<compile_context>
chip_gen: v7x
topology: tpu7x:2x2x1
jax: 0.10.0
libtpu: 0.0.40
codegen_flags: <defaults>
</compile_context>

<pallas_src>
import functools

import jax
import jax.numpy as jnp
from jax import lax
from jax.experimental import pallas as pl
from jax.experimental.pallas import tpu as pltpu


# --------------------------- x -> gates precompute ---------------------------
def _x_gates_kernel(xp_ref, w_ref, b_ref, out_ref, patch_ref, *, kh, kw, cin, hid):
    """Input->gates contribution (conv_x(x_t) + bias) for one (t, b) frame.

    xp_ref : (1, H+kh-1, W+kw-1, cin)  spatially zero-padded frame (f32)
    w_ref  : (kh*kw*cin, 4*hid)        x-part of the conv weight (bf16)
    b_ref  : (1, 4*hid)                conv bias (f32)
    out_ref: (H*W, 4*hid)              gate pre-activations from x (f32)
    patch  : (H*W, kh*kw*cin)          im2col scratch (f32)
    """
    _, Hp, Wp, _ = xp_ref.shape
    H = Hp - (kh - 1)
    W = Wp - (kw - 1)
    xp = xp_ref[0]                                         # (Hp, Wp, cin)
    for dy in range(kh):
        for dx in range(kw):
            k = dy * kw + dx
            win = xp[dy:dy + H, dx:dx + W, :]               # (H, W, cin)
            patch_ref[:, k * cin:(k + 1) * cin] = win.reshape(H * W, cin)
    acc = jnp.dot(patch_ref[...].astype(jnp.bfloat16), w_ref[...],
                  preferred_element_type=jnp.float32)       # (H*W, 4*hid) f32
    out_ref[...] = acc + b_ref[...]


def _x_gates(frames_padded, w_x, bias, *, kh, kw, hid):
    F, Hp, Wp, cin = frames_padded.shape
    H = Hp - (kh - 1)
    W = Wp - (kw - 1)
    kern = functools.partial(_x_gates_kernel, kh=kh, kw=kw, cin=cin, hid=hid)
    flops = 2 * F * H * W * (kh * kw * cin) * (4 * hid)
    cost = pl.CostEstimate(
        flops=flops, transcendentals=0,
        bytes_accessed=frames_padded.size * 4 + w_x.size * 2 + F * H * W * 4 * hid * 4)
    return pl.pallas_call(
        kern,
        out_shape=jax.ShapeDtypeStruct((F * H * W, 4 * hid), jnp.float32),
        grid=(F,),
        in_specs=[
            pl.BlockSpec((1, Hp, Wp, cin), lambda f: (f, 0, 0, 0)),
            pl.BlockSpec((kh * kw * cin, 4 * hid), lambda f: (0, 0)),
            pl.BlockSpec((1, 4 * hid), lambda f: (0, 0)),
        ],
        out_specs=pl.BlockSpec((H * W, 4 * hid), lambda f: (f, 0)),
        scratch_shapes=[pltpu.VMEM((H * W, kh * kw * cin), jnp.float32)],
        compiler_params=pltpu.CompilerParams(dimension_semantics=("parallel",)),
        cost_estimate=cost,
    )(frames_padded, w_x, bias)


# ----------------------- recurrent ConvLSTM time loop ------------------------
def _recurrence_kernel(xg_ref, w_ref, hseq_ref, hpad_ref, c_ref, patch_ref,
                       *, kh, kw, hid):
    """One grid step = one time step; h/c stay resident in VMEM scratch.

    xg_ref : (1, M, 4*hid)            precomputed x->gates (+bias) for step t (f32)
    w_ref  : (kh*kw*hid, 4*hid)       h-part of the conv weight (bf16)
    hseq_ref: (1, M, hid)             hidden state output for step t (f32)
    hpad_ref: (B, H+kh-1, W+kw-1, hid) zero-padded hidden state (VMEM scratch)
    c_ref  : (M, hid)                 cell state (VMEM scratch)
    patch  : (M, kh*kw*hid)           im2col scratch for the h convolution
    """
    B, Hp, Wp, _ = hpad_ref.shape
    ph, pw = kh // 2, kw // 2
    H = Hp - 2 * ph
    W = Wp - 2 * pw
    M = B * H * W
    t = pl.program_id(0)

    @pl.when(t == 0)
    def _init():
        hpad_ref[...] = jnp.zeros_like(hpad_ref)
        c_ref[...] = jnp.zeros_like(c_ref)

    # Fused im2col of the (zero-padded) previous hidden state: K = kh*kw*hid.
    hp = hpad_ref[...]                                       # (B, Hp, Wp, hid)
    for dy in range(kh):
        for dx in range(kw):
            k = dy * kw + dx
            win = hp[:, dy:dy + H, dx:dx + W, :]             # (B, H, W, hid)
            patch_ref[:, k * hid:(k + 1) * hid] = win.reshape(M, hid)

    # gates = conv_x(x_t) + bias (precomputed) + conv_h(h_{t-1}); one MXU matmul.
    gates = xg_ref[0] + jnp.dot(patch_ref[...].astype(jnp.bfloat16), w_ref[...],
                                preferred_element_type=jnp.float32)  # (M, 4*hid)

    # Full-width activations + lane select (gate order i, f, o, g as in torch.chunk).
    lane = lax.broadcasted_iota(jnp.int32, gates.shape, dimension=1)
    act = jnp.where(lane < 3 * hid, jax.nn.sigmoid(gates), jnp.tanh(gates))
    i = act[:, 0 * hid:1 * hid]
    f = act[:, 1 * hid:2 * hid]
    o = act[:, 2 * hid:3 * hid]
    g = act[:, 3 * hid:4 * hid]

    c_next = f * c_ref[...] + i * g                          # f32 state math
    h_next = o * jnp.tanh(c_next)

    c_ref[...] = c_next
    hpad_ref[:, ph:ph + H, pw:pw + W, :] = h_next.reshape(B, H, W, hid)
    hseq_ref[0] = h_next


def _recurrence(xg, w_h, *, kh, kw, hid, B, H, W):
    T, M, _ = xg.shape
    ph, pw = kh // 2, kw // 2
    kern = functools.partial(_recurrence_kernel, kh=kh, kw=kw, hid=hid)
    flops = 2 * T * M * (kh * kw * hid) * (4 * hid)
    cost = pl.CostEstimate(
        flops=flops, transcendentals=3 * T * M * 4 * hid,
        bytes_accessed=xg.size * 4 + w_h.size * 2 + T * M * hid * 4)
    return pl.pallas_call(
        kern,
        out_shape=jax.ShapeDtypeStruct((T, M, hid), jnp.float32),
        grid=(T,),
        in_specs=[
            pl.BlockSpec((1, M, 4 * hid), lambda t: (t, 0, 0)),
            pl.BlockSpec((kh * kw * hid, 4 * hid), lambda t: (0, 0)),
        ],
        out_specs=pl.BlockSpec((1, M, hid), lambda t: (t, 0, 0)),
        scratch_shapes=[
            pltpu.VMEM((B, H + 2 * ph, W + 2 * pw, hid), jnp.float32),  # h (padded)
            pltpu.VMEM((M, hid), jnp.float32),                          # c
            pltpu.VMEM((M, kh * kw * hid), jnp.float32),                # im2col patches
        ],
        compiler_params=pltpu.CompilerParams(dimension_semantics=("arbitrary",)),
        cost_estimate=cost,
    )(xg, w_h)


# --------------------------------- JAX glue -----------------------------------
def init_convlstm_params(key, in_ch, hid_ch, k_size, layers):
    """Synthetic init; shapes/scale match nn.Conv2d(in+hid, 4*hid, k). Weights bf16."""
    kh, kw = k_size
    params = []
    for layer in range(layers):
        cin = in_ch if layer == 0 else hid_ch
        ct = cin + hid_ch
        fan_in = ct * kh * kw
        bound = 1.0 / jnp.sqrt(float(fan_in))
        key, k_w, k_b = jax.random.split(key, 3)
        # combined weight (kh*kw, cin+hid, 4*hid); split into x-part and h-part.
        w = jax.random.uniform(k_w, (kh * kw, ct, 4 * hid_ch),
                               minval=-bound, maxval=bound, dtype=jnp.float32)
        w_x = w[:, :cin, :].reshape(kh * kw * cin, 4 * hid_ch).astype(jnp.bfloat16)
        w_h = w[:, cin:, :].reshape(kh * kw * hid_ch, 4 * hid_ch).astype(jnp.bfloat16)
        b = jax.random.uniform(k_b, (1, 4 * hid_ch),
                               minval=-bound, maxval=bound, dtype=jnp.float32)
        params.append((w_x, w_h, b))
    return params


def convlstm_forward(x, params, *, hid_ch, k_size):
    """x: (B, T, C_in, H, W) float32 (batch_first). Returns (B, hid, H, W) NCHW."""
    kh, kw = k_size
    ph, pw = kh // 2, kw // 2
    B, T, _, H, W = x.shape
    M = B * H * W

    # NCHW frames -> (T, B, H, W, C) for the kernels.
    seq = jnp.transpose(x, (1, 0, 3, 4, 2)).astype(jnp.float32)
    for (w_x, w_h, b) in params:
        cin = seq.shape[-1]
        frames = seq.reshape(T * B, H, W, cin)
        frames_p = jnp.pad(frames, ((0, 0), (ph, ph), (pw, pw), (0, 0)))
        xg = _x_gates(frames_p, w_x, b, kh=kh, kw=kw, hid=hid_ch)      # (T*B*H*W, 4*hid)
        xg = xg.reshape(T, M, 4 * hid_ch)
        h_seq = _recurrence(xg, w_h, kh=kh, kw=kw, hid=hid_ch,
                            B=B, H=H, W=W)                             # (T, M, hid)
        seq = h_seq.reshape(T, B, H, W, hid_ch)
    last = seq[-1]                                # (B, H, W, hid)
    return jnp.transpose(last, (0, 3, 1, 2))      # (B, hid, H, W) -- NCHW like torch


# --------------------------- pure-JAX reference --------------------------------
def _reference_forward(x, params, *, hid_ch, k_size):
    kh, kw = k_size
    ph, pw = kh // 2, kw // 2
    B, T, _, H, W = x.shape
    seq = x.astype(jnp.float32)
    for (w_x, w_h, b) in params:
        cin = w_x.shape[0] // (kh * kw)
        wx = w_x.astype(jnp.float32).reshape(kh, kw, cin, 4 * hid_ch)
        wh = w_h.astype(jnp.float32).reshape(kh, kw, hid_ch, 4 * hid_ch)
        w_full = jnp.concatenate([wx, wh], axis=2)          # (kh, kw, cin+hid, 4*hid)
        h = jnp.zeros((B, hid_ch, H, W), jnp.float32)
        c = jnp.zeros((B, hid_ch, H, W), jnp.float32)
        outs = []
        for t in range(T):
            comb = jnp.concatenate([seq[:, t], h], axis=1)
            g = lax.conv_general_dilated(
                comb, w_full, window_strides=(1, 1),
                padding=((ph, ph), (pw, pw)),
                dimension_numbers=("NCHW", "HWIO", "NCHW"))
            g = g + b.reshape(1, 4 * hid_ch, 1, 1)
            i, f, o, gg = jnp.split(g, 4, axis=1)
            i, f, o = jax.nn.sigmoid(i), jax.nn.sigmoid(f), jax.nn.sigmoid(o)
            gg = jnp.tanh(gg)
            c = f * c + i * gg
            h = o * jnp.tanh(c)
            outs.append(h)
        seq = jnp.stack(outs, axis=1)
    return seq[:, -1]


# ----------------------------------- main --------------------------------------
if __name__ == "__main__":
    B, T, C_IN, H, W = 2, 8, 4, 16, 16
    HID = 32
    K = (3, 3)
    LAYERS = 1

    key = jax.random.PRNGKey(0)
    key, xkey = jax.random.split(key)
    x = jax.random.normal(xkey, (B, T, C_IN, H, W), dtype=jnp.float32)
    params = init_convlstm_params(key, C_IN, HID, K, LAYERS)

    fwd = jax.jit(functools.partial(convlstm_forward, hid_ch=HID, k_size=K))
    out = jax.block_until_ready(fwd(x, params))

    assert out.shape == (B, HID, H, W), out.shape
    assert bool(jnp.all(jnp.isfinite(out)))

    # Numerical parity vs. a pure-JAX/XLA reference (same bf16-stored weights;
    # only the in-kernel bf16 MXU operand cast differs -> loose tolerance).
    ref = jax.jit(functools.partial(_reference_forward, hid_ch=HID, k_size=K))(x, params)
    max_err = float(jnp.max(jnp.abs(out - jax.block_until_ready(ref))))
    assert max_err < 3e-2, f"max abs error vs reference: {max_err}"

    print("KERNEL_OK")
</pallas_src>

<mosaic_0001>
module attributes {stable_mosaic.version = 11 : i64} {
  func.func @_recurrence_kernel(%arg0: i32, %arg1: memref<1x512x128xf32, #tpu.memory_space<vmem>>, %arg2: memref<288x128xbf16, #tpu.memory_space<vmem>>, %arg3: memref<1x512x32xf32, #tpu.memory_space<vmem>>, %arg4: memref<2x18x18x32xf32, #tpu.memory_space<vmem>>, %arg5: memref<512x32xf32, #tpu.memory_space<vmem>>, %arg6: memref<512x288xf32, #tpu.memory_space<vmem>>) attributes {dimension_semantics = [#tpu.dimension_semantics<arbitrary>], iteration_bounds = array<i64: 8>, scalar_prefetch = 0 : i64, scratch_operands = 3 : i64, tpu.core_type = #tpu.core_type<tc>, window_params = [{transform_indices = @transform_0, window_bounds = array<i64: 1, 512, 128>}, {pipeline_mode = #tpu.pipeline_mode<synchronous>, transform_indices = @transform_1, window_bounds = array<i64: 288, 128>}, {transform_indices = @transform_2, window_bounds = array<i64: 1, 512, 32>}]} {
    %c0_i32 = arith.constant 0 : i32
    %0 = arith.cmpi eq, %arg0, %c0_i32 : i32
    %1 = arith.extui %0 : i1 to i32
    %c0_i32_0 = arith.constant 0 : i32
    %2 = arith.cmpi ne, %1, %c0_i32_0 : i32
    scf.if %2 {
      %cst_32 = arith.constant 0.000000e+00 : f32
      %64 = vector.broadcast %cst_32 : f32 to vector<2x18x18x32xf32>
      %c0_33 = arith.constant 0 : index
      %c0_34 = arith.constant 0 : index
      %c0_35 = arith.constant 0 : index
      %c0_36 = arith.constant 0 : index
      %65 = vector.load %arg4[%c0_33, %c0_34, %c0_35, %c0_36] : memref<2x18x18x32xf32, #tpu.memory_space<vmem>>, vector<2x18x18x32xf32>
      tpu.vector_store %arg4[%c0_33, %c0_34, %c0_35, %c0_36], %64 {strides = array<i32>} : memref<2x18x18x32xf32, #tpu.memory_space<vmem>>, vector<2x18x18x32xf32>,
      %cst_37 = arith.constant 0.000000e+00 : f32
      %66 = vector.broadcast %cst_37 : f32 to vector<512x32xf32>
      %c0_38 = arith.constant 0 : index
      %c0_39 = arith.constant 0 : index
      %67 = vector.load %arg5[%c0_38, %c0_39] : memref<512x32xf32, #tpu.memory_space<vmem>>, vector<512x32xf32>
      tpu.vector_store %arg5[%c0_38, %c0_39], %66 {strides = array<i32>} : memref<512x32xf32, #tpu.memory_space<vmem>>, vector<512x32xf32>,
    } else {
    }
    %c0 = arith.constant 0 : index
    %c0_1 = arith.constant 0 : index
    %c0_2 = arith.constant 0 : index
    %c0_3 = arith.constant 0 : index
    %3 = vector.load %arg4[%c0, %c0_1, %c0_2, %c0_3] : memref<2x18x18x32xf32, #tpu.memory_space<vmem>>, vector<2x18x18x32xf32>
    %4 = vector.extract_strided_slice %3 {offsets = [0, 0, 0, 0], sizes = [2, 16, 16, 32], strides = [1, 1, 1, 1]} : vector<2x18x18x32xf32> to vector<2x16x16x32xf32>
    %5 = vector.shape_cast %4 : vector<2x16x16x32xf32> to vector<512x32xf32>
    %c0_4 = arith.constant 0 : index
    %c0_5 = arith.constant 0 : index
    %6 = vector.load %arg6[%c0_4, %c0_5] : memref<512x288xf32, #tpu.memory_space<vmem>>, vector<512x32xf32>
    tpu.vector_store %arg6[%c0_4, %c0_5], %5 {strides = array<i32>} : memref<512x288xf32, #tpu.memory_space<vmem>>, vector<512x32xf32>,
    %7 = vector.extract_strided_slice %3 {offsets = [0, 0, 1, 0], sizes = [2, 16, 16, 32], strides = [1, 1, 1, 1]} : vector<2x18x18x32xf32> to vector<2x16x16x32xf32>
    %8 = vector.shape_cast %7 : vector<2x16x16x32xf32> to vector<512x32xf32>
    %c0_6 = arith.constant 0 : index
    %c32 = arith.constant 32 : index
    %9 = vector.load %arg6[%c0_6, %c32] : memref<512x288xf32, #tpu.memory_space<vmem>>, vector<512x32xf32>
    tpu.vector_store %arg6[%c0_6, %c32], %8 {strides = array<i32>} : memref<512x288xf32, #tpu.memory_space<vmem>>, vector<512x32xf32>,
    %10 = vector.extract_strided_slice %3 {offsets = [0, 0, 2, 0], sizes = [2, 16, 16, 32], strides = [1, 1, 1, 1]} : vector<2x18x18x32xf32> to vector<2x16x16x32xf32>
    %11 = vector.shape_cast %10 : vector<2x16x16x32xf32> to vector<512x32xf32>
    %c0_7 = arith.constant 0 : index
    %c64 = arith.constant 64 : index
    %12 = vector.load %arg6[%c0_7, %c64] : memref<512x288xf32, #tpu.memory_space<vmem>>, vector<512x32xf32>
    tpu.vector_store %arg6[%c0_7, %c64], %11 {strides = array<i32>} : memref<512x288xf32, #tpu.memory_space<vmem>>, vector<512x32xf32>,
    %13 = vector.extract_strided_slice %3 {offsets = [0, 1, 0, 0], sizes = [2, 16, 16, 32], strides = [1, 1, 1, 1]} : vector<2x18x18x32xf32> to vector<2x16x16x32xf32>
    %14 = vector.shape_cast %13 : vector<2x16x16x32xf32> to vector<512x32xf32>
    %c0_8 = arith.constant 0 : index
    %c96 = arith.constant 96 : index
    %15 = vector.load %arg6[%c0_8, %c96] : memref<512x288xf32, #tpu.memory_space<vmem>>, vector<512x32xf32>
    tpu.vector_store %arg6[%c0_8, %c96], %14 {strides = array<i32>} : memref<512x288xf32, #tpu.memory_space<vmem>>, vector<512x32xf32>,
    %16 = vector.extract_strided_slice %3 {offsets = [0, 1, 1, 0], sizes = [2, 16, 16, 32], strides = [1, 1, 1, 1]} : vector<2x18x18x32xf32> to vector<2x16x16x32xf32>
    %17 = vector.shape_cast %16 : vector<2x16x16x32xf32> to vector<512x32xf32>
    %c0_9 = arith.constant 0 : index
    %c128 = arith.constant 128 : index
    %18 = vector.load %arg6[%c0_9, %c128] : memref<512x288xf32, #tpu.memory_space<vmem>>, vector<512x32xf32>
    tpu.vector_store %arg6[%c0_9, %c128], %17 {strides = array<i32>} : memref<512x288xf32, #tpu.memory_space<vmem>>, vector<512x32xf32>,
    %19 = vector.extract_strided_slice %3 {offsets = [0, 1, 2, 0], sizes = [2, 16, 16, 32], strides = [1, 1, 1, 1]} : vector<2x18x18x32xf32> to vector<2x16x16x32xf32>
    %20 = vector.shape_cast %19 : vector<2x16x16x32xf32> to vector<512x32xf32>
    %c0_10 = arith.constant 0 : index
    %c160 = arith.constant 160 : index
    %21 = vector.load %arg6[%c0_10, %c160] : memref<512x288xf32, #tpu.memory_space<vmem>>, vector<512x32xf32>
    tpu.vector_store %arg6[%c0_10, %c160], %20 {strides = array<i32>} : memref<512x288xf32, #tpu.memory_space<vmem>>, vector<512x32xf32>,
    %22 = vector.extract_strided_slice %3 {offsets = [0, 2, 0, 0], sizes = [2, 16, 16, 32], strides = [1, 1, 1, 1]} : vector<2x18x18x32xf32> to vector<2x16x16x32xf32>
    %23 = vector.shape_cast %22 : vector<2x16x16x32xf32> to vector<512x32xf32>
    %c0_11 = arith.constant 0 : index
    %c192 = arith.constant 192 : index
    %24 = vector.load %arg6[%c0_11, %c192] : memref<512x288xf32, #tpu.memory_space<vmem>>, vector<512x32xf32>
    tpu.vector_store %arg6[%c0_11, %c192], %23 {strides = array<i32>} : memref<512x288xf32, #tpu.memory_space<vmem>>, vector<512x32xf32>,
    %25 = vector.extract_strided_slice %3 {offsets = [0, 2, 1, 0], sizes = [2, 16, 16, 32], strides = [1, 1, 1, 1]} : vector<2x18x18x32xf32> to vector<2x16x16x32xf32>
    %26 = vector.shape_cast %25 : vector<2x16x16x32xf32> to vector<512x32xf32>
    %c0_12 = arith.constant 0 : index
    %c224 = arith.constant 224 : index
    %27 = vector.load %arg6[%c0_12, %c224] : memref<512x288xf32, #tpu.memory_space<vmem>>, vector<512x32xf32>
    tpu.vector_store %arg6[%c0_12, %c224], %26 {strides = array<i32>} : memref<512x288xf32, #tpu.memory_space<vmem>>, vector<512x32xf32>,
    %28 = vector.extract_strided_slice %3 {offsets = [0, 2, 2, 0], sizes = [2, 16, 16, 32], strides = [1, 1, 1, 1]} : vector<2x18x18x32xf32> to vector<2x16x16x32xf32>
    %29 = vector.shape_cast %28 : vector<2x16x16x32xf32> to vector<512x32xf32>
    %c0_13 = arith.constant 0 : index
    %c256 = arith.constant 256 : index
    %30 = vector.load %arg6[%c0_13, %c256] : memref<512x288xf32, #tpu.memory_space<vmem>>, vector<512x32xf32>
    tpu.vector_store %arg6[%c0_13, %c256], %29 {strides = array<i32>} : memref<512x288xf32, #tpu.memory_space<vmem>>, vector<512x32xf32>,
    %c0_14 = arith.constant 0 : index
    %c0_15 = arith.constant 0 : index
    %c0_16 = arith.constant 0 : index
    %31 = vector.load %arg1[%c0_14, %c0_15, %c0_16] : memref<1x512x128xf32, #tpu.memory_space<vmem>>, vector<1x512x128xf32>
    %32 = vector.shape_cast %31 : vector<1x512x128xf32> to vector<512x128xf32>
    %c0_17 = arith.constant 0 : index
    %c0_18 = arith.constant 0 : index
    %33 = vector.load %arg6[%c0_17, %c0_18] : memref<512x288xf32, #tpu.memory_space<vmem>>, vector<512x288xf32>
    %34 = arith.truncf %33 : vector<512x288xf32> to vector<512x288xbf16>
    %c0_19 = arith.constant 0 : index
    %c0_20 = arith.constant 0 : index
    %35 = vector.load %arg2[%c0_19, %c0_20] : memref<288x128xbf16, #tpu.memory_space<vmem>>, vector<288x128xbf16>
    %cst = arith.constant dense<0.000000e+00> : vector<512x128xf32>
    %36 = tpu.matmul %34, %35, %cst {dimension_numbers = #tpu.dot_dimension_numbers<[1], [0], [0], [1], [0, 0, 1, 1], [], []>} : vector<512x288xbf16>, vector<288x128xbf16>, vector<512x128xf32> -> vector<512x128xf32>
    %37 = arith.addf %32, %36 : vector<512x128xf32>
    %38 = tpu.iota {dimensions = array<i32: 1>} : vector<512x128xi32>
    %c96_i32 = arith.constant 96 : i32
    %39 = vector.broadcast %c96_i32 : i32 to vector<512x128xi32>
    %40 = arith.cmpi slt, %38, %39 : vector<512x128xi32>
    %41 = arith.negf %37 : vector<512x128xf32>
    %42 = math.exp %41 : vector<512x128xf32>
    %cst_21 = arith.constant 1.000000e+00 : f32
    %43 = vector.broadcast %cst_21 : f32 to vector<512x128xf32>
    %44 = arith.addf %43, %42 : vector<512x128xf32>
    %45 = arith.divf %43, %44 : vector<512x128xf32>
    %46 = math.tanh %37 : vector<512x128xf32>
    %47 = arith.select %40, %45, %46 : vector<512x128xi1>, vector<512x128xf32>
    %48 = vector.extract_strided_slice %47 {offsets = [0, 0], sizes = [512, 32], strides = [1, 1]} : vector<512x128xf32> to vector<512x32xf32>
    %49 = vector.extract_strided_slice %47 {offsets = [0, 32], sizes = [512, 32], strides = [1, 1]} : vector<512x128xf32> to vector<512x32xf32>
    %50 = vector.extract_strided_slice %47 {offsets = [0, 64], sizes = [512, 32], strides = [1, 1]} : vector<512x128xf32> to vector<512x32xf32>
    %51 = vector.extract_strided_slice %47 {offsets = [0, 96], sizes = [512, 32], strides = [1, 1]} : vector<512x128xf32> to vector<512x32xf32>
    %c0_22 = arith.constant 0 : index
    %c0_23 = arith.constant 0 : index
    %52 = vector.load %arg5[%c0_22, %c0_23] : memref<512x32xf32, #tpu.memory_space<vmem>>, vector<512x32xf32>
    %53 = arith.mulf %49, %52 : vector<512x32xf32>
    %54 = arith.mulf %48, %51 : vector<512x32xf32>
    %55 = arith.addf %53, %54 : vector<512x32xf32>
    %56 = math.tanh %55 : vector<512x32xf32>
    %57 = arith.mulf %50, %56 : vector<512x32xf32>
    %c0_24 = arith.constant 0 : index
    %c0_25 = arith.constant 0 : index
    %58 = vector.load %arg5[%c0_24, %c0_25] : memref<512x32xf32, #tpu.memory_space<vmem>>, vector<512x32xf32>
    tpu.vector_store %arg5[%c0_24, %c0_25], %55 {strides = array<i32>} : memref<512x32xf32, #tpu.memory_space<vmem>>, vector<512x32xf32>,
    %59 = vector.shape_cast %57 : vector<512x32xf32> to vector<2x16x16x32xf32>
    %c0_26 = arith.constant 0 : index
    %c1 = arith.constant 1 : index
    %c1_27 = arith.constant 1 : index
    %c0_28 = arith.constant 0 : index
    %60 = vector.load %arg4[%c0_26, %c1, %c1_27, %c0_28] : memref<2x18x18x32xf32, #tpu.memory_space<vmem>>, vector<2x16x16x32xf32>
    tpu.vector_store %arg4[%c0_26, %c1, %c1_27, %c0_28], %59 {strides = array<i32>} : memref<2x18x18x32xf32, #tpu.memory_space<vmem>>, vector<2x16x16x32xf32>,
    %c0_29 = arith.constant 0 : index
    %c0_30 = arith.constant 0 : index
    %c0_31 = arith.constant 0 : index
    %61 = vector.load %arg3[%c0_29, %c0_30, %c0_31] : memref<1x512x32xf32, #tpu.memory_space<vmem>>, vector<1x512x32xf32>
    %62 = vector.shape_cast %61 : vector<1x512x32xf32> to vector<512x32xf32>
    %63 = vector.shape_cast %57 : vector<512x32xf32> to vector<1x512x32xf32>
    tpu.vector_store %arg3[%c0_29, %c0_30, %c0_31], %63 {strides = array<i32>} : memref<1x512x32xf32, #tpu.memory_space<vmem>>, vector<1x512x32xf32>,
    return
  }
  func.func @transform_0(%arg0: i32) -> (i32, i32, i32) {
    %c0_i32 = arith.constant 0 : i32
    %c0_i32_0 = arith.constant 0 : i32
    %c0_i32_1 = arith.constant 0 : i32
    return %arg0, %c0_i32, %c0_i32_0 : i32, i32, i32
  }
  func.func @transform_1(%arg0: i32) -> (i32, i32) {
    %c0_i32 = arith.constant 0 : i32
    %c0_i32_0 = arith.constant 0 : i32
    %c0_i32_1 = arith.constant 0 : i32
    return %c0_i32, %c0_i32_0 : i32, i32
  }
  func.func @transform_2(%arg0: i32) -> (i32, i32, i32) {
    %c0_i32 = arith.constant 0 : i32
    %c0_i32_0 = arith.constant 0 : i32
    %c0_i32_1 = arith.constant 0 : i32
    return %arg0, %c0_i32, %c0_i32_0 : i32, i32, i32
  }
}

module attributes {stable_mosaic.version = 11 : i64} {
  func.func @_x_gates_kernel(%arg0: i32, %arg1: memref<1x18x18x4xf32, #tpu.memory_space<vmem>>, %arg2: memref<36x128xbf16, #tpu.memory_space<vmem>>, %arg3: memref<1x128xf32, #tpu.memory_space<vmem>>, %arg4: memref<256x128xf32, #tpu.memory_space<vmem>>, %arg5: memref<256x36xf32, #tpu.memory_space<vmem>>) attributes {dimension_semantics = [#tpu.dimension_semantics<parallel>], iteration_bounds = array<i64: 16>, scalar_prefetch = 0 : i64, scratch_operands = 1 : i64, tpu.core_type = #tpu.core_type<tc>, window_params = [{transform_indices = @transform_0, window_bounds = array<i64: 1, 18, 18, 4>}, {pipeline_mode = #tpu.pipeline_mode<synchronous>, transform_indices = @transform_1, window_bounds = array<i64: 36, 128>}, {pipeline_mode = #tpu.pipeline_mode<synchronous>, transform_indices = @transform_2, window_bounds = array<i64: 1, 128>}, {transform_indices = @transform_3, window_bounds = array<i64: 256, 128>}]} {
    %c0 = arith.constant 0 : index
    %c0_0 = arith.constant 0 : index
    %c0_1 = arith.constant 0 : index
    %c0_2 = arith.constant 0 : index
    %0 = vector.load %arg1[%c0, %c0_0, %c0_1, %c0_2] : memref<1x18x18x4xf32, #tpu.memory_space<vmem>>, vector<1x18x18x4xf32>
    %1 = vector.shape_cast %0 : vector<1x18x18x4xf32> to vector<18x18x4xf32>
    %2 = vector.extract_strided_slice %1 {offsets = [0, 0, 0], sizes = [16, 16, 4], strides = [1, 1, 1]} : vector<18x18x4xf32> to vector<16x16x4xf32>
    %3 = vector.shape_cast %2 : vector<16x16x4xf32> to vector<256x4xf32>
    %c0_3 = arith.constant 0 : index
    %c0_4 = arith.constant 0 : index
    %4 = vector.load %arg5[%c0_3, %c0_4] : memref<256x36xf32, #tpu.memory_space<vmem>>, vector<256x4xf32>
    tpu.vector_store %arg5[%c0_3, %c0_4], %3 {strides = array<i32>} : memref<256x36xf32, #tpu.memory_space<vmem>>, vector<256x4xf32>,
    %5 = vector.extract_strided_slice %1 {offsets = [0, 1, 0], sizes = [16, 16, 4], strides = [1, 1, 1]} : vector<18x18x4xf32> to vector<16x16x4xf32>
    %6 = vector.shape_cast %5 : vector<16x16x4xf32> to vector<256x4xf32>
    %c0_5 = arith.constant 0 : index
    %c4 = arith.constant 4 : index
    %7 = vector.load %arg5[%c0_5, %c4] : memref<256x36xf32, #tpu.memory_space<vmem>>, vector<256x4xf32>
    tpu.vector_store %arg5[%c0_5, %c4], %6 {strides = array<i32>} : memref<256x36xf32, #tpu.memory_space<vmem>>, vector<256x4xf32>,
    %8 = vector.extract_strided_slice %1 {offsets = [0, 2, 0], sizes = [16, 16, 4], strides = [1, 1, 1]} : vector<18x18x4xf32> to vector<16x16x4xf32>
    %9 = vector.shape_cast %8 : vector<16x16x4xf32> to vector<256x4xf32>
    %c0_6 = arith.constant 0 : index
    %c8 = arith.constant 8 : index
    %10 = vector.load %arg5[%c0_6, %c8] : memref<256x36xf32, #tpu.memory_space<vmem>>, vector<256x4xf32>
    tpu.vector_store %arg5[%c0_6, %c8], %9 {strides = array<i32>} : memref<256x36xf32, #tpu.memory_space<vmem>>, vector<256x4xf32>,
    %11 = vector.extract_strided_slice %1 {offsets = [1, 0, 0], sizes = [16, 16, 4], strides = [1, 1, 1]} : vector<18x18x4xf32> to vector<16x16x4xf32>
    %12 = vector.shape_cast %11 : vector<16x16x4xf32> to vector<256x4xf32>
    %c0_7 = arith.constant 0 : index
    %c12 = arith.constant 12 : index
    %13 = vector.load %arg5[%c0_7, %c12] : memref<256x36xf32, #tpu.memory_space<vmem>>, vector<256x4xf32>
    tpu.vector_store %arg5[%c0_7, %c12], %12 {strides = array<i32>} : memref<256x36xf32, #tpu.memory_space<vmem>>, vector<256x4xf32>,
    %14 = vector.extract_strided_slice %1 {offsets = [1, 1, 0], sizes = [16, 16, 4], strides = [1, 1, 1]} : vector<18x18x4xf32> to vector<16x16x4xf32>
    %15 = vector.shape_cast %14 : vector<16x16x4xf32> to vector<256x4xf32>
    %c0_8 = arith.constant 0 : index
    %c16 = arith.constant 16 : index
    %16 = vector.load %arg5[%c0_8, %c16] : memref<256x36xf32, #tpu.memory_space<vmem>>, vector<256x4xf32>
    tpu.vector_store %arg5[%c0_8, %c16], %15 {strides = array<i32>} : memref<256x36xf32, #tpu.memory_space<vmem>>, vector<256x4xf32>,
    %17 = vector.extract_strided_slice %1 {offsets = [1, 2, 0], sizes = [16, 16, 4], strides = [1, 1, 1]} : vector<18x18x4xf32> to vector<16x16x4xf32>
    %18 = vector.shape_cast %17 : vector<16x16x4xf32> to vector<256x4xf32>
    %c0_9 = arith.constant 0 : index
    %c20 = arith.constant 20 : index
    %19 = vector.load %arg5[%c0_9, %c20] : memref<256x36xf32, #tpu.memory_space<vmem>>, vector<256x4xf32>
    tpu.vector_store %arg5[%c0_9, %c20], %18 {strides = array<i32>} : memref<256x36xf32, #tpu.memory_space<vmem>>, vector<256x4xf32>,
    %20 = vector.extract_strided_slice %1 {offsets = [2, 0, 0], sizes = [16, 16, 4], strides = [1, 1, 1]} : vector<18x18x4xf32> to vector<16x16x4xf32>
    %21 = vector.shape_cast %20 : vector<16x16x4xf32> to vector<256x4xf32>
    %c0_10 = arith.constant 0 : index
    %c24 = arith.constant 24 : index
    %22 = vector.load %arg5[%c0_10, %c24] : memref<256x36xf32, #tpu.memory_space<vmem>>, vector<256x4xf32>
    tpu.vector_store %arg5[%c0_10, %c24], %21 {strides = array<i32>} : memref<256x36xf32, #tpu.memory_space<vmem>>, vector<256x4xf32>,
    %23 = vector.extract_strided_slice %1 {offsets = [2, 1, 0], sizes = [16, 16, 4], strides = [1, 1, 1]} : vector<18x18x4xf32> to vector<16x16x4xf32>
    %24 = vector.shape_cast %23 : vector<16x16x4xf32> to vector<256x4xf32>
    %c0_11 = arith.constant 0 : index
    %c28 = arith.constant 28 : index
    %25 = vector.load %arg5[%c0_11, %c28] : memref<256x36xf32, #tpu.memory_space<vmem>>, vector<256x4xf32>
    tpu.vector_store %arg5[%c0_11, %c28], %24 {strides = array<i32>} : memref<256x36xf32, #tpu.memory_space<vmem>>, vector<256x4xf32>,
    %26 = vector.extract_strided_slice %1 {offsets = [2, 2, 0], sizes = [16, 16, 4], strides = [1, 1, 1]} : vector<18x18x4xf32> to vector<16x16x4xf32>
    %27 = vector.shape_cast %26 : vector<16x16x4xf32> to vector<256x4xf32>
    %c0_12 = arith.constant 0 : index
    %c32 = arith.constant 32 : index
    %28 = vector.load %arg5[%c0_12, %c32] : memref<256x36xf32, #tpu.memory_space<vmem>>, vector<256x4xf32>
    tpu.vector_store %arg5[%c0_12, %c32], %27 {strides = array<i32>} : memref<256x36xf32, #tpu.memory_space<vmem>>, vector<256x4xf32>,
    %c0_13 = arith.constant 0 : index
    %c0_14 = arith.constant 0 : index
    %29 = vector.load %arg5[%c0_13, %c0_14] : memref<256x36xf32, #tpu.memory_space<vmem>>, vector<256x36xf32>
    %30 = arith.truncf %29 : vector<256x36xf32> to vector<256x36xbf16>
    %c0_15 = arith.constant 0 : index
    %c0_16 = arith.constant 0 : index
    %31 = vector.load %arg2[%c0_15, %c0_16] : memref<36x128xbf16, #tpu.memory_space<vmem>>, vector<36x128xbf16>
    %cst = arith.constant dense<0.000000e+00> : vector<256x128xf32>
    %32 = tpu.matmul %30, %31, %cst {dimension_numbers = #tpu.dot_dimension_numbers<[1], [0], [0], [1], [0, 0, 1, 1], [], []>} : vector<256x36xbf16>, vector<36x128xbf16>, vector<256x128xf32> -> vector<256x128xf32>
    %c0_17 = arith.constant 0 : index
    %c0_18 = arith.constant 0 : index
    %33 = vector.load %arg3[%c0_17, %c0_18] : memref<1x128xf32, #tpu.memory_space<vmem>>, vector<1x128xf32>
    %34 = vector.broadcast %33 : vector<1x128xf32> to vector<256x128xf32>
    %35 = arith.addf %32, %34 : vector<256x128xf32>
    %c0_19 = arith.constant 0 : index
    %c0_20 = arith.constant 0 : index
    %36 = vector.load %arg4[%c0_19, %c0_20] : memref<256x128xf32, #tpu.memory_space<vmem>>, vector<256x128xf32>
    tpu.vector_store %arg4[%c0_19, %c0_20], %35 {strides = array<i32>} : memref<256x128xf32, #tpu.memory_space<vmem>>, vector<256x128xf32>,
    return
  }
  func.func @transform_0(%arg0: i32) -> (i32, i32, i32, i32) {
    %c0_i32 = arith.constant 0 : i32
    %c0_i32_0 = arith.constant 0 : i32
    %c0_i32_1 = arith.constant 0 : i32
    %c0_i32_2 = arith.constant 0 : i32
    return %arg0, %c0_i32, %c0_i32_0, %c0_i32_1 : i32, i32, i32, i32
  }
  func.func @transform_1(%arg0: i32) -> (i32, i32) {
    %c0_i32 = arith.constant 0 : i32
    %c0_i32_0 = arith.constant 0 : i32
    %c0_i32_1 = arith.constant 0 : i32
    return %c0_i32, %c0_i32_0 : i32, i32
  }
  func.func @transform_2(%arg0: i32) -> (i32, i32) {
    %c0_i32 = arith.constant 0 : i32
    %c0_i32_0 = arith.constant 0 : i32
    %c0_i32_1 = arith.constant 0 : i32
    return %c0_i32, %c0_i32_0 : i32, i32
  }
  func.func @transform_3(%arg0: i32) -> (i32, i32) {
    %c0_i32 = arith.constant 0 : i32
    %c0_i32_0 = arith.constant 0 : i32
    return %arg0, %c0_i32 : i32, i32
  }
}

</mosaic_0001>

<llo_original>
// kernel: convlstm_forward.2
$region0: #{convlstm_forward.2}
  #allocation0 [shape = 'u32[]', space=smem, size = 0x4, offset = 0x4, fixed_abs, tag = 'smem constant byte address 0x4 - core index']
  #allocation1 [shape = 'u32[144,128]{1,0:T(1,128)}', space=vmem, size = 0x12000, scoped, tag = 'internal scratch']
  #allocation2 [shape = 'f32[256,36]{1,0:T(8,128)}', space=vmem, size = 0x20000, scoped, tag = 'scratch operand']
  %s0 = inlined_call_operand.vmem [shape: f32[16,18,18,4], index: 0, kind: input, shape index: {}]
  %s1 = inlined_call_operand.vmem [shape: bf16[36,128], index: 1, kind: input, shape index: {}]
  %s2 = inlined_call_operand.vmem [shape: f32[1,128], index: 2, kind: input, shape index: {}]
  %s3 = inlined_call_operand.vmem [shape: f32[4096,128], index: 3, kind: output, shape index: {}]
  %s4 = sld [smem:[#allocation0]]
  $region45: #{convlstm_forward.2} parent=0
    _
  %s6 = ssub.s32 1, %s4
  %s7 = scalar_select 0, %s6, %s4
  loop: start=0, step=1, limit=18
  $region2: #{convlstm_forward.2} parent=0 // loop_pre_header
    _
  $region3: #{convlstm_forward.2} parent=0 // loop_header
    %s9 = sphi 0, %s13
    %p10 = scmp.ge.s32.totalorder %s9, 18
    %s19 = sphi 0, %s21
    %s22 = sphi 0, %s19
    %s23 = sphi 0, %s22
    %s39 = sphi 0, %s23
    %s43 = sphi 0, %s43
    %s45 = sphi 0, %s43
    %s46 = sphi 0, %s45
    %s60 = sphi 0, %s46
    %s64 = sphi 0, %s64
    %s66 = sphi 0, %s64
    %s67 = sphi 0, %s66
    %s81 = sphi 0, %s67
    %s87 = sphi 0, %s89
    %s90 = sphi 0, %s87
    %s91 = sphi 0, %s90
    %s107 = sphi 0, %s91
  $region4: #{convlstm_forward.2} parent=0 // loop_header_branch
    %12 = sbr.rel (%p10) target = $region8
  $region5: #{convlstm_forward.2} parent=0 // loop_body
    %s14 = ssub.s32 %s9, 1
    %s15 = ssub.s32 %s9, 2
    %s16 = sadd.s32 %s9, 1
    %s17 = ssub.s32 %s9, %s16
    %p18 = scmp.eq.s32.totalorder %s17, 0
    %s20 = sadd.s32 %s19, 1
    %s21 = scalar_select %p18, %s19, %s20
    %p24 = pneg %p18
    %p25 = scmp.eq.s32.totalorder %s9, 15
    %p26 = por %p24, %p25
    %p27 = scmp.ne.s32.totalorder %s19, %s22
    %p28 = scmp.eq.s32.totalorder %s9, 0
    %p29 = por %p27, %p28
    %p30 = scmp.ne.s32.totalorder %s19, %s22
    %p31 = scmp.eq.s32.totalorder %s14, 15
    %p32 = por %p30, %p31
    %p33 = scmp.ne.s32.totalorder %s22, %s23
    %p34 = scmp.eq.s32.totalorder %s14, 0
    %p35 = por %p33, %p34
    %p36 = scmp.ne.s32.totalorder %s22, %s23
    %p37 = scmp.eq.s32.totalorder %s15, 15
    %p38 = por %p36, %p37
    %p40 = scmp.ne.s32.totalorder %s23, %s39
    %p41 = scmp.eq.s32.totalorder %s15, 0
    %p42 = por %p40, %p41
    %s44 = sadd.s32 %s43, 1
    %p47 = scmp.eq.s32.totalorder %s9, 15
    %p48 = scmp.ne.s32.totalorder %s43, %s45
    %p49 = scmp.eq.s32.totalorder %s9, 0
    %p50 = por %p48, %p49
    %p51 = scmp.ne.s32.totalorder %s43, %s45
    %p52 = scmp.eq.s32.totalorder %s14, 15
    %p53 = por %p51, %p52
    %p54 = scmp.ne.s32.totalorder %s45, %s46
    %p55 = scmp.eq.s32.totalorder %s14, 0
    %p56 = por %p54, %p55
    %p57 = scmp.ne.s32.totalorder %s45, %s46
    %p58 = scmp.eq.s32.totalorder %s15, 15
    %p59 = por %p57, %p58
    %p61 = scmp.ne.s32.totalorder %s46, %s60
    %p62 = scmp.eq.s32.totalorder %s15, 0
    %p63 = por %p61, %p62
    %s65 = sadd.s32 %s64, 1
    %p68 = scmp.eq.s32.totalorder %s9, 15
    %p69 = scmp.ne.s32.totalorder %s64, %s66
    %p70 = scmp.eq.s32.totalorder %s9, 0
    %p71 = por %p69, %p70
    %p72 = scmp.ne.s32.totalorder %s64, %s66
    %p73 = scmp.eq.s32.totalorder %s14, 15
    %p74 = por %p72, %p73
    %p75 = scmp.ne.s32.totalorder %s66, %s67
    %p76 = scmp.eq.s32.totalorder %s14, 0
    %p77 = por %p75, %p76
    %p78 = scmp.ne.s32.totalorder %s66, %s67
    %p79 = scmp.eq.s32.totalorder %s15, 15
    %p80 = por %p78, %p79
    %p82 = scmp.ne.s32.totalorder %s67, %s81
    %p83 = scmp.eq.s32.totalorder %s15, 0
    %p84 = por %p82, %p83
    %s85 = ssub.s32 %s9, %s16
    %p86 = scmp.eq.s32.totalorder %s85, 0
    %s88 = sadd.s32 %s87, 1
    %s89 = scalar_select %p86, %s87, %s88
    %p92 = pneg %p86
    %p93 = scmp.eq.s32.totalorder %s9, 15
    %p94 = por %p92, %p93
    %p95 = scmp.ne.s32.totalorder %s87, %s90
    %p96 = scmp.eq.s32.totalorder %s9, 0
    %p97 = por %p95, %p96
    %p98 = scmp.ne.s32.totalorder %s87, %s90
    %p99 = scmp.eq.s32.totalorder %s14, 15
    %p100 = por %p98, %p99
    %p101 = scmp.ne.s32.totalorder %s90, %s91
    %p102 = scmp.eq.s32.totalorder %s14, 0
    %p103 = por %p101, %p102
    %p104 = scmp.ne.s32.totalorder %s90, %s91
    %p105 = scmp.eq.s32.totalorder %s15, 15
    %p106 = por %p104, %p105
    %p108 = scmp.ne.s32.totalorder %s91, %s107
    %p109 = scmp.eq.s32.totalorder %s15, 0
    %p110 = por %p108, %p109
    %p111 = scmp.le.s32.totalorder 1, %s9
    %p112 = scmp.lt.s32.totalorder %s9, 17
    %p113 = pnand %p111, %p112
    %p114 = pneg %p113
    // Predicated region
    $region9: #{convlstm_forward.2} parent=5 // pred_check
      _
    $region10: #{convlstm_forward.2} parent=5 // pred_check_branch
      %116 = sbr.rel (%p113) target = $region12
    $region11: #{convlstm_forward.2} parent=5 // pred_region
      %s117 = ssub.s32 %s9, 1
      // Predicated region
      $region13: #{convlstm_forward.2} parent=11 // pred_check
        %p118 = pneg %p56
      $region14: #{convlstm_forward.2} parent=11 // pred_check_branch
        %120 = sbr.rel (%p118) target = $region16
      $region15: #{convlstm_forward.2} parent=11 // pred_region
        _
      $region16: #{convlstm_forward.2} parent=11 // pred_fallthru
        _
      // Predicated region
      $region17: #{convlstm_forward.2} parent=11 // pred_check
        %p121 = pneg %p77
      $region18: #{convlstm_forward.2} parent=11 // pred_check_branch
        %123 = sbr.rel (%p121) target = $region20
      $region19: #{convlstm_forward.2} parent=11 // pred_region
        _
      $region20: #{convlstm_forward.2} parent=11 // pred_fallthru
        _
    $region12: #{convlstm_forward.2} parent=5 // pred_fallthru
      _
    %p124 = scmp.lt.s32.totalorder %s9, 16
    // Predicated region
    $region21: #{convlstm_forward.2} parent=5 // pred_check
      %p125 = pneg %p124
    $region22: #{convlstm_forward.2} parent=5 // pred_check_branch
      %127 = sbr.rel (%p125) target = $region24
    $region23: #{convlstm_forward.2} parent=5 // pred_region
      // Predicated region
      $region25: #{convlstm_forward.2} parent=23 // pred_check
        %p128 = pneg %p29
      $region26: #{convlstm_forward.2} parent=23 // pred_check_branch
        %130 = sbr.rel (%p128) target = $region28
      $region27: #{convlstm_forward.2} parent=23 // pred_region
        %p131 = scmp.lt.s32.totalorder %s9, 15
        %s132 = scalar_select %p131, %s9, 15
        %s133 = smul.addr %s132, 54
        %s134 = smul.addr %s133, 8
        %s135 = scalar_lea.vmem %s0, %s134
      $region28: #{convlstm_forward.2} parent=23 // pred_fallthru
        _
    $region24: #{convlstm_forward.2} parent=5 // pred_fallthru
      _
    %p136 = scmp.le.s32.totalorder 1, %s9
    %p137 = scmp.lt.s32.totalorder %s9, 17
    %p138 = pnand %p136, %p137
    %p139 = pneg %p138
    // Predicated region
    $region29: #{convlstm_forward.2} parent=5 // pred_check
      _
    $region30: #{convlstm_forward.2} parent=5 // pred_check_branch
      %141 = sbr.rel (%p138) target = $region32
    $region31: #{convlstm_forward.2} parent=5 // pred_region
      %s142 = ssub.s32 %s9, 1
      %p143 = scmp.lt.s32.totalorder %s14, 15
      %s144 = scalar_select %p143, %s14, 15
      %s145 = smul.addr %s144, 54
      %s146 = smul.addr %s145, 8
      %s147 = scalar_lea.vmem %s0, %s146
      %p148 = pneg %p35
      %p149 = pneg %p32
      %p150 = pneg %p56
      %p151 = pneg %p53
      %p152 = pneg %p77
      %p153 = pneg %p74
      %p154 = pneg %p103
      %p155 = pneg %p100
      %s156 = smul.u32 32, %s14
      %p157 = scmp.lt.s32.totalorder %s156, 511
      %s158 = scalar_select %p157, %s156, 511
      %s159 = smul.addr %s158, 8
      %s160 = scalar_lea.vmem %s3, %s159
      %p161 = scmp.lt.s32.totalorder %s14, 15
      %s162 = scalar_select %p161, %s14, 15
      %s163 = smul.addr %s162, 54
      %s164 = smul.addr %s163, 8
      %s165 = scalar_lea.vmem %s0, %s164
      %s166 = smul.u32 32, %s14
      %p167 = scmp.lt.s32.totalorder %s166, 511
      %s168 = scalar_select %p167, %s166, 511
      %s169 = smul.addr %s168, 8
      %s170 = scalar_lea.vmem %s3, %s169
      %s171 = smul.u32 32, %s14
      %v173 = vld [vmem:[%s165] sm:$0xff]
      %v174 = vld [vmem:[%s165 + $0x8] sm:$0xff]
      %v175 = vld [vmem:[%s165 + $0x10] sm:$0x3]
      %v176 = vld [vmem:[%s165 + $0x18] sm:$0xff]
      %v177 = vld [vmem:[%s165 + $0x20] sm:$0xff]
      %v178 = vld [vmem:[%s165 + $0x28] sm:$0x3]
      %v179 = vld [vmem:[%s165 + $0x30] sm:$0xff]
      %v180 = vld [vmem:[%s165 + $0x38] sm:$0xff]
      %v181 = vld [vmem:[%s165 + $0x40] sm:$0x3]
      %v182 = vld [vmem:[%s165 + $0x48] sm:$0xff]
      %v183 = vld [vmem:[%s165 + $0x50] sm:$0xff]
      %v184 = vld [vmem:[%s165 + $0x58] sm:$0x3]
      %v185 = vld [vmem:[%s165 + $0x60] sm:$0xff]
      %v186 = vld [vmem:[%s165 + $0x68] sm:$0xff]
      %v187 = vld [vmem:[%s165 + $0x70] sm:$0x3]
      %v188 = vld [vmem:[%s165 + $0x78] sm:$0xff]
      %v189 = vld [vmem:[%s165 + $0x80] sm:$0xff]
      %v190 = vld [vmem:[%s165 + $0x88] sm:$0x3]
      %v191 = vld [vmem:[%s165 + $0x90] sm:$0xff]
      %v192 = vld [vmem:[%s165 + $0x98] sm:$0xff]
      %v193 = vld [vmem:[%s165 + $0xa0] sm:$0x3]
      %v194 = vld [vmem:[%s165 + $0xa8] sm:$0xff]
      %v195 = vld [vmem:[%s165 + $0xb0] sm:$0xff]
      %v196 = vld [vmem:[%s165 + $0xb8] sm:$0x3]
      %v197 = vld [vmem:[%s165 + $0xc0] sm:$0xff]
      %v198 = vld [vmem:[%s165 + $0xc8] sm:$0xff]
      %v199 = vld [vmem:[%s165 + $0xd0] sm:$0x3]
      %v200 = vld [vmem:[%s165 + $0xd8] sm:$0xff]
      %v201 = vld [vmem:[%s165 + $0xe0] sm:$0xff]
      %v202 = vld [vmem:[%s165 + $0xe8] sm:$0x3]
      %v203 = vld [vmem:[%s165 + $0xf0] sm:$0xff]
      %v204 = vld [vmem:[%s165 + $0xf8] sm:$0xff]
      %v205 = vld [vmem:[%s165 + $0x100] sm:$0x3]
      %v206 = vld [vmem:[%s165 + $0x108] sm:$0xff]
      %v207 = vld [vmem:[%s165 + $0x110] sm:$0xff]
      %v208 = vld [vmem:[%s165 + $0x118] sm:$0x3]
      %v209 = vld [vmem:[%s165 + $0x120] sm:$0xff]
      %v210 = vld [vmem:[%s165 + $0x128] sm:$0xff]
      %v211 = vld [vmem:[%s165 + $0x130] sm:$0x3]
      %v212 = vld [vmem:[%s165 + $0x138] sm:$0xff]
      %v213 = vld [vmem:[%s165 + $0x140] sm:$0xff]
      %v214 = vld [vmem:[%s165 + $0x148] sm:$0x3]
      %v215 = vld [vmem:[%s165 + $0x150] sm:$0xff]
      %v216 = vld [vmem:[%s165 + $0x158] sm:$0xff]
      %v217 = vld [vmem:[%s165 + $0x160] sm:$0x3]
      %v218 = vld [vmem:[%s165 + $0x168] sm:$0xff]
      %v219 = vld [vmem:[%s165 + $0x170] sm:$0xff]
      %v220 = vld [vmem:[%s165 + $0x178] sm:$0x3]
      %v221 = vld [vmem:[%s165 + $0x180] sm:$0xff]
      %v222 = vld [vmem:[%s165 + $0x188] sm:$0xff]
      %v223 = vld [vmem:[%s165 + $0x190] sm:$0x3]
      %v224 = vld [vmem:[%s165 + $0x198] sm:$0xff]
      %v225 = vld [vmem:[%s165 + $0x1a0] sm:$0xff]
      %v226 = vld [vmem:[%s165 + $0x1a8] sm:$0x3]
      %vm227 = vcmask 31744
      %228 = vst.msk [vmem:[#allocation2] sm:$0xff] %vm227, %v173
      %229 = vst.msk [vmem:[#allocation2 + $0x8] sm:$0xff] %vm227, %v174
      %230 = vst.msk [vmem:[#allocation2 + $0x10] sm:$0xff] %vm227, %v176
      %231 = vst.msk [vmem:[#allocation2 + $0x18] sm:$0xff] %vm227, %v177
      %232 = vst.msk [vmem:[#allocation2 + $0x20] sm:$0xff] %vm227, %v179
      %233 = vst.msk [vmem:[#allocation2 + $0x28] sm:$0xff] %vm227, %v180
      %234 = vst.msk [vmem:[#allocation2 + $0x30] sm:$0xff] %vm227, %v182
      %235 = vst.msk [vmem:[#allocation2 + $0x38] sm:$0xff] %vm227, %v183
      %236 = vst.msk [vmem:[#allocation2 + $0x40] sm:$0xff] %vm227, %v185
      %237 = vst.msk [vmem:[#allocation2 + $0x48] sm:$0xff] %vm227, %v186
      %238 = vst.msk [vmem:[#allocation2 + $0x50] sm:$0xff] %vm227, %v188
      %239 = vst.msk [vmem:[#allocation2 + $0x58] sm:$0xff] %vm227, %v189
      %240 = vst.msk [vmem:[#allocation2 + $0x60] sm:$0xff] %vm227, %v191
      %241 = vst.msk [vmem:[#allocation2 + $0x68] sm:$0xff] %vm227, %v192
      %242 = vst.msk [vmem:[#allocation2 + $0x70] sm:$0xff] %vm227, %v194
      %243 = vst.msk [vmem:[#allocation2 + $0x78] sm:$0xff] %vm227, %v195
      %244 = vst.msk [vmem:[#allocation2 + $0x80] sm:$0xff] %vm227, %v197
      %245 = vst.msk [vmem:[#allocation2 + $0x88] sm:$0xff] %vm227, %v198
      %246 = vst.msk [vmem:[#allocation2 + $0x90] sm:$0xff] %vm227, %v200
      %247 = vst.msk [vmem:[#allocation2 + $0x98] sm:$0xff] %vm227, %v201
      %248 = vst.msk [vmem:[#allocation2 + $0xa0] sm:$0xff] %vm227, %v203
      %249 = vst.msk [vmem:[#allocation2 + $0xa8] sm:$0xff] %vm227, %v204
      %250 = vst.msk [vmem:[#allocation2 + $0xb0] sm:$0xff] %vm227, %v206
      %251 = vst.msk [vmem:[#allocation2 + $0xb8] sm:$0xff] %vm227, %v207
      %252 = vst.msk [vmem:[#allocation2 + $0xc0] sm:$0xff] %vm227, %v209
      %253 = vst.msk [vmem:[#allocation2 + $0xc8] sm:$0xff] %vm227, %v210
      %254 = vst.msk [vmem:[#allocation2 + $0xd0] sm:$0xff] %vm227, %v212
      %255 = vst.msk [vmem:[#allocation2 + $0xd8] sm:$0xff] %vm227, %v213
      %256 = vst.msk [vmem:[#allocation2 + $0xe0] sm:$0xff] %vm227, %v215
      %257 = vst.msk [vmem:[#allocation2 + $0xe8] sm:$0xff] %vm227, %v216
      %258 = vst.msk [vmem:[#allocation2 + $0xf0] sm:$0xff] %vm227, %v218
      %259 = vst.msk [vmem:[#allocation2 + $0xf8] sm:$0xff] %vm227, %v219
      %vm308 = vcmask 1046528
      %v309 = vrot.slane %v173, 1
      %v310 = vrot.slane %v174, 1
      %v311 = vsel %vm308, %v309, %v310
      %v312 = vrot.slane %v175, 1
      %v313 = vsel %vm308, %v310, %v312
      %v314 = vrot.slane %v176, 1
      %v315 = vrot.slane %v177, 1
      %v316 = vsel %vm308, %v314, %v315
      %v317 = vrot.slane %v178, 1
      %v318 = vsel %vm308, %v315, %v317
      %v319 = vrot.slane %v179, 1
      %v320 = vrot.slane %v180, 1
      %v321 = vsel %vm308, %v319, %v320
      %v322 = vrot.slane %v181, 1
      %v323 = vsel %vm308, %v320, %v322
      %v324 = vrot.slane %v182, 1
      %v325 = vrot.slane %v183, 1
      %v326 = vsel %vm308, %v324, %v325
      %v327 = vrot.slane %v184, 1
      %v328 = vsel %vm308, %v325, %v327
      %v329 = vrot.slane %v185, 1
      %v330 = vrot.slane %v186, 1
      %v331 = vsel %vm308, %v329, %v330
      %v332 = vrot.slane %v187, 1
      %v333 = vsel %vm308, %v330, %v332
      %v334 = vrot.slane %v188, 1
      %v335 = vrot.slane %v189, 1
      %v336 = vsel %vm308, %v334, %v335
      %v337 = vrot.slane %v190, 1
      %v338 = vsel %vm308, %v335, %v337
      %v339 = vrot.slane %v191, 1
      %v340 = vrot.slane %v192, 1
      %v341 = vsel %vm308, %v339, %v340
      %v342 = vrot.slane %v193, 1
      %v343 = vsel %vm308, %v340, %v342
      %v344 = vrot.slane %v194, 1
      %v345 = vrot.slane %v195, 1
      %v346 = vsel %vm308, %v344, %v345
      %v347 = vrot.slane %v196, 1
      %v348 = vsel %vm308, %v345, %v347
      %v349 = vrot.slane %v197, 1
      %v350 = vrot.slane %v198, 1
      %v351 = vsel %vm308, %v349, %v350
      %v352 = vrot.slane %v199, 1
      %v353 = vsel %vm308, %v350, %v352
      %v354 = vrot.slane %v200, 1
      %v355 = vrot.slane %v201, 1
      %v356 = vsel %vm308, %v354, %v355
      %v357 = vrot.slane %v202, 1
      %v358 = vsel %vm308, %v355, %v357
      %v359 = vrot.slane %v203, 1
      %v360 = vrot.slane %v204, 1
      %v361 = vsel %vm308, %v359, %v360
      %v362 = vrot.slane %v205, 1
      %v363 = vsel %vm308, %v360, %v362
      %v364 = vrot.slane %v206, 1
      %v365 = vrot.slane %v207, 1
      %v366 = vsel %vm308, %v364, %v365
      %v367 = vrot.slane %v208, 1
      %v368 = vsel %vm308, %v365, %v367
      %v369 = vrot.slane %v209, 1
      %v370 = vrot.slane %v210, 1
      %v371 = vsel %vm308, %v369, %v370
      %v372 = vrot.slane %v211, 1
      %v373 = vsel %vm308, %v370, %v372
      %v374 = vrot.slane %v212, 1
      %v375 = vrot.slane %v213, 1
      %v376 = vsel %vm308, %v374, %v375
      %v377 = vrot.slane %v214, 1
      %v378 = vsel %vm308, %v375, %v377
      %v379 = vrot.slane %v215, 1
      %v380 = vrot.slane %v216, 1
      %v381 = vsel %vm308, %v379, %v380
      %v382 = vrot.slane %v217, 1
      %v383 = vsel %vm308, %v380, %v382
      %v384 = vrot.slane %v218, 1
      %v385 = vrot.slane %v219, 1
      %v386 = vsel %vm308, %v384, %v385
      %v387 = vrot.slane %v220, 1
      %v388 = vsel %vm308, %v385, %v387
      %389 = vrot.lane.b32.xlu0 %v311, 4
      %v390 = vpop.permute.xlu0 %389
      %391 = vrot.lane.b32.xlu0 %v313, 4
      %v392 = vpop.permute.xlu0 %391
      %393 = vrot.lane.b32.xlu0 %v316, 4
      %v394 = vpop.permute.xlu0 %393
      %395 = vrot.lane.b32.xlu0 %v318, 4
      %v396 = vpop.permute.xlu0 %395
      %397 = vrot.lane.b32.xlu0 %v321, 4
      %v398 = vpop.permute.xlu0 %397
      %399 = vrot.lane.b32.xlu0 %v323, 4
      %v400 = vpop.permute.xlu0 %399
      %401 = vrot.lane.b32.xlu0 %v326, 4
      %v402 = vpop.permute.xlu0 %401
      %403 = vrot.lane.b32.xlu0 %v328, 4
      %v404 = vpop.permute.xlu0 %403
      %405 = vrot.lane.b32.xlu0 %v331, 4
      %v406 = vpop.permute.xlu0 %405
      %407 = vrot.lane.b32.xlu0 %v333, 4
      %v408 = vpop.permute.xlu0 %407
      %409 = vrot.lane.b32.xlu0 %v336, 4
      %v410 = vpop.permute.xlu0 %409
      %411 = vrot.lane.b32.xlu0 %v338, 4
      %v412 = vpop.permute.xlu0 %411
      %413 = vrot.lane.b32.xlu0 %v341, 4
      %v414 = vpop.permute.xlu0 %413
      %415 = vrot.lane.b32.xlu0 %v343, 4
      %v416 = vpop.permute.xlu0 %415
      %417 = vrot.lane.b32.xlu0 %v346, 4
      %v418 = vpop.permute.xlu0 %417
      %419 = vrot.lane.b32.xlu0 %v348, 4
      %v420 = vpop.permute.xlu0 %419
      %421 = vrot.lane.b32.xlu0 %v351, 4
      %v422 = vpop.permute.xlu0 %421
      %423 = vrot.lane.b32.xlu0 %v353, 4
      %v424 = vpop.permute.xlu0 %423
      %425 = vrot.lane.b32.xlu0 %v356, 4
      %v426 = vpop.permute.xlu0 %425
      %427 = vrot.lane.b32.xlu0 %v358, 4
      %v428 = vpop.permute.xlu0 %427
      %429 = vrot.lane.b32.xlu0 %v361, 4
      %v430 = vpop.permute.xlu0 %429
      %431 = vrot.lane.b32.xlu0 %v363, 4
      %v432 = vpop.permute.xlu0 %431
      %433 = vrot.lane.b32.xlu0 %v366, 4
      %v434 = vpop.permute.xlu0 %433
      %435 = vrot.lane.b32.xlu0 %v368, 4
      %v436 = vpop.permute.xlu0 %435
      %437 = vrot.lane.b32.xlu0 %v371, 4
      %v438 = vpop.permute.xlu0 %437
      %439 = vrot.lane.b32.xlu0 %v373, 4
      %v440 = vpop.permute.xlu0 %439
      %441 = vrot.lane.b32.xlu0 %v376, 4
      %v442 = vpop.permute.xlu0 %441
      %443 = vrot.lane.b32.xlu0 %v378, 4
      %v444 = vpop.permute.xlu0 %443
      %445 = vrot.lane.b32.xlu0 %v381, 4
      %v446 = vpop.permute.xlu0 %445
      %447 = vrot.lane.b32.xlu0 %v383, 4
      %v448 = vpop.permute.xlu0 %447
      %449 = vrot.lane.b32.xlu0 %v386, 4
      %v450 = vpop.permute.xlu0 %449
      %451 = vrot.lane.b32.xlu0 %v388, 4
      %v452 = vpop.permute.xlu0 %451
      %vm485 = vcmask 64544
      %486 = vst.msk [vmem:[#allocation2] sm:$0xff] %vm485, %v390
      %487 = vst.msk [vmem:[#allocation2 + $0x8] sm:$0xff] %vm485, %v392
      %488 = vst.msk [vmem:[#allocation2 + $0x10] sm:$0xff] %vm485, %v394
      %489 = vst.msk [vmem:[#allocation2 + $0x18] sm:$0xff] %vm485, %v396
      %490 = vst.msk [vmem:[#allocation2 + $0x20] sm:$0xff] %vm485, %v398
      %491 = vst.msk [vmem:[#allocation2 + $0x28] sm:$0xff] %vm485, %v400
      %492 = vst.msk [vmem:[#allocation2 + $0x30] sm:$0xff] %vm485, %v402
      %493 = vst.msk [vmem:[#allocation2 + $0x38] sm:$0xff] %vm485, %v404
      %494 = vst.msk [vmem:[#allocation2 + $0x40] sm:$0xff] %vm485, %v406
      %495 = vst.msk [vmem:[#allocation2 + $0x48] sm:$0xff] %vm485, %v408
      %496 = vst.msk [vmem:[#allocation2 + $0x50] sm:$0xff] %vm485, %v410
      %497 = vst.msk [vmem:[#allocation2 + $0x58] sm:$0xff] %vm485, %v412
      %498 = vst.msk [vmem:[#allocation2 + $0x60] sm:$0xff] %vm485, %v414
      %499 = vst.msk [vmem:[#allocation2 + $0x68] sm:$0xff] %vm485, %v416
      %500 = vst.msk [vmem:[#allocation2 + $0x70] sm:$0xff] %vm485, %v418
      %501 = vst.msk [vmem:[#allocation2 + $0x78] sm:$0xff] %vm485, %v420
      %502 = vst.msk [vmem:[#allocation2 + $0x80] sm:$0xff] %vm485, %v422
      %503 = vst.msk [vmem:[#allocation2 + $0x88] sm:$0xff] %vm485, %v424
      %504 = vst.msk [vmem:[#allocation2 + $0x90] sm:$0xff] %vm485, %v426
      %505 = vst.msk [vmem:[#allocation2 + $0x98] sm:$0xff] %vm485, %v428
      %506 = vst.msk [vmem:[#allocation2 + $0xa0] sm:$0xff] %vm485, %v430
      %507 = vst.msk [vmem:[#allocation2 + $0xa8] sm:$0xff] %vm485, %v432
      %508 = vst.msk [vmem:[#allocation2 + $0xb0] sm:$0xff] %vm485, %v434
      %509 = vst.msk [vmem:[#allocation2 + $0xb8] sm:$0xff] %vm485, %v436
      %510 = vst.msk [vmem:[#allocation2 + $0xc0] sm:$0xff] %vm485, %v438
      %511 = vst.msk [vmem:[#allocation2 + $0xc8] sm:$0xff] %vm485, %v440
      %512 = vst.msk [vmem:[#allocation2 + $0xd0] sm:$0xff] %vm485, %v442
      %513 = vst.msk [vmem:[#allocation2 + $0xd8] sm:$0xff] %vm485, %v444
      %514 = vst.msk [vmem:[#allocation2 + $0xe0] sm:$0xff] %vm485, %v446
      %515 = vst.msk [vmem:[#allocation2 + $0xe8] sm:$0xff] %vm485, %v448
      %516 = vst.msk [vmem:[#allocation2 + $0xf0] sm:$0xff] %vm485, %v450
      %517 = vst.msk [vmem:[#allocation2 + $0xf8] sm:$0xff] %vm485, %v452
      %vm518 = vcmask 1045504
      %v519 = vrot.slane %v173, 2
      %v520 = vrot.slane %v174, 2
      %v521 = vsel %vm518, %v519, %v520
      %v522 = vrot.slane %v175, 2
      %v523 = vsel %vm518, %v520, %v522
      %v524 = vrot.slane %v176, 2
      %v525 = vrot.slane %v177, 2
      %v526 = vsel %vm518, %v524, %v525
      %v527 = vrot.slane %v178, 2
      %v528 = vsel %vm518, %v525, %v527
      %v529 = vrot.slane %v179, 2
      %v530 = vrot.slane %v180, 2
      %v531 = vsel %vm518, %v529, %v530
      %v532 = vrot.slane %v181, 2
      %v533 = vsel %vm518, %v530, %v532
      %v534 = vrot.slane %v182, 2
      %v535 = vrot.slane %v183, 2
      %v536 = vsel %vm518, %v534, %v535
      %v537 = vrot.slane %v184, 2
      %v538 = vsel %vm518, %v535, %v537
      %v539 = vrot.slane %v185, 2
      %v540 = vrot.slane %v186, 2
      %v541 = vsel %vm518, %v539, %v540
      %v542 = vrot.slane %v187, 2
      %v543 = vsel %vm518, %v540, %v542
      %v544 = vrot.slane %v188, 2
      %v545 = vrot.slane %v189, 2
      %v546 = vsel %vm518, %v544, %v545
      %v547 = vrot.slane %v190, 2
      %v548 = vsel %vm518, %v545, %v547
      %v549 = vrot.slane %v191, 2
      %v550 = vrot.slane %v192, 2
      %v551 = vsel %vm518, %v549, %v550
      %v552 = vrot.slane %v193, 2
      %v553 = vsel %vm518, %v550, %v552
      %v554 = vrot.slane %v194, 2
      %v555 = vrot.slane %v195, 2
      %v556 = vsel %vm518, %v554, %v555
      %v557 = vrot.slane %v196, 2
      %v558 = vsel %vm518, %v555, %v557
      %v559 = vrot.slane %v197, 2
      %v560 = vrot.slane %v198, 2
      %v561 = vsel %vm518, %v559, %v560
      %v562 = vrot.slane %v199, 2
      %v563 = vsel %vm518, %v560, %v562
      %v564 = vrot.slane %v200, 2
      %v565 = vrot.slane %v201, 2
      %v566 = vsel %vm518, %v564, %v565
      %v567 = vrot.slane %v202, 2
      %v568 = vsel %vm518, %v565, %v567
      %v569 = vrot.slane %v203, 2
      %v570 = vrot.slane %v204, 2
      %v571 = vsel %vm518, %v569, %v570
      %v572 = vrot.slane %v205, 2
      %v573 = vsel %vm518, %v570, %v572
      %v574 = vrot.slane %v206, 2
      %v575 = vrot.slane %v207, 2
      %v576 = vsel %vm518, %v574, %v575
      %v577 = vrot.slane %v208, 2
      %v578 = vsel %vm518, %v575, %v577
      %v579 = vrot.slane %v209, 2
      %v580 = vrot.slane %v210, 2
      %v581 = vsel %vm518, %v579, %v580
      %v582 = vrot.slane %v211, 2
      %v583 = vsel %vm518, %v580, %v582
      %v584 = vrot.slane %v212, 2
      %v585 = vrot.slane %v213, 2
      %v586 = vsel %vm518, %v584, %v585
      %v587 = vrot.slane %v214, 2
      %v588 = vsel %vm518, %v585, %v587
      %v589 = vrot.slane %v215, 2
      %v590 = vrot.slane %v216, 2
      %v591 = vsel %vm518, %v589, %v590
      %v592 = vrot.slane %v217, 2
      %v593 = vsel %vm518, %v590, %v592
      %v594 = vrot.slane %v218, 2
      %v595 = vrot.slane %v219, 2
      %v596 = vsel %vm518, %v594, %v595
      %v597 = vrot.slane %v220, 2
      %v598 = vsel %vm518, %v595, %v597
      %599 = vrot.lane.b32.xlu0 %v521, 8
      %v600 = vpop.permute.xlu0 %599
      %601 = vrot.lane.b32.xlu0 %v523, 8
      %v602 = vpop.permute.xlu0 %601
      %603 = vrot.lane.b32.xlu0 %v526, 8
      %v604 = vpop.permute.xlu0 %603
      %605 = vrot.lane.b32.xlu0 %v528, 8
      %v606 = vpop.permute.xlu0 %605
      %607 = vrot.lane.b32.xlu0 %v531, 8
      %v608 = vpop.permute.xlu0 %607
      %609 = vrot.lane.b32.xlu0 %v533, 8
      %v610 = vpop.permute.xlu0 %609
      %611 = vrot.lane.b32.xlu0 %v536, 8
      %v612 = vpop.permute.xlu0 %611
      %613 = vrot.lane.b32.xlu0 %v538, 8
      %v614 = vpop.permute.xlu0 %613
      %615 = vrot.lane.b32.xlu0 %v541, 8
      %v616 = vpop.permute.xlu0 %615
      %617 = vrot.lane.b32.xlu0 %v543, 8
      %v618 = vpop.permute.xlu0 %617
      %619 = vrot.lane.b32.xlu0 %v546, 8
      %v620 = vpop.permute.xlu0 %619
      %621 = vrot.lane.b32.xlu0 %v548, 8
      %v622 = vpop.permute.xlu0 %621
      %623 = vrot.lane.b32.xlu0 %v551, 8
      %v624 = vpop.permute.xlu0 %623
      %625 = vrot.lane.b32.xlu0 %v553, 8
      %v626 = vpop.permute.xlu0 %625
      %627 = vrot.lane.b32.xlu0 %v556, 8
      %v628 = vpop.permute.xlu0 %627
      %629 = vrot.lane.b32.xlu0 %v558, 8
      %v630 = vpop.permute.xlu0 %629
      %631 = vrot.lane.b32.xlu0 %v561, 8
      %v632 = vpop.permute.xlu0 %631
      %633 = vrot.lane.b32.xlu0 %v563, 8
      %v634 = vpop.permute.xlu0 %633
      %635 = vrot.lane.b32.xlu0 %v566, 8
      %v636 = vpop.permute.xlu0 %635
      %637 = vrot.lane.b32.xlu0 %v568, 8
      %v638 = vpop.permute.xlu0 %637
      %639 = vrot.lane.b32.xlu0 %v571, 8
      %v640 = vpop.permute.xlu0 %639
      %641 = vrot.lane.b32.xlu0 %v573, 8
      %v642 = vpop.permute.xlu0 %641
      %643 = vrot.lane.b32.xlu0 %v576, 8
      %v644 = vpop.permute.xlu0 %643
      %645 = vrot.lane.b32.xlu0 %v578, 8
      %v646 = vpop.permute.xlu0 %645
      %647 = vrot.lane.b32.xlu0 %v581, 8
      %v648 = vpop.permute.xlu0 %647
      %649 = vrot.lane.b32.xlu0 %v583, 8
      %v650 = vpop.permute.xlu0 %649
      %651 = vrot.lane.b32.xlu0 %v586, 8
      %v652 = vpop.permute.xlu0 %651
      %653 = vrot.lane.b32.xlu0 %v588, 8
      %v654 = vpop.permute.xlu0 %653
      %655 = vrot.lane.b32.xlu0 %v591, 8
      %v656 = vpop.permute.xlu0 %655
      %657 = vrot.lane.b32.xlu0 %v593, 8
      %v658 = vpop.permute.xlu0 %657
      %659 = vrot.lane.b32.xlu0 %v596, 8
      %v660 = vpop.permute.xlu0 %659
      %661 = vrot.lane.b32.xlu0 %v598, 8
      %v662 = vpop.permute.xlu0 %661
      %vm695 = vcmask 97344
      %696 = vst.msk [vmem:[#allocation2] sm:$0xff] %vm695, %v600
      %697 = vst.msk [vmem:[#allocation2 + $0x8] sm:$0xff] %vm695, %v602
      %698 = vst.msk [vmem:[#allocation2 + $0x10] sm:$0xff] %vm695, %v604
      %699 = vst.msk [vmem:[#allocation2 + $0x18] sm:$0xff] %vm695, %v606
      %700 = vst.msk [vmem:[#allocation2 + $0x20] sm:$0xff] %vm695, %v608
      %701 = vst.msk [vmem:[#allocation2 + $0x28] sm:$0xff] %vm695, %v610
      %702 = vst.msk [vmem:[#allocation2 + $0x30] sm:$0xff] %vm695, %v612
      %703 = vst.msk [vmem:[#allocation2 + $0x38] sm:$0xff] %vm695, %v614
      %704 = vst.msk [vmem:[#allocation2 + $0x40] sm:$0xff] %vm695, %v616
      %705 = vst.msk [vmem:[#allocation2 + $0x48] sm:$0xff] %vm695, %v618
      %706 = vst.msk [vmem:[#allocation2 + $0x50] sm:$0xff] %vm695, %v620
      %707 = vst.msk [vmem:[#allocation2 + $0x58] sm:$0xff] %vm695, %v622
      %708 = vst.msk [vmem:[#allocation2 + $0x60] sm:$0xff] %vm695, %v624
      %709 = vst.msk [vmem:[#allocation2 + $0x68] sm:$0xff] %vm695, %v626
      %710 = vst.msk [vmem:[#allocation2 + $0x70] sm:$0xff] %vm695, %v628
      %711 = vst.msk [vmem:[#allocation2 + $0x78] sm:$0xff] %vm695, %v630
      %712 = vst.msk [vmem:[#allocation2 + $0x80] sm:$0xff] %vm695, %v632
      %713 = vst.msk [vmem:[#allocation2 + $0x88] sm:$0xff] %vm695, %v634
      %714 = vst.msk [vmem:[#allocation2 + $0x90] sm:$0xff] %vm695, %v636
      %715 = vst.msk [vmem:[#allocation2 + $0x98] sm:$0xff] %vm695, %v638
      %716 = vst.msk [vmem:[#allocation2 + $0xa0] sm:$0xff] %vm695, %v640
      %717 = vst.msk [vmem:[#allocation2 + $0xa8] sm:$0xff] %vm695, %v642
      %718 = vst.msk [vmem:[#allocation2 + $0xb0] sm:$0xff] %vm695, %v644
      %719 = vst.msk [vmem:[#allocation2 + $0xb8] sm:$0xff] %vm695, %v646
      %720 = vst.msk [vmem:[#allocation2 + $0xc0] sm:$0xff] %vm695, %v648
      %721 = vst.msk [vmem:[#allocation2 + $0xc8] sm:$0xff] %vm695, %v650
      %722 = vst.msk [vmem:[#allocation2 + $0xd0] sm:$0xff] %vm695, %v652
      %723 = vst.msk [vmem:[#allocation2 + $0xd8] sm:$0xff] %vm695, %v654
      %724 = vst.msk [vmem:[#allocation2 + $0xe0] sm:$0xff] %vm695, %v656
      %725 = vst.msk [vmem:[#allocation2 + $0xe8] sm:$0xff] %vm695, %v658
      %726 = vst.msk [vmem:[#allocation2 + $0xf0] sm:$0xff] %vm695, %v660
      %727 = vst.msk [vmem:[#allocation2 + $0xf8] sm:$0xff] %vm695, %v662
      %730 = vrot.lane.b32.xlu0 %v176, 12
      %v731 = vpop.permute.xlu0 %730
      %732 = vrot.lane.b32.xlu0 %v177, 12
      %v733 = vpop.permute.xlu0 %732
      %734 = vrot.lane.b32.xlu0 %v179, 12
      %v735 = vpop.permute.xlu0 %734
      %736 = vrot.lane.b32.xlu0 %v180, 12
      %v737 = vpop.permute.xlu0 %736
      %738 = vrot.lane.b32.xlu0 %v182, 12
      %v739 = vpop.permute.xlu0 %738
      %740 = vrot.lane.b32.xlu0 %v183, 12
      %v741 = vpop.permute.xlu0 %740
      %742 = vrot.lane.b32.xlu0 %v185, 12
      %v743 = vpop.permute.xlu0 %742
      %744 = vrot.lane.b32.xlu0 %v186, 12
      %v745 = vpop.permute.xlu0 %744
      %746 = vrot.lane.b32.xlu0 %v188, 12
      %v747 = vpop.permute.xlu0 %746
      %748 = vrot.lane.b32.xlu0 %v189, 12
      %v749 = vpop.permute.xlu0 %748
      %750 = vrot.lane.b32.xlu0 %v191, 12
      %v751 = vpop.permute.xlu0 %750
      %752 = vrot.lane.b32.xlu0 %v192, 12
      %v753 = vpop.permute.xlu0 %752
      %754 = vrot.lane.b32.xlu0 %v194, 12
      %v755 = vpop.permute.xlu0 %754
      %756 = vrot.lane.b32.xlu0 %v195, 12
      %v757 = vpop.permute.xlu0 %756
      %758 = vrot.lane.b32.xlu0 %v197, 12
      %v759 = vpop.permute.xlu0 %758
      %760 = vrot.lane.b32.xlu0 %v198, 12
      %v761 = vpop.permute.xlu0 %760
      %762 = vrot.lane.b32.xlu0 %v200, 12
      %v763 = vpop.permute.xlu0 %762
      %764 = vrot.lane.b32.xlu0 %v201, 12
      %v765 = vpop.permute.xlu0 %764
      %766 = vrot.lane.b32.xlu0 %v203, 12
      %v767 = vpop.permute.xlu0 %766
      %768 = vrot.lane.b32.xlu0 %v204, 12
      %v769 = vpop.permute.xlu0 %768
      %770 = vrot.lane.b32.xlu0 %v206, 12
      %v771 = vpop.permute.xlu0 %770
      %772 = vrot.lane.b32.xlu0 %v207, 12
      %v773 = vpop.permute.xlu0 %772
      %774 = vrot.lane.b32.xlu0 %v209, 12
      %v775 = vpop.permute.xlu0 %774
      %776 = vrot.lane.b32.xlu0 %v210, 12
      %v777 = vpop.permute.xlu0 %776
      %778 = vrot.lane.b32.xlu0 %v212, 12
      %v779 = vpop.permute.xlu0 %778
      %780 = vrot.lane.b32.xlu0 %v213, 12
      %v781 = vpop.permute.xlu0 %780
      %782 = vrot.lane.b32.xlu0 %v215, 12
      %v783 = vpop.permute.xlu0 %782
      %784 = vrot.lane.b32.xlu0 %v216, 12
      %v785 = vpop.permute.xlu0 %784
      %786 = vrot.lane.b32.xlu0 %v218, 12
      %v787 = vpop.permute.xlu0 %786
      %788 = vrot.lane.b32.xlu0 %v219, 12
      %v789 = vpop.permute.xlu0 %788
      %790 = vrot.lane.b32.xlu0 %v221, 12
      %v791 = vpop.permute.xlu0 %790
      %792 = vrot.lane.b32.xlu0 %v222, 12
      %v793 = vpop.permute.xlu0 %792
      %vm826 = vcmask 130144
      %827 = vst.msk [vmem:[#allocation2] sm:$0xff] %vm826, %v731
      %828 = vst.msk [vmem:[#allocation2 + $0x8] sm:$0xff] %vm826, %v733
      %829 = vst.msk [vmem:[#allocation2 + $0x10] sm:$0xff] %vm826, %v735
      %830 = vst.msk [vmem:[#allocation2 + $0x18] sm:$0xff] %vm826, %v737
      %831 = vst.msk [vmem:[#allocation2 + $0x20] sm:$0xff] %vm826, %v739
      %832 = vst.msk [vmem:[#allocation2 + $0x28] sm:$0xff] %vm826, %v741
      %833 = vst.msk [vmem:[#allocation2 + $0x30] sm:$0xff] %vm826, %v743
      %834 = vst.msk [vmem:[#allocation2 + $0x38] sm:$0xff] %vm826, %v745
      %835 = vst.msk [vmem:[#allocation2 + $0x40] sm:$0xff] %vm826, %v747
      %836 = vst.msk [vmem:[#allocation2 + $0x48] sm:$0xff] %vm826, %v749
      %837 = vst.msk [vmem:[#allocation2 + $0x50] sm:$0xff] %vm826, %v751
      %838 = vst.msk [vmem:[#allocation2 + $0x58] sm:$0xff] %vm826, %v753
      %839 = vst.msk [vmem:[#allocation2 + $0x60] sm:$0xff] %vm826, %v755
      %840 = vst.msk [vmem:[#allocation2 + $0x68] sm:$0xff] %vm826, %v757
      %841 = vst.msk [vmem:[#allocation2 + $0x70] sm:$0xff] %vm826, %v759
      %842 = vst.msk [vmem:[#allocation2 + $0x78] sm:$0xff] %vm826, %v761
      %843 = vst.msk [vmem:[#allocation2 + $0x80] sm:$0xff] %vm826, %v763
      %844 = vst.msk [vmem:[#allocation2 + $0x88] sm:$0xff] %vm826, %v765
      %845 = vst.msk [vmem:[#allocation2 + $0x90] sm:$0xff] %vm826, %v767
      %846 = vst.msk [vmem:[#allocation2 + $0x98] sm:$0xff] %vm826, %v769
      %847 = vst.msk [vmem:[#allocation2 + $0xa0] sm:$0xff] %vm826, %v771
      %848 = vst.msk [vmem:[#allocation2 + $0xa8] sm:$0xff] %vm826, %v773
      %849 = vst.msk [vmem:[#allocation2 + $0xb0] sm:$0xff] %vm826, %v775
      %850 = vst.msk [vmem:[#allocation2 + $0xb8] sm:$0xff] %vm826, %v777
      %851 = vst.msk [vmem:[#allocation2 + $0xc0] sm:$0xff] %vm826, %v779
      %852 = vst.msk [vmem:[#allocation2 + $0xc8] sm:$0xff] %vm826, %v781
      %853 = vst.msk [vmem:[#allocation2 + $0xd0] sm:$0xff] %vm826, %v783
      %854 = vst.msk [vmem:[#allocation2 + $0xd8] sm:$0xff] %vm826, %v785
      %855 = vst.msk [vmem:[#allocation2 + $0xe0] sm:$0xff] %vm826, %v787
      %856 = vst.msk [vmem:[#allocation2 + $0xe8] sm:$0xff] %vm826, %v789
      %857 = vst.msk [vmem:[#allocation2 + $0xf0] sm:$0xff] %vm826, %v791
      %858 = vst.msk [vmem:[#allocation2 + $0xf8] sm:$0xff] %vm826, %v793
      %v860 = vrot.slane %v221, 1
      %v861 = vrot.slane %v222, 1
      %v862 = vsel %vm308, %v860, %v861
      %v863 = vrot.slane %v223, 1
      %v864 = vsel %vm308, %v861, %v863
      %865 = vrot.lane.b32.xlu0 %v316, 16
      %v866 = vpop.permute.xlu0 %865
      %867 = vrot.lane.b32.xlu0 %v318, 16
      %v868 = vpop.permute.xlu0 %867
      %869 = vrot.lane.b32.xlu0 %v321, 16
      %v870 = vpop.permute.xlu0 %869
      %871 = vrot.lane.b32.xlu0 %v323, 16
      %v872 = vpop.permute.xlu0 %871
      %873 = vrot.lane.b32.xlu0 %v326, 16
      %v874 = vpop.permute.xlu0 %873
      %875 = vrot.lane.b32.xlu0 %v328, 16
      %v876 = vpop.permute.xlu0 %875
      %877 = vrot.lane.b32.xlu0 %v331, 16
      %v878 = vpop.permute.xlu0 %877
      %879 = vrot.lane.b32.xlu0 %v333, 16
      %v880 = vpop.permute.xlu0 %879
      %881 = vrot.lane.b32.xlu0 %v336, 16
      %v882 = vpop.permute.xlu0 %881
      %883 = vrot.lane.b32.xlu0 %v338, 16
      %v884 = vpop.permute.xlu0 %883
      %885 = vrot.lane.b32.xlu0 %v341, 16
      %v886 = vpop.permute.xlu0 %885
      %887 = vrot.lane.b32.xlu0 %v343, 16
      %v888 = vpop.permute.xlu0 %887
      %889 = vrot.lane.b32.xlu0 %v346, 16
      %v890 = vpop.permute.xlu0 %889
      %891 = vrot.lane.b32.xlu0 %v348, 16
      %v892 = vpop.permute.xlu0 %891
      %893 = vrot.lane.b32.xlu0 %v351, 16
      %v894 = vpop.permute.xlu0 %893
      %895 = vrot.lane.b32.xlu0 %v353, 16
      %v896 = vpop.permute.xlu0 %895
      %897 = vrot.lane.b32.xlu0 %v356, 16
      %v898 = vpop.permute.xlu0 %897
      %899 = vrot.lane.b32.xlu0 %v358, 16
      %v900 = vpop.permute.xlu0 %899
      %901 = vrot.lane.b32.xlu0 %v361, 16
      %v902 = vpop.permute.xlu0 %901
      %903 = vrot.lane.b32.xlu0 %v363, 16
      %v904 = vpop.permute.xlu0 %903
      %905 = vrot.lane.b32.xlu0 %v366, 16
      %v906 = vpop.permute.xlu0 %905
      %907 = vrot.lane.b32.xlu0 %v368, 16
      %v908 = vpop.permute.xlu0 %907
      %909 = vrot.lane.b32.xlu0 %v371, 16
      %v910 = vpop.permute.xlu0 %909
      %911 = vrot.lane.b32.xlu0 %v373, 16
      %v912 = vpop.permute.xlu0 %911
      %913 = vrot.lane.b32.xlu0 %v376, 16
      %v914 = vpop.permute.xlu0 %913
      %915 = vrot.lane.b32.xlu0 %v378, 16
      %v916 = vpop.permute.xlu0 %915
      %917 = vrot.lane.b32.xlu0 %v381, 16
      %v918 = vpop.permute.xlu0 %917
      %919 = vrot.lane.b32.xlu0 %v383, 16
      %v920 = vpop.permute.xlu0 %919
      %921 = vrot.lane.b32.xlu0 %v386, 16
      %v922 = vpop.permute.xlu0 %921
      %923 = vrot.lane.b32.xlu0 %v388, 16
      %v924 = vpop.permute.xlu0 %923
      %925 = vrot.lane.b32.xlu0 %v862, 16
      %v926 = vpop.permute.xlu0 %925
      %927 = vrot.lane.b32.xlu0 %v864, 16
      %v928 = vpop.permute.xlu0 %927
      %vm961 = vcmask 162944
      %962 = vst.msk [vmem:[#allocation2] sm:$0xff] %vm961, %v866
      %963 = vst.msk [vmem:[#allocation2 + $0x8] sm:$0xff] %vm961, %v868
      %964 = vst.msk [vmem:[#allocation2 + $0x10] sm:$0xff] %vm961, %v870
      %965 = vst.msk [vmem:[#allocation2 + $0x18] sm:$0xff] %vm961, %v872
      %966 = vst.msk [vmem:[#allocation2 + $0x20] sm:$0xff] %vm961, %v874
      %967 = vst.msk [vmem:[#allocation2 + $0x28] sm:$0xff] %vm961, %v876
      %968 = vst.msk [vmem:[#allocation2 + $0x30] sm:$0xff] %vm961, %v878
      %969 = vst.msk [vmem:[#allocation2 + $0x38] sm:$0xff] %vm961, %v880
      %970 = vst.msk [vmem:[#allocation2 + $0x40] sm:$0xff] %vm961, %v882
      %971 = vst.msk [vmem:[#allocation2 + $0x48] sm:$0xff] %vm961, %v884
      %972 = vst.msk [vmem:[#allocation2 + $0x50] sm:$0xff] %vm961, %v886
      %973 = vst.msk [vmem:[#allocation2 + $0x58] sm:$0xff] %vm961, %v888
      %974 = vst.msk [vmem:[#allocation2 + $0x60] sm:$0xff] %vm961, %v890
      %975 = vst.msk [vmem:[#allocation2 + $0x68] sm:$0xff] %vm961, %v892
      %976 = vst.msk [vmem:[#allocation2 + $0x70] sm:$0xff] %vm961, %v894
      %977 = vst.msk [vmem:[#allocation2 + $0x78] sm:$0xff] %vm961, %v896
      %978 = vst.msk [vmem:[#allocation2 + $0x80] sm:$0xff] %vm961, %v898
      %979 = vst.msk [vmem:[#allocation2 + $0x88] sm:$0xff] %vm961, %v900
      %980 = vst.msk [vmem:[#allocation2 + $0x90] sm:$0xff] %vm961, %v902
      %981 = vst.msk [vmem:[#allocation2 + $0x98] sm:$0xff] %vm961, %v904
      %982 = vst.msk [vmem:[#allocation2 + $0xa0] sm:$0xff] %vm961, %v906
      %983 = vst.msk [vmem:[#allocation2 + $0xa8] sm:$0xff] %vm961, %v908
      %984 = vst.msk [vmem:[#allocation2 + $0xb0] sm:$0xff] %vm961, %v910
      %985 = vst.msk [vmem:[#allocation2 + $0xb8] sm:$0xff] %vm961, %v912
      %986 = vst.msk [vmem:[#allocation2 + $0xc0] sm:$0xff] %vm961, %v914
      %987 = vst.msk [vmem:[#allocation2 + $0xc8] sm:$0xff] %vm961, %v916
      %988 = vst.msk [vmem:[#allocation2 + $0xd0] sm:$0xff] %vm961, %v918
      %989 = vst.msk [vmem:[#allocation2 + $0xd8] sm:$0xff] %vm961, %v920
      %990 = vst.msk [vmem:[#allocation2 + $0xe0] sm:$0xff] %vm961, %v922
      %991 = vst.msk [vmem:[#allocation2 + $0xe8] sm:$0xff] %vm961, %v924
      %992 = vst.msk [vmem:[#allocation2 + $0xf0] sm:$0xff] %vm961, %v926
      %993 = vst.msk [vmem:[#allocation2 + $0xf8] sm:$0xff] %vm961, %v928
      %v994 = vrot.slane %v221, 2
      %v995 = vrot.slane %v222, 2
      %v996 = vsel %vm518, %v994, %v995
      %v997 = vrot.slane %v223, 2
      %v998 = vsel %vm518, %v995, %v997
      %999 = vrot.lane.b32.xlu0 %v526, 20
      %v1000 = vpop.permute.xlu0 %999
      %1001 = vrot.lane.b32.xlu0 %v528, 20
      %v1002 = vpop.permute.xlu0 %1001
      %1003 = vrot.lane.b32.xlu0 %v531, 20
      %v1004 = vpop.permute.xlu0 %1003
      %1005 = vrot.lane.b32.xlu0 %v533, 20
      %v1006 = vpop.permute.xlu0 %1005
      %1007 = vrot.lane.b32.xlu0 %v536, 20
      %v1008 = vpop.permute.xlu0 %1007
      %1009 = vrot.lane.b32.xlu0 %v538, 20
      %v1010 = vpop.permute.xlu0 %1009
      %1011 = vrot.lane.b32.xlu0 %v541, 20
      %v1012 = vpop.permute.xlu0 %1011
      %1013 = vrot.lane.b32.xlu0 %v543, 20
      %v1014 = vpop.permute.xlu0 %1013
      %1015 = vrot.lane.b32.xlu0 %v546, 20
      %v1016 = vpop.permute.xlu0 %1015
      %1017 = vrot.lane.b32.xlu0 %v548, 20
      %v1018 = vpop.permute.xlu0 %1017
      %1019 = vrot.lane.b32.xlu0 %v551, 20
      %v1020 = vpop.permute.xlu0 %1019
      %1021 = vrot.lane.b32.xlu0 %v553, 20
      %v1022 = vpop.permute.xlu0 %1021
      %1023 = vrot.lane.b32.xlu0 %v556, 20
      %v1024 = vpop.permute.xlu0 %1023
      %1025 = vrot.lane.b32.xlu0 %v558, 20
      %v1026 = vpop.permute.xlu0 %1025
      %1027 = vrot.lane.b32.xlu0 %v561, 20
      %v1028 = vpop.permute.xlu0 %1027
      %1029 = vrot.lane.b32.xlu0 %v563, 20
      %v1030 = vpop.permute.xlu0 %1029
      %1031 = vrot.lane.b32.xlu0 %v566, 20
      %v1032 = vpop.permute.xlu0 %1031
      %1033 = vrot.lane.b32.xlu0 %v568, 20
      %v1034 = vpop.permute.xlu0 %1033
      %1035 = vrot.lane.b32.xlu0 %v571, 20
      %v1036 = vpop.permute.xlu0 %1035
      %1037 = vrot.lane.b32.xlu0 %v573, 20
      %v1038 = vpop.permute.xlu0 %1037
      %1039 = vrot.lane.b32.xlu0 %v576, 20
      %v1040 = vpop.permute.xlu0 %1039
      %1041 = vrot.lane.b32.xlu0 %v578, 20
      %v1042 = vpop.permute.xlu0 %1041
      %1043 = vrot.lane.b32.xlu0 %v581, 20
      %v1044 = vpop.permute.xlu0 %1043
      %1045 = vrot.lane.b32.xlu0 %v583, 20
      %v1046 = vpop.permute.xlu0 %1045
      %1047 = vrot.lane.b32.xlu0 %v586, 20
      %v1048 = vpop.permute.xlu0 %1047
      %1049 = vrot.lane.b32.xlu0 %v588, 20
      %v1050 = vpop.permute.xlu0 %1049
      %1051 = vrot.lane.b32.xlu0 %v591, 20
      %v1052 = vpop.permute.xlu0 %1051
      %1053 = vrot.lane.b32.xlu0 %v593, 20
      %v1054 = vpop.permute.xlu0 %1053
      %1055 = vrot.lane.b32.xlu0 %v596, 20
      %v1056 = vpop.permute.xlu0 %1055
      %1057 = vrot.lane.b32.xlu0 %v598, 20
      %v1058 = vpop.permute.xlu0 %1057
      %1059 = vrot.lane.b32.xlu0 %v996, 20
      %v1060 = vpop.permute.xlu0 %1059
      %1061 = vrot.lane.b32.xlu0 %v998, 20
      %v1062 = vpop.permute.xlu0 %1061
      %vm1095 = vcmask 195744
      %1096 = vst.msk [vmem:[#allocation2] sm:$0xff] %vm1095, %v1000
      %1097 = vst.msk [vmem:[#allocation2 + $0x8] sm:$0xff] %vm1095, %v1002
      %1098 = vst.msk [vmem:[#allocation2 + $0x10] sm:$0xff] %vm1095, %v1004
      %1099 = vst.msk [vmem:[#allocation2 + $0x18] sm:$0xff] %vm1095, %v1006
      %1100 = vst.msk [vmem:[#allocation2 + $0x20] sm:$0xff] %vm1095, %v1008
      %1101 = vst.msk [vmem:[#allocation2 + $0x28] sm:$0xff] %vm1095, %v1010
      %1102 = vst.msk [vmem:[#allocation2 + $0x30] sm:$0xff] %vm1095, %v1012
      %1103 = vst.msk [vmem:[#allocation2 + $0x38] sm:$0xff] %vm1095, %v1014
      %1104 = vst.msk [vmem:[#allocation2 + $0x40] sm:$0xff] %vm1095, %v1016
      %1105 = vst.msk [vmem:[#allocation2 + $0x48] sm:$0xff] %vm1095, %v1018
      %1106 = vst.msk [vmem:[#allocation2 + $0x50] sm:$0xff] %vm1095, %v1020
      %1107 = vst.msk [vmem:[#allocation2 + $0x58] sm:$0xff] %vm1095, %v1022
      %1108 = vst.msk [vmem:[#allocation2 + $0x60] sm:$0xff] %vm1095, %v1024
      %1109 = vst.msk [vmem:[#allocation2 + $0x68] sm:$0xff] %vm1095, %v1026
      %1110 = vst.msk [vmem:[#allocation2 + $0x70] sm:$0xff] %vm1095, %v1028
      %1111 = vst.msk [vmem:[#allocation2 + $0x78] sm:$0xff] %vm1095, %v1030
      %1112 = vst.msk [vmem:[#allocation2 + $0x80] sm:$0xff] %vm1095, %v1032
      %1113 = vst.msk [vmem:[#allocation2 + $0x88] sm:$0xff] %vm1095, %v1034
      %1114 = vst.msk [vmem:[#allocation2 + $0x90] sm:$0xff] %vm1095, %v1036
      %1115 = vst.msk [vmem:[#allocation2 + $0x98] sm:$0xff] %vm1095, %v1038
      %1116 = vst.msk [vmem:[#allocation2 + $0xa0] sm:$0xff] %vm1095, %v1040
      %1117 = vst.msk [vmem:[#allocation2 + $0xa8] sm:$0xff] %vm1095, %v1042
      %1118 = vst.msk [vmem:[#allocation2 + $0xb0] sm:$0xff] %vm1095, %v1044
      %1119 = vst.msk [vmem:[#allocation2 + $0xb8] sm:$0xff] %vm1095, %v1046
      %1120 = vst.msk [vmem:[#allocation2 + $0xc0] sm:$0xff] %vm1095, %v1048
      %1121 = vst.msk [vmem:[#allocation2 + $0xc8] sm:$0xff] %vm1095, %v1050
      %1122 = vst.msk [vmem:[#allocation2 + $0xd0] sm:$0xff] %vm1095, %v1052
      %1123 = vst.msk [vmem:[#allocation2 + $0xd8] sm:$0xff] %vm1095, %v1054
      %1124 = vst.msk [vmem:[#allocation2 + $0xe0] sm:$0xff] %vm1095, %v1056
      %1125 = vst.msk [vmem:[#allocation2 + $0xe8] sm:$0xff] %vm1095, %v1058
      %1126 = vst.msk [vmem:[#allocation2 + $0xf0] sm:$0xff] %vm1095, %v1060
      %1127 = vst.msk [vmem:[#allocation2 + $0xf8] sm:$0xff] %vm1095, %v1062
      %1130 = vrot.lane.b32.xlu0 %v179, 24
      %v1131 = vpop.permute.xlu0 %1130
      %1132 = vrot.lane.b32.xlu0 %v180, 24
      %v1133 = vpop.permute.xlu0 %1132
      %1134 = vrot.lane.b32.xlu0 %v182, 24
      %v1135 = vpop.permute.xlu0 %1134
      %1136 = vrot.lane.b32.xlu0 %v183, 24
      %v1137 = vpop.permute.xlu0 %1136
      %1138 = vrot.lane.b32.xlu0 %v185, 24
      %v1139 = vpop.permute.xlu0 %1138
      %1140 = vrot.lane.b32.xlu0 %v186, 24
      %v1141 = vpop.permute.xlu0 %1140
      %1142 = vrot.lane.b32.xlu0 %v188, 24
      %v1143 = vpop.permute.xlu0 %1142
      %1144 = vrot.lane.b32.xlu0 %v189, 24
      %v1145 = vpop.permute.xlu0 %1144
      %1146 = vrot.lane.b32.xlu0 %v191, 24
      %v1147 = vpop.permute.xlu0 %1146
      %1148 = vrot.lane.b32.xlu0 %v192, 24
      %v1149 = vpop.permute.xlu0 %1148
      %1150 = vrot.lane.b32.xlu0 %v194, 24
      %v1151 = vpop.permute.xlu0 %1150
      %1152 = vrot.lane.b32.xlu0 %v195, 24
      %v1153 = vpop.permute.xlu0 %1152
      %1154 = vrot.lane.b32.xlu0 %v197, 24
      %v1155 = vpop.permute.xlu0 %1154
      %1156 = vrot.lane.b32.xlu0 %v198, 24
      %v1157 = vpop.permute.xlu0 %1156
      %1158 = vrot.lane.b32.xlu0 %v200, 24
      %v1159 = vpop.permute.xlu0 %1158
      %1160 = vrot.lane.b32.xlu0 %v201, 24
      %v1161 = vpop.permute.xlu0 %1160
      %1162 = vrot.lane.b32.xlu0 %v203, 24
      %v1163 = vpop.permute.xlu0 %1162
      %1164 = vrot.lane.b32.xlu0 %v204, 24
      %v1165 = vpop.permute.xlu0 %1164
      %1166 = vrot.lane.b32.xlu0 %v206, 24
      %v1167 = vpop.permute.xlu0 %1166
      %1168 = vrot.lane.b32.xlu0 %v207, 24
      %v1169 = vpop.permute.xlu0 %1168
      %1170 = vrot.lane.b32.xlu0 %v209, 24
      %v1171 = vpop.permute.xlu0 %1170
      %1172 = vrot.lane.b32.xlu0 %v210, 24
      %v1173 = vpop.permute.xlu0 %1172
      %1174 = vrot.lane.b32.xlu0 %v212, 24
      %v1175 = vpop.permute.xlu0 %1174
      %1176 = vrot.lane.b32.xlu0 %v213, 24
      %v1177 = vpop.permute.xlu0 %1176
      %1178 = vrot.lane.b32.xlu0 %v215, 24
      %v1179 = vpop.permute.xlu0 %1178
      %1180 = vrot.lane.b32.xlu0 %v216, 24
      %v1181 = vpop.permute.xlu0 %1180
      %1182 = vrot.lane.b32.xlu0 %v218, 24
      %v1183 = vpop.permute.xlu0 %1182
      %1184 = vrot.lane.b32.xlu0 %v219, 24
      %v1185 = vpop.permute.xlu0 %1184
      %1186 = vrot.lane.b32.xlu0 %v221, 24
      %v1187 = vpop.permute.xlu0 %1186
      %1188 = vrot.lane.b32.xlu0 %v222, 24
      %v1189 = vpop.permute.xlu0 %1188
      %1190 = vrot.lane.b32.xlu0 %v224, 24
      %v1191 = vpop.permute.xlu0 %1190
      %1192 = vrot.lane.b32.xlu0 %v225, 24
      %v1193 = vpop.permute.xlu0 %1192
      %vm1226 = vcmask 228544
      %1227 = vst.msk [vmem:[#allocation2] sm:$0xff] %vm1226, %v1131
      %1228 = vst.msk [vmem:[#allocation2 + $0x8] sm:$0xff] %vm1226, %v1133
      %1229 = vst.msk [vmem:[#allocation2 + $0x10] sm:$0xff] %vm1226, %v1135
      %1230 = vst.msk [vmem:[#allocation2 + $0x18] sm:$0xff] %vm1226, %v1137
      %1231 = vst.msk [vmem:[#allocation2 + $0x20] sm:$0xff] %vm1226, %v1139
      %1232 = vst.msk [vmem:[#allocation2 + $0x28] sm:$0xff] %vm1226, %v1141
      %1233 = vst.msk [vmem:[#allocation2 + $0x30] sm:$0xff] %vm1226, %v1143
      %1234 = vst.msk [vmem:[#allocation2 + $0x38] sm:$0xff] %vm1226, %v1145
      %1235 = vst.msk [vmem:[#allocation2 + $0x40] sm:$0xff] %vm1226, %v1147
      %1236 = vst.msk [vmem:[#allocation2 + $0x48] sm:$0xff] %vm1226, %v1149
      %1237 = vst.msk [vmem:[#allocation2 + $0x50] sm:$0xff] %vm1226, %v1151
      %1238 = vst.msk [vmem:[#allocation2 + $0x58] sm:$0xff] %vm1226, %v1153
      %1239 = vst.msk [vmem:[#allocation2 + $0x60] sm:$0xff] %vm1226, %v1155
      %1240 = vst.msk [vmem:[#allocation2 + $0x68] sm:$0xff] %vm1226, %v1157
      %1241 = vst.msk [vmem:[#allocation2 + $0x70] sm:$0xff] %vm1226, %v1159
      %1242 = vst.msk [vmem:[#allocation2 + $0x78] sm:$0xff] %vm1226, %v1161
      %1243 = vst.msk [vmem:[#allocation2 + $0x80] sm:$0xff] %vm1226, %v1163
      %1244 = vst.msk [vmem:[#allocation2 + $0x88] sm:$0xff] %vm1226, %v1165
      %1245 = vst.msk [vmem:[#allocation2 + $0x90] sm:$0xff] %vm1226, %v1167
      %1246 = vst.msk [vmem:[#allocation2 + $0x98] sm:$0xff] %vm1226, %v1169
      %1247 = vst.msk [vmem:[#allocation2 + $0xa0] sm:$0xff] %vm1226, %v1171
      %1248 = vst.msk [vmem:[#allocation2 + $0xa8] sm:$0xff] %vm1226, %v1173
      %1249 = vst.msk [vmem:[#allocation2 + $0xb0] sm:$0xff] %vm1226, %v1175
      %1250 = vst.msk [vmem:[#allocation2 + $0xb8] sm:$0xff] %vm1226, %v1177
      %1251 = vst.msk [vmem:[#allocation2 + $0xc0] sm:$0xff] %vm1226, %v1179
      %1252 = vst.msk [vmem:[#allocation2 + $0xc8] sm:$0xff] %vm1226, %v1181
      %1253 = vst.msk [vmem:[#allocation2 + $0xd0] sm:$0xff] %vm1226, %v1183
      %1254 = vst.msk [vmem:[#allocation2 + $0xd8] sm:$0xff] %vm1226, %v1185
      %1255 = vst.msk [vmem:[#allocation2 + $0xe0] sm:$0xff] %vm1226, %v1187
      %1256 = vst.msk [vmem:[#allocation2 + $0xe8] sm:$0xff] %vm1226, %v1189
      %1257 = vst.msk [vmem:[#allocation2 + $0xf0] sm:$0xff] %vm1226, %v1191
      %1258 = vst.msk [vmem:[#allocation2 + $0xf8] sm:$0xff] %vm1226, %v1193
      %v1260 = vrot.slane %v224, 1
      %v1261 = vrot.slane %v225, 1
      %v1262 = vsel %vm308, %v1260, %v1261
      %v1263 = vrot.slane %v226, 1
      %v1264 = vsel %vm308, %v1261, %v1263
      %1265 = vrot.lane.b32.xlu0 %v321, 28
      %v1266 = vpop.permute.xlu0 %1265
      %1267 = vrot.lane.b32.xlu0 %v323, 28
      %v1268 = vpop.permute.xlu0 %1267
      %1269 = vrot.lane.b32.xlu0 %v326, 28
      %v1270 = vpop.permute.xlu0 %1269
      %1271 = vrot.lane.b32.xlu0 %v328, 28
      %v1272 = vpop.permute.xlu0 %1271
      %1273 = vrot.lane.b32.xlu0 %v331, 28
      %v1274 = vpop.permute.xlu0 %1273
      %1275 = vrot.lane.b32.xlu0 %v333, 28
      %v1276 = vpop.permute.xlu0 %1275
      %1277 = vrot.lane.b32.xlu0 %v336, 28
      %v1278 = vpop.permute.xlu0 %1277
      %1279 = vrot.lane.b32.xlu0 %v338, 28
      %v1280 = vpop.permute.xlu0 %1279
      %1281 = vrot.lane.b32.xlu0 %v341, 28
      %v1282 = vpop.permute.xlu0 %1281
      %1283 = vrot.lane.b32.xlu0 %v343, 28
      %v1284 = vpop.permute.xlu0 %1283
      %1285 = vrot.lane.b32.xlu0 %v346, 28
      %v1286 = vpop.permute.xlu0 %1285
      %1287 = vrot.lane.b32.xlu0 %v348, 28
      %v1288 = vpop.permute.xlu0 %1287
      %1289 = vrot.lane.b32.xlu0 %v351, 28
      %v1290 = vpop.permute.xlu0 %1289
      %1291 = vrot.lane.b32.xlu0 %v353, 28
      %v1292 = vpop.permute.xlu0 %1291
      %1293 = vrot.lane.b32.xlu0 %v356, 28
      %v1294 = vpop.permute.xlu0 %1293
      %1295 = vrot.lane.b32.xlu0 %v358, 28
      %v1296 = vpop.permute.xlu0 %1295
      %1297 = vrot.lane.b32.xlu0 %v361, 28
      %v1298 = vpop.permute.xlu0 %1297
      %1299 = vrot.lane.b32.xlu0 %v363, 28
      %v1300 = vpop.permute.xlu0 %1299
      %1301 = vrot.lane.b32.xlu0 %v366, 28
      %v1302 = vpop.permute.xlu0 %1301
      %1303 = vrot.lane.b32.xlu0 %v368, 28
      %v1304 = vpop.permute.xlu0 %1303
      %1305 = vrot.lane.b32.xlu0 %v371, 28
      %v1306 = vpop.permute.xlu0 %1305
      %1307 = vrot.lane.b32.xlu0 %v373, 28
      %v1308 = vpop.permute.xlu0 %1307
      %1309 = vrot.lane.b32.xlu0 %v376, 28
      %v1310 = vpop.permute.xlu0 %1309
      %1311 = vrot.lane.b32.xlu0 %v378, 28
      %v1312 = vpop.permute.xlu0 %1311
      %1313 = vrot.lane.b32.xlu0 %v381, 28
      %v1314 = vpop.permute.xlu0 %1313
      %1315 = vrot.lane.b32.xlu0 %v383, 28
      %v1316 = vpop.permute.xlu0 %1315
      %1317 = vrot.lane.b32.xlu0 %v386, 28
      %v1318 = vpop.permute.xlu0 %1317
      %1319 = vrot.lane.b32.xlu0 %v388, 28
      %v1320 = vpop.permute.xlu0 %1319
      %1321 = vrot.lane.b32.xlu0 %v862, 28
      %v1322 = vpop.permute.xlu0 %1321
      %1323 = vrot.lane.b32.xlu0 %v864, 28
      %v1324 = vpop.permute.xlu0 %1323
      %1325 = vrot.lane.b32.xlu0 %v1262, 28
      %v1326 = vpop.permute.xlu0 %1325
      %1327 = vrot.lane.b32.xlu0 %v1264, 28
      %v1328 = vpop.permute.xlu0 %1327
      %vm1361 = vcmask 261344
      %1362 = vst.msk [vmem:[#allocation2] sm:$0xff] %vm1361, %v1266
      %1363 = vst.msk [vmem:[#allocation2 + $0x8] sm:$0xff] %vm1361, %v1268
      %1364 = vst.msk [vmem:[#allocation2 + $0x10] sm:$0xff] %vm1361, %v1270
      %1365 = vst.msk [vmem:[#allocation2 + $0x18] sm:$0xff] %vm1361, %v1272
      %1366 = vst.msk [vmem:[#allocation2 + $0x20] sm:$0xff] %vm1361, %v1274
      %1367 = vst.msk [vmem:[#allocation2 + $0x28] sm:$0xff] %vm1361, %v1276
      %1368 = vst.msk [vmem:[#allocation2 + $0x30] sm:$0xff] %vm1361, %v1278
      %1369 = vst.msk [vmem:[#allocation2 + $0x38] sm:$0xff] %vm1361, %v1280
      %1370 = vst.msk [vmem:[#allocation2 + $0x40] sm:$0xff] %vm1361, %v1282
      %1371 = vst.msk [vmem:[#allocation2 + $0x48] sm:$0xff] %vm1361, %v1284
      %1372 = vst.msk [vmem:[#allocation2 + $0x50] sm:$0xff] %vm1361, %v1286
      %1373 = vst.msk [vmem:[#allocation2 + $0x58] sm:$0xff] %vm1361, %v1288
      %1374 = vst.msk [vmem:[#allocation2 + $0x60] sm:$0xff] %vm1361, %v1290
      %1375 = vst.msk [vmem:[#allocation2 + $0x68] sm:$0xff] %vm1361, %v1292
      %1376 = vst.msk [vmem:[#allocation2 + $0x70] sm:$0xff] %vm1361, %v1294
      %1377 = vst.msk [vmem:[#allocation2 + $0x78] sm:$0xff] %vm1361, %v1296
      %1378 = vst.msk [vmem:[#allocation2 + $0x80] sm:$0xff] %vm1361, %v1298
      %1379 = vst.msk [vmem:[#allocation2 + $0x88] sm:$0xff] %vm1361, %v1300
      %1380 = vst.msk [vmem:[#allocation2 + $0x90] sm:$0xff] %vm1361, %v1302
      %1381 = vst.msk [vmem:[#allocation2 + $0x98] sm:$0xff] %vm1361, %v1304
      %1382 = vst.msk [vmem:[#allocation2 + $0xa0] sm:$0xff] %vm1361, %v1306
      %1383 = vst.msk [vmem:[#allocation2 + $0xa8] sm:$0xff] %vm1361, %v1308
      %1384 = vst.msk [vmem:[#allocation2 + $0xb0] sm:$0xff] %vm1361, %v1310
      %1385 = vst.msk [vmem:[#allocation2 + $0xb8] sm:$0xff] %vm1361, %v1312
      %1386 = vst.msk [vmem:[#allocation2 + $0xc0] sm:$0xff] %vm1361, %v1314
      %1387 = vst.msk [vmem:[#allocation2 + $0xc8] sm:$0xff] %vm1361, %v1316
      %1388 = vst.msk [vmem:[#allocation2 + $0xd0] sm:$0xff] %vm1361, %v1318
      %1389 = vst.msk [vmem:[#allocation2 + $0xd8] sm:$0xff] %vm1361, %v1320
      %1390 = vst.msk [vmem:[#allocation2 + $0xe0] sm:$0xff] %vm1361, %v1322
      %1391 = vst.msk [vmem:[#allocation2 + $0xe8] sm:$0xff] %vm1361, %v1324
      %1392 = vst.msk [vmem:[#allocation2 + $0xf0] sm:$0xff] %vm1361, %v1326
      %1393 = vst.msk [vmem:[#allocation2 + $0xf8] sm:$0xff] %vm1361, %v1328
      %v1394 = vrot.slane %v224, 2
      %v1395 = vrot.slane %v225, 2
      %v1396 = vsel %vm518, %v1394, %v1395
      %v1397 = vrot.slane %v226, 2
      %v1398 = vsel %vm518, %v1395, %v1397
      %1399 = vrot.lane.b32.xlu0 %v531, 32
      %v1400 = vpop.permute.xlu0 %1399
      %1401 = vrot.lane.b32.xlu0 %v533, 32
      %v1402 = vpop.permute.xlu0 %1401
      %1403 = vrot.lane.b32.xlu0 %v536, 32
      %v1404 = vpop.permute.xlu0 %1403
      %1405 = vrot.lane.b32.xlu0 %v538, 32
      %v1406 = vpop.permute.xlu0 %1405
      %1407 = vrot.lane.b32.xlu0 %v541, 32
      %v1408 = vpop.permute.xlu0 %1407
      %1409 = vrot.lane.b32.xlu0 %v543, 32
      %v1410 = vpop.permute.xlu0 %1409
      %1411 = vrot.lane.b32.xlu0 %v546, 32
      %v1412 = vpop.permute.xlu0 %1411
      %1413 = vrot.lane.b32.xlu0 %v548, 32
      %v1414 = vpop.permute.xlu0 %1413
      %1415 = vrot.lane.b32.xlu0 %v551, 32
      %v1416 = vpop.permute.xlu0 %1415
      %1417 = vrot.lane.b32.xlu0 %v553, 32
      %v1418 = vpop.permute.xlu0 %1417
      %1419 = vrot.lane.b32.xlu0 %v556, 32
      %v1420 = vpop.permute.xlu0 %1419
      %1421 = vrot.lane.b32.xlu0 %v558, 32
      %v1422 = vpop.permute.xlu0 %1421
      %1423 = vrot.lane.b32.xlu0 %v561, 32
      %v1424 = vpop.permute.xlu0 %1423
      %1425 = vrot.lane.b32.xlu0 %v563, 32
      %v1426 = vpop.permute.xlu0 %1425
      %1427 = vrot.lane.b32.xlu0 %v566, 32
      %v1428 = vpop.permute.xlu0 %1427
      %1429 = vrot.lane.b32.xlu0 %v568, 32
      %v1430 = vpop.permute.xlu0 %1429
      %1431 = vrot.lane.b32.xlu0 %v571, 32
      %v1432 = vpop.permute.xlu0 %1431
      %1433 = vrot.lane.b32.xlu0 %v573, 32
      %v1434 = vpop.permute.xlu0 %1433
      %1435 = vrot.lane.b32.xlu0 %v576, 32
      %v1436 = vpop.permute.xlu0 %1435
      %1437 = vrot.lane.b32.xlu0 %v578, 32
      %v1438 = vpop.permute.xlu0 %1437
      %1439 = vrot.lane.b32.xlu0 %v581, 32
      %v1440 = vpop.permute.xlu0 %1439
      %1441 = vrot.lane.b32.xlu0 %v583, 32
      %v1442 = vpop.permute.xlu0 %1441
      %1443 = vrot.lane.b32.xlu0 %v586, 32
      %v1444 = vpop.permute.xlu0 %1443
      %1445 = vrot.lane.b32.xlu0 %v588, 32
      %v1446 = vpop.permute.xlu0 %1445
      %1447 = vrot.lane.b32.xlu0 %v591, 32
      %v1448 = vpop.permute.xlu0 %1447
      %1449 = vrot.lane.b32.xlu0 %v593, 32
      %v1450 = vpop.permute.xlu0 %1449
      %1451 = vrot.lane.b32.xlu0 %v596, 32
      %v1452 = vpop.permute.xlu0 %1451
      %1453 = vrot.lane.b32.xlu0 %v598, 32
      %v1454 = vpop.permute.xlu0 %1453
      %1455 = vrot.lane.b32.xlu0 %v996, 32
      %v1456 = vpop.permute.xlu0 %1455
      %1457 = vrot.lane.b32.xlu0 %v998, 32
      %v1458 = vpop.permute.xlu0 %1457
      %1459 = vrot.lane.b32.xlu0 %v1396, 32
      %v1460 = vpop.permute.xlu0 %1459
      %1461 = vrot.lane.b32.xlu0 %v1398, 32
      %v1462 = vpop.permute.xlu0 %1461
      %vm1495 = vcmask 294144
      %1496 = vst.msk [vmem:[#allocation2] sm:$0xff] %vm1495, %v1400
      %1497 = vst.msk [vmem:[#allocation2 + $0x8] sm:$0xff] %vm1495, %v1402
      %1498 = vst.msk [vmem:[#allocation2 + $0x10] sm:$0xff] %vm1495, %v1404
      %1499 = vst.msk [vmem:[#allocation2 + $0x18] sm:$0xff] %vm1495, %v1406
      %1500 = vst.msk [vmem:[#allocation2 + $0x20] sm:$0xff] %vm1495, %v1408
      %1501 = vst.msk [vmem:[#allocation2 + $0x28] sm:$0xff] %vm1495, %v1410
      %1502 = vst.msk [vmem:[#allocation2 + $0x30] sm:$0xff] %vm1495, %v1412
      %1503 = vst.msk [vmem:[#allocation2 + $0x38] sm:$0xff] %vm1495, %v1414
      %1504 = vst.msk [vmem:[#allocation2 + $0x40] sm:$0xff] %vm1495, %v1416
      %1505 = vst.msk [vmem:[#allocation2 + $0x48] sm:$0xff] %vm1495, %v1418
      %1506 = vst.msk [vmem:[#allocation2 + $0x50] sm:$0xff] %vm1495, %v1420
      %1507 = vst.msk [vmem:[#allocation2 + $0x58] sm:$0xff] %vm1495, %v1422
      %1508 = vst.msk [vmem:[#allocation2 + $0x60] sm:$0xff] %vm1495, %v1424
      %1509 = vst.msk [vmem:[#allocation2 + $0x68] sm:$0xff] %vm1495, %v1426
      %1510 = vst.msk [vmem:[#allocation2 + $0x70] sm:$0xff] %vm1495, %v1428
      %1511 = vst.msk [vmem:[#allocation2 + $0x78] sm:$0xff] %vm1495, %v1430
      %1512 = vst.msk [vmem:[#allocation2 + $0x80] sm:$0xff] %vm1495, %v1432
      %1513 = vst.msk [vmem:[#allocation2 + $0x88] sm:$0xff] %vm1495, %v1434
      %1514 = vst.msk [vmem:[#allocation2 + $0x90] sm:$0xff] %vm1495, %v1436
      %1515 = vst.msk [vmem:[#allocation2 + $0x98] sm:$0xff] %vm1495, %v1438
      %1516 = vst.msk [vmem:[#allocation2 + $0xa0] sm:$0xff] %vm1495, %v1440
      %1517 = vst.msk [vmem:[#allocation2 + $0xa8] sm:$0xff] %vm1495, %v1442
      %1518 = vst.msk [vmem:[#allocation2 + $0xb0] sm:$0xff] %vm1495, %v1444
      %1519 = vst.msk [vmem:[#allocation2 + $0xb8] sm:$0xff] %vm1495, %v1446
      %1520 = vst.msk [vmem:[#allocation2 + $0xc0] sm:$0xff] %vm1495, %v1448
      %1521 = vst.msk [vmem:[#allocation2 + $0xc8] sm:$0xff] %vm1495, %v1450
      %1522 = vst.msk [vmem:[#allocation2 + $0xd0] sm:$0xff] %vm1495, %v1452
      %1523 = vst.msk [vmem:[#allocation2 + $0xd8] sm:$0xff] %vm1495, %v1454
      %1524 = vst.msk [vmem:[#allocation2 + $0xe0] sm:$0xff] %vm1495, %v1456
      %1525 = vst.msk [vmem:[#allocation2 + $0xe8] sm:$0xff] %vm1495, %v1458
      %1526 = vst.msk [vmem:[#allocation2 + $0xf0] sm:$0xff] %vm1495, %v1460
      %1527 = vst.msk [vmem:[#allocation2 + $0xf8] sm:$0xff] %vm1495, %v1462
      %v1528 = vld [vmem:[#allocation2] sm:$0xff]
      %v1529 = vld [vmem:[#allocation2 + $0x8] sm:$0xff]
      %v1530 = vld [vmem:[#allocation2 + $0x10] sm:$0xff]
      %v1531 = vld [vmem:[#allocation2 + $0x18] sm:$0xff]
      %v1532 = vld [vmem:[#allocation2 + $0x20] sm:$0xff]
      %v1533 = vld [vmem:[#allocation2 + $0x28] sm:$0xff]
      %v1534 = vld [vmem:[#allocation2 + $0x30] sm:$0xff]
      %v1535 = vld [vmem:[#allocation2 + $0x38] sm:$0xff]
      %v1536 = vld [vmem:[#allocation2 + $0x40] sm:$0xff]
      %v1537 = vld [vmem:[#allocation2 + $0x48] sm:$0xff]
      %v1538 = vld [vmem:[#allocation2 + $0x50] sm:$0xff]
      %v1539 = vld [vmem:[#allocation2 + $0x58] sm:$0xff]
      %v1540 = vld [vmem:[#allocation2 + $0x60] sm:$0xff]
      %v1541 = vld [vmem:[#allocation2 + $0x68] sm:$0xff]
      %v1542 = vld [vmem:[#allocation2 + $0x70] sm:$0xff]
      %v1543 = vld [vmem:[#allocation2 + $0x78] sm:$0xff]
      %v1544 = vld [vmem:[#allocation2 + $0x80] sm:$0xff]
      %v1545 = vld [vmem:[#allocation2 + $0x88] sm:$0xff]
      %v1546 = vld [vmem:[#allocation2 + $0x90] sm:$0xff]
      %v1547 = vld [vmem:[#allocation2 + $0x98] sm:$0xff]
      %v1548 = vld [vmem:[#allocation2 + $0xa0] sm:$0xff]
      %v1549 = vld [vmem:[#allocation2 + $0xa8] sm:$0xff]
      %v1550 = vld [vmem:[#allocation2 + $0xb0] sm:$0xff]
      %v1551 = vld [vmem:[#allocation2 + $0xb8] sm:$0xff]
      %v1552 = vld [vmem:[#allocation2 + $0xc0] sm:$0xff]
      %v1553 = vld [vmem:[#allocation2 + $0xc8] sm:$0xff]
      %v1554 = vld [vmem:[#allocation2 + $0xd0] sm:$0xff]
      %v1555 = vld [vmem:[#allocation2 + $0xd8] sm:$0xff]
      %v1556 = vld [vmem:[#allocation2 + $0xe0] sm:$0xff]
      %v1557 = vld [vmem:[#allocation2 + $0xe8] sm:$0xff]
      %v1558 = vld [vmem:[#allocation2 + $0xf0] sm:$0xff]
      %v1559 = vld [vmem:[#allocation2 + $0xf8] sm:$0xff]
      %v1560 = vpack.c.bf16 %v1529, %v1528
      %v1561 = vpack.c.bf16 %v1531, %v1530
      %v1562 = vpack.c.bf16 %v1533, %v1532
      %v1563 = vpack.c.bf16 %v1535, %v1534
      %v1564 = vpack.c.bf16 %v1537, %v1536
      %v1565 = vpack.c.bf16 %v1539, %v1538
      %v1566 = vpack.c.bf16 %v1541, %v1540
      %v1567 = vpack.c.bf16 %v1543, %v1542
      %v1568 = vpack.c.bf16 %v1545, %v1544
      %v1569 = vpack.c.bf16 %v1547, %v1546
      %v1570 = vpack.c.bf16 %v1549, %v1548
      %v1571 = vpack.c.bf16 %v1551, %v1550
      %v1572 = vpack.c.bf16 %v1553, %v1552
      %v1573 = vpack.c.bf16 %v1555, %v1554
      %v1574 = vpack.c.bf16 %v1557, %v1556
      %v1575 = vpack.c.bf16 %v1559, %v1558
      %v1576 = vld [vmem:[%s1] sm:$0xf]
      %v1577 = vld [vmem:[%s1 + $0x4] sm:$0xf]
      %v1578 = vld [vmem:[%s1 + $0x8] sm:$0xf]
      %v1579 = vld [vmem:[%s1 + $0xc] sm:$0xf]
      %v1580 = vld [vmem:[%s1 + $0x10] sm:$0x3]
      %v1581 = vld [vmem:[%s2] sm:$0x1]
      %v1583 = vlaneseq
      %v1584 = vshrl.u32 %v1583, 7
      %v1585 = vsub.s32 0, %v1584
      %v1586 = vrot.slane %v1581, %v1585
      %v1593 = vunpack.c.l.b16 %v1576
      %v1594 = vunpack.c.l.b16 %v1577
      %v1595 = vunpack.c.l.b16 %v1578
      %v1596 = vunpack.c.l.b16 %v1579
      %v1597 = vunpack.c.l.b16 %v1580
      %v1598 = vpack.c.b16 %v1594, %v1593
      %v1599 = vpack.c.b16 %v1596, %v1595
      %v1600 = vpack.c.b16 %v1597, %v1597
      %vm1603 = vcmask 293888
      %v1605 = vsel %vm1603, %v1560, 0
      %v1608 = vsel %vm1603, %v1561, 0
      %v1611 = vsel %vm1603, %v1562, 0
      %v1614 = vsel %vm1603, %v1563, 0
      %v1617 = vsel %vm1603, %v1564, 0
      %v1620 = vsel %vm1603, %v1565, 0
      %v1623 = vsel %vm1603, %v1566, 0
      %v1626 = vsel %vm1603, %v1567, 0
      %v1629 = vsel %vm1603, %v1568, 0
      %v1632 = vsel %vm1603, %v1569, 0
      %v1635 = vsel %vm1603, %v1570, 0
      %v1638 = vsel %vm1603, %v1571, 0
      %v1641 = vsel %vm1603, %v1572, 0
      %v1644 = vsel %vm1603, %v1573, 0
      %v1647 = vsel %vm1603, %v1574, 0
      %v1650 = vsel %vm1603, %v1575, 0
      %vm1652 = vcmask 1041408
      %v1654 = vsel %vm1652, %v1600, 0
      %1656 = vmatprep.subr.bf16.mxu0 0
      %1657 = vmatpush1.bf16.msra.mxu0 %v1598
      %1658 = vmatprep.subr.bf16.mxu0 0
      %1659 = vmatpush1.bf16.msra.mxu0 %v1599
      %1660 = vmatprep.subr.bf16.mxu0 0
      %1661 = vmatpush1.bf16.msra.mxu0 %v1654
      %1662 = vmatprep.subr.bf16.mxu0 0
      %1663 = vmatpush1.bf16.msra.mxu0 0
      %1664 = vmatprep.subr.bf16.mxu0 0
      %1665 = vmatpush1.bf16.msra.mxu0 0
      %1666 = vmatprep.subr.bf16.mxu0 0
      %1667 = vmatpush1.bf16.msra.mxu0 0
      %1668 = vmatprep.subr.bf16.mxu0 0
      %1669 = vmatpush1.bf16.msra.mxu0 0
      %1670 = vmatprep.subr.bf16.mxu0 0
      %1671 = vmatpush1.bf16.msra.mxu0 0
      %1672 = vmatprep.subr.bf16.mxu0 0
      %1673 = vmatpush1.bf16.msra.mxu0 0
      %1674 = vmatprep.subr.bf16.mxu0 0
      %1675 = vmatpush1.bf16.msra.mxu0 0
      %1676 = vmatprep.subr.bf16.mxu0 0
      %1677 = vmatpush1.bf16.msra.mxu0 0
      %1678 = vmatprep.subr.bf16.mxu0 0
      %1679 = vmatpush1.bf16.msra.mxu0 0
      %1680 = vmatprep.subr.bf16.mxu0 0
      %1681 = vmatpush1.bf16.msra.mxu0 0
      %1682 = vmatprep.subr.bf16.mxu0 0
      %1683 = vmatpush1.bf16.msra.mxu0 0
      %1684 = vmatprep.subr.bf16.mxu0 0
      %1685 = vmatpush1.bf16.msra.mxu0 0
      %1686 = vmatprep.subr.bf16.mxu0 0
      %1687 = vmatpush1.bf16.msra.mxu0 0
      %1688 = vmatprep.mubr.bf16.mxu0 0
      %1689 = vmatmul.mubr.bf16.gmra.mrb[0].mxu0 %v1605
      %v1690 = vpop.f32.mrb[0].mxu0
      %v1691 = vadd.f32 %v1586, %v1690
      %v1692 = vpop.f32.mrb[0].mxu0
      %v1693 = vpop.f32.mrb[0].mxu0
      %v1694 = vadd.f32 %v1586, %v1693
      %v1695 = vpop.f32.mrb[0].mxu0
      %1696 = vmatprep.mubr.bf16.mxu0 0
      %1697 = vmatmul.mubr.bf16.gmra.mrb[0].mxu0 %v1608
      %v1698 = vpop.f32.mrb[0].mxu0
      %v1699 = vadd.f32 %v1586, %v1698
      %v1700 = vpop.f32.mrb[0].mxu0
      %v1701 = vpop.f32.mrb[0].mxu0
      %v1702 = vadd.f32 %v1586, %v1701
      %v1703 = vpop.f32.mrb[0].mxu0
      %1704 = vmatprep.mubr.bf16.mxu0 0
      %1705 = vmatmul.mubr.bf16.gmra.mrb[0].mxu0 %v1611
      %v1706 = vpop.f32.mrb[0].mxu0
      %v1707 = vadd.f32 %v1586, %v1706
      %v1708 = vpop.f32.mrb[0].mxu0
      %v1709 = vpop.f32.mrb[0].mxu0
      %v1710 = vadd.f32 %v1586, %v1709
      %v1711 = vpop.f32.mrb[0].mxu0
      %1712 = vmatprep.mubr.bf16.mxu0 0
      %1713 = vmatmul.mubr.bf16.gmra.mrb[0].mxu0 %v1614
      %v1714 = vpop.f32.mrb[0].mxu0
      %v1715 = vadd.f32 %v1586, %v1714
      %v1716 = vpop.f32.mrb[0].mxu0
      %v1717 = vpop.f32.mrb[0].mxu0
      %v1718 = vadd.f32 %v1586, %v1717
      %v1719 = vpop.f32.mrb[0].mxu0
      %1720 = vmatprep.mubr.bf16.mxu0 0
      %1721 = vmatmul.mubr.bf16.gmra.mrb[0].mxu0 %v1617
      %v1722 = vpop.f32.mrb[0].mxu0
      %v1723 = vadd.f32 %v1586, %v1722
      %v1724 = vpop.f32.mrb[0].mxu0
      %v1725 = vpop.f32.mrb[0].mxu0
      %v1726 = vadd.f32 %v1586, %v1725
      %v1727 = vpop.f32.mrb[0].mxu0
      %1728 = vmatprep.mubr.bf16.mxu0 0
      %1729 = vmatmul.mubr.bf16.gmra.mrb[0].mxu0 %v1620
      %v1730 = vpop.f32.mrb[0].mxu0
      %v1731 = vadd.f32 %v1586, %v1730
      %v1732 = vpop.f32.mrb[0].mxu0
      %v1733 = vpop.f32.mrb[0].mxu0
      %v1734 = vadd.f32 %v1586, %v1733
      %v1735 = vpop.f32.mrb[0].mxu0
      %1736 = vmatprep.mubr.bf16.mxu0 0
      %1737 = vmatmul.mubr.bf16.gmra.mrb[0].mxu0 %v1623
      %v1738 = vpop.f32.mrb[0].mxu0
      %v1739 = vadd.f32 %v1586, %v1738
      %v1740 = vpop.f32.mrb[0].mxu0
      %v1741 = vpop.f32.mrb[0].mxu0
      %v1742 = vadd.f32 %v1586, %v1741
      %v1743 = vpop.f32.mrb[0].mxu0
      %1744 = vmatprep.mubr.bf16.mxu0 0
      %1745 = vmatmul.mubr.bf16.gmra.mrb[0].mxu0 %v1626
      %v1746 = vpop.f32.mrb[0].mxu0
      %v1747 = vadd.f32 %v1586, %v1746
      %v1748 = vpop.f32.mrb[0].mxu0
      %v1749 = vpop.f32.mrb[0].mxu0
      %v1750 = vadd.f32 %v1586, %v1749
      %v1751 = vpop.f32.mrb[0].mxu0
      %1752 = vmatprep.mubr.bf16.mxu0 0
      %1753 = vmatmul.mubr.bf16.gmra.mrb[0].mxu0 %v1629
      %v1754 = vpop.f32.mrb[0].mxu0
      %v1755 = vadd.f32 %v1586, %v1754
      %v1756 = vpop.f32.mrb[0].mxu0
      %v1757 = vpop.f32.mrb[0].mxu0
      %v1758 = vadd.f32 %v1586, %v1757
      %v1759 = vpop.f32.mrb[0].mxu0
      %1760 = vmatprep.mubr.bf16.mxu0 0
      %1761 = vmatmul.mubr.bf16.gmra.mrb[0].mxu0 %v1632
      %v1762 = vpop.f32.mrb[0].mxu0
      %v1763 = vadd.f32 %v1586, %v1762
      %v1764 = vpop.f32.mrb[0].mxu0
      %v1765 = vpop.f32.mrb[0].mxu0
      %v1766 = vadd.f32 %v1586, %v1765
      %v1767 = vpop.f32.mrb[0].mxu0
      %1768 = vmatprep.mubr.bf16.mxu0 0
      %1769 = vmatmul.mubr.bf16.gmra.mrb[0].mxu0 %v1635
      %v1770 = vpop.f32.mrb[0].mxu0
      %v1771 = vadd.f32 %v1586, %v1770
      %v1772 = vpop.f32.mrb[0].mxu0
      %v1773 = vpop.f32.mrb[0].mxu0
      %v1774 = vadd.f32 %v1586, %v1773
      %v1775 = vpop.f32.mrb[0].mxu0
      %1776 = vmatprep.mubr.bf16.mxu0 0
      %1777 = vmatmul.mubr.bf16.gmra.mrb[0].mxu0 %v1638
      %v1778 = vpop.f32.mrb[0].mxu0
      %v1779 = vadd.f32 %v1586, %v1778
      %v1780 = vpop.f32.mrb[0].mxu0
      %v1781 = vpop.f32.mrb[0].mxu0
      %v1782 = vadd.f32 %v1586, %v1781
      %v1783 = vpop.f32.mrb[0].mxu0
      %1784 = vmatprep.mubr.bf16.mxu0 0
      %1785 = vmatmul.mubr.bf16.gmra.mrb[0].mxu0 %v1641
      %v1786 = vpop.f32.mrb[0].mxu0
      %v1787 = vadd.f32 %v1586, %v1786
      %v1788 = vpop.f32.mrb[0].mxu0
      %v1789 = vpop.f32.mrb[0].mxu0
      %v1790 = vadd.f32 %v1586, %v1789
      %v1791 = vpop.f32.mrb[0].mxu0
      %1792 = vmatprep.mubr.bf16.mxu0 0
      %1793 = vmatmul.mubr.bf16.gmra.mrb[0].mxu0 %v1644
      %v1794 = vpop.f32.mrb[0].mxu0
      %v1795 = vadd.f32 %v1586, %v1794
      %v1796 = vpop.f32.mrb[0].mxu0
      %v1797 = vpop.f32.mrb[0].mxu0
      %v1798 = vadd.f32 %v1586, %v1797
      %v1799 = vpop.f32.mrb[0].mxu0
      %1800 = vmatprep.mubr.bf16.mxu0 0
      %1801 = vmatmul.mubr.bf16.gmra.mrb[0].mxu0 %v1647
      %v1802 = vpop.f32.mrb[0].mxu0
      %v1803 = vadd.f32 %v1586, %v1802
      %v1804 = vpop.f32.mrb[0].mxu0
      %v1805 = vpop.f32.mrb[0].mxu0
      %v1806 = vadd.f32 %v1586, %v1805
      %v1807 = vpop.f32.mrb[0].mxu0
      %1808 = vmatprep.mubr.bf16.mxu0 0
      %1809 = vmatmul.mubr.bf16.gmra.mrb[0].mxu0 %v1650
      %v1810 = vpop.f32.mrb[0].mxu0
      %v1811 = vadd.f32 %v1586, %v1810
      %v1812 = vpop.f32.mrb[0].mxu0
      %v1813 = vpop.f32.mrb[0].mxu0
      %v1814 = vadd.f32 %v1586, %v1813
      %v1815 = vpop.f32.mrb[0].mxu0
      %1816 = vdwg.mxu0
      %1817 = vst [vmem:[%s170] sm:$0xff] %v1691
      %1818 = vst [vmem:[%s170 + $0x8] sm:$0xff] %v1694
      %1819 = vst [vmem:[%s170 + $0x10] sm:$0xff] %v1699
      %1820 = vst [vmem:[%s170 + $0x18] sm:$0xff] %v1702
      %1821 = vst [vmem:[%s170 + $0x20] sm:$0xff] %v1707
      %1822 = vst [vmem:[%s170 + $0x28] sm:$0xff] %v1710
      %1823 = vst [vmem:[%s170 + $0x30] sm:$0xff] %v1715
      %1824 = vst [vmem:[%s170 + $0x38] sm:$0xff] %v1718
      %1825 = vst [vmem:[%s170 + $0x40] sm:$0xff] %v1723
      %1826 = vst [vmem:[%s170 + $0x48] sm:$0xff] %v1726
      %1827 = vst [vmem:[%s170 + $0x50] sm:$0xff] %v1731
      %1828 = vst [vmem:[%s170 + $0x58] sm:$0xff] %v1734
      %1829 = vst [vmem:[%s170 + $0x60] sm:$0xff] %v1739
      %1830 = vst [vmem:[%s170 + $0x68] sm:$0xff] %v1742
      %1831 = vst [vmem:[%s170 + $0x70] sm:$0xff] %v1747
      %1832 = vst [vmem:[%s170 + $0x78] sm:$0xff] %v1750
      %1833 = vst [vmem:[%s170 + $0x80] sm:$0xff] %v1755
      %1834 = vst [vmem:[%s170 + $0x88] sm:$0xff] %v1758
      %1835 = vst [vmem:[%s170 + $0x90] sm:$0xff] %v1763
      %1836 = vst [vmem:[%s170 + $0x98] sm:$0xff] %v1766
      %1837 = vst [vmem:[%s170 + $0xa0] sm:$0xff] %v1771
      %1838 = vst [vmem:[%s170 + $0xa8] sm:$0xff] %v1774
      %1839 = vst [vmem:[%s170 + $0xb0] sm:$0xff] %v1779
      %1840 = vst [vmem:[%s170 + $0xb8] sm:$0xff] %v1782
      %1841 = vst [vmem:[%s170 + $0xc0] sm:$0xff] %v1787
      %1842 = vst [vmem:[%s170 + $0xc8] sm:$0xff] %v1790
      %1843 = vst [vmem:[%s170 + $0xd0] sm:$0xff] %v1795
      %1844 = vst [vmem:[%s170 + $0xd8] sm:$0xff] %v1798
      %1845 = vst [vmem:[%s170 + $0xe0] sm:$0xff] %v1803
      %1846 = vst [vmem:[%s170 + $0xe8] sm:$0xff] %v1806
      %1847 = vst [vmem:[%s170 + $0xf0] sm:$0xff] %v1811
      %1848 = vst [vmem:[%s170 + $0xf8] sm:$0xff] %v1814
      %s1849 = smul.u32 32, %s14
      %p1850 = scmp.lt.s32.totalorder %s1849, 511
      %s1851 = scalar_select %p1850, %s1849, 511
      %s1852 = smul.addr %s1851, 8
      %s1853 = scalar_lea.vmem %s3, %s1852
      // Predicated region
      $region33: #{convlstm_forward.2} parent=31 // pred_check
        %p1854 = pneg %p100
      $region34: #{convlstm_forward.2} parent=31 // pred_check_branch
        %1856 = sbr.rel (%p1854) target = $region36
      $region35: #{convlstm_forward.2} parent=31 // pred_region
        %s1857 = smul.u32 32, %s14
      $region36: #{convlstm_forward.2} parent=31 // pred_fallthru
        _
    $region32: #{convlstm_forward.2} parent=5 // pred_fallthru
      _
    %p1858 = scmp.le.s32.totalorder 2, %s9
    // Predicated region
    $region37: #{convlstm_forward.2} parent=5 // pred_check
      %p1859 = pneg %p1858
    $region38: #{convlstm_forward.2} parent=5 // pred_check_branch
      %1861 = sbr.rel (%p1859) target = $region40
    $region39: #{convlstm_forward.2} parent=5 // pred_region
      %s1862 = ssub.s32 %s9, 2
      // Predicated region
      $region41: #{convlstm_forward.2} parent=39 // pred_check
        %p1863 = pneg %p106
      $region42: #{convlstm_forward.2} parent=39 // pred_check_branch
        %1865 = sbr.rel (%p1863) target = $region44
      $region43: #{convlstm_forward.2} parent=39 // pred_region
        %s1866 = smul.u32 32, %s15
        %p1867 = scmp.lt.s32.totalorder %s1866, 511
        %s1868 = scalar_select %p1867, %s1866, 511
        %s1869 = smul.addr %s1868, 8
        %s1870 = scalar_lea.vmem %s3, %s1869
      $region44: #{convlstm_forward.2} parent=39 // pred_fallthru
        _
    $region40: #{convlstm_forward.2} parent=5 // pred_fallthru
      _
  $region6: #{convlstm_forward.2} parent=0 // loop_footer
    %s13 = sadd.s32 1, %s9
  $region7: #{convlstm_forward.2} parent=0 // loop_footer_branch
    %8 = sbr.rel target = $region3
  $region8: #{convlstm_forward.2} parent=0 // loop_exit
    _

// kernel: convlstm_forward.3
$region0: #{convlstm_forward.3}
  #allocation0 [shape = 'u32[]', space=smem, size = 0x4, offset = 0x4, fixed_abs, tag = 'smem constant byte address 0x4 - core index']
  #allocation1 [shape = 'u32[144,128]{1,0:T(1,128)}', space=vmem, size = 0x12000, scoped, tag = 'internal scratch']
  #allocation2 [shape = 'f32[2,18,18,32]{3,2,1,0:T(8,128)}', space=vmem, size = 0x6c000, scoped, tag = 'scratch operand']
  #allocation3 [shape = 'f32[512,32]{1,0:T(8,128)}', space=vmem, size = 0x40000, scoped, tag = 'scratch operand']
  #allocation4 [shape = 'f32[512,288]{1,0:T(8,128)}', space=vmem, size = 0xc0000, scoped, tag = 'scratch operand']
  %s0 = inlined_call_operand.vmem [shape: f32[8,512,128], index: 0, kind: input, shape index: {}]
  %s1 = inlined_call_operand.vmem [shape: bf16[288,128], index: 1, kind: input, shape index: {}]
  %s2 = inlined_call_operand.vmem [shape: f32[8,512,32], index: 2, kind: output, shape index: {}]
  %s3 = sld [smem:[#allocation0]]
  $region45: #{convlstm_forward.3} parent=0
    _
  %s5 = ssub.s32 1, %s3
  %s6 = scalar_select 0, %s5, %s3
  loop: start=0, step=1, limit=10
  $region2: #{convlstm_forward.3} parent=0 // loop_pre_header
    _
  $region3: #{convlstm_forward.3} parent=0 // loop_header
    %s8 = sphi 0, %s12
    %p9 = scmp.ge.s32.totalorder %s8, 10
    %s18 = sphi 0, %s20
    %s21 = sphi 0, %s18
    %s22 = sphi 0, %s21
    %s38 = sphi 0, %s22
    %s42 = sphi 0, %s42
    %s44 = sphi 0, %s42
    %s45 = sphi 0, %s44
    %s59 = sphi 0, %s45
    %s65 = sphi 0, %s67
    %s68 = sphi 0, %s65
    %s69 = sphi 0, %s68
    %s85 = sphi 0, %s69
  $region4: #{convlstm_forward.3} parent=0 // loop_header_branch
    %11 = sbr.rel (%p9) target = $region8
  $region5: #{convlstm_forward.3} parent=0 // loop_body
    %s13 = ssub.s32 %s8, 1
    %s14 = ssub.s32 %s8, 2
    %s15 = sadd.s32 %s8, 1
    %s16 = ssub.s32 %s8, %s15
    %p17 = scmp.eq.s32.totalorder %s16, 0
    %s19 = sadd.s32 %s18, 1
    %s20 = scalar_select %p17, %s18, %s19
    %p23 = pneg %p17
    %p24 = scmp.eq.s32.totalorder %s8, 7
    %p25 = por %p23, %p24
    %p26 = scmp.ne.s32.totalorder %s18, %s21
    %p27 = scmp.eq.s32.totalorder %s8, 0
    %p28 = por %p26, %p27
    %p29 = scmp.ne.s32.totalorder %s18, %s21
    %p30 = scmp.eq.s32.totalorder %s13, 7
    %p31 = por %p29, %p30
    %p32 = scmp.ne.s32.totalorder %s21, %s22
    %p33 = scmp.eq.s32.totalorder %s13, 0
    %p34 = por %p32, %p33
    %p35 = scmp.ne.s32.totalorder %s21, %s22
    %p36 = scmp.eq.s32.totalorder %s14, 7
    %p37 = por %p35, %p36
    %p39 = scmp.ne.s32.totalorder %s22, %s38
    %p40 = scmp.eq.s32.totalorder %s14, 0
    %p41 = por %p39, %p40
    %s43 = sadd.s32 %s42, 1
    %p46 = scmp.eq.s32.totalorder %s8, 7
    %p47 = scmp.ne.s32.totalorder %s42, %s44
    %p48 = scmp.eq.s32.totalorder %s8, 0
    %p49 = por %p47, %p48
    %p50 = scmp.ne.s32.totalorder %s42, %s44
    %p51 = scmp.eq.s32.totalorder %s13, 7
    %p52 = por %p50, %p51
    %p53 = scmp.ne.s32.totalorder %s44, %s45
    %p54 = scmp.eq.s32.totalorder %s13, 0
    %p55 = por %p53, %p54
    %p56 = scmp.ne.s32.totalorder %s44, %s45
    %p57 = scmp.eq.s32.totalorder %s14, 7
    %p58 = por %p56, %p57
    %p60 = scmp.ne.s32.totalorder %s45, %s59
    %p61 = scmp.eq.s32.totalorder %s14, 0
    %p62 = por %p60, %p61
    %s63 = ssub.s32 %s8, %s15
    %p64 = scmp.eq.s32.totalorder %s63, 0
    %s66 = sadd.s32 %s65, 1
    %s67 = scalar_select %p64, %s65, %s66
    %p70 = pneg %p64
    %p71 = scmp.eq.s32.totalorder %s8, 7
    %p72 = por %p70, %p71
    %p73 = scmp.ne.s32.totalorder %s65, %s68
    %p74 = scmp.eq.s32.totalorder %s8, 0
    %p75 = por %p73, %p74
    %p76 = scmp.ne.s32.totalorder %s65, %s68
    %p77 = scmp.eq.s32.totalorder %s13, 7
    %p78 = por %p76, %p77
    %p79 = scmp.ne.s32.totalorder %s68, %s69
    %p80 = scmp.eq.s32.totalorder %s13, 0
    %p81 = por %p79, %p80
    %p82 = scmp.ne.s32.totalorder %s68, %s69
    %p83 = scmp.eq.s32.totalorder %s14, 7
    %p84 = por %p82, %p83
    %p86 = scmp.ne.s32.totalorder %s69, %s85
    %p87 = scmp.eq.s32.totalorder %s14, 0
    %p88 = por %p86, %p87
    %p89 = scmp.le.s32.totalorder 1, %s8
    %p90 = scmp.lt.s32.totalorder %s8, 9
    %p91 = pnand %p89, %p90
    %p92 = pneg %p91
    // Predicated region
    $region9: #{convlstm_forward.3} parent=5 // pred_check
      _
    $region10: #{convlstm_forward.3} parent=5 // pred_check_branch
      %94 = sbr.rel (%p91) target = $region12
    $region11: #{convlstm_forward.3} parent=5 // pred_region
      %s95 = ssub.s32 %s8, 1
      // Predicated region
      $region13: #{convlstm_forward.3} parent=11 // pred_check
        %p96 = pneg %p55
      $region14: #{convlstm_forward.3} parent=11 // pred_check_branch
        %98 = sbr.rel (%p96) target = $region16
      $region15: #{convlstm_forward.3} parent=11 // pred_region
        _
      $region16: #{convlstm_forward.3} parent=11 // pred_fallthru
        _
    $region12: #{convlstm_forward.3} parent=5 // pred_fallthru
      _
    %p99 = scmp.lt.s32.totalorder %s8, 8
    // Predicated region
    $region17: #{convlstm_forward.3} parent=5 // pred_check
      %p100 = pneg %p99
    $region18: #{convlstm_forward.3} parent=5 // pred_check_branch
      %102 = sbr.rel (%p100) target = $region20
    $region19: #{convlstm_forward.3} parent=5 // pred_region
      // Predicated region
      $region21: #{convlstm_forward.3} parent=19 // pred_check
        %p103 = pneg %p28
      $region22: #{convlstm_forward.3} parent=19 // pred_check_branch
        %105 = sbr.rel (%p103) target = $region24
      $region23: #{convlstm_forward.3} parent=19 // pred_region
        %p106 = scmp.lt.s32.totalorder %s8, 7
        %s107 = scalar_select %p106, %s8, 7
        %s108 = smul.addr %s107, 64
        %s109 = smul.addr %s108, 8
        %s110 = scalar_lea.vmem %s0, %s109
      $region24: #{convlstm_forward.3} parent=19 // pred_fallthru
        _
    $region20: #{convlstm_forward.3} parent=5 // pred_fallthru
      _
    %p111 = scmp.le.s32.totalorder 1, %s8
    %p112 = scmp.lt.s32.totalorder %s8, 9
    %p113 = pnand %p111, %p112
    %p114 = pneg %p113
    // Predicated region
    $region25: #{convlstm_forward.3} parent=5 // pred_check
      _
    $region26: #{convlstm_forward.3} parent=5 // pred_check_branch
      %116 = sbr.rel (%p113) target = $region28
    $region27: #{convlstm_forward.3} parent=5 // pred_region
      %s117 = ssub.s32 %s8, 1
      %p118 = scmp.lt.s32.totalorder %s13, 7
      %s119 = scalar_select %p118, %s13, 7
      %s120 = smul.addr %s119, 64
      %s121 = smul.addr %s120, 8
      %s122 = scalar_lea.vmem %s0, %s121
      %p123 = pneg %p34
      %p124 = pneg %p31
      %p125 = pneg %p55
      %p126 = pneg %p52
      %p127 = pneg %p81
      %p128 = pneg %p78
      %p129 = scmp.lt.s32.totalorder %s13, 7
      %s130 = scalar_select %p129, %s13, 7
      %s131 = smul.addr %s130, 64
      %s132 = smul.addr %s131, 8
      %s133 = scalar_lea.vmem %s2, %s132
      %p134 = scmp.lt.s32.totalorder %s13, 7
      %s135 = scalar_select %p134, %s13, 7
      %s136 = smul.addr %s135, 64
      %s137 = smul.addr %s136, 8
      %s138 = scalar_lea.vmem %s0, %s137
      %p139 = scmp.lt.s32.totalorder %s13, 7
      %s140 = scalar_select %p139, %s13, 7
      %s141 = smul.addr %s140, 64
      %s142 = smul.addr %s141, 8
      %s143 = scalar_lea.vmem %s2, %s142
      %p145 = scmp.eq.s32.totalorder %s13, 0
      // Predicated region
      $region29: #{convlstm_forward.3} parent=27 // pred_check
        %p146 = pneg %p145
      $region30: #{convlstm_forward.3} parent=27 // pred_check_branch
        %148 = sbr.rel (%p146) target = $region32
      $region31: #{convlstm_forward.3} parent=27 // pred_region
        %vm149 = vcmask 261120
        %150 = vst.msk [vmem:[#allocation2] sm:$0xff] %vm149, 0.0
        %151 = vst.msk [vmem:[#allocation2 + $0x8] sm:$0xff] %vm149, 0.0
        %vm152 = vcmask 254976
        %153 = vst.msk [vmem:[#allocation2 + $0x10] sm:$0x3] %vm152, 0.0
        %154 = vst.msk [vmem:[#allocation2 + $0x18] sm:$0xff] %vm149, 0.0
        %155 = vst.msk [vmem:[#allocation2 + $0x20] sm:$0xff] %vm149, 0.0
        %156 = vst.msk [vmem:[#allocation2 + $0x28] sm:$0x3] %vm152, 0.0
        %157 = vst.msk [vmem:[#allocation2 + $0x30] sm:$0xff] %vm149, 0.0
        %158 = vst.msk [vmem:[#allocation2 + $0x38] sm:$0xff] %vm149, 0.0
        %159 = vst.msk [vmem:[#allocation2 + $0x40] sm:$0x3] %vm152, 0.0
        %160 = vst.msk [vmem:[#allocation2 + $0x48] sm:$0xff] %vm149, 0.0
        %161 = vst.msk [vmem:[#allocation2 + $0x50] sm:$0xff] %vm149, 0.0
        %162 = vst.msk [vmem:[#allocation2 + $0x58] sm:$0x3] %vm152, 0.0
        %163 = vst.msk [vmem:[#allocation2 + $0x60] sm:$0xff] %vm149, 0.0
        %164 = vst.msk [vmem:[#allocation2 + $0x68] sm:$0xff] %vm149, 0.0
        %165 = vst.msk [vmem:[#allocation2 + $0x70] sm:$0x3] %vm152, 0.0
        %166 = vst.msk [vmem:[#allocation2 + $0x78] sm:$0xff] %vm149, 0.0
        %167 = vst.msk [vmem:[#allocation2 + $0x80] sm:$0xff] %vm149, 0.0
        %168 = vst.msk [vmem:[#allocation2 + $0x88] sm:$0x3] %vm152, 0.0
        %169 = vst.msk [vmem:[#allocation2 + $0x90] sm:$0xff] %vm149, 0.0
        %170 = vst.msk [vmem:[#allocation2 + $0x98] sm:$0xff] %vm149, 0.0
        %171 = vst.msk [vmem:[#allocation2 + $0xa0] sm:$0x3] %vm152, 0.0
        %172 = vst.msk [vmem:[#allocation2 + $0xa8] sm:$0xff] %vm149, 0.0
        %173 = vst.msk [vmem:[#allocation2 + $0xb0] sm:$0xff] %vm149, 0.0
        %174 = vst.msk [vmem:[#allocation2 + $0xb8] sm:$0x3] %vm152, 0.0
        %175 = vst.msk [vmem:[#allocation2 + $0xc0] sm:$0xff] %vm149, 0.0
        %176 = vst.msk [vmem:[#allocation2 + $0xc8] sm:$0xff] %vm149, 0.0
        %177 = vst.msk [vmem:[#allocation2 + $0xd0] sm:$0x3] %vm152, 0.0
        %178 = vst.msk [vmem:[#allocation2 + $0xd8] sm:$0xff] %vm149, 0.0
        %179 = vst.msk [vmem:[#allocation2 + $0xe0] sm:$0xff] %vm149, 0.0
        %180 = vst.msk [vmem:[#allocation2 + $0xe8] sm:$0x3] %vm152, 0.0
        %181 = vst.msk [vmem:[#allocation2 + $0xf0] sm:$0xff] %vm149, 0.0
        %182 = vst.msk [vmem:[#allocation2 + $0xf8] sm:$0xff] %vm149, 0.0
        %183 = vst.msk [vmem:[#allocation2 + $0x100] sm:$0x3] %vm152, 0.0
        %184 = vst.msk [vmem:[#allocation2 + $0x108] sm:$0xff] %vm149, 0.0
        %185 = vst.msk [vmem:[#allocation2 + $0x110] sm:$0xff] %vm149, 0.0
        %186 = vst.msk [vmem:[#allocation2 + $0x118] sm:$0x3] %vm152, 0.0
        %187 = vst.msk [vmem:[#allocation2 + $0x120] sm:$0xff] %vm149, 0.0
        %188 = vst.msk [vmem:[#allocation2 + $0x128] sm:$0xff] %vm149, 0.0
        %189 = vst.msk [vmem:[#allocation2 + $0x130] sm:$0x3] %vm152, 0.0
        %190 = vst.msk [vmem:[#allocation2 + $0x138] sm:$0xff] %vm149, 0.0
        %191 = vst.msk [vmem:[#allocation2 + $0x140] sm:$0xff] %vm149, 0.0
        %192 = vst.msk [vmem:[#allocation2 + $0x148] sm:$0x3] %vm152, 0.0
        %193 = vst.msk [vmem:[#allocation2 + $0x150] sm:$0xff] %vm149, 0.0
        %194 = vst.msk [vmem:[#allocation2 + $0x158] sm:$0xff] %vm149, 0.0
        %195 = vst.msk [vmem:[#allocation2 + $0x160] sm:$0x3] %vm152, 0.0
        %196 = vst.msk [vmem:[#allocation2 + $0x168] sm:$0xff] %vm149, 0.0
        %197 = vst.msk [vmem:[#allocation2 + $0x170] sm:$0xff] %vm149, 0.0
        %198 = vst.msk [vmem:[#allocation2 + $0x178] sm:$0x3] %vm152, 0.0
        %199 = vst.msk [vmem:[#allocation2 + $0x180] sm:$0xff] %vm149, 0.0
        %200 = vst.msk [vmem:[#allocation2 + $0x188] sm:$0xff] %vm149, 0.0
        %201 = vst.msk [vmem:[#allocation2 + $0x190] sm:$0x3] %vm152, 0.0
        %202 = vst.msk [vmem:[#allocation2 + $0x198] sm:$0xff] %vm149, 0.0
        %203 = vst.msk [vmem:[#allocation2 + $0x1a0] sm:$0xff] %vm149, 0.0
        %204 = vst.msk [vmem:[#allocation2 + $0x1a8] sm:$0x3] %vm152, 0.0
        %205 = vst.msk [vmem:[#allocation2 + $0x1b0] sm:$0xff] %vm149, 0.0
        %206 = vst.msk [vmem:[#allocation2 + $0x1b8] sm:$0xff] %vm149, 0.0
        %207 = vst.msk [vmem:[#allocation2 + $0x1c0] sm:$0x3] %vm152, 0.0
        %208 = vst.msk [vmem:[#allocation2 + $0x1c8] sm:$0xff] %vm149, 0.0
        %209 = vst.msk [vmem:[#allocation2 + $0x1d0] sm:$0xff] %vm149, 0.0
        %210 = vst.msk [vmem:[#allocation2 + $0x1d8] sm:$0x3] %vm152, 0.0
        %211 = vst.msk [vmem:[#allocation2 + $0x1e0] sm:$0xff] %vm149, 0.0
        %212 = vst.msk [vmem:[#allocation2 + $0x1e8] sm:$0xff] %vm149, 0.0
        %213 = vst.msk [vmem:[#allocation2 + $0x1f0] sm:$0x3] %vm152, 0.0
        %214 = vst.msk [vmem:[#allocation2 + $0x1f8] sm:$0xff] %vm149, 0.0
        %215 = vst.msk [vmem:[#allocation2 + $0x200] sm:$0xff] %vm149, 0.0
        %216 = vst.msk [vmem:[#allocation2 + $0x208] sm:$0x3] %vm152, 0.0
        %217 = vst.msk [vmem:[#allocation2 + $0x210] sm:$0xff] %vm149, 0.0
        %218 = vst.msk [vmem:[#allocation2 + $0x218] sm:$0xff] %vm149, 0.0
        %219 = vst.msk [vmem:[#allocation2 + $0x220] sm:$0x3] %vm152, 0.0
        %220 = vst.msk [vmem:[#allocation2 + $0x228] sm:$0xff] %vm149, 0.0
        %221 = vst.msk [vmem:[#allocation2 + $0x230] sm:$0xff] %vm149, 0.0
        %222 = vst.msk [vmem:[#allocation2 + $0x238] sm:$0x3] %vm152, 0.0
        %223 = vst.msk [vmem:[#allocation2 + $0x240] sm:$0xff] %vm149, 0.0
        %224 = vst.msk [vmem:[#allocation2 + $0x248] sm:$0xff] %vm149, 0.0
        %225 = vst.msk [vmem:[#allocation2 + $0x250] sm:$0x3] %vm152, 0.0
        %226 = vst.msk [vmem:[#allocation2 + $0x258] sm:$0xff] %vm149, 0.0
        %227 = vst.msk [vmem:[#allocation2 + $0x260] sm:$0xff] %vm149, 0.0
        %228 = vst.msk [vmem:[#allocation2 + $0x268] sm:$0x3] %vm152, 0.0
        %229 = vst.msk [vmem:[#allocation2 + $0x270] sm:$0xff] %vm149, 0.0
        %230 = vst.msk [vmem:[#allocation2 + $0x278] sm:$0xff] %vm149, 0.0
        %231 = vst.msk [vmem:[#allocation2 + $0x280] sm:$0x3] %vm152, 0.0
        %232 = vst.msk [vmem:[#allocation2 + $0x288] sm:$0xff] %vm149, 0.0
        %233 = vst.msk [vmem:[#allocation2 + $0x290] sm:$0xff] %vm149, 0.0
        %234 = vst.msk [vmem:[#allocation2 + $0x298] sm:$0x3] %vm152, 0.0
        %235 = vst.msk [vmem:[#allocation2 + $0x2a0] sm:$0xff] %vm149, 0.0
        %236 = vst.msk [vmem:[#allocation2 + $0x2a8] sm:$0xff] %vm149, 0.0
        %237 = vst.msk [vmem:[#allocation2 + $0x2b0] sm:$0x3] %vm152, 0.0
        %238 = vst.msk [vmem:[#allocation2 + $0x2b8] sm:$0xff] %vm149, 0.0
        %239 = vst.msk [vmem:[#allocation2 + $0x2c0] sm:$0xff] %vm149, 0.0
        %240 = vst.msk [vmem:[#allocation2 + $0x2c8] sm:$0x3] %vm152, 0.0
        %241 = vst.msk [vmem:[#allocation2 + $0x2d0] sm:$0xff] %vm149, 0.0
        %242 = vst.msk [vmem:[#allocation2 + $0x2d8] sm:$0xff] %vm149, 0.0
        %243 = vst.msk [vmem:[#allocation2 + $0x2e0] sm:$0x3] %vm152, 0.0
        %244 = vst.msk [vmem:[#allocation2 + $0x2e8] sm:$0xff] %vm149, 0.0
        %245 = vst.msk [vmem:[#allocation2 + $0x2f0] sm:$0xff] %vm149, 0.0
        %246 = vst.msk [vmem:[#allocation2 + $0x2f8] sm:$0x3] %vm152, 0.0
        %247 = vst.msk [vmem:[#allocation2 + $0x300] sm:$0xff] %vm149, 0.0
        %248 = vst.msk [vmem:[#allocation2 + $0x308] sm:$0xff] %vm149, 0.0
        %249 = vst.msk [vmem:[#allocation2 + $0x310] sm:$0x3] %vm152, 0.0
        %250 = vst.msk [vmem:[#allocation2 + $0x318] sm:$0xff] %vm149, 0.0
        %251 = vst.msk [vmem:[#allocation2 + $0x320] sm:$0xff] %vm149, 0.0
        %252 = vst.msk [vmem:[#allocation2 + $0x328] sm:$0x3] %vm152, 0.0
        %253 = vst.msk [vmem:[#allocation2 + $0x330] sm:$0xff] %vm149, 0.0
        %254 = vst.msk [vmem:[#allocation2 + $0x338] sm:$0xff] %vm149, 0.0
        %255 = vst.msk [vmem:[#allocation2 + $0x340] sm:$0x3] %vm152, 0.0
        %256 = vst.msk [vmem:[#allocation2 + $0x348] sm:$0xff] %vm149, 0.0
        %257 = vst.msk [vmem:[#allocation2 + $0x350] sm:$0xff] %vm149, 0.0
        %258 = vst.msk [vmem:[#allocation2 + $0x358] sm:$0x3] %vm152, 0.0
        %259 = vst.msk [vmem:[#allocation3] sm:$0xff] %vm149, 0.0
        %260 = vst.msk [vmem:[#allocation3 + $0x8] sm:$0xff] %vm149, 0.0
        %261 = vst.msk [vmem:[#allocation3 + $0x10] sm:$0xff] %vm149, 0.0
        %262 = vst.msk [vmem:[#allocation3 + $0x18] sm:$0xff] %vm149, 0.0
        %263 = vst.msk [vmem:[#allocation3 + $0x20] sm:$0xff] %vm149, 0.0
        %264 = vst.msk [vmem:[#allocation3 + $0x28] sm:$0xff] %vm149, 0.0
        %265 = vst.msk [vmem:[#allocation3 + $0x30] sm:$0xff] %vm149, 0.0
        %266 = vst.msk [vmem:[#allocation3 + $0x38] sm:$0xff] %vm149, 0.0
        %267 = vst.msk [vmem:[#allocation3 + $0x40] sm:$0xff] %vm149, 0.0
        %268 = vst.msk [vmem:[#allocation3 + $0x48] sm:$0xff] %vm149, 0.0
        %269 = vst.msk [vmem:[#allocation3 + $0x50] sm:$0xff] %vm149, 0.0
        %270 = vst.msk [vmem:[#allocation3 + $0x58] sm:$0xff] %vm149, 0.0
        %271 = vst.msk [vmem:[#allocation3 + $0x60] sm:$0xff] %vm149, 0.0
        %272 = vst.msk [vmem:[#allocation3 + $0x68] sm:$0xff] %vm149, 0.0
        %273 = vst.msk [vmem:[#allocation3 + $0x70] sm:$0xff] %vm149, 0.0
        %274 = vst.msk [vmem:[#allocation3 + $0x78] sm:$0xff] %vm149, 0.0
        %275 = vst.msk [vmem:[#allocation3 + $0x80] sm:$0xff] %vm149, 0.0
        %276 = vst.msk [vmem:[#allocation3 + $0x88] sm:$0xff] %vm149, 0.0
        %277 = vst.msk [vmem:[#allocation3 + $0x90] sm:$0xff] %vm149, 0.0
        %278 = vst.msk [vmem:[#allocation3 + $0x98] sm:$0xff] %vm149, 0.0
        %279 = vst.msk [vmem:[#allocation3 + $0xa0] sm:$0xff] %vm149, 0.0
        %280 = vst.msk [vmem:[#allocation3 + $0xa8] sm:$0xff] %vm149, 0.0
        %281 = vst.msk [vmem:[#allocation3 + $0xb0] sm:$0xff] %vm149, 0.0
        %282 = vst.msk [vmem:[#allocation3 + $0xb8] sm:$0xff] %vm149, 0.0
        %283 = vst.msk [vmem:[#allocation3 + $0xc0] sm:$0xff] %vm149, 0.0
        %284 = vst.msk [vmem:[#allocation3 + $0xc8] sm:$0xff] %vm149, 0.0
        %285 = vst.msk [vmem:[#allocation3 + $0xd0] sm:$0xff] %vm149, 0.0
        %286 = vst.msk [vmem:[#allocation3 + $0xd8] sm:$0xff] %vm149, 0.0
        %287 = vst.msk [vmem:[#allocation3 + $0xe0] sm:$0xff] %vm149, 0.0
        %288 = vst.msk [vmem:[#allocation3 + $0xe8] sm:$0xff] %vm149, 0.0
        %289 = vst.msk [vmem:[#allocation3 + $0xf0] sm:$0xff] %vm149, 0.0
        %290 = vst.msk [vmem:[#allocation3 + $0xf8] sm:$0xff] %vm149, 0.0
        %291 = vst.msk [vmem:[#allocation3 + $0x100] sm:$0xff] %vm149, 0.0
        %292 = vst.msk [vmem:[#allocation3 + $0x108] sm:$0xff] %vm149, 0.0
        %293 = vst.msk [vmem:[#allocation3 + $0x110] sm:$0xff] %vm149, 0.0
        %294 = vst.msk [vmem:[#allocation3 + $0x118] sm:$0xff] %vm149, 0.0
        %295 = vst.msk [vmem:[#allocation3 + $0x120] sm:$0xff] %vm149, 0.0
        %296 = vst.msk [vmem:[#allocation3 + $0x128] sm:$0xff] %vm149, 0.0
        %297 = vst.msk [vmem:[#allocation3 + $0x130] sm:$0xff] %vm149, 0.0
        %298 = vst.msk [vmem:[#allocation3 + $0x138] sm:$0xff] %vm149, 0.0
        %299 = vst.msk [vmem:[#allocation3 + $0x140] sm:$0xff] %vm149, 0.0
        %300 = vst.msk [vmem:[#allocation3 + $0x148] sm:$0xff] %vm149, 0.0
        %301 = vst.msk [vmem:[#allocation3 + $0x150] sm:$0xff] %vm149, 0.0
        %302 = vst.msk [vmem:[#allocation3 + $0x158] sm:$0xff] %vm149, 0.0
        %303 = vst.msk [vmem:[#allocation3 + $0x160] sm:$0xff] %vm149, 0.0
        %304 = vst.msk [vmem:[#allocation3 + $0x168] sm:$0xff] %vm149, 0.0
        %305 = vst.msk [vmem:[#allocation3 + $0x170] sm:$0xff] %vm149, 0.0
        %306 = vst.msk [vmem:[#allocation3 + $0x178] sm:$0xff] %vm149, 0.0
        %307 = vst.msk [vmem:[#allocation3 + $0x180] sm:$0xff] %vm149, 0.0
        %308 = vst.msk [vmem:[#allocation3 + $0x188] sm:$0xff] %vm149, 0.0
        %309 = vst.msk [vmem:[#allocation3 + $0x190] sm:$0xff] %vm149, 0.0
        %310 = vst.msk [vmem:[#allocation3 + $0x198] sm:$0xff] %vm149, 0.0
        %311 = vst.msk [vmem:[#allocation3 + $0x1a0] sm:$0xff] %vm149, 0.0
        %312 = vst.msk [vmem:[#allocation3 + $0x1a8] sm:$0xff] %vm149, 0.0
        %313 = vst.msk [vmem:[#allocation3 + $0x1b0] sm:$0xff] %vm149, 0.0
        %314 = vst.msk [vmem:[#allocation3 + $0x1b8] sm:$0xff] %vm149, 0.0
        %315 = vst.msk [vmem:[#allocation3 + $0x1c0] sm:$0xff] %vm149, 0.0
        %316 = vst.msk [vmem:[#allocation3 + $0x1c8] sm:$0xff] %vm149, 0.0
        %317 = vst.msk [vmem:[#allocation3 + $0x1d0] sm:$0xff] %vm149, 0.0
        %318 = vst.msk [vmem:[#allocation3 + $0x1d8] sm:$0xff] %vm149, 0.0
        %319 = vst.msk [vmem:[#allocation3 + $0x1e0] sm:$0xff] %vm149, 0.0
        %320 = vst.msk [vmem:[#allocation3 + $0x1e8] sm:$0xff] %vm149, 0.0
        %321 = vst.msk [vmem:[#allocation3 + $0x1f0] sm:$0xff] %vm149, 0.0
        %322 = vst.msk [vmem:[#allocation3 + $0x1f8] sm:$0xff] %vm149, 0.0
      $region32: #{convlstm_forward.3} parent=27 // pred_fallthru
        _
      %v323 = vld [vmem:[#allocation2] sm:$0xff]
      %v324 = vld [vmem:[#allocation2 + $0x8] sm:$0xff]
      %v325 = vld [vmem:[#allocation2 + $0x10] sm:$0x3]
      %v326 = vld [vmem:[#allocation2 + $0x18] sm:$0xff]
      %v327 = vld [vmem:[#allocation2 + $0x20] sm:$0xff]
      %v328 = vld [vmem:[#allocation2 + $0x28] sm:$0x3]
      %v329 = vld [vmem:[#allocation2 + $0x30] sm:$0xff]
      %v330 = vld [vmem:[#allocation2 + $0x38] sm:$0xff]
      %v331 = vld [vmem:[#allocation2 + $0x40] sm:$0x3]
      %v332 = vld [vmem:[#allocation2 + $0x48] sm:$0xff]
      %v333 = vld [vmem:[#allocation2 + $0x50] sm:$0xff]
      %v334 = vld [vmem:[#allocation2 + $0x58] sm:$0x3]
      %v335 = vld [vmem:[#allocation2 + $0x60] sm:$0xff]
      %v336 = vld [vmem:[#allocation2 + $0x68] sm:$0xff]
      %v337 = vld [vmem:[#allocation2 + $0x70] sm:$0x3]
      %v338 = vld [vmem:[#allocation2 + $0x78] sm:$0xff]
      %v339 = vld [vmem:[#allocation2 + $0x80] sm:$0xff]
      %v340 = vld [vmem:[#allocation2 + $0x88] sm:$0x3]
      %v341 = vld [vmem:[#allocation2 + $0x90] sm:$0xff]
      %v342 = vld [vmem:[#allocation2 + $0x98] sm:$0xff]
      %v343 = vld [vmem:[#allocation2 + $0xa0] sm:$0x3]
      %v344 = vld [vmem:[#allocation2 + $0xa8] sm:$0xff]
      %v345 = vld [vmem:[#allocation2 + $0xb0] sm:$0xff]
      %v346 = vld [vmem:[#allocation2 + $0xb8] sm:$0x3]
      %v347 = vld [vmem:[#allocation2 + $0xc0] sm:$0xff]
      %v348 = vld [vmem:[#allocation2 + $0xc8] sm:$0xff]
      %v349 = vld [vmem:[#allocation2 + $0xd0] sm:$0x3]
      %v350 = vld [vmem:[#allocation2 + $0xd8] sm:$0xff]
      %v351 = vld [vmem:[#allocation2 + $0xe0] sm:$0xff]
      %v352 = vld [vmem:[#allocation2 + $0xe8] sm:$0x3]
      %v353 = vld [vmem:[#allocation2 + $0xf0] sm:$0xff]
      %v354 = vld [vmem:[#allocation2 + $0xf8] sm:$0xff]
      %v355 = vld [vmem:[#allocation2 + $0x100] sm:$0x3]
      %v356 = vld [vmem:[#allocation2 + $0x108] sm:$0xff]
      %v357 = vld [vmem:[#allocation2 + $0x110] sm:$0xff]
      %v358 = vld [vmem:[#allocation2 + $0x118] sm:$0x3]
      %v359 = vld [vmem:[#allocation2 + $0x120] sm:$0xff]
      %v360 = vld [vmem:[#allocation2 + $0x128] sm:$0xff]
      %v361 = vld [vmem:[#allocation2 + $0x130] sm:$0x3]
      %v362 = vld [vmem:[#allocation2 + $0x138] sm:$0xff]
      %v363 = vld [vmem:[#allocation2 + $0x140] sm:$0xff]
      %v364 = vld [vmem:[#allocation2 + $0x148] sm:$0x3]
      %v365 = vld [vmem:[#allocation2 + $0x150] sm:$0xff]
      %v366 = vld [vmem:[#allocation2 + $0x158] sm:$0xff]
      %v367 = vld [vmem:[#allocation2 + $0x160] sm:$0x3]
      %v368 = vld [vmem:[#allocation2 + $0x168] sm:$0xff]
      %v369 = vld [vmem:[#allocation2 + $0x170] sm:$0xff]
      %v370 = vld [vmem:[#allocation2 + $0x178] sm:$0x3]
      %v371 = vld [vmem:[#allocation2 + $0x180] sm:$0xff]
      %v372 = vld [vmem:[#allocation2 + $0x188] sm:$0xff]
      %v373 = vld [vmem:[#allocation2 + $0x190] sm:$0x3]
      %v374 = vld [vmem:[#allocation2 + $0x198] sm:$0xff]
      %v375 = vld [vmem:[#allocation2 + $0x1a0] sm:$0xff]
      %v376 = vld [vmem:[#allocation2 + $0x1a8] sm:$0x3]
      %v377 = vld [vmem:[#allocation2 + $0x1b0] sm:$0xff]
      %v378 = vld [vmem:[#allocation2 + $0x1b8] sm:$0xff]
      %v379 = vld [vmem:[#allocation2 + $0x1c0] sm:$0x3]
      %v380 = vld [vmem:[#allocation2 + $0x1c8] sm:$0xff]
      %v381 = vld [vmem:[#allocation2 + $0x1d0] sm:$0xff]
      %v382 = vld [vmem:[#allocation2 + $0x1d8] sm:$0x3]
      %v383 = vld [vmem:[#allocation2 + $0x1e0] sm:$0xff]
      %v384 = vld [vmem:[#allocation2 + $0x1e8] sm:$0xff]
      %v385 = vld [vmem:[#allocation2 + $0x1f0] sm:$0x3]
      %v386 = vld [vmem:[#allocation2 + $0x1f8] sm:$0xff]
      %v387 = vld [vmem:[#allocation2 + $0x200] sm:$0xff]
      %v388 = vld [vmem:[#allocation2 + $0x208] sm:$0x3]
      %v389 = vld [vmem:[#allocation2 + $0x210] sm:$0xff]
      %v390 = vld [vmem:[#allocation2 + $0x218] sm:$0xff]
      %v391 = vld [vmem:[#allocation2 + $0x220] sm:$0x3]
      %v392 = vld [vmem:[#allocation2 + $0x228] sm:$0xff]
      %v393 = vld [vmem:[#allocation2 + $0x230] sm:$0xff]
      %v394 = vld [vmem:[#allocation2 + $0x238] sm:$0x3]
      %v395 = vld [vmem:[#allocation2 + $0x240] sm:$0xff]
      %v396 = vld [vmem:[#allocation2 + $0x248] sm:$0xff]
      %v397 = vld [vmem:[#allocation2 + $0x250] sm:$0x3]
      %v398 = vld [vmem:[#allocation2 + $0x258] sm:$0xff]
      %v399 = vld [vmem:[#allocation2 + $0x260] sm:$0xff]
      %v400 = vld [vmem:[#allocation2 + $0x268] sm:$0x3]
      %v401 = vld [vmem:[#allocation2 + $0x270] sm:$0xff]
      %v402 = vld [vmem:[#allocation2 + $0x278] sm:$0xff]
      %v403 = vld [vmem:[#allocation2 + $0x280] sm:$0x3]
      %v404 = vld [vmem:[#allocation2 + $0x288] sm:$0xff]
      %v405 = vld [vmem:[#allocation2 + $0x290] sm:$0xff]
      %v406 = vld [vmem:[#allocation2 + $0x298] sm:$0x3]
      %v407 = vld [vmem:[#allocation2 + $0x2a0] sm:$0xff]
      %v408 = vld [vmem:[#allocation2 + $0x2a8] sm:$0xff]
      %v409 = vld [vmem:[#allocation2 + $0x2b0] sm:$0x3]
      %v410 = vld [vmem:[#allocation2 + $0x2b8] sm:$0xff]
      %v411 = vld [vmem:[#allocation2 + $0x2c0] sm:$0xff]
      %v412 = vld [vmem:[#allocation2 + $0x2c8] sm:$0x3]
      %v413 = vld [vmem:[#allocation2 + $0x2d0] sm:$0xff]
      %v414 = vld [vmem:[#allocation2 + $0x2d8] sm:$0xff]
      %v415 = vld [vmem:[#allocation2 + $0x2e0] sm:$0x3]
      %v416 = vld [vmem:[#allocation2 + $0x2e8] sm:$0xff]
      %v417 = vld [vmem:[#allocation2 + $0x2f0] sm:$0xff]
      %v418 = vld [vmem:[#allocation2 + $0x2f8] sm:$0x3]
      %v419 = vld [vmem:[#allocation2 + $0x300] sm:$0xff]
      %v420 = vld [vmem:[#allocation2 + $0x308] sm:$0xff]
      %v421 = vld [vmem:[#allocation2 + $0x310] sm:$0x3]
      %v422 = vld [vmem:[#allocation2 + $0x318] sm:$0xff]
      %v423 = vld [vmem:[#allocation2 + $0x320] sm:$0xff]
      %v424 = vld [vmem:[#allocation2 + $0x328] sm:$0x3]
      %v425 = vld [vmem:[#allocation2 + $0x330] sm:$0xff]
      %v426 = vld [vmem:[#allocation2 + $0x338] sm:$0xff]
      %v427 = vld [vmem:[#allocation2 + $0x340] sm:$0x3]
      %v428 = vld [vmem:[#allocation2 + $0x348] sm:$0xff]
      %v429 = vld [vmem:[#allocation2 + $0x350] sm:$0xff]
      %v430 = vld [vmem:[#allocation2 + $0x358] sm:$0x3]
      %vm431 = vcmask 261120
      %432 = vst.msk [vmem:[#allocation4] sm:$0xff] %vm431, %v323
      %433 = vst.msk [vmem:[#allocation4 + $0x18] sm:$0xff] %vm431, %v324
      %434 = vst.msk [vmem:[#allocation4 + $0x30] sm:$0xff] %vm431, %v326
      %435 = vst.msk [vmem:[#allocation4 + $0x48] sm:$0xff] %vm431, %v327
      %436 = vst.msk [vmem:[#allocation4 + $0x60] sm:$0xff] %vm431, %v329
      %437 = vst.msk [vmem:[#allocation4 + $0x78] sm:$0xff] %vm431, %v330
      %438 = vst.msk [vmem:[#allocation4 + $0x90] sm:$0xff] %vm431, %v332
      %439 = vst.msk [vmem:[#allocation4 + $0xa8] sm:$0xff] %vm431, %v333
      %440 = vst.msk [vmem:[#allocation4 + $0xc0] sm:$0xff] %vm431, %v335
      %441 = vst.msk [vmem:[#allocation4 + $0xd8] sm:$0xff] %vm431, %v336
      %442 = vst.msk [vmem:[#allocation4 + $0xf0] sm:$0xff] %vm431, %v338
      %443 = vst.msk [vmem:[#allocation4 + $0x108] sm:$0xff] %vm431, %v339
      %444 = vst.msk [vmem:[#allocation4 + $0x120] sm:$0xff] %vm431, %v341
      %445 = vst.msk [vmem:[#allocation4 + $0x138] sm:$0xff] %vm431, %v342
      %446 = vst.msk [vmem:[#allocation4 + $0x150] sm:$0xff] %vm431, %v344
      %447 = vst.msk [vmem:[#allocation4 + $0x168] sm:$0xff] %vm431, %v345
      %448 = vst.msk [vmem:[#allocation4 + $0x180] sm:$0xff] %vm431, %v347
      %449 = vst.msk [vmem:[#allocation4 + $0x198] sm:$0xff] %vm431, %v348
      %450 = vst.msk [vmem:[#allocation4 + $0x1b0] sm:$0xff] %vm431, %v350
      %451 = vst.msk [vmem:[#allocation4 + $0x1c8] sm:$0xff] %vm431, %v351
      %452 = vst.msk [vmem:[#allocation4 + $0x1e0] sm:$0xff] %vm431, %v353
      %453 = vst.msk [vmem:[#allocation4 + $0x1f8] sm:$0xff] %vm431, %v354
      %454 = vst.msk [vmem:[#allocation4 + $0x210] sm:$0xff] %vm431, %v356
      %455 = vst.msk [vmem:[#allocation4 + $0x228] sm:$0xff] %vm431, %v357
      %456 = vst.msk [vmem:[#allocation4 + $0x240] sm:$0xff] %vm431, %v359
      %457 = vst.msk [vmem:[#allocation4 + $0x258] sm:$0xff] %vm431, %v360
      %458 = vst.msk [vmem:[#allocation4 + $0x270] sm:$0xff] %vm431, %v362
      %459 = vst.msk [vmem:[#allocation4 + $0x288] sm:$0xff] %vm431, %v363
      %460 = vst.msk [vmem:[#allocation4 + $0x2a0] sm:$0xff] %vm431, %v365
      %461 = vst.msk [vmem:[#allocation4 + $0x2b8] sm:$0xff] %vm431, %v366
      %462 = vst.msk [vmem:[#allocation4 + $0x2d0] sm:$0xff] %vm431, %v368
      %463 = vst.msk [vmem:[#allocation4 + $0x2e8] sm:$0xff] %vm431, %v369
      %464 = vst.msk [vmem:[#allocation4 + $0x300] sm:$0xff] %vm431, %v377
      %465 = vst.msk [vmem:[#allocation4 + $0x318] sm:$0xff] %vm431, %v378
      %466 = vst.msk [vmem:[#allocation4 + $0x330] sm:$0xff] %vm431, %v380
      %467 = vst.msk [vmem:[#allocation4 + $0x348] sm:$0xff] %vm431, %v381
      %468 = vst.msk [vmem:[#allocation4 + $0x360] sm:$0xff] %vm431, %v383
      %469 = vst.msk [vmem:[#allocation4 + $0x378] sm:$0xff] %vm431, %v384
      %470 = vst.msk [vmem:[#allocation4 + $0x390] sm:$0xff] %vm431, %v386
      %471 = vst.msk [vmem:[#allocation4 + $0x3a8] sm:$0xff] %vm431, %v387
      %472 = vst.msk [vmem:[#allocation4 + $0x3c0] sm:$0xff] %vm431, %v389
      %473 = vst.msk [vmem:[#allocation4 + $0x3d8] sm:$0xff] %vm431, %v390
      %474 = vst.msk [vmem:[#allocation4 + $0x3f0] sm:$0xff] %vm431, %v392
      %475 = vst.msk [vmem:[#allocation4 + $0x408] sm:$0xff] %vm431, %v393
      %476 = vst.msk [vmem:[#allocation4 + $0x420] sm:$0xff] %vm431, %v395
      %477 = vst.msk [vmem:[#allocation4 + $0x438] sm:$0xff] %vm431, %v396
      %478 = vst.msk [vmem:[#allocation4 + $0x450] sm:$0xff] %vm431, %v398
      %479 = vst.msk [vmem:[#allocation4 + $0x468] sm:$0xff] %vm431, %v399
      %480 = vst.msk [vmem:[#allocation4 + $0x480] sm:$0xff] %vm431, %v401
      %481 = vst.msk [vmem:[#allocation4 + $0x498] sm:$0xff] %vm431, %v402
      %482 = vst.msk [vmem:[#allocation4 + $0x4b0] sm:$0xff] %vm431, %v404
      %483 = vst.msk [vmem:[#allocation4 + $0x4c8] sm:$0xff] %vm431, %v405
      %484 = vst.msk [vmem:[#allocation4 + $0x4e0] sm:$0xff] %vm431, %v407
      %485 = vst.msk [vmem:[#allocation4 + $0x4f8] sm:$0xff] %vm431, %v408
      %486 = vst.msk [vmem:[#allocation4 + $0x510] sm:$0xff] %vm431, %v410
      %487 = vst.msk [vmem:[#allocation4 + $0x528] sm:$0xff] %vm431, %v411
      %488 = vst.msk [vmem:[#allocation4 + $0x540] sm:$0xff] %vm431, %v413
      %489 = vst.msk [vmem:[#allocation4 + $0x558] sm:$0xff] %vm431, %v414
      %490 = vst.msk [vmem:[#allocation4 + $0x570] sm:$0xff] %vm431, %v416
      %491 = vst.msk [vmem:[#allocation4 + $0x588] sm:$0xff] %vm431, %v417
      %492 = vst.msk [vmem:[#allocation4 + $0x5a0] sm:$0xff] %vm431, %v419
      %493 = vst.msk [vmem:[#allocation4 + $0x5b8] sm:$0xff] %vm431, %v420
      %494 = vst.msk [vmem:[#allocation4 + $0x5d0] sm:$0xff] %vm431, %v422
      %495 = vst.msk [vmem:[#allocation4 + $0x5e8] sm:$0xff] %vm431, %v423
      %vm592 = vcmask 1046528
      %v593 = vrot.slane %v323, 1
      %v594 = vrot.slane %v324, 1
      %v595 = vsel %vm592, %v593, %v594
      %v596 = vrot.slane %v325, 1
      %v597 = vsel %vm592, %v594, %v596
      %v598 = vrot.slane %v326, 1
      %v599 = vrot.slane %v327, 1
      %v600 = vsel %vm592, %v598, %v599
      %v601 = vrot.slane %v328, 1
      %v602 = vsel %vm592, %v599, %v601
      %v603 = vrot.slane %v329, 1
      %v604 = vrot.slane %v330, 1
      %v605 = vsel %vm592, %v603, %v604
      %v606 = vrot.slane %v331, 1
      %v607 = vsel %vm592, %v604, %v606
      %v608 = vrot.slane %v332, 1
      %v609 = vrot.slane %v333, 1
      %v610 = vsel %vm592, %v608, %v609
      %v611 = vrot.slane %v334, 1
      %v612 = vsel %vm592, %v609, %v611
      %v613 = vrot.slane %v335, 1
      %v614 = vrot.slane %v336, 1
      %v615 = vsel %vm592, %v613, %v614
      %v616 = vrot.slane %v337, 1
      %v617 = vsel %vm592, %v614, %v616
      %v618 = vrot.slane %v338, 1
      %v619 = vrot.slane %v339, 1
      %v620 = vsel %vm592, %v618, %v619
      %v621 = vrot.slane %v340, 1
      %v622 = vsel %vm592, %v619, %v621
      %v623 = vrot.slane %v341, 1
      %v624 = vrot.slane %v342, 1
      %v625 = vsel %vm592, %v623, %v624
      %v626 = vrot.slane %v343, 1
      %v627 = vsel %vm592, %v624, %v626
      %v628 = vrot.slane %v344, 1
      %v629 = vrot.slane %v345, 1
      %v630 = vsel %vm592, %v628, %v629
      %v631 = vrot.slane %v346, 1
      %v632 = vsel %vm592, %v629, %v631
      %v633 = vrot.slane %v347, 1
      %v634 = vrot.slane %v348, 1
      %v635 = vsel %vm592, %v633, %v634
      %v636 = vrot.slane %v349, 1
      %v637 = vsel %vm592, %v634, %v636
      %v638 = vrot.slane %v350, 1
      %v639 = vrot.slane %v351, 1
      %v640 = vsel %vm592, %v638, %v639
      %v641 = vrot.slane %v352, 1
      %v642 = vsel %vm592, %v639, %v641
      %v643 = vrot.slane %v353, 1
      %v644 = vrot.slane %v354, 1
      %v645 = vsel %vm592, %v643, %v644
      %v646 = vrot.slane %v355, 1
      %v647 = vsel %vm592, %v644, %v646
      %v648 = vrot.slane %v356, 1
      %v649 = vrot.slane %v357, 1
      %v650 = vsel %vm592, %v648, %v649
      %v651 = vrot.slane %v358, 1
      %v652 = vsel %vm592, %v649, %v651
      %v653 = vrot.slane %v359, 1
      %v654 = vrot.slane %v360, 1
      %v655 = vsel %vm592, %v653, %v654
      %v656 = vrot.slane %v361, 1
      %v657 = vsel %vm592, %v654, %v656
      %v658 = vrot.slane %v362, 1
      %v659 = vrot.slane %v363, 1
      %v660 = vsel %vm592, %v658, %v659
      %v661 = vrot.slane %v364, 1
      %v662 = vsel %vm592, %v659, %v661
      %v663 = vrot.slane %v365, 1
      %v664 = vrot.slane %v366, 1
      %v665 = vsel %vm592, %v663, %v664
      %v666 = vrot.slane %v367, 1
      %v667 = vsel %vm592, %v664, %v666
      %v668 = vrot.slane %v368, 1
      %v669 = vrot.slane %v369, 1
      %v670 = vsel %vm592, %v668, %v669
      %v671 = vrot.slane %v370, 1
      %v672 = vsel %vm592, %v669, %v671
      %v673 = vrot.slane %v377, 1
      %v674 = vrot.slane %v378, 1
      %v675 = vsel %vm592, %v673, %v674
      %v676 = vrot.slane %v379, 1
      %v677 = vsel %vm592, %v674, %v676
      %v678 = vrot.slane %v380, 1
      %v679 = vrot.slane %v381, 1
      %v680 = vsel %vm592, %v678, %v679
      %v681 = vrot.slane %v382, 1
      %v682 = vsel %vm592, %v679, %v681
      %v683 = vrot.slane %v383, 1
      %v684 = vrot.slane %v384, 1
      %v685 = vsel %vm592, %v683, %v684
      %v686 = vrot.slane %v385, 1
      %v687 = vsel %vm592, %v684, %v686
      %v688 = vrot.slane %v386, 1
      %v689 = vrot.slane %v387, 1
      %v690 = vsel %vm592, %v688, %v689
      %v691 = vrot.slane %v388, 1
      %v692 = vsel %vm592, %v689, %v691
      %v693 = vrot.slane %v389, 1
      %v694 = vrot.slane %v390, 1
      %v695 = vsel %vm592, %v693, %v694
      %v696 = vrot.slane %v391, 1
      %v697 = vsel %vm592, %v694, %v696
      %v698 = vrot.slane %v392, 1
      %v699 = vrot.slane %v393, 1
      %v700 = vsel %vm592, %v698, %v699
      %v701 = vrot.slane %v394, 1
      %v702 = vsel %vm592, %v699, %v701
      %v703 = vrot.slane %v395, 1
      %v704 = vrot.slane %v396, 1
      %v705 = vsel %vm592, %v703, %v704
      %v706 = vrot.slane %v397, 1
      %v707 = vsel %vm592, %v704, %v706
      %v708 = vrot.slane %v398, 1
      %v709 = vrot.slane %v399, 1
      %v710 = vsel %vm592, %v708, %v709
      %v711 = vrot.slane %v400, 1
      %v712 = vsel %vm592, %v709, %v711
      %v713 = vrot.slane %v401, 1
      %v714 = vrot.slane %v402, 1
      %v715 = vsel %vm592, %v713, %v714
      %v716 = vrot.slane %v403, 1
      %v717 = vsel %vm592, %v714, %v716
      %v718 = vrot.slane %v404, 1
      %v719 = vrot.slane %v405, 1
      %v720 = vsel %vm592, %v718, %v719
      %v721 = vrot.slane %v406, 1
      %v722 = vsel %vm592, %v719, %v721
      %v723 = vrot.slane %v407, 1
      %v724 = vrot.slane %v408, 1
      %v725 = vsel %vm592, %v723, %v724
      %v726 = vrot.slane %v409, 1
      %v727 = vsel %vm592, %v724, %v726
      %v728 = vrot.slane %v410, 1
      %v729 = vrot.slane %v411, 1
      %v730 = vsel %vm592, %v728, %v729
      %v731 = vrot.slane %v412, 1
      %v732 = vsel %vm592, %v729, %v731
      %v733 = vrot.slane %v413, 1
      %v734 = vrot.slane %v414, 1
      %v735 = vsel %vm592, %v733, %v734
      %v736 = vrot.slane %v415, 1
      %v737 = vsel %vm592, %v734, %v736
      %v738 = vrot.slane %v416, 1
      %v739 = vrot.slane %v417, 1
      %v740 = vsel %vm592, %v738, %v739
      %v741 = vrot.slane %v418, 1
      %v742 = vsel %vm592, %v739, %v741
      %v743 = vrot.slane %v419, 1
      %v744 = vrot.slane %v420, 1
      %v745 = vsel %vm592, %v743, %v744
      %v746 = vrot.slane %v421, 1
      %v747 = vsel %vm592, %v744, %v746
      %v748 = vrot.slane %v422, 1
      %v749 = vrot.slane %v423, 1
      %v750 = vsel %vm592, %v748, %v749
      %v751 = vrot.slane %v424, 1
      %v752 = vsel %vm592, %v749, %v751
      %753 = vrot.lane.b32.xlu0 %v595, 32
      %v754 = vpop.permute.xlu0 %753
      %755 = vrot.lane.b32.xlu0 %v597, 32
      %v756 = vpop.permute.xlu0 %755
      %757 = vrot.lane.b32.xlu0 %v600, 32
      %v758 = vpop.permute.xlu0 %757
      %759 = vrot.lane.b32.xlu0 %v602, 32
      %v760 = vpop.permute.xlu0 %759
      %761 = vrot.lane.b32.xlu0 %v605, 32
      %v762 = vpop.permute.xlu0 %761
      %763 = vrot.lane.b32.xlu0 %v607, 32
      %v764 = vpop.permute.xlu0 %763
      %765 = vrot.lane.b32.xlu0 %v610, 32
      %v766 = vpop.permute.xlu0 %765
      %767 = vrot.lane.b32.xlu0 %v612, 32
      %v768 = vpop.permute.xlu0 %767
      %769 = vrot.lane.b32.xlu0 %v615, 32
      %v770 = vpop.permute.xlu0 %769
      %771 = vrot.lane.b32.xlu0 %v617, 32
      %v772 = vpop.permute.xlu0 %771
      %773 = vrot.lane.b32.xlu0 %v620, 32
      %v774 = vpop.permute.xlu0 %773
      %775 = vrot.lane.b32.xlu0 %v622, 32
      %v776 = vpop.permute.xlu0 %775
      %777 = vrot.lane.b32.xlu0 %v625, 32
      %v778 = vpop.permute.xlu0 %777
      %779 = vrot.lane.b32.xlu0 %v627, 32
      %v780 = vpop.permute.xlu0 %779
      %781 = vrot.lane.b32.xlu0 %v630, 32
      %v782 = vpop.permute.xlu0 %781
      %783 = vrot.lane.b32.xlu0 %v632, 32
      %v784 = vpop.permute.xlu0 %783
      %785 = vrot.lane.b32.xlu0 %v635, 32
      %v786 = vpop.permute.xlu0 %785
      %787 = vrot.lane.b32.xlu0 %v637, 32
      %v788 = vpop.permute.xlu0 %787
      %789 = vrot.lane.b32.xlu0 %v640, 32
      %v790 = vpop.permute.xlu0 %789
      %791 = vrot.lane.b32.xlu0 %v642, 32
      %v792 = vpop.permute.xlu0 %791
      %793 = vrot.lane.b32.xlu0 %v645, 32
      %v794 = vpop.permute.xlu0 %793
      %795 = vrot.lane.b32.xlu0 %v647, 32
      %v796 = vpop.permute.xlu0 %795
      %797 = vrot.lane.b32.xlu0 %v650, 32
      %v798 = vpop.permute.xlu0 %797
      %799 = vrot.lane.b32.xlu0 %v652, 32
      %v800 = vpop.permute.xlu0 %799
      %801 = vrot.lane.b32.xlu0 %v655, 32
      %v802 = vpop.permute.xlu0 %801
      %803 = vrot.lane.b32.xlu0 %v657, 32
      %v804 = vpop.permute.xlu0 %803
      %805 = vrot.lane.b32.xlu0 %v660, 32
      %v806 = vpop.permute.xlu0 %805
      %807 = vrot.lane.b32.xlu0 %v662, 32
      %v808 = vpop.permute.xlu0 %807
      %809 = vrot.lane.b32.xlu0 %v665, 32
      %v810 = vpop.permute.xlu0 %809
      %811 = vrot.lane.b32.xlu0 %v667, 32
      %v812 = vpop.permute.xlu0 %811
      %813 = vrot.lane.b32.xlu0 %v670, 32
      %v814 = vpop.permute.xlu0 %813
      %815 = vrot.lane.b32.xlu0 %v672, 32
      %v816 = vpop.permute.xlu0 %815
      %817 = vrot.lane.b32.xlu0 %v675, 32
      %v818 = vpop.permute.xlu0 %817
      %819 = vrot.lane.b32.xlu0 %v677, 32
      %v820 = vpop.permute.xlu0 %819
      %821 = vrot.lane.b32.xlu0 %v680, 32
      %v822 = vpop.permute.xlu0 %821
      %823 = vrot.lane.b32.xlu0 %v682, 32
      %v824 = vpop.permute.xlu0 %823
      %825 = vrot.lane.b32.xlu0 %v685, 32
      %v826 = vpop.permute.xlu0 %825
      %827 = vrot.lane.b32.xlu0 %v687, 32
      %v828 = vpop.permute.xlu0 %827
      %829 = vrot.lane.b32.xlu0 %v690, 32
      %v830 = vpop.permute.xlu0 %829
      %831 = vrot.lane.b32.xlu0 %v692, 32
      %v832 = vpop.permute.xlu0 %831
      %833 = vrot.lane.b32.xlu0 %v695, 32
      %v834 = vpop.permute.xlu0 %833
      %835 = vrot.lane.b32.xlu0 %v697, 32
      %v836 = vpop.permute.xlu0 %835
      %837 = vrot.lane.b32.xlu0 %v700, 32
      %v838 = vpop.permute.xlu0 %837
      %839 = vrot.lane.b32.xlu0 %v702, 32
      %v840 = vpop.permute.xlu0 %839
      %841 = vrot.lane.b32.xlu0 %v705, 32
      %v842 = vpop.permute.xlu0 %841
      %843 = vrot.lane.b32.xlu0 %v707, 32
      %v844 = vpop.permute.xlu0 %843
      %845 = vrot.lane.b32.xlu0 %v710, 32
      %v846 = vpop.permute.xlu0 %845
      %847 = vrot.lane.b32.xlu0 %v712, 32
      %v848 = vpop.permute.xlu0 %847
      %849 = vrot.lane.b32.xlu0 %v715, 32
      %v850 = vpop.permute.xlu0 %849
      %851 = vrot.lane.b32.xlu0 %v717, 32
      %v852 = vpop.permute.xlu0 %851
      %853 = vrot.lane.b32.xlu0 %v720, 32
      %v854 = vpop.permute.xlu0 %853
      %855 = vrot.lane.b32.xlu0 %v722, 32
      %v856 = vpop.permute.xlu0 %855
      %857 = vrot.lane.b32.xlu0 %v725, 32
      %v858 = vpop.permute.xlu0 %857
      %859 = vrot.lane.b32.xlu0 %v727, 32
      %v860 = vpop.permute.xlu0 %859
      %861 = vrot.lane.b32.xlu0 %v730, 32
      %v862 = vpop.permute.xlu0 %861
      %863 = vrot.lane.b32.xlu0 %v732, 32
      %v864 = vpop.permute.xlu0 %863
      %865 = vrot.lane.b32.xlu0 %v735, 32
      %v866 = vpop.permute.xlu0 %865
      %867 = vrot.lane.b32.xlu0 %v737, 32
      %v868 = vpop.permute.xlu0 %867
      %869 = vrot.lane.b32.xlu0 %v740, 32
      %v870 = vpop.permute.xlu0 %869
      %871 = vrot.lane.b32.xlu0 %v742, 32
      %v872 = vpop.permute.xlu0 %871
      %873 = vrot.lane.b32.xlu0 %v745, 32
      %v874 = vpop.permute.xlu0 %873
      %875 = vrot.lane.b32.xlu0 %v747, 32
      %v876 = vpop.permute.xlu0 %875
      %877 = vrot.lane.b32.xlu0 %v750, 32
      %v878 = vpop.permute.xlu0 %877
      %879 = vrot.lane.b32.xlu0 %v752, 32
      %v880 = vpop.permute.xlu0 %879
      %vm945 = vcmask 523520
      %946 = vst.msk [vmem:[#allocation4] sm:$0xff] %vm945, %v754
      %947 = vst.msk [vmem:[#allocation4 + $0x18] sm:$0xff] %vm945, %v756
      %948 = vst.msk [vmem:[#allocation4 + $0x30] sm:$0xff] %vm945, %v758
      %949 = vst.msk [vmem:[#allocation4 + $0x48] sm:$0xff] %vm945, %v760
      %950 = vst.msk [vmem:[#allocation4 + $0x60] sm:$0xff] %vm945, %v762
      %951 = vst.msk [vmem:[#allocation4 + $0x78] sm:$0xff] %vm945, %v764
      %952 = vst.msk [vmem:[#allocation4 + $0x90] sm:$0xff] %vm945, %v766
      %953 = vst.msk [vmem:[#allocation4 + $0xa8] sm:$0xff] %vm945, %v768
      %954 = vst.msk [vmem:[#allocation4 + $0xc0] sm:$0xff] %vm945, %v770
      %955 = vst.msk [vmem:[#allocation4 + $0xd8] sm:$0xff] %vm945, %v772
      %956 = vst.msk [vmem:[#allocation4 + $0xf0] sm:$0xff] %vm945, %v774
      %957 = vst.msk [vmem:[#allocation4 + $0x108] sm:$0xff] %vm945, %v776
      %958 = vst.msk [vmem:[#allocation4 + $0x120] sm:$0xff] %vm945, %v778
      %959 = vst.msk [vmem:[#allocation4 + $0x138] sm:$0xff] %vm945, %v780
      %960 = vst.msk [vmem:[#allocation4 + $0x150] sm:$0xff] %vm945, %v782
      %961 = vst.msk [vmem:[#allocation4 + $0x168] sm:$0xff] %vm945, %v784
      %962 = vst.msk [vmem:[#allocation4 + $0x180] sm:$0xff] %vm945, %v786
      %963 = vst.msk [vmem:[#allocation4 + $0x198] sm:$0xff] %vm945, %v788
      %964 = vst.msk [vmem:[#allocation4 + $0x1b0] sm:$0xff] %vm945, %v790
      %965 = vst.msk [vmem:[#allocation4 + $0x1c8] sm:$0xff] %vm945, %v792
      %966 = vst.msk [vmem:[#allocation4 + $0x1e0] sm:$0xff] %vm945, %v794
      %967 = vst.msk [vmem:[#allocation4 + $0x1f8] sm:$0xff] %vm945, %v796
      %968 = vst.msk [vmem:[#allocation4 + $0x210] sm:$0xff] %vm945, %v798
      %969 = vst.msk [vmem:[#allocation4 + $0x228] sm:$0xff] %vm945, %v800
      %970 = vst.msk [vmem:[#allocation4 + $0x240] sm:$0xff] %vm945, %v802
      %971 = vst.msk [vmem:[#allocation4 + $0x258] sm:$0xff] %vm945, %v804
      %972 = vst.msk [vmem:[#allocation4 + $0x270] sm:$0xff] %vm945, %v806
      %973 = vst.msk [vmem:[#allocation4 + $0x288] sm:$0xff] %vm945, %v808
      %974 = vst.msk [vmem:[#allocation4 + $0x2a0] sm:$0xff] %vm945, %v810
      %975 = vst.msk [vmem:[#allocation4 + $0x2b8] sm:$0xff] %vm945, %v812
      %976 = vst.msk [vmem:[#allocation4 + $0x2d0] sm:$0xff] %vm945, %v814
      %977 = vst.msk [vmem:[#allocation4 + $0x2e8] sm:$0xff] %vm945, %v816
      %978 = vst.msk [vmem:[#allocation4 + $0x300] sm:$0xff] %vm945, %v818
      %979 = vst.msk [vmem:[#allocation4 + $0x318] sm:$0xff] %vm945, %v820
      %980 = vst.msk [vmem:[#allocation4 + $0x330] sm:$0xff] %vm945, %v822
      %981 = vst.msk [vmem:[#allocation4 + $0x348] sm:$0xff] %vm945, %v824
      %982 = vst.msk [vmem:[#allocation4 + $0x360] sm:$0xff] %vm945, %v826
      %983 = vst.msk [vmem:[#allocation4 + $0x378] sm:$0xff] %vm945, %v828
      %984 = vst.msk [vmem:[#allocation4 + $0x390] sm:$0xff] %vm945, %v830
      %985 = vst.msk [vmem:[#allocation4 + $0x3a8] sm:$0xff] %vm945, %v832
      %986 = vst.msk [vmem:[#allocation4 + $0x3c0] sm:$0xff] %vm945, %v834
      %987 = vst.msk [vmem:[#allocation4 + $0x3d8] sm:$0xff] %vm945, %v836
      %988 = vst.msk [vmem:[#allocation4 + $0x3f0] sm:$0xff] %vm945, %v838
      %989 = vst.msk [vmem:[#allocation4 + $0x408] sm:$0xff] %vm945, %v840
      %990 = vst.msk [vmem:[#allocation4 + $0x420] sm:$0xff] %vm945, %v842
      %991 = vst.msk [vmem:[#allocation4 + $0x438] sm:$0xff] %vm945, %v844
      %992 = vst.msk [vmem:[#allocation4 + $0x450] sm:$0xff] %vm945, %v846
      %993 = vst.msk [vmem:[#allocation4 + $0x468] sm:$0xff] %vm945, %v848
      %994 = vst.msk [vmem:[#allocation4 + $0x480] sm:$0xff] %vm945, %v850
      %995 = vst.msk [vmem:[#allocation4 + $0x498] sm:$0xff] %vm945, %v852
      %996 = vst.msk [vmem:[#allocation4 + $0x4b0] sm:$0xff] %vm945, %v854
      %997 = vst.msk [vmem:[#allocation4 + $0x4c8] sm:$0xff] %vm945, %v856
      %998 = vst.msk [vmem:[#allocation4 + $0x4e0] sm:$0xff] %vm945, %v858
      %999 = vst.msk [vmem:[#allocation4 + $0x4f8] sm:$0xff] %vm945, %v860
      %1000 = vst.msk [vmem:[#allocation4 + $0x510] sm:$0xff] %vm945, %v862
      %1001 = vst.msk [vmem:[#allocation4 + $0x528] sm:$0xff] %vm945, %v864
      %1002 = vst.msk [vmem:[#allocation4 + $0x540] sm:$0xff] %vm945, %v866
      %1003 = vst.msk [vmem:[#allocation4 + $0x558] sm:$0xff] %vm945, %v868
      %1004 = vst.msk [vmem:[#allocation4 + $0x570] sm:$0xff] %vm945, %v870
      %1005 = vst.msk [vmem:[#allocation4 + $0x588] sm:$0xff] %vm945, %v872
      %1006 = vst.msk [vmem:[#allocation4 + $0x5a0] sm:$0xff] %vm945, %v874
      %1007 = vst.msk [vmem:[#allocation4 + $0x5b8] sm:$0xff] %vm945, %v876
      %1008 = vst.msk [vmem:[#allocation4 + $0x5d0] sm:$0xff] %vm945, %v878
      %1009 = vst.msk [vmem:[#allocation4 + $0x5e8] sm:$0xff] %vm945, %v880
      %vm1010 = vcmask 1045504
      %v1011 = vrot.slane %v323, 2
      %v1012 = vrot.slane %v324, 2
      %v1013 = vsel %vm1010, %v1011, %v1012
      %v1014 = vrot.slane %v325, 2
      %v1015 = vsel %vm1010, %v1012, %v1014
      %v1016 = vrot.slane %v326, 2
      %v1017 = vrot.slane %v327, 2
      %v1018 = vsel %vm1010, %v1016, %v1017
      %v1019 = vrot.slane %v328, 2
      %v1020 = vsel %vm1010, %v1017, %v1019
      %v1021 = vrot.slane %v329, 2
      %v1022 = vrot.slane %v330, 2
      %v1023 = vsel %vm1010, %v1021, %v1022
      %v1024 = vrot.slane %v331, 2
      %v1025 = vsel %vm1010, %v1022, %v1024
      %v1026 = vrot.slane %v332, 2
      %v1027 = vrot.slane %v333, 2
      %v1028 = vsel %vm1010, %v1026, %v1027
      %v1029 = vrot.slane %v334, 2
      %v1030 = vsel %vm1010, %v1027, %v1029
      %v1031 = vrot.slane %v335, 2
      %v1032 = vrot.slane %v336, 2
      %v1033 = vsel %vm1010, %v1031, %v1032
      %v1034 = vrot.slane %v337, 2
      %v1035 = vsel %vm1010, %v1032, %v1034
      %v1036 = vrot.slane %v338, 2
      %v1037 = vrot.slane %v339, 2
      %v1038 = vsel %vm1010, %v1036, %v1037
      %v1039 = vrot.slane %v340, 2
      %v1040 = vsel %vm1010, %v1037, %v1039
      %v1041 = vrot.slane %v341, 2
      %v1042 = vrot.slane %v342, 2
      %v1043 = vsel %vm1010, %v1041, %v1042
      %v1044 = vrot.slane %v343, 2
      %v1045 = vsel %vm1010, %v1042, %v1044
      %v1046 = vrot.slane %v344, 2
      %v1047 = vrot.slane %v345, 2
      %v1048 = vsel %vm1010, %v1046, %v1047
      %v1049 = vrot.slane %v346, 2
      %v1050 = vsel %vm1010, %v1047, %v1049
      %v1051 = vrot.slane %v347, 2
      %v1052 = vrot.slane %v348, 2
      %v1053 = vsel %vm1010, %v1051, %v1052
      %v1054 = vrot.slane %v349, 2
      %v1055 = vsel %vm1010, %v1052, %v1054
      %v1056 = vrot.slane %v350, 2
      %v1057 = vrot.slane %v351, 2
      %v1058 = vsel %vm1010, %v1056, %v1057
      %v1059 = vrot.slane %v352, 2
      %v1060 = vsel %vm1010, %v1057, %v1059
      %v1061 = vrot.slane %v353, 2
      %v1062 = vrot.slane %v354, 2
      %v1063 = vsel %vm1010, %v1061, %v1062
      %v1064 = vrot.slane %v355, 2
      %v1065 = vsel %vm1010, %v1062, %v1064
      %v1066 = vrot.slane %v356, 2
      %v1067 = vrot.slane %v357, 2
      %v1068 = vsel %vm1010, %v1066, %v1067
      %v1069 = vrot.slane %v358, 2
      %v1070 = vsel %vm1010, %v1067, %v1069
      %v1071 = vrot.slane %v359, 2
      %v1072 = vrot.slane %v360, 2
      %v1073 = vsel %vm1010, %v1071, %v1072
      %v1074 = vrot.slane %v361, 2
      %v1075 = vsel %vm1010, %v1072, %v1074
      %v1076 = vrot.slane %v362, 2
      %v1077 = vrot.slane %v363, 2
      %v1078 = vsel %vm1010, %v1076, %v1077
      %v1079 = vrot.slane %v364, 2
      %v1080 = vsel %vm1010, %v1077, %v1079
      %v1081 = vrot.slane %v365, 2
      %v1082 = vrot.slane %v366, 2
      %v1083 = vsel %vm1010, %v1081, %v1082
      %v1084 = vrot.slane %v367, 2
      %v1085 = vsel %vm1010, %v1082, %v1084
      %v1086 = vrot.slane %v368, 2
      %v1087 = vrot.slane %v369, 2
      %v1088 = vsel %vm1010, %v1086, %v1087
      %v1089 = vrot.slane %v370, 2
      %v1090 = vsel %vm1010, %v1087, %v1089
      %v1091 = vrot.slane %v377, 2
      %v1092 = vrot.slane %v378, 2
      %v1093 = vsel %vm1010, %v1091, %v1092
      %v1094 = vrot.slane %v379, 2
      %v1095 = vsel %vm1010, %v1092, %v1094
      %v1096 = vrot.slane %v380, 2
      %v1097 = vrot.slane %v381, 2
      %v1098 = vsel %vm1010, %v1096, %v1097
      %v1099 = vrot.slane %v382, 2
      %v1100 = vsel %vm1010, %v1097, %v1099
      %v1101 = vrot.slane %v383, 2
      %v1102 = vrot.slane %v384, 2
      %v1103 = vsel %vm1010, %v1101, %v1102
      %v1104 = vrot.slane %v385, 2
      %v1105 = vsel %vm1010, %v1102, %v1104
      %v1106 = vrot.slane %v386, 2
      %v1107 = vrot.slane %v387, 2
      %v1108 = vsel %vm1010, %v1106, %v1107
      %v1109 = vrot.slane %v388, 2
      %v1110 = vsel %vm1010, %v1107, %v1109
      %v1111 = vrot.slane %v389, 2
      %v1112 = vrot.slane %v390, 2
      %v1113 = vsel %vm1010, %v1111, %v1112
      %v1114 = vrot.slane %v391, 2
      %v1115 = vsel %vm1010, %v1112, %v1114
      %v1116 = vrot.slane %v392, 2
      %v1117 = vrot.slane %v393, 2
      %v1118 = vsel %vm1010, %v1116, %v1117
      %v1119 = vrot.slane %v394, 2
      %v1120 = vsel %vm1010, %v1117, %v1119
      %v1121 = vrot.slane %v395, 2
      %v1122 = vrot.slane %v396, 2
      %v1123 = vsel %vm1010, %v1121, %v1122
      %v1124 = vrot.slane %v397, 2
      %v1125 = vsel %vm1010, %v1122, %v1124
      %v1126 = vrot.slane %v398, 2
      %v1127 = vrot.slane %v399, 2
      %v1128 = vsel %vm1010, %v1126, %v1127
      %v1129 = vrot.slane %v400, 2
      %v1130 = vsel %vm1010, %v1127, %v1129
      %v1131 = vrot.slane %v401, 2
      %v1132 = vrot.slane %v402, 2
      %v1133 = vsel %vm1010, %v1131, %v1132
      %v1134 = vrot.slane %v403, 2
      %v1135 = vsel %vm1010, %v1132, %v1134
      %v1136 = vrot.slane %v404, 2
      %v1137 = vrot.slane %v405, 2
      %v1138 = vsel %vm1010, %v1136, %v1137
      %v1139 = vrot.slane %v406, 2
      %v1140 = vsel %vm1010, %v1137, %v1139
      %v1141 = vrot.slane %v407, 2
      %v1142 = vrot.slane %v408, 2
      %v1143 = vsel %vm1010, %v1141, %v1142
      %v1144 = vrot.slane %v409, 2
      %v1145 = vsel %vm1010, %v1142, %v1144
      %v1146 = vrot.slane %v410, 2
      %v1147 = vrot.slane %v411, 2
      %v1148 = vsel %vm1010, %v1146, %v1147
      %v1149 = vrot.slane %v412, 2
      %v1150 = vsel %vm1010, %v1147, %v1149
      %v1151 = vrot.slane %v413, 2
      %v1152 = vrot.slane %v414, 2
      %v1153 = vsel %vm1010, %v1151, %v1152
      %v1154 = vrot.slane %v415, 2
      %v1155 = vsel %vm1010, %v1152, %v1154
      %v1156 = vrot.slane %v416, 2
      %v1157 = vrot.slane %v417, 2
      %v1158 = vsel %vm1010, %v1156, %v1157
      %v1159 = vrot.slane %v418, 2
      %v1160 = vsel %vm1010, %v1157, %v1159
      %v1161 = vrot.slane %v419, 2
      %v1162 = vrot.slane %v420, 2
      %v1163 = vsel %vm1010, %v1161, %v1162
      %v1164 = vrot.slane %v421, 2
      %v1165 = vsel %vm1010, %v1162, %v1164
      %v1166 = vrot.slane %v422, 2
      %v1167 = vrot.slane %v423, 2
      %v1168 = vsel %vm1010, %v1166, %v1167
      %v1169 = vrot.slane %v424, 2
      %v1170 = vsel %vm1010, %v1167, %v1169
      %1171 = vrot.lane.b32.xlu0 %v1013, 64
      %v1172 = vpop.permute.xlu0 %1171
      %1173 = vrot.lane.b32.xlu0 %v1015, 64
      %v1174 = vpop.permute.xlu0 %1173
      %1175 = vrot.lane.b32.xlu0 %v1018, 64
      %v1176 = vpop.permute.xlu0 %1175
      %1177 = vrot.lane.b32.xlu0 %v1020, 64
      %v1178 = vpop.permute.xlu0 %1177
      %1179 = vrot.lane.b32.xlu0 %v1023, 64
      %v1180 = vpop.permute.xlu0 %1179
      %1181 = vrot.lane.b32.xlu0 %v1025, 64
      %v1182 = vpop.permute.xlu0 %1181
      %1183 = vrot.lane.b32.xlu0 %v1028, 64
      %v1184 = vpop.permute.xlu0 %1183
      %1185 = vrot.lane.b32.xlu0 %v1030, 64
      %v1186 = vpop.permute.xlu0 %1185
      %1187 = vrot.lane.b32.xlu0 %v1033, 64
      %v1188 = vpop.permute.xlu0 %1187
      %1189 = vrot.lane.b32.xlu0 %v1035, 64
      %v1190 = vpop.permute.xlu0 %1189
      %1191 = vrot.lane.b32.xlu0 %v1038, 64
      %v1192 = vpop.permute.xlu0 %1191
      %1193 = vrot.lane.b32.xlu0 %v1040, 64
      %v1194 = vpop.permute.xlu0 %1193
      %1195 = vrot.lane.b32.xlu0 %v1043, 64
      %v1196 = vpop.permute.xlu0 %1195
      %1197 = vrot.lane.b32.xlu0 %v1045, 64
      %v1198 = vpop.permute.xlu0 %1197
      %1199 = vrot.lane.b32.xlu0 %v1048, 64
      %v1200 = vpop.permute.xlu0 %1199
      %1201 = vrot.lane.b32.xlu0 %v1050, 64
      %v1202 = vpop.permute.xlu0 %1201
      %1203 = vrot.lane.b32.xlu0 %v1053, 64
      %v1204 = vpop.permute.xlu0 %1203
      %1205 = vrot.lane.b32.xlu0 %v1055, 64
      %v1206 = vpop.permute.xlu0 %1205
      %1207 = vrot.lane.b32.xlu0 %v1058, 64
      %v1208 = vpop.permute.xlu0 %1207
      %1209 = vrot.lane.b32.xlu0 %v1060, 64
      %v1210 = vpop.permute.xlu0 %1209
      %1211 = vrot.lane.b32.xlu0 %v1063, 64
      %v1212 = vpop.permute.xlu0 %1211
      %1213 = vrot.lane.b32.xlu0 %v1065, 64
      %v1214 = vpop.permute.xlu0 %1213
      %1215 = vrot.lane.b32.xlu0 %v1068, 64
      %v1216 = vpop.permute.xlu0 %1215
      %1217 = vrot.lane.b32.xlu0 %v1070, 64
      %v1218 = vpop.permute.xlu0 %1217
      %1219 = vrot.lane.b32.xlu0 %v1073, 64
      %v1220 = vpop.permute.xlu0 %1219
      %1221 = vrot.lane.b32.xlu0 %v1075, 64
      %v1222 = vpop.permute.xlu0 %1221
      %1223 = vrot.lane.b32.xlu0 %v1078, 64
      %v1224 = vpop.permute.xlu0 %1223
      %1225 = vrot.lane.b32.xlu0 %v1080, 64
      %v1226 = vpop.permute.xlu0 %1225
      %1227 = vrot.lane.b32.xlu0 %v1083, 64
      %v1228 = vpop.permute.xlu0 %1227
      %1229 = vrot.lane.b32.xlu0 %v1085, 64
      %v1230 = vpop.permute.xlu0 %1229
      %1231 = vrot.lane.b32.xlu0 %v1088, 64
      %v1232 = vpop.permute.xlu0 %1231
      %1233 = vrot.lane.b32.xlu0 %v1090, 64
      %v1234 = vpop.permute.xlu0 %1233
      %1235 = vrot.lane.b32.xlu0 %v1093, 64
      %v1236 = vpop.permute.xlu0 %1235
      %1237 = vrot.lane.b32.xlu0 %v1095, 64
      %v1238 = vpop.permute.xlu0 %1237
      %1239 = vrot.lane.b32.xlu0 %v1098, 64
      %v1240 = vpop.permute.xlu0 %1239
      %1241 = vrot.lane.b32.xlu0 %v1100, 64
      %v1242 = vpop.permute.xlu0 %1241
      %1243 = vrot.lane.b32.xlu0 %v1103, 64
      %v1244 = vpop.permute.xlu0 %1243
      %1245 = vrot.lane.b32.xlu0 %v1105, 64
      %v1246 = vpop.permute.xlu0 %1245
      %1247 = vrot.lane.b32.xlu0 %v1108, 64
      %v1248 = vpop.permute.xlu0 %1247
      %1249 = vrot.lane.b32.xlu0 %v1110, 64
      %v1250 = vpop.permute.xlu0 %1249
      %1251 = vrot.lane.b32.xlu0 %v1113, 64
      %v1252 = vpop.permute.xlu0 %1251
      %1253 = vrot.lane.b32.xlu0 %v1115, 64
      %v1254 = vpop.permute.xlu0 %1253
      %1255 = vrot.lane.b32.xlu0 %v1118, 64
      %v1256 = vpop.permute.xlu0 %1255
      %1257 = vrot.lane.b32.xlu0 %v1120, 64
      %v1258 = vpop.permute.xlu0 %1257
      %1259 = vrot.lane.b32.xlu0 %v1123, 64
      %v1260 = vpop.permute.xlu0 %1259
      %1261 = vrot.lane.b32.xlu0 %v1125, 64
      %v1262 = vpop.permute.xlu0 %1261
      %1263 = vrot.lane.b32.xlu0 %v1128, 64
      %v1264 = vpop.permute.xlu0 %1263
      %1265 = vrot.lane.b32.xlu0 %v1130, 64
      %v1266 = vpop.permute.xlu0 %1265
      %1267 = vrot.lane.b32.xlu0 %v1133, 64
      %v1268 = vpop.permute.xlu0 %1267
      %1269 = vrot.lane.b32.xlu0 %v1135, 64
      %v1270 = vpop.permute.xlu0 %1269
      %1271 = vrot.lane.b32.xlu0 %v1138, 64
      %v1272 = vpop.permute.xlu0 %1271
      %1273 = vrot.lane.b32.xlu0 %v1140, 64
      %v1274 = vpop.permute.xlu0 %1273
      %1275 = vrot.lane.b32.xlu0 %v1143, 64
      %v1276 = vpop.permute.xlu0 %1275
      %1277 = vrot.lane.b32.xlu0 %v1145, 64
      %v1278 = vpop.permute.xlu0 %1277
      %1279 = vrot.lane.b32.xlu0 %v1148, 64
      %v1280 = vpop.permute.xlu0 %1279
      %1281 = vrot.lane.b32.xlu0 %v1150, 64
      %v1282 = vpop.permute.xlu0 %1281
      %1283 = vrot.lane.b32.xlu0 %v1153, 64
      %v1284 = vpop.permute.xlu0 %1283
      %1285 = vrot.lane.b32.xlu0 %v1155, 64
      %v1286 = vpop.permute.xlu0 %1285
      %1287 = vrot.lane.b32.xlu0 %v1158, 64
      %v1288 = vpop.permute.xlu0 %1287
      %1289 = vrot.lane.b32.xlu0 %v1160, 64
      %v1290 = vpop.permute.xlu0 %1289
      %1291 = vrot.lane.b32.xlu0 %v1163, 64
      %v1292 = vpop.permute.xlu0 %1291
      %1293 = vrot.lane.b32.xlu0 %v1165, 64
      %v1294 = vpop.permute.xlu0 %1293
      %1295 = vrot.lane.b32.xlu0 %v1168, 64
      %v1296 = vpop.permute.xlu0 %1295
      %1297 = vrot.lane.b32.xlu0 %v1170, 64
      %v1298 = vpop.permute.xlu0 %1297
      %vm1363 = vcmask 785920
      %1364 = vst.msk [vmem:[#allocation4] sm:$0xff] %vm1363, %v1172
      %1365 = vst.msk [vmem:[#allocation4 + $0x18] sm:$0xff] %vm1363, %v1174
      %1366 = vst.msk [vmem:[#allocation4 + $0x30] sm:$0xff] %vm1363, %v1176
      %1367 = vst.msk [vmem:[#allocation4 + $0x48] sm:$0xff] %vm1363, %v1178
      %1368 = vst.msk [vmem:[#allocation4 + $0x60] sm:$0xff] %vm1363, %v1180
      %1369 = vst.msk [vmem:[#allocation4 + $0x78] sm:$0xff] %vm1363, %v1182
      %1370 = vst.msk [vmem:[#allocation4 + $0x90] sm:$0xff] %vm1363, %v1184
      %1371 = vst.msk [vmem:[#allocation4 + $0xa8] sm:$0xff] %vm1363, %v1186
      %1372 = vst.msk [vmem:[#allocation4 + $0xc0] sm:$0xff] %vm1363, %v1188
      %1373 = vst.msk [vmem:[#allocation4 + $0xd8] sm:$0xff] %vm1363, %v1190
      %1374 = vst.msk [vmem:[#allocation4 + $0xf0] sm:$0xff] %vm1363, %v1192
      %1375 = vst.msk [vmem:[#allocation4 + $0x108] sm:$0xff] %vm1363, %v1194
      %1376 = vst.msk [vmem:[#allocation4 + $0x120] sm:$0xff] %vm1363, %v1196
      %1377 = vst.msk [vmem:[#allocation4 + $0x138] sm:$0xff] %vm1363, %v1198
      %1378 = vst.msk [vmem:[#allocation4 + $0x150] sm:$0xff] %vm1363, %v1200
      %1379 = vst.msk [vmem:[#allocation4 + $0x168] sm:$0xff] %vm1363, %v1202
      %1380 = vst.msk [vmem:[#allocation4 + $0x180] sm:$0xff] %vm1363, %v1204
      %1381 = vst.msk [vmem:[#allocation4 + $0x198] sm:$0xff] %vm1363, %v1206
      %1382 = vst.msk [vmem:[#allocation4 + $0x1b0] sm:$0xff] %vm1363, %v1208
      %1383 = vst.msk [vmem:[#allocation4 + $0x1c8] sm:$0xff] %vm1363, %v1210
      %1384 = vst.msk [vmem:[#allocation4 + $0x1e0] sm:$0xff] %vm1363, %v1212
      %1385 = vst.msk [vmem:[#allocation4 + $0x1f8] sm:$0xff] %vm1363, %v1214
      %1386 = vst.msk [vmem:[#allocation4 + $0x210] sm:$0xff] %vm1363, %v1216
      %1387 = vst.msk [vmem:[#allocation4 + $0x228] sm:$0xff] %vm1363, %v1218
      %1388 = vst.msk [vmem:[#allocation4 + $0x240] sm:$0xff] %vm1363, %v1220
      %1389 = vst.msk [vmem:[#allocation4 + $0x258] sm:$0xff] %vm1363, %v1222
      %1390 = vst.msk [vmem:[#allocation4 + $0x270] sm:$0xff] %vm1363, %v1224
      %1391 = vst.msk [vmem:[#allocation4 + $0x288] sm:$0xff] %vm1363, %v1226
      %1392 = vst.msk [vmem:[#allocation4 + $0x2a0] sm:$0xff] %vm1363, %v1228
      %1393 = vst.msk [vmem:[#allocation4 + $0x2b8] sm:$0xff] %vm1363, %v1230
      %1394 = vst.msk [vmem:[#allocation4 + $0x2d0] sm:$0xff] %vm1363, %v1232
      %1395 = vst.msk [vmem:[#allocation4 + $0x2e8] sm:$0xff] %vm1363, %v1234
      %1396 = vst.msk [vmem:[#allocation4 + $0x300] sm:$0xff] %vm1363, %v1236
      %1397 = vst.msk [vmem:[#allocation4 + $0x318] sm:$0xff] %vm1363, %v1238
      %1398 = vst.msk [vmem:[#allocation4 + $0x330] sm:$0xff] %vm1363, %v1240
      %1399 = vst.msk [vmem:[#allocation4 + $0x348] sm:$0xff] %vm1363, %v1242
      %1400 = vst.msk [vmem:[#allocation4 + $0x360] sm:$0xff] %vm1363, %v1244
      %1401 = vst.msk [vmem:[#allocation4 + $0x378] sm:$0xff] %vm1363, %v1246
      %1402 = vst.msk [vmem:[#allocation4 + $0x390] sm:$0xff] %vm1363, %v1248
      %1403 = vst.msk [vmem:[#allocation4 + $0x3a8] sm:$0xff] %vm1363, %v1250
      %1404 = vst.msk [vmem:[#allocation4 + $0x3c0] sm:$0xff] %vm1363, %v1252
      %1405 = vst.msk [vmem:[#allocation4 + $0x3d8] sm:$0xff] %vm1363, %v1254
      %1406 = vst.msk [vmem:[#allocation4 + $0x3f0] sm:$0xff] %vm1363, %v1256
      %1407 = vst.msk [vmem:[#allocation4 + $0x408] sm:$0xff] %vm1363, %v1258
      %1408 = vst.msk [vmem:[#allocation4 + $0x420] sm:$0xff] %vm1363, %v1260
      %1409 = vst.msk [vmem:[#allocation4 + $0x438] sm:$0xff] %vm1363, %v1262
      %1410 = vst.msk [vmem:[#allocation4 + $0x450] sm:$0xff] %vm1363, %v1264
      %1411 = vst.msk [vmem:[#allocation4 + $0x468] sm:$0xff] %vm1363, %v1266
      %1412 = vst.msk [vmem:[#allocation4 + $0x480] sm:$0xff] %vm1363, %v1268
      %1413 = vst.msk [vmem:[#allocation4 + $0x498] sm:$0xff] %vm1363, %v1270
      %1414 = vst.msk [vmem:[#allocation4 + $0x4b0] sm:$0xff] %vm1363, %v1272
      %1415 = vst.msk [vmem:[#allocation4 + $0x4c8] sm:$0xff] %vm1363, %v1274
      %1416 = vst.msk [vmem:[#allocation4 + $0x4e0] sm:$0xff] %vm1363, %v1276
      %1417 = vst.msk [vmem:[#allocation4 + $0x4f8] sm:$0xff] %vm1363, %v1278
      %1418 = vst.msk [vmem:[#allocation4 + $0x510] sm:$0xff] %vm1363, %v1280
      %1419 = vst.msk [vmem:[#allocation4 + $0x528] sm:$0xff] %vm1363, %v1282
      %1420 = vst.msk [vmem:[#allocation4 + $0x540] sm:$0xff] %vm1363, %v1284
      %1421 = vst.msk [vmem:[#allocation4 + $0x558] sm:$0xff] %vm1363, %v1286
      %1422 = vst.msk [vmem:[#allocation4 + $0x570] sm:$0xff] %vm1363, %v1288
      %1423 = vst.msk [vmem:[#allocation4 + $0x588] sm:$0xff] %vm1363, %v1290
      %1424 = vst.msk [vmem:[#allocation4 + $0x5a0] sm:$0xff] %vm1363, %v1292
      %1425 = vst.msk [vmem:[#allocation4 + $0x5b8] sm:$0xff] %vm1363, %v1294
      %1426 = vst.msk [vmem:[#allocation4 + $0x5d0] sm:$0xff] %vm1363, %v1296
      %1427 = vst.msk [vmem:[#allocation4 + $0x5e8] sm:$0xff] %vm1363, %v1298
      %1432 = vrot.lane.b32.xlu0 %v326, 96
      %v1433 = vpop.permute.xlu0 %1432
      %1434 = vrot.lane.b32.xlu0 %v327, 96
      %v1435 = vpop.permute.xlu0 %1434
      %1436 = vrot.lane.b32.xlu0 %v329, 96
      %v1437 = vpop.permute.xlu0 %1436
      %1438 = vrot.lane.b32.xlu0 %v330, 96
      %v1439 = vpop.permute.xlu0 %1438
      %1440 = vrot.lane.b32.xlu0 %v332, 96
      %v1441 = vpop.permute.xlu0 %1440
      %1442 = vrot.lane.b32.xlu0 %v333, 96
      %v1443 = vpop.permute.xlu0 %1442
      %1444 = vrot.lane.b32.xlu0 %v335, 96
      %v1445 = vpop.permute.xlu0 %1444
      %1446 = vrot.lane.b32.xlu0 %v336, 96
      %v1447 = vpop.permute.xlu0 %1446
      %1448 = vrot.lane.b32.xlu0 %v338, 96
      %v1449 = vpop.permute.xlu0 %1448
      %1450 = vrot.lane.b32.xlu0 %v339, 96
      %v1451 = vpop.permute.xlu0 %1450
      %1452 = vrot.lane.b32.xlu0 %v341, 96
      %v1453 = vpop.permute.xlu0 %1452
      %1454 = vrot.lane.b32.xlu0 %v342, 96
      %v1455 = vpop.permute.xlu0 %1454
      %1456 = vrot.lane.b32.xlu0 %v344, 96
      %v1457 = vpop.permute.xlu0 %1456
      %1458 = vrot.lane.b32.xlu0 %v345, 96
      %v1459 = vpop.permute.xlu0 %1458
      %1460 = vrot.lane.b32.xlu0 %v347, 96
      %v1461 = vpop.permute.xlu0 %1460
      %1462 = vrot.lane.b32.xlu0 %v348, 96
      %v1463 = vpop.permute.xlu0 %1462
      %1464 = vrot.lane.b32.xlu0 %v350, 96
      %v1465 = vpop.permute.xlu0 %1464
      %1466 = vrot.lane.b32.xlu0 %v351, 96
      %v1467 = vpop.permute.xlu0 %1466
      %1468 = vrot.lane.b32.xlu0 %v353, 96
      %v1469 = vpop.permute.xlu0 %1468
      %1470 = vrot.lane.b32.xlu0 %v354, 96
      %v1471 = vpop.permute.xlu0 %1470
      %1472 = vrot.lane.b32.xlu0 %v356, 96
      %v1473 = vpop.permute.xlu0 %1472
      %1474 = vrot.lane.b32.xlu0 %v357, 96
      %v1475 = vpop.permute.xlu0 %1474
      %1476 = vrot.lane.b32.xlu0 %v359, 96
      %v1477 = vpop.permute.xlu0 %1476
      %1478 = vrot.lane.b32.xlu0 %v360, 96
      %v1479 = vpop.permute.xlu0 %1478
      %1480 = vrot.lane.b32.xlu0 %v362, 96
      %v1481 = vpop.permute.xlu0 %1480
      %1482 = vrot.lane.b32.xlu0 %v363, 96
      %v1483 = vpop.permute.xlu0 %1482
      %1484 = vrot.lane.b32.xlu0 %v365, 96
      %v1485 = vpop.permute.xlu0 %1484
      %1486 = vrot.lane.b32.xlu0 %v366, 96
      %v1487 = vpop.permute.xlu0 %1486
      %1488 = vrot.lane.b32.xlu0 %v368, 96
      %v1489 = vpop.permute.xlu0 %1488
      %1490 = vrot.lane.b32.xlu0 %v369, 96
      %v1491 = vpop.permute.xlu0 %1490
      %1492 = vrot.lane.b32.xlu0 %v371, 96
      %v1493 = vpop.permute.xlu0 %1492
      %1494 = vrot.lane.b32.xlu0 %v372, 96
      %v1495 = vpop.permute.xlu0 %1494
      %1496 = vrot.lane.b32.xlu0 %v380, 96
      %v1497 = vpop.permute.xlu0 %1496
      %1498 = vrot.lane.b32.xlu0 %v381, 96
      %v1499 = vpop.permute.xlu0 %1498
      %1500 = vrot.lane.b32.xlu0 %v383, 96
      %v1501 = vpop.permute.xlu0 %1500
      %1502 = vrot.lane.b32.xlu0 %v384, 96
      %v1503 = vpop.permute.xlu0 %1502
      %1504 = vrot.lane.b32.xlu0 %v386, 96
      %v1505 = vpop.permute.xlu0 %1504
      %1506 = vrot.lane.b32.xlu0 %v387, 96
      %v1507 = vpop.permute.xlu0 %1506
      %1508 = vrot.lane.b32.xlu0 %v389, 96
      %v1509 = vpop.permute.xlu0 %1508
      %1510 = vrot.lane.b32.xlu0 %v390, 96
      %v1511 = vpop.permute.xlu0 %1510
      %1512 = vrot.lane.b32.xlu0 %v392, 96
      %v1513 = vpop.permute.xlu0 %1512
      %1514 = vrot.lane.b32.xlu0 %v393, 96
      %v1515 = vpop.permute.xlu0 %1514
      %1516 = vrot.lane.b32.xlu0 %v395, 96
      %v1517 = vpop.permute.xlu0 %1516
      %1518 = vrot.lane.b32.xlu0 %v396, 96
      %v1519 = vpop.permute.xlu0 %1518
      %1520 = vrot.lane.b32.xlu0 %v398, 96
      %v1521 = vpop.permute.xlu0 %1520
      %1522 = vrot.lane.b32.xlu0 %v399, 96
      %v1523 = vpop.permute.xlu0 %1522
      %1524 = vrot.lane.b32.xlu0 %v401, 96
      %v1525 = vpop.permute.xlu0 %1524
      %1526 = vrot.lane.b32.xlu0 %v402, 96
      %v1527 = vpop.permute.xlu0 %1526
      %1528 = vrot.lane.b32.xlu0 %v404, 96
      %v1529 = vpop.permute.xlu0 %1528
      %1530 = vrot.lane.b32.xlu0 %v405, 96
      %v1531 = vpop.permute.xlu0 %1530
      %1532 = vrot.lane.b32.xlu0 %v407, 96
      %v1533 = vpop.permute.xlu0 %1532
      %1534 = vrot.lane.b32.xlu0 %v408, 96
      %v1535 = vpop.permute.xlu0 %1534
      %1536 = vrot.lane.b32.xlu0 %v410, 96
      %v1537 = vpop.permute.xlu0 %1536
      %1538 = vrot.lane.b32.xlu0 %v411, 96
      %v1539 = vpop.permute.xlu0 %1538
      %1540 = vrot.lane.b32.xlu0 %v413, 96
      %v1541 = vpop.permute.xlu0 %1540
      %1542 = vrot.lane.b32.xlu0 %v414, 96
      %v1543 = vpop.permute.xlu0 %1542
      %1544 = vrot.lane.b32.xlu0 %v416, 96
      %v1545 = vpop.permute.xlu0 %1544
      %1546 = vrot.lane.b32.xlu0 %v417, 96
      %v1547 = vpop.permute.xlu0 %1546
      %1548 = vrot.lane.b32.xlu0 %v419, 96
      %v1549 = vpop.permute.xlu0 %1548
      %1550 = vrot.lane.b32.xlu0 %v420, 96
      %v1551 = vpop.permute.xlu0 %1550
      %1552 = vrot.lane.b32.xlu0 %v422, 96
      %v1553 = vpop.permute.xlu0 %1552
      %1554 = vrot.lane.b32.xlu0 %v423, 96
      %v1555 = vpop.permute.xlu0 %1554
      %1556 = vrot.lane.b32.xlu0 %v425, 96
      %v1557 = vpop.permute.xlu0 %1556
      %1558 = vrot.lane.b32.xlu0 %v426, 96
      %v1559 = vpop.permute.xlu0 %1558
      %vm1624 = vcmask 1048320
      %1625 = vst.msk [vmem:[#allocation4] sm:$0xff] %vm1624, %v1433
      %1626 = vst.msk [vmem:[#allocation4 + $0x18] sm:$0xff] %vm1624, %v1435
      %1627 = vst.msk [vmem:[#allocation4 + $0x30] sm:$0xff] %vm1624, %v1437
      %1628 = vst.msk [vmem:[#allocation4 + $0x48] sm:$0xff] %vm1624, %v1439
      %1629 = vst.msk [vmem:[#allocation4 + $0x60] sm:$0xff] %vm1624, %v1441
      %1630 = vst.msk [vmem:[#allocation4 + $0x78] sm:$0xff] %vm1624, %v1443
      %1631 = vst.msk [vmem:[#allocation4 + $0x90] sm:$0xff] %vm1624, %v1445
      %1632 = vst.msk [vmem:[#allocation4 + $0xa8] sm:$0xff] %vm1624, %v1447
      %1633 = vst.msk [vmem:[#allocation4 + $0xc0] sm:$0xff] %vm1624, %v1449
      %1634 = vst.msk [vmem:[#allocation4 + $0xd8] sm:$0xff] %vm1624, %v1451
      %1635 = vst.msk [vmem:[#allocation4 + $0xf0] sm:$0xff] %vm1624, %v1453
      %1636 = vst.msk [vmem:[#allocation4 + $0x108] sm:$0xff] %vm1624, %v1455
      %1637 = vst.msk [vmem:[#allocation4 + $0x120] sm:$0xff] %vm1624, %v1457
      %1638 = vst.msk [vmem:[#allocation4 + $0x138] sm:$0xff] %vm1624, %v1459
      %1639 = vst.msk [vmem:[#allocation4 + $0x150] sm:$0xff] %vm1624, %v1461
      %1640 = vst.msk [vmem:[#allocation4 + $0x168] sm:$0xff] %vm1624, %v1463
      %1641 = vst.msk [vmem:[#allocation4 + $0x180] sm:$0xff] %vm1624, %v1465
      %1642 = vst.msk [vmem:[#allocation4 + $0x198] sm:$0xff] %vm1624, %v1467
      %1643 = vst.msk [vmem:[#allocation4 + $0x1b0] sm:$0xff] %vm1624, %v1469
      %1644 = vst.msk [vmem:[#allocation4 + $0x1c8] sm:$0xff] %vm1624, %v1471
      %1645 = vst.msk [vmem:[#allocation4 + $0x1e0] sm:$0xff] %vm1624, %v1473
      %1646 = vst.msk [vmem:[#allocation4 + $0x1f8] sm:$0xff] %vm1624, %v1475
      %1647 = vst.msk [vmem:[#allocation4 + $0x210] sm:$0xff] %vm1624, %v1477
      %1648 = vst.msk [vmem:[#allocation4 + $0x228] sm:$0xff] %vm1624, %v1479
      %1649 = vst.msk [vmem:[#allocation4 + $0x240] sm:$0xff] %vm1624, %v1481
      %1650 = vst.msk [vmem:[#allocation4 + $0x258] sm:$0xff] %vm1624, %v1483
      %1651 = vst.msk [vmem:[#allocation4 + $0x270] sm:$0xff] %vm1624, %v1485
      %1652 = vst.msk [vmem:[#allocation4 + $0x288] sm:$0xff] %vm1624, %v1487
      %1653 = vst.msk [vmem:[#allocation4 + $0x2a0] sm:$0xff] %vm1624, %v1489
      %1654 = vst.msk [vmem:[#allocation4 + $0x2b8] sm:$0xff] %vm1624, %v1491
      %1655 = vst.msk [vmem:[#allocation4 + $0x2d0] sm:$0xff] %vm1624, %v1493
      %1656 = vst.msk [vmem:[#allocation4 + $0x2e8] sm:$0xff] %vm1624, %v1495
      %1657 = vst.msk [vmem:[#allocation4 + $0x300] sm:$0xff] %vm1624, %v1497
      %1658 = vst.msk [vmem:[#allocation4 + $0x318] sm:$0xff] %vm1624, %v1499
      %1659 = vst.msk [vmem:[#allocation4 + $0x330] sm:$0xff] %vm1624, %v1501
      %1660 = vst.msk [vmem:[#allocation4 + $0x348] sm:$0xff] %vm1624, %v1503
      %1661 = vst.msk [vmem:[#allocation4 + $0x360] sm:$0xff] %vm1624, %v1505
      %1662 = vst.msk [vmem:[#allocation4 + $0x378] sm:$0xff] %vm1624, %v1507
      %1663 = vst.msk [vmem:[#allocation4 + $0x390] sm:$0xff] %vm1624, %v1509
      %1664 = vst.msk [vmem:[#allocation4 + $0x3a8] sm:$0xff] %vm1624, %v1511
      %1665 = vst.msk [vmem:[#allocation4 + $0x3c0] sm:$0xff] %vm1624, %v1513
      %1666 = vst.msk [vmem:[#allocation4 + $0x3d8] sm:$0xff] %vm1624, %v1515
      %1667 = vst.msk [vmem:[#allocation4 + $0x3f0] sm:$0xff] %vm1624, %v1517
      %1668 = vst.msk [vmem:[#allocation4 + $0x408] sm:$0xff] %vm1624, %v1519
      %1669 = vst.msk [vmem:[#allocation4 + $0x420] sm:$0xff] %vm1624, %v1521
      %1670 = vst.msk [vmem:[#allocation4 + $0x438] sm:$0xff] %vm1624, %v1523
      %1671 = vst.msk [vmem:[#allocation4 + $0x450] sm:$0xff] %vm1624, %v1525
      %1672 = vst.msk [vmem:[#allocation4 + $0x468] sm:$0xff] %vm1624, %v1527
      %1673 = vst.msk [vmem:[#allocation4 + $0x480] sm:$0xff] %vm1624, %v1529
      %1674 = vst.msk [vmem:[#allocation4 + $0x498] sm:$0xff] %vm1624, %v1531
      %1675 = vst.msk [vmem:[#allocation4 + $0x4b0] sm:$0xff] %vm1624, %v1533
      %1676 = vst.msk [vmem:[#allocation4 + $0x4c8] sm:$0xff] %vm1624, %v1535
      %1677 = vst.msk [vmem:[#allocation4 + $0x4e0] sm:$0xff] %vm1624, %v1537
      %1678 = vst.msk [vmem:[#allocation4 + $0x4f8] sm:$0xff] %vm1624, %v1539
      %1679 = vst.msk [vmem:[#allocation4 + $0x510] sm:$0xff] %vm1624, %v1541
      %1680 = vst.msk [vmem:[#allocation4 + $0x528] sm:$0xff] %vm1624, %v1543
      %1681 = vst.msk [vmem:[#allocation4 + $0x540] sm:$0xff] %vm1624, %v1545
      %1682 = vst.msk [vmem:[#allocation4 + $0x558] sm:$0xff] %vm1624, %v1547
      %1683 = vst.msk [vmem:[#allocation4 + $0x570] sm:$0xff] %vm1624, %v1549
      %1684 = vst.msk [vmem:[#allocation4 + $0x588] sm:$0xff] %vm1624, %v1551
      %1685 = vst.msk [vmem:[#allocation4 + $0x5a0] sm:$0xff] %vm1624, %v1553
      %1686 = vst.msk [vmem:[#allocation4 + $0x5b8] sm:$0xff] %vm1624, %v1555
      %1687 = vst.msk [vmem:[#allocation4 + $0x5d0] sm:$0xff] %vm1624, %v1557
      %1688 = vst.msk [vmem:[#allocation4 + $0x5e8] sm:$0xff] %vm1624, %v1559
      %v1691 = vrot.slane %v371, 1
      %v1692 = vrot.slane %v372, 1
      %v1693 = vsel %vm592, %v1691, %v1692
      %v1694 = vrot.slane %v373, 1
      %v1695 = vsel %vm592, %v1692, %v1694
      %v1696 = vrot.slane %v425, 1
      %v1697 = vrot.slane %v426, 1
      %v1698 = vsel %vm592, %v1696, %v1697
      %v1699 = vrot.slane %v427, 1
      %v1700 = vsel %vm592, %v1697, %v1699
      %1765 = vst.msk [vmem:[#allocation4 + $0x8] sm:$0xff] %vm431, %v600
      %1766 = vst.msk [vmem:[#allocation4 + $0x20] sm:$0xff] %vm431, %v602
      %1767 = vst.msk [vmem:[#allocation4 + $0x38] sm:$0xff] %vm431, %v605
      %1768 = vst.msk [vmem:[#allocation4 + $0x50] sm:$0xff] %vm431, %v607
      %1769 = vst.msk [vmem:[#allocation4 + $0x68] sm:$0xff] %vm431, %v610
      %1770 = vst.msk [vmem:[#allocation4 + $0x80] sm:$0xff] %vm431, %v612
      %1771 = vst.msk [vmem:[#allocation4 + $0x98] sm:$0xff] %vm431, %v615
      %1772 = vst.msk [vmem:[#allocation4 + $0xb0] sm:$0xff] %vm431, %v617
      %1773 = vst.msk [vmem:[#allocation4 + $0xc8] sm:$0xff] %vm431, %v620
      %1774 = vst.msk [vmem:[#allocation4 + $0xe0] sm:$0xff] %vm431, %v622
      %1775 = vst.msk [vmem:[#allocation4 + $0xf8] sm:$0xff] %vm431, %v625
      %1776 = vst.msk [vmem:[#allocation4 + $0x110] sm:$0xff] %vm431, %v627
      %1777 = vst.msk [vmem:[#allocation4 + $0x128] sm:$0xff] %vm431, %v630
      %1778 = vst.msk [vmem:[#allocation4 + $0x140] sm:$0xff] %vm431, %v632
      %1779 = vst.msk [vmem:[#allocation4 + $0x158] sm:$0xff] %vm431, %v635
      %1780 = vst.msk [vmem:[#allocation4 + $0x170] sm:$0xff] %vm431, %v637
      %1781 = vst.msk [vmem:[#allocation4 + $0x188] sm:$0xff] %vm431, %v640
      %1782 = vst.msk [vmem:[#allocation4 + $0x1a0] sm:$0xff] %vm431, %v642
      %1783 = vst.msk [vmem:[#allocation4 + $0x1b8] sm:$0xff] %vm431, %v645
      %1784 = vst.msk [vmem:[#allocation4 + $0x1d0] sm:$0xff] %vm431, %v647
      %1785 = vst.msk [vmem:[#allocation4 + $0x1e8] sm:$0xff] %vm431, %v650
      %1786 = vst.msk [vmem:[#allocation4 + $0x200] sm:$0xff] %vm431, %v652
      %1787 = vst.msk [vmem:[#allocation4 + $0x218] sm:$0xff] %vm431, %v655
      %1788 = vst.msk [vmem:[#allocation4 + $0x230] sm:$0xff] %vm431, %v657
      %1789 = vst.msk [vmem:[#allocation4 + $0x248] sm:$0xff] %vm431, %v660
      %1790 = vst.msk [vmem:[#allocation4 + $0x260] sm:$0xff] %vm431, %v662
      %1791 = vst.msk [vmem:[#allocation4 + $0x278] sm:$0xff] %vm431, %v665
      %1792 = vst.msk [vmem:[#allocation4 + $0x290] sm:$0xff] %vm431, %v667
      %1793 = vst.msk [vmem:[#allocation4 + $0x2a8] sm:$0xff] %vm431, %v670
      %1794 = vst.msk [vmem:[#allocation4 + $0x2c0] sm:$0xff] %vm431, %v672
      %1795 = vst.msk [vmem:[#allocation4 + $0x2d8] sm:$0xff] %vm431, %v1693
      %1796 = vst.msk [vmem:[#allocation4 + $0x2f0] sm:$0xff] %vm431, %v1695
      %1797 = vst.msk [vmem:[#allocation4 + $0x308] sm:$0xff] %vm431, %v680
      %1798 = vst.msk [vmem:[#allocation4 + $0x320] sm:$0xff] %vm431, %v682
      %1799 = vst.msk [vmem:[#allocation4 + $0x338] sm:$0xff] %vm431, %v685
      %1800 = vst.msk [vmem:[#allocation4 + $0x350] sm:$0xff] %vm431, %v687
      %1801 = vst.msk [vmem:[#allocation4 + $0x368] sm:$0xff] %vm431, %v690
      %1802 = vst.msk [vmem:[#allocation4 + $0x380] sm:$0xff] %vm431, %v692
      %1803 = vst.msk [vmem:[#allocation4 + $0x398] sm:$0xff] %vm431, %v695
      %1804 = vst.msk [vmem:[#allocation4 + $0x3b0] sm:$0xff] %vm431, %v697
      %1805 = vst.msk [vmem:[#allocation4 + $0x3c8] sm:$0xff] %vm431, %v700
      %1806 = vst.msk [vmem:[#allocation4 + $0x3e0] sm:$0xff] %vm431, %v702
      %1807 = vst.msk [vmem:[#allocation4 + $0x3f8] sm:$0xff] %vm431, %v705
      %1808 = vst.msk [vmem:[#allocation4 + $0x410] sm:$0xff] %vm431, %v707
      %1809 = vst.msk [vmem:[#allocation4 + $0x428] sm:$0xff] %vm431, %v710
      %1810 = vst.msk [vmem:[#allocation4 + $0x440] sm:$0xff] %vm431, %v712
      %1811 = vst.msk [vmem:[#allocation4 + $0x458] sm:$0xff] %vm431, %v715
      %1812 = vst.msk [vmem:[#allocation4 + $0x470] sm:$0xff] %vm431, %v717
      %1813 = vst.msk [vmem:[#allocation4 + $0x488] sm:$0xff] %vm431, %v720
      %1814 = vst.msk [vmem:[#allocation4 + $0x4a0] sm:$0xff] %vm431, %v722
      %1815 = vst.msk [vmem:[#allocation4 + $0x4b8] sm:$0xff] %vm431, %v725
      %1816 = vst.msk [vmem:[#allocation4 + $0x4d0] sm:$0xff] %vm431, %v727
      %1817 = vst.msk [vmem:[#allocation4 + $0x4e8] sm:$0xff] %vm431, %v730
      %1818 = vst.msk [vmem:[#allocation4 + $0x500] sm:$0xff] %vm431, %v732
      %1819 = vst.msk [vmem:[#allocation4 + $0x518] sm:$0xff] %vm431, %v735
      %1820 = vst.msk [vmem:[#allocation4 + $0x530] sm:$0xff] %vm431, %v737
      %1821 = vst.msk [vmem:[#allocation4 + $0x548] sm:$0xff] %vm431, %v740
      %1822 = vst.msk [vmem:[#allocation4 + $0x560] sm:$0xff] %vm431, %v742
      %1823 = vst.msk [vmem:[#allocation4 + $0x578] sm:$0xff] %vm431, %v745
      %1824 = vst.msk [vmem:[#allocation4 + $0x590] sm:$0xff] %vm431, %v747
      %1825 = vst.msk [vmem:[#allocation4 + $0x5a8] sm:$0xff] %vm431, %v750
      %1826 = vst.msk [vmem:[#allocation4 + $0x5c0] sm:$0xff] %vm431, %v752
      %1827 = vst.msk [vmem:[#allocation4 + $0x5d8] sm:$0xff] %vm431, %v1698
      %1828 = vst.msk [vmem:[#allocation4 + $0x5f0] sm:$0xff] %vm431, %v1700
      %v1829 = vrot.slane %v371, 2
      %v1830 = vrot.slane %v372, 2
      %v1831 = vsel %vm1010, %v1829, %v1830
      %v1832 = vrot.slane %v373, 2
      %v1833 = vsel %vm1010, %v1830, %v1832
      %v1834 = vrot.slane %v425, 2
      %v1835 = vrot.slane %v426, 2
      %v1836 = vsel %vm1010, %v1834, %v1835
      %v1837 = vrot.slane %v427, 2
      %v1838 = vsel %vm1010, %v1835, %v1837
      %1839 = vrot.lane.b32.xlu0 %v1018, 32
      %v1840 = vpop.permute.xlu0 %1839
      %1841 = vrot.lane.b32.xlu0 %v1020, 32
      %v1842 = vpop.permute.xlu0 %1841
      %1843 = vrot.lane.b32.xlu0 %v1023, 32
      %v1844 = vpop.permute.xlu0 %1843
      %1845 = vrot.lane.b32.xlu0 %v1025, 32
      %v1846 = vpop.permute.xlu0 %1845
      %1847 = vrot.lane.b32.xlu0 %v1028, 32
      %v1848 = vpop.permute.xlu0 %1847
      %1849 = vrot.lane.b32.xlu0 %v1030, 32
      %v1850 = vpop.permute.xlu0 %1849
      %1851 = vrot.lane.b32.xlu0 %v1033, 32
      %v1852 = vpop.permute.xlu0 %1851
      %1853 = vrot.lane.b32.xlu0 %v1035, 32
      %v1854 = vpop.permute.xlu0 %1853
      %1855 = vrot.lane.b32.xlu0 %v1038, 32
      %v1856 = vpop.permute.xlu0 %1855
      %1857 = vrot.lane.b32.xlu0 %v1040, 32
      %v1858 = vpop.permute.xlu0 %1857
      %1859 = vrot.lane.b32.xlu0 %v1043, 32
      %v1860 = vpop.permute.xlu0 %1859
      %1861 = vrot.lane.b32.xlu0 %v1045, 32
      %v1862 = vpop.permute.xlu0 %1861
      %1863 = vrot.lane.b32.xlu0 %v1048, 32
      %v1864 = vpop.permute.xlu0 %1863
      %1865 = vrot.lane.b32.xlu0 %v1050, 32
      %v1866 = vpop.permute.xlu0 %1865
      %1867 = vrot.lane.b32.xlu0 %v1053, 32
      %v1868 = vpop.permute.xlu0 %1867
      %1869 = vrot.lane.b32.xlu0 %v1055, 32
      %v1870 = vpop.permute.xlu0 %1869
      %1871 = vrot.lane.b32.xlu0 %v1058, 32
      %v1872 = vpop.permute.xlu0 %1871
      %1873 = vrot.lane.b32.xlu0 %v1060, 32
      %v1874 = vpop.permute.xlu0 %1873
      %1875 = vrot.lane.b32.xlu0 %v1063, 32
      %v1876 = vpop.permute.xlu0 %1875
      %1877 = vrot.lane.b32.xlu0 %v1065, 32
      %v1878 = vpop.permute.xlu0 %1877
      %1879 = vrot.lane.b32.xlu0 %v1068, 32
      %v1880 = vpop.permute.xlu0 %1879
      %1881 = vrot.lane.b32.xlu0 %v1070, 32
      %v1882 = vpop.permute.xlu0 %1881
      %1883 = vrot.lane.b32.xlu0 %v1073, 32
      %v1884 = vpop.permute.xlu0 %1883
      %1885 = vrot.lane.b32.xlu0 %v1075, 32
      %v1886 = vpop.permute.xlu0 %1885
      %1887 = vrot.lane.b32.xlu0 %v1078, 32
      %v1888 = vpop.permute.xlu0 %1887
      %1889 = vrot.lane.b32.xlu0 %v1080, 32
      %v1890 = vpop.permute.xlu0 %1889
      %1891 = vrot.lane.b32.xlu0 %v1083, 32
      %v1892 = vpop.permute.xlu0 %1891
      %1893 = vrot.lane.b32.xlu0 %v1085, 32
      %v1894 = vpop.permute.xlu0 %1893
      %1895 = vrot.lane.b32.xlu0 %v1088, 32
      %v1896 = vpop.permute.xlu0 %1895
      %1897 = vrot.lane.b32.xlu0 %v1090, 32
      %v1898 = vpop.permute.xlu0 %1897
      %1899 = vrot.lane.b32.xlu0 %v1831, 32
      %v1900 = vpop.permute.xlu0 %1899
      %1901 = vrot.lane.b32.xlu0 %v1833, 32
      %v1902 = vpop.permute.xlu0 %1901
      %1903 = vrot.lane.b32.xlu0 %v1098, 32
      %v1904 = vpop.permute.xlu0 %1903
      %1905 = vrot.lane.b32.xlu0 %v1100, 32
      %v1906 = vpop.permute.xlu0 %1905
      %1907 = vrot.lane.b32.xlu0 %v1103, 32
      %v1908 = vpop.permute.xlu0 %1907
      %1909 = vrot.lane.b32.xlu0 %v1105, 32
      %v1910 = vpop.permute.xlu0 %1909
      %1911 = vrot.lane.b32.xlu0 %v1108, 32
      %v1912 = vpop.permute.xlu0 %1911
      %1913 = vrot.lane.b32.xlu0 %v1110, 32
      %v1914 = vpop.permute.xlu0 %1913
      %1915 = vrot.lane.b32.xlu0 %v1113, 32
      %v1916 = vpop.permute.xlu0 %1915
      %1917 = vrot.lane.b32.xlu0 %v1115, 32
      %v1918 = vpop.permute.xlu0 %1917
      %1919 = vrot.lane.b32.xlu0 %v1118, 32
      %v1920 = vpop.permute.xlu0 %1919
      %1921 = vrot.lane.b32.xlu0 %v1120, 32
      %v1922 = vpop.permute.xlu0 %1921
      %1923 = vrot.lane.b32.xlu0 %v1123, 32
      %v1924 = vpop.permute.xlu0 %1923
      %1925 = vrot.lane.b32.xlu0 %v1125, 32
      %v1926 = vpop.permute.xlu0 %1925
      %1927 = vrot.lane.b32.xlu0 %v1128, 32
      %v1928 = vpop.permute.xlu0 %1927
      %1929 = vrot.lane.b32.xlu0 %v1130, 32
      %v1930 = vpop.permute.xlu0 %1929
      %1931 = vrot.lane.b32.xlu0 %v1133, 32
      %v1932 = vpop.permute.xlu0 %1931
      %1933 = vrot.lane.b32.xlu0 %v1135, 32
      %v1934 = vpop.permute.xlu0 %1933
      %1935 = vrot.lane.b32.xlu0 %v1138, 32
      %v1936 = vpop.permute.xlu0 %1935
      %1937 = vrot.lane.b32.xlu0 %v1140, 32
      %v1938 = vpop.permute.xlu0 %1937
      %1939 = vrot.lane.b32.xlu0 %v1143, 32
      %v1940 = vpop.permute.xlu0 %1939
      %1941 = vrot.lane.b32.xlu0 %v1145, 32
      %v1942 = vpop.permute.xlu0 %1941
      %1943 = vrot.lane.b32.xlu0 %v1148, 32
      %v1944 = vpop.permute.xlu0 %1943
      %1945 = vrot.lane.b32.xlu0 %v1150, 32
      %v1946 = vpop.permute.xlu0 %1945
      %1947 = vrot.lane.b32.xlu0 %v1153, 32
      %v1948 = vpop.permute.xlu0 %1947
      %1949 = vrot.lane.b32.xlu0 %v1155, 32
      %v1950 = vpop.permute.xlu0 %1949
      %1951 = vrot.lane.b32.xlu0 %v1158, 32
      %v1952 = vpop.permute.xlu0 %1951
      %1953 = vrot.lane.b32.xlu0 %v1160, 32
      %v1954 = vpop.permute.xlu0 %1953
      %1955 = vrot.lane.b32.xlu0 %v1163, 32
      %v1956 = vpop.permute.xlu0 %1955
      %1957 = vrot.lane.b32.xlu0 %v1165, 32
      %v1958 = vpop.permute.xlu0 %1957
      %1959 = vrot.lane.b32.xlu0 %v1168, 32
      %v1960 = vpop.permute.xlu0 %1959
      %1961 = vrot.lane.b32.xlu0 %v1170, 32
      %v1962 = vpop.permute.xlu0 %1961
      %1963 = vrot.lane.b32.xlu0 %v1836, 32
      %v1964 = vpop.permute.xlu0 %1963
      %1965 = vrot.lane.b32.xlu0 %v1838, 32
      %v1966 = vpop.permute.xlu0 %1965
      %2031 = vst.msk [vmem:[#allocation4 + $0x8] sm:$0xff] %vm945, %v1840
      %2032 = vst.msk [vmem:[#allocation4 + $0x20] sm:$0xff] %vm945, %v1842
      %2033 = vst.msk [vmem:[#allocation4 + $0x38] sm:$0xff] %vm945, %v1844
      %2034 = vst.msk [vmem:[#allocation4 + $0x50] sm:$0xff] %vm945, %v1846
      %2035 = vst.msk [vmem:[#allocation4 + $0x68] sm:$0xff] %vm945, %v1848
      %2036 = vst.msk [vmem:[#allocation4 + $0x80] sm:$0xff] %vm945, %v1850
      %2037 = vst.msk [vmem:[#allocation4 + $0x98] sm:$0xff] %vm945, %v1852
      %2038 = vst.msk [vmem:[#allocation4 + $0xb0] sm:$0xff] %vm945, %v1854
      %2039 = vst.msk [vmem:[#allocation4 + $0xc8] sm:$0xff] %vm945, %v1856
      %2040 = vst.msk [vmem:[#allocation4 + $0xe0] sm:$0xff] %vm945, %v1858
      %2041 = vst.msk [vmem:[#allocation4 + $0xf8] sm:$0xff] %vm945, %v1860
      %2042 = vst.msk [vmem:[#allocation4 + $0x110] sm:$0xff] %vm945, %v1862
      %2043 = vst.msk [vmem:[#allocation4 + $0x128] sm:$0xff] %vm945, %v1864
      %2044 = vst.msk [vmem:[#allocation4 + $0x140] sm:$0xff] %vm945, %v1866
      %2045 = vst.msk [vmem:[#allocation4 + $0x158] sm:$0xff] %vm945, %v1868
      %2046 = vst.msk [vmem:[#allocation4 + $0x170] sm:$0xff] %vm945, %v1870
      %2047 = vst.msk [vmem:[#allocation4 + $0x188] sm:$0xff] %vm945, %v1872
      %2048 = vst.msk [vmem:[#allocation4 + $0x1a0] sm:$0xff] %vm945, %v1874
      %2049 = vst.msk [vmem:[#allocation4 + $0x1b8] sm:$0xff] %vm945, %v1876
      %2050 = vst.msk [vmem:[#allocation4 + $0x1d0] sm:$0xff] %vm945, %v1878
      %2051 = vst.msk [vmem:[#allocation4 + $0x1e8] sm:$0xff] %vm945, %v1880
      %2052 = vst.msk [vmem:[#allocation4 + $0x200] sm:$0xff] %vm945, %v1882
      %2053 = vst.msk [vmem:[#allocation4 + $0x218] sm:$0xff] %vm945, %v1884
      %2054 = vst.msk [vmem:[#allocation4 + $0x230] sm:$0xff] %vm945, %v1886
      %2055 = vst.msk [vmem:[#allocation4 + $0x248] sm:$0xff] %vm945, %v1888
      %2056 = vst.msk [vmem:[#allocation4 + $0x260] sm:$0xff] %vm945, %v1890
      %2057 = vst.msk [vmem:[#allocation4 + $0x278] sm:$0xff] %vm945, %v1892
      %2058 = vst.msk [vmem:[#allocation4 + $0x290] sm:$0xff] %vm945, %v1894
      %2059 = vst.msk [vmem:[#allocation4 + $0x2a8] sm:$0xff] %vm945, %v1896
      %2060 = vst.msk [vmem:[#allocation4 + $0x2c0] sm:$0xff] %vm945, %v1898
      %2061 = vst.msk [vmem:[#allocation4 + $0x2d8] sm:$0xff] %vm945, %v1900
      %2062 = vst.msk [vmem:[#allocation4 + $0x2f0] sm:$0xff] %vm945, %v1902
      %2063 = vst.msk [vmem:[#allocation4 + $0x308] sm:$0xff] %vm945, %v1904
      %2064 = vst.msk [vmem:[#allocation4 + $0x320] sm:$0xff] %vm945, %v1906
      %2065 = vst.msk [vmem:[#allocation4 + $0x338] sm:$0xff] %vm945, %v1908
      %2066 = vst.msk [vmem:[#allocation4 + $0x350] sm:$0xff] %vm945, %v1910
      %2067 = vst.msk [vmem:[#allocation4 + $0x368] sm:$0xff] %vm945, %v1912
      %2068 = vst.msk [vmem:[#allocation4 + $0x380] sm:$0xff] %vm945, %v1914
      %2069 = vst.msk [vmem:[#allocation4 + $0x398] sm:$0xff] %vm945, %v1916
      %2070 = vst.msk [vmem:[#allocation4 + $0x3b0] sm:$0xff] %vm945, %v1918
      %2071 = vst.msk [vmem:[#allocation4 + $0x3c8] sm:$0xff] %vm945, %v1920
      %2072 = vst.msk [vmem:[#allocation4 + $0x3e0] sm:$0xff] %vm945, %v1922
      %2073 = vst.msk [vmem:[#allocation4 + $0x3f8] sm:$0xff] %vm945, %v1924
      %2074 = vst.msk [vmem:[#allocation4 + $0x410] sm:$0xff] %vm945, %v1926
      %2075 = vst.msk [vmem:[#allocation4 + $0x428] sm:$0xff] %vm945, %v1928
      %2076 = vst.msk [vmem:[#allocation4 + $0x440] sm:$0xff] %vm945, %v1930
      %2077 = vst.msk [vmem:[#allocation4 + $0x458] sm:$0xff] %vm945, %v1932
      %2078 = vst.msk [vmem:[#allocation4 + $0x470] sm:$0xff] %vm945, %v1934
      %2079 = vst.msk [vmem:[#allocation4 + $0x488] sm:$0xff] %vm945, %v1936
      %2080 = vst.msk [vmem:[#allocation4 + $0x4a0] sm:$0xff] %vm945, %v1938
      %2081 = vst.msk [vmem:[#allocation4 + $0x4b8] sm:$0xff] %vm945, %v1940
      %2082 = vst.msk [vmem:[#allocation4 + $0x4d0] sm:$0xff] %vm945, %v1942
      %2083 = vst.msk [vmem:[#allocation4 + $0x4e8] sm:$0xff] %vm945, %v1944
      %2084 = vst.msk [vmem:[#allocation4 + $0x500] sm:$0xff] %vm945, %v1946
      %2085 = vst.msk [vmem:[#allocation4 + $0x518] sm:$0xff] %vm945, %v1948
      %2086 = vst.msk [vmem:[#allocation4 + $0x530] sm:$0xff] %vm945, %v1950
      %2087 = vst.msk [vmem:[#allocation4 + $0x548] sm:$0xff] %vm945, %v1952
      %2088 = vst.msk [vmem:[#allocation4 + $0x560] sm:$0xff] %vm945, %v1954
      %2089 = vst.msk [vmem:[#allocation4 + $0x578] sm:$0xff] %vm945, %v1956
      %2090 = vst.msk [vmem:[#allocation4 + $0x590] sm:$0xff] %vm945, %v1958
      %2091 = vst.msk [vmem:[#allocation4 + $0x5a8] sm:$0xff] %vm945, %v1960
      %2092 = vst.msk [vmem:[#allocation4 + $0x5c0] sm:$0xff] %vm945, %v1962
      %2093 = vst.msk [vmem:[#allocation4 + $0x5d8] sm:$0xff] %vm945, %v1964
      %2094 = vst.msk [vmem:[#allocation4 + $0x5f0] sm:$0xff] %vm945, %v1966
      %2099 = vrot.lane.b32.xlu0 %v329, 64
      %v2100 = vpop.permute.xlu0 %2099
      %2101 = vrot.lane.b32.xlu0 %v330, 64
      %v2102 = vpop.permute.xlu0 %2101
      %2103 = vrot.lane.b32.xlu0 %v332, 64
      %v2104 = vpop.permute.xlu0 %2103
      %2105 = vrot.lane.b32.xlu0 %v333, 64
      %v2106 = vpop.permute.xlu0 %2105
      %2107 = vrot.lane.b32.xlu0 %v335, 64
      %v2108 = vpop.permute.xlu0 %2107
      %2109 = vrot.lane.b32.xlu0 %v336, 64
      %v2110 = vpop.permute.xlu0 %2109
      %2111 = vrot.lane.b32.xlu0 %v338, 64
      %v2112 = vpop.permute.xlu0 %2111
      %2113 = vrot.lane.b32.xlu0 %v339, 64
      %v2114 = vpop.permute.xlu0 %2113
      %2115 = vrot.lane.b32.xlu0 %v341, 64
      %v2116 = vpop.permute.xlu0 %2115
      %2117 = vrot.lane.b32.xlu0 %v342, 64
      %v2118 = vpop.permute.xlu0 %2117
      %2119 = vrot.lane.b32.xlu0 %v344, 64
      %v2120 = vpop.permute.xlu0 %2119
      %2121 = vrot.lane.b32.xlu0 %v345, 64
      %v2122 = vpop.permute.xlu0 %2121
      %2123 = vrot.lane.b32.xlu0 %v347, 64
      %v2124 = vpop.permute.xlu0 %2123
      %2125 = vrot.lane.b32.xlu0 %v348, 64
      %v2126 = vpop.permute.xlu0 %2125
      %2127 = vrot.lane.b32.xlu0 %v350, 64
      %v2128 = vpop.permute.xlu0 %2127
      %2129 = vrot.lane.b32.xlu0 %v351, 64
      %v2130 = vpop.permute.xlu0 %2129
      %2131 = vrot.lane.b32.xlu0 %v353, 64
      %v2132 = vpop.permute.xlu0 %2131
      %2133 = vrot.lane.b32.xlu0 %v354, 64
      %v2134 = vpop.permute.xlu0 %2133
      %2135 = vrot.lane.b32.xlu0 %v356, 64
      %v2136 = vpop.permute.xlu0 %2135
      %2137 = vrot.lane.b32.xlu0 %v357, 64
      %v2138 = vpop.permute.xlu0 %2137
      %2139 = vrot.lane.b32.xlu0 %v359, 64
      %v2140 = vpop.permute.xlu0 %2139
      %2141 = vrot.lane.b32.xlu0 %v360, 64
      %v2142 = vpop.permute.xlu0 %2141
      %2143 = vrot.lane.b32.xlu0 %v362, 64
      %v2144 = vpop.permute.xlu0 %2143
      %2145 = vrot.lane.b32.xlu0 %v363, 64
      %v2146 = vpop.permute.xlu0 %2145
      %2147 = vrot.lane.b32.xlu0 %v365, 64
      %v2148 = vpop.permute.xlu0 %2147
      %2149 = vrot.lane.b32.xlu0 %v366, 64
      %v2150 = vpop.permute.xlu0 %2149
      %2151 = vrot.lane.b32.xlu0 %v368, 64
      %v2152 = vpop.permute.xlu0 %2151
      %2153 = vrot.lane.b32.xlu0 %v369, 64
      %v2154 = vpop.permute.xlu0 %2153
      %2155 = vrot.lane.b32.xlu0 %v371, 64
      %v2156 = vpop.permute.xlu0 %2155
      %2157 = vrot.lane.b32.xlu0 %v372, 64
      %v2158 = vpop.permute.xlu0 %2157
      %2159 = vrot.lane.b32.xlu0 %v374, 64
      %v2160 = vpop.permute.xlu0 %2159
      %2161 = vrot.lane.b32.xlu0 %v375, 64
      %v2162 = vpop.permute.xlu0 %2161
      %2163 = vrot.lane.b32.xlu0 %v383, 64
      %v2164 = vpop.permute.xlu0 %2163
      %2165 = vrot.lane.b32.xlu0 %v384, 64
      %v2166 = vpop.permute.xlu0 %2165
      %2167 = vrot.lane.b32.xlu0 %v386, 64
      %v2168 = vpop.permute.xlu0 %2167
      %2169 = vrot.lane.b32.xlu0 %v387, 64
      %v2170 = vpop.permute.xlu0 %2169
      %2171 = vrot.lane.b32.xlu0 %v389, 64
      %v2172 = vpop.permute.xlu0 %2171
      %2173 = vrot.lane.b32.xlu0 %v390, 64
      %v2174 = vpop.permute.xlu0 %2173
      %2175 = vrot.lane.b32.xlu0 %v392, 64
      %v2176 = vpop.permute.xlu0 %2175
      %2177 = vrot.lane.b32.xlu0 %v393, 64
      %v2178 = vpop.permute.xlu0 %2177
      %2179 = vrot.lane.b32.xlu0 %v395, 64
      %v2180 = vpop.permute.xlu0 %2179
      %2181 = vrot.lane.b32.xlu0 %v396, 64
      %v2182 = vpop.permute.xlu0 %2181
      %2183 = vrot.lane.b32.xlu0 %v398, 64
      %v2184 = vpop.permute.xlu0 %2183
      %2185 = vrot.lane.b32.xlu0 %v399, 64
      %v2186 = vpop.permute.xlu0 %2185
      %2187 = vrot.lane.b32.xlu0 %v401, 64
      %v2188 = vpop.permute.xlu0 %2187
      %2189 = vrot.lane.b32.xlu0 %v402, 64
      %v2190 = vpop.permute.xlu0 %2189
      %2191 = vrot.lane.b32.xlu0 %v404, 64
      %v2192 = vpop.permute.xlu0 %2191
      %2193 = vrot.lane.b32.xlu0 %v405, 64
      %v2194 = vpop.permute.xlu0 %2193
      %2195 = vrot.lane.b32.xlu0 %v407, 64
      %v2196 = vpop.permute.xlu0 %2195
      %2197 = vrot.lane.b32.xlu0 %v408, 64
      %v2198 = vpop.permute.xlu0 %2197
      %2199 = vrot.lane.b32.xlu0 %v410, 64
      %v2200 = vpop.permute.xlu0 %2199
      %2201 = vrot.lane.b32.xlu0 %v411, 64
      %v2202 = vpop.permute.xlu0 %2201
      %2203 = vrot.lane.b32.xlu0 %v413, 64
      %v2204 = vpop.permute.xlu0 %2203
      %2205 = vrot.lane.b32.xlu0 %v414, 64
      %v2206 = vpop.permute.xlu0 %2205
      %2207 = vrot.lane.b32.xlu0 %v416, 64
      %v2208 = vpop.permute.xlu0 %2207
      %2209 = vrot.lane.b32.xlu0 %v417, 64
      %v2210 = vpop.permute.xlu0 %2209
      %2211 = vrot.lane.b32.xlu0 %v419, 64
      %v2212 = vpop.permute.xlu0 %2211
      %2213 = vrot.lane.b32.xlu0 %v420, 64
      %v2214 = vpop.permute.xlu0 %2213
      %2215 = vrot.lane.b32.xlu0 %v422, 64
      %v2216 = vpop.permute.xlu0 %2215
      %2217 = vrot.lane.b32.xlu0 %v423, 64
      %v2218 = vpop.permute.xlu0 %2217
      %2219 = vrot.lane.b32.xlu0 %v425, 64
      %v2220 = vpop.permute.xlu0 %2219
      %2221 = vrot.lane.b32.xlu0 %v426, 64
      %v2222 = vpop.permute.xlu0 %2221
      %2223 = vrot.lane.b32.xlu0 %v428, 64
      %v2224 = vpop.permute.xlu0 %2223
      %2225 = vrot.lane.b32.xlu0 %v429, 64
      %v2226 = vpop.permute.xlu0 %2225
      %2291 = vst.msk [vmem:[#allocation4 + $0x8] sm:$0xff] %vm1363, %v2100
      %2292 = vst.msk [vmem:[#allocation4 + $0x20] sm:$0xff] %vm1363, %v2102
      %2293 = vst.msk [vmem:[#allocation4 + $0x38] sm:$0xff] %vm1363, %v2104
      %2294 = vst.msk [vmem:[#allocation4 + $0x50] sm:$0xff] %vm1363, %v2106
      %2295 = vst.msk [vmem:[#allocation4 + $0x68] sm:$0xff] %vm1363, %v2108
      %2296 = vst.msk [vmem:[#allocation4 + $0x80] sm:$0xff] %vm1363, %v2110
      %2297 = vst.msk [vmem:[#allocation4 + $0x98] sm:$0xff] %vm1363, %v2112
      %2298 = vst.msk [vmem:[#allocation4 + $0xb0] sm:$0xff] %vm1363, %v2114
      %2299 = vst.msk [vmem:[#allocation4 + $0xc8] sm:$0xff] %vm1363, %v2116
      %2300 = vst.msk [vmem:[#allocation4 + $0xe0] sm:$0xff] %vm1363, %v2118
      %2301 = vst.msk [vmem:[#allocation4 + $0xf8] sm:$0xff] %vm1363, %v2120
      %2302 = vst.msk [vmem:[#allocation4 + $0x110] sm:$0xff] %vm1363, %v2122
      %2303 = vst.msk [vmem:[#allocation4 + $0x128] sm:$0xff] %vm1363, %v2124
      %2304 = vst.msk [vmem:[#allocation4 + $0x140] sm:$0xff] %vm1363, %v2126
      %2305 = vst.msk [vmem:[#allocation4 + $0x158] sm:$0xff] %vm1363, %v2128
      %2306 = vst.msk [vmem:[#allocation4 + $0x170] sm:$0xff] %vm1363, %v2130
      %2307 = vst.msk [vmem:[#allocation4 + $0x188] sm:$0xff] %vm1363, %v2132
      %2308 = vst.msk [vmem:[#allocation4 + $0x1a0] sm:$0xff] %vm1363, %v2134
      %2309 = vst.msk [vmem:[#allocation4 + $0x1b8] sm:$0xff] %vm1363, %v2136
      %2310 = vst.msk [vmem:[#allocation4 + $0x1d0] sm:$0xff] %vm1363, %v2138
      %2311 = vst.msk [vmem:[#allocation4 + $0x1e8] sm:$0xff] %vm1363, %v2140
      %2312 = vst.msk [vmem:[#allocation4 + $0x200] sm:$0xff] %vm1363, %v2142
      %2313 = vst.msk [vmem:[#allocation4 + $0x218] sm:$0xff] %vm1363, %v2144
      %2314 = vst.msk [vmem:[#allocation4 + $0x230] sm:$0xff] %vm1363, %v2146
      %2315 = vst.msk [vmem:[#allocation4 + $0x248] sm:$0xff] %vm1363, %v2148
      %2316 = vst.msk [vmem:[#allocation4 + $0x260] sm:$0xff] %vm1363, %v2150
      %2317 = vst.msk [vmem:[#allocation4 + $0x278] sm:$0xff] %vm1363, %v2152
      %2318 = vst.msk [vmem:[#allocation4 + $0x290] sm:$0xff] %vm1363, %v2154
      %2319 = vst.msk [vmem:[#allocation4 + $0x2a8] sm:$0xff] %vm1363, %v2156
      %2320 = vst.msk [vmem:[#allocation4 + $0x2c0] sm:$0xff] %vm1363, %v2158
      %2321 = vst.msk [vmem:[#allocation4 + $0x2d8] sm:$0xff] %vm1363, %v2160
      %2322 = vst.msk [vmem:[#allocation4 + $0x2f0] sm:$0xff] %vm1363, %v2162
      %2323 = vst.msk [vmem:[#allocation4 + $0x308] sm:$0xff] %vm1363, %v2164
      %2324 = vst.msk [vmem:[#allocation4 + $0x320] sm:$0xff] %vm1363, %v2166
      %2325 = vst.msk [vmem:[#allocation4 + $0x338] sm:$0xff] %vm1363, %v2168
      %2326 = vst.msk [vmem:[#allocation4 + $0x350] sm:$0xff] %vm1363, %v2170
      %2327 = vst.msk [vmem:[#allocation4 + $0x368] sm:$0xff] %vm1363, %v2172
      %2328 = vst.msk [vmem:[#allocation4 + $0x380] sm:$0xff] %vm1363, %v2174
      %2329 = vst.msk [vmem:[#allocation4 + $0x398] sm:$0xff] %vm1363, %v2176
      %2330 = vst.msk [vmem:[#allocation4 + $0x3b0] sm:$0xff] %vm1363, %v2178
      %2331 = vst.msk [vmem:[#allocation4 + $0x3c8] sm:$0xff] %vm1363, %v2180
      %2332 = vst.msk [vmem:[#allocation4 + $0x3e0] sm:$0xff] %vm1363, %v2182
      %2333 = vst.msk [vmem:[#allocation4 + $0x3f8] sm:$0xff] %vm1363, %v2184
      %2334 = vst.msk [vmem:[#allocation4 + $0x410] sm:$0xff] %vm1363, %v2186
      %2335 = vst.msk [vmem:[#allocation4 + $0x428] sm:$0xff] %vm1363, %v2188
      %2336 = vst.msk [vmem:[#allocation4 + $0x440] sm:$0xff] %vm1363, %v2190
      %2337 = vst.msk [vmem:[#allocation4 + $0x458] sm:$0xff] %vm1363, %v2192
      %2338 = vst.msk [vmem:[#allocation4 + $0x470] sm:$0xff] %vm1363, %v2194
      %2339 = vst.msk [vmem:[#allocation4 + $0x488] sm:$0xff] %vm1363, %v2196
      %2340 = vst.msk [vmem:[#allocation4 + $0x4a0] sm:$0xff] %vm1363, %v2198
      %2341 = vst.msk [vmem:[#allocation4 + $0x4b8] sm:$0xff] %vm1363, %v2200
      %2342 = vst.msk [vmem:[#allocation4 + $0x4d0] sm:$0xff] %vm1363, %v2202
      %2343 = vst.msk [vmem:[#allocation4 + $0x4e8] sm:$0xff] %vm1363, %v2204
      %2344 = vst.msk [vmem:[#allocation4 + $0x500] sm:$0xff] %vm1363, %v2206
      %2345 = vst.msk [vmem:[#allocation4 + $0x518] sm:$0xff] %vm1363, %v2208
      %2346 = vst.msk [vmem:[#allocation4 + $0x530] sm:$0xff] %vm1363, %v2210
      %2347 = vst.msk [vmem:[#allocation4 + $0x548] sm:$0xff] %vm1363, %v2212
      %2348 = vst.msk [vmem:[#allocation4 + $0x560] sm:$0xff] %vm1363, %v2214
      %2349 = vst.msk [vmem:[#allocation4 + $0x578] sm:$0xff] %vm1363, %v2216
      %2350 = vst.msk [vmem:[#allocation4 + $0x590] sm:$0xff] %vm1363, %v2218
      %2351 = vst.msk [vmem:[#allocation4 + $0x5a8] sm:$0xff] %vm1363, %v2220
      %2352 = vst.msk [vmem:[#allocation4 + $0x5c0] sm:$0xff] %vm1363, %v2222
      %2353 = vst.msk [vmem:[#allocation4 + $0x5d8] sm:$0xff] %vm1363, %v2224
      %2354 = vst.msk [vmem:[#allocation4 + $0x5f0] sm:$0xff] %vm1363, %v2226
      %v2357 = vrot.slane %v374, 1
      %v2358 = vrot.slane %v375, 1
      %v2359 = vsel %vm592, %v2357, %v2358
      %v2360 = vrot.slane %v376, 1
      %v2361 = vsel %vm592, %v2358, %v2360
      %v2362 = vrot.slane %v428, 1
      %v2363 = vrot.slane %v429, 1
      %v2364 = vsel %vm592, %v2362, %v2363
      %v2365 = vrot.slane %v430, 1
      %v2366 = vsel %vm592, %v2363, %v2365
      %2367 = vrot.lane.b32.xlu0 %v605, 96
      %v2368 = vpop.permute.xlu0 %2367
      %2369 = vrot.lane.b32.xlu0 %v607, 96
      %v2370 = vpop.permute.xlu0 %2369
      %2371 = vrot.lane.b32.xlu0 %v610, 96
      %v2372 = vpop.permute.xlu0 %2371
      %2373 = vrot.lane.b32.xlu0 %v612, 96
      %v2374 = vpop.permute.xlu0 %2373
      %2375 = vrot.lane.b32.xlu0 %v615, 96
      %v2376 = vpop.permute.xlu0 %2375
      %2377 = vrot.lane.b32.xlu0 %v617, 96
      %v2378 = vpop.permute.xlu0 %2377
      %2379 = vrot.lane.b32.xlu0 %v620, 96
      %v2380 = vpop.permute.xlu0 %2379
      %2381 = vrot.lane.b32.xlu0 %v622, 96
      %v2382 = vpop.permute.xlu0 %2381
      %2383 = vrot.lane.b32.xlu0 %v625, 96
      %v2384 = vpop.permute.xlu0 %2383
      %2385 = vrot.lane.b32.xlu0 %v627, 96
      %v2386 = vpop.permute.xlu0 %2385
      %2387 = vrot.lane.b32.xlu0 %v630, 96
      %v2388 = vpop.permute.xlu0 %2387
      %2389 = vrot.lane.b32.xlu0 %v632, 96
      %v2390 = vpop.permute.xlu0 %2389
      %2391 = vrot.lane.b32.xlu0 %v635, 96
      %v2392 = vpop.permute.xlu0 %2391
      %2393 = vrot.lane.b32.xlu0 %v637, 96
      %v2394 = vpop.permute.xlu0 %2393
      %2395 = vrot.lane.b32.xlu0 %v640, 96
      %v2396 = vpop.permute.xlu0 %2395
      %2397 = vrot.lane.b32.xlu0 %v642, 96
      %v2398 = vpop.permute.xlu0 %2397
      %2399 = vrot.lane.b32.xlu0 %v645, 96
      %v2400 = vpop.permute.xlu0 %2399
      %2401 = vrot.lane.b32.xlu0 %v647, 96
      %v2402 = vpop.permute.xlu0 %2401
      %2403 = vrot.lane.b32.xlu0 %v650, 96
      %v2404 = vpop.permute.xlu0 %2403
      %2405 = vrot.lane.b32.xlu0 %v652, 96
      %v2406 = vpop.permute.xlu0 %2405
      %2407 = vrot.lane.b32.xlu0 %v655, 96
      %v2408 = vpop.permute.xlu0 %2407
      %2409 = vrot.lane.b32.xlu0 %v657, 96
      %v2410 = vpop.permute.xlu0 %2409
      %2411 = vrot.lane.b32.xlu0 %v660, 96
      %v2412 = vpop.permute.xlu0 %2411
      %2413 = vrot.lane.b32.xlu0 %v662, 96
      %v2414 = vpop.permute.xlu0 %2413
      %2415 = vrot.lane.b32.xlu0 %v665, 96
      %v2416 = vpop.permute.xlu0 %2415
      %2417 = vrot.lane.b32.xlu0 %v667, 96
      %v2418 = vpop.permute.xlu0 %2417
      %2419 = vrot.lane.b32.xlu0 %v670, 96
      %v2420 = vpop.permute.xlu0 %2419
      %2421 = vrot.lane.b32.xlu0 %v672, 96
      %v2422 = vpop.permute.xlu0 %2421
      %2423 = vrot.lane.b32.xlu0 %v1693, 96
      %v2424 = vpop.permute.xlu0 %2423
      %2425 = vrot.lane.b32.xlu0 %v1695, 96
      %v2426 = vpop.permute.xlu0 %2425
      %2427 = vrot.lane.b32.xlu0 %v2359, 96
      %v2428 = vpop.permute.xlu0 %2427
      %2429 = vrot.lane.b32.xlu0 %v2361, 96
      %v2430 = vpop.permute.xlu0 %2429
      %2431 = vrot.lane.b32.xlu0 %v685, 96
      %v2432 = vpop.permute.xlu0 %2431
      %2433 = vrot.lane.b32.xlu0 %v687, 96
      %v2434 = vpop.permute.xlu0 %2433
      %2435 = vrot.lane.b32.xlu0 %v690, 96
      %v2436 = vpop.permute.xlu0 %2435
      %2437 = vrot.lane.b32.xlu0 %v692, 96
      %v2438 = vpop.permute.xlu0 %2437
      %2439 = vrot.lane.b32.xlu0 %v695, 96
      %v2440 = vpop.permute.xlu0 %2439
      %2441 = vrot.lane.b32.xlu0 %v697, 96
      %v2442 = vpop.permute.xlu0 %2441
      %2443 = vrot.lane.b32.xlu0 %v700, 96
      %v2444 = vpop.permute.xlu0 %2443
      %2445 = vrot.lane.b32.xlu0 %v702, 96
      %v2446 = vpop.permute.xlu0 %2445
      %2447 = vrot.lane.b32.xlu0 %v705, 96
      %v2448 = vpop.permute.xlu0 %2447
      %2449 = vrot.lane.b32.xlu0 %v707, 96
      %v2450 = vpop.permute.xlu0 %2449
      %2451 = vrot.lane.b32.xlu0 %v710, 96
      %v2452 = vpop.permute.xlu0 %2451
      %2453 = vrot.lane.b32.xlu0 %v712, 96
      %v2454 = vpop.permute.xlu0 %2453
      %2455 = vrot.lane.b32.xlu0 %v715, 96
      %v2456 = vpop.permute.xlu0 %2455
      %2457 = vrot.lane.b32.xlu0 %v717, 96
      %v2458 = vpop.permute.xlu0 %2457
      %2459 = vrot.lane.b32.xlu0 %v720, 96
      %v2460 = vpop.permute.xlu0 %2459
      %2461 = vrot.lane.b32.xlu0 %v722, 96
      %v2462 = vpop.permute.xlu0 %2461
      %2463 = vrot.lane.b32.xlu0 %v725, 96
      %v2464 = vpop.permute.xlu0 %2463
      %2465 = vrot.lane.b32.xlu0 %v727, 96
      %v2466 = vpop.permute.xlu0 %2465
      %2467 = vrot.lane.b32.xlu0 %v730, 96
      %v2468 = vpop.permute.xlu0 %2467
      %2469 = vrot.lane.b32.xlu0 %v732, 96
      %v2470 = vpop.permute.xlu0 %2469
      %2471 = vrot.lane.b32.xlu0 %v735, 96
      %v2472 = vpop.permute.xlu0 %2471
      %2473 = vrot.lane.b32.xlu0 %v737, 96
      %v2474 = vpop.permute.xlu0 %2473
      %2475 = vrot.lane.b32.xlu0 %v740, 96
      %v2476 = vpop.permute.xlu0 %2475
      %2477 = vrot.lane.b32.xlu0 %v742, 96
      %v2478 = vpop.permute.xlu0 %2477
      %2479 = vrot.lane.b32.xlu0 %v745, 96
      %v2480 = vpop.permute.xlu0 %2479
      %2481 = vrot.lane.b32.xlu0 %v747, 96
      %v2482 = vpop.permute.xlu0 %2481
      %2483 = vrot.lane.b32.xlu0 %v750, 96
      %v2484 = vpop.permute.xlu0 %2483
      %2485 = vrot.lane.b32.xlu0 %v752, 96
      %v2486 = vpop.permute.xlu0 %2485
      %2487 = vrot.lane.b32.xlu0 %v1698, 96
      %v2488 = vpop.permute.xlu0 %2487
      %2489 = vrot.lane.b32.xlu0 %v1700, 96
      %v2490 = vpop.permute.xlu0 %2489
      %2491 = vrot.lane.b32.xlu0 %v2364, 96
      %v2492 = vpop.permute.xlu0 %2491
      %2493 = vrot.lane.b32.xlu0 %v2366, 96
      %v2494 = vpop.permute.xlu0 %2493
      %2559 = vst.msk [vmem:[#allocation4 + $0x8] sm:$0xff] %vm1624, %v2368
      %2560 = vst.msk [vmem:[#allocation4 + $0x20] sm:$0xff] %vm1624, %v2370
      %2561 = vst.msk [vmem:[#allocation4 + $0x38] sm:$0xff] %vm1624, %v2372
      %2562 = vst.msk [vmem:[#allocation4 + $0x50] sm:$0xff] %vm1624, %v2374
      %2563 = vst.msk [vmem:[#allocation4 + $0x68] sm:$0xff] %vm1624, %v2376
      %2564 = vst.msk [vmem:[#allocation4 + $0x80] sm:$0xff] %vm1624, %v2378
      %2565 = vst.msk [vmem:[#allocation4 + $0x98] sm:$0xff] %vm1624, %v2380
      %2566 = vst.msk [vmem:[#allocation4 + $0xb0] sm:$0xff] %vm1624, %v2382
      %2567 = vst.msk [vmem:[#allocation4 + $0xc8] sm:$0xff] %vm1624, %v2384
      %2568 = vst.msk [vmem:[#allocation4 + $0xe0] sm:$0xff] %vm1624, %v2386
      %2569 = vst.msk [vmem:[#allocation4 + $0xf8] sm:$0xff] %vm1624, %v2388
      %2570 = vst.msk [vmem:[#allocation4 + $0x110] sm:$0xff] %vm1624, %v2390
      %2571 = vst.msk [vmem:[#allocation4 + $0x128] sm:$0xff] %vm1624, %v2392
      %2572 = vst.msk [vmem:[#allocation4 + $0x140] sm:$0xff] %vm1624, %v2394
      %2573 = vst.msk [vmem:[#allocation4 + $0x158] sm:$0xff] %vm1624, %v2396
      %2574 = vst.msk [vmem:[#allocation4 + $0x170] sm:$0xff] %vm1624, %v2398
      %2575 = vst.msk [vmem:[#allocation4 + $0x188] sm:$0xff] %vm1624, %v2400
      %2576 = vst.msk [vmem:[#allocation4 + $0x1a0] sm:$0xff] %vm1624, %v2402
      %2577 = vst.msk [vmem:[#allocation4 + $0x1b8] sm:$0xff] %vm1624, %v2404
      %2578 = vst.msk [vmem:[#allocation4 + $0x1d0] sm:$0xff] %vm1624, %v2406
      %2579 = vst.msk [vmem:[#allocation4 + $0x1e8] sm:$0xff] %vm1624, %v2408
      %2580 = vst.msk [vmem:[#allocation4 + $0x200] sm:$0xff] %vm1624, %v2410
      %2581 = vst.msk [vmem:[#allocation4 + $0x218] sm:$0xff] %vm1624, %v2412
      %2582 = vst.msk [vmem:[#allocation4 + $0x230] sm:$0xff] %vm1624, %v2414
      %2583 = vst.msk [vmem:[#allocation4 + $0x248] sm:$0xff] %vm1624, %v2416
      %2584 = vst.msk [vmem:[#allocation4 + $0x260] sm:$0xff] %vm1624, %v2418
      %2585 = vst.msk [vmem:[#allocation4 + $0x278] sm:$0xff] %vm1624, %v2420
      %2586 = vst.msk [vmem:[#allocation4 + $0x290] sm:$0xff] %vm1624, %v2422
      %2587 = vst.msk [vmem:[#allocation4 + $0x2a8] sm:$0xff] %vm1624, %v2424
      %2588 = vst.msk [vmem:[#allocation4 + $0x2c0] sm:$0xff] %vm1624, %v2426
      %2589 = vst.msk [vmem:[#allocation4 + $0x2d8] sm:$0xff] %vm1624, %v2428
      %2590 = vst.msk [vmem:[#allocation4 + $0x2f0] sm:$0xff] %vm1624, %v2430
      %2591 = vst.msk [vmem:[#allocation4 + $0x308] sm:$0xff] %vm1624, %v2432
      %2592 = vst.msk [vmem:[#allocation4 + $0x320] sm:$0xff] %vm1624, %v2434
      %2593 = vst.msk [vmem:[#allocation4 + $0x338] sm:$0xff] %vm1624, %v2436
      %2594 = vst.msk [vmem:[#allocation4 + $0x350] sm:$0xff] %vm1624, %v2438
      %2595 = vst.msk [vmem:[#allocation4 + $0x368] sm:$0xff] %vm1624, %v2440
      %2596 = vst.msk [vmem:[#allocation4 + $0x380] sm:$0xff] %vm1624, %v2442
      %2597 = vst.msk [vmem:[#allocation4 + $0x398] sm:$0xff] %vm1624, %v2444
      %2598 = vst.msk [vmem:[#allocation4 + $0x3b0] sm:$0xff] %vm1624, %v2446
      %2599 = vst.msk [vmem:[#allocation4 + $0x3c8] sm:$0xff] %vm1624, %v2448
      %2600 = vst.msk [vmem:[#allocation4 + $0x3e0] sm:$0xff] %vm1624, %v2450
      %2601 = vst.msk [vmem:[#allocation4 + $0x3f8] sm:$0xff] %vm1624, %v2452
      %2602 = vst.msk [vmem:[#allocation4 + $0x410] sm:$0xff] %vm1624, %v2454
      %2603 = vst.msk [vmem:[#allocation4 + $0x428] sm:$0xff] %vm1624, %v2456
      %2604 = vst.msk [vmem:[#allocation4 + $0x440] sm:$0xff] %vm1624, %v2458
      %2605 = vst.msk [vmem:[#allocation4 + $0x458] sm:$0xff] %vm1624, %v2460
      %2606 = vst.msk [vmem:[#allocation4 + $0x470] sm:$0xff] %vm1624, %v2462
      %2607 = vst.msk [vmem:[#allocation4 + $0x488] sm:$0xff] %vm1624, %v2464
      %2608 = vst.msk [vmem:[#allocation4 + $0x4a0] sm:$0xff] %vm1624, %v2466
      %2609 = vst.msk [vmem:[#allocation4 + $0x4b8] sm:$0xff] %vm1624, %v2468
      %2610 = vst.msk [vmem:[#allocation4 + $0x4d0] sm:$0xff] %vm1624, %v2470
      %2611 = vst.msk [vmem:[#allocation4 + $0x4e8] sm:$0xff] %vm1624, %v2472
      %2612 = vst.msk [vmem:[#allocation4 + $0x500] sm:$0xff] %vm1624, %v2474
      %2613 = vst.msk [vmem:[#allocation4 + $0x518] sm:$0xff] %vm1624, %v2476
      %2614 = vst.msk [vmem:[#allocation4 + $0x530] sm:$0xff] %vm1624, %v2478
      %2615 = vst.msk [vmem:[#allocation4 + $0x548] sm:$0xff] %vm1624, %v2480
      %2616 = vst.msk [vmem:[#allocation4 + $0x560] sm:$0xff] %vm1624, %v2482
      %2617 = vst.msk [vmem:[#allocation4 + $0x578] sm:$0xff] %vm1624, %v2484
      %2618 = vst.msk [vmem:[#allocation4 + $0x590] sm:$0xff] %vm1624, %v2486
      %2619 = vst.msk [vmem:[#allocation4 + $0x5a8] sm:$0xff] %vm1624, %v2488
      %2620 = vst.msk [vmem:[#allocation4 + $0x5c0] sm:$0xff] %vm1624, %v2490
      %2621 = vst.msk [vmem:[#allocation4 + $0x5d8] sm:$0xff] %vm1624, %v2492
      %2622 = vst.msk [vmem:[#allocation4 + $0x5f0] sm:$0xff] %vm1624, %v2494
      %v2623 = vrot.slane %v374, 2
      %v2624 = vrot.slane %v375, 2
      %v2625 = vsel %vm1010, %v2623, %v2624
      %v2626 = vrot.slane %v376, 2
      %v2627 = vsel %vm1010, %v2624, %v2626
      %v2628 = vrot.slane %v428, 2
      %v2629 = vrot.slane %v429, 2
      %v2630 = vsel %vm1010, %v2628, %v2629
      %v2631 = vrot.slane %v430, 2
      %v2632 = vsel %vm1010, %v2629, %v2631
      %2697 = vst.msk [vmem:[#allocation4 + $0x10] sm:$0xff] %vm431, %v1023
      %2698 = vst.msk [vmem:[#allocation4 + $0x28] sm:$0xff] %vm431, %v1025
      %2699 = vst.msk [vmem:[#allocation4 + $0x40] sm:$0xff] %vm431, %v1028
      %2700 = vst.msk [vmem:[#allocation4 + $0x58] sm:$0xff] %vm431, %v1030
      %2701 = vst.msk [vmem:[#allocation4 + $0x70] sm:$0xff] %vm431, %v1033
      %2702 = vst.msk [vmem:[#allocation4 + $0x88] sm:$0xff] %vm431, %v1035
      %2703 = vst.msk [vmem:[#allocation4 + $0xa0] sm:$0xff] %vm431, %v1038
      %2704 = vst.msk [vmem:[#allocation4 + $0xb8] sm:$0xff] %vm431, %v1040
      %2705 = vst.msk [vmem:[#allocation4 + $0xd0] sm:$0xff] %vm431, %v1043
      %2706 = vst.msk [vmem:[#allocation4 + $0xe8] sm:$0xff] %vm431, %v1045
      %2707 = vst.msk [vmem:[#allocation4 + $0x100] sm:$0xff] %vm431, %v1048
      %2708 = vst.msk [vmem:[#allocation4 + $0x118] sm:$0xff] %vm431, %v1050
      %2709 = vst.msk [vmem:[#allocation4 + $0x130] sm:$0xff] %vm431, %v1053
      %2710 = vst.msk [vmem:[#allocation4 + $0x148] sm:$0xff] %vm431, %v1055
      %2711 = vst.msk [vmem:[#allocation4 + $0x160] sm:$0xff] %vm431, %v1058
      %2712 = vst.msk [vmem:[#allocation4 + $0x178] sm:$0xff] %vm431, %v1060
      %2713 = vst.msk [vmem:[#allocation4 + $0x190] sm:$0xff] %vm431, %v1063
      %2714 = vst.msk [vmem:[#allocation4 + $0x1a8] sm:$0xff] %vm431, %v1065
      %2715 = vst.msk [vmem:[#allocation4 + $0x1c0] sm:$0xff] %vm431, %v1068
      %2716 = vst.msk [vmem:[#allocation4 + $0x1d8] sm:$0xff] %vm431, %v1070
      %2717 = vst.msk [vmem:[#allocation4 + $0x1f0] sm:$0xff] %vm431, %v1073
      %2718 = vst.msk [vmem:[#allocation4 + $0x208] sm:$0xff] %vm431, %v1075
      %2719 = vst.msk [vmem:[#allocation4 + $0x220] sm:$0xff] %vm431, %v1078
      %2720 = vst.msk [vmem:[#allocation4 + $0x238] sm:$0xff] %vm431, %v1080
      %2721 = vst.msk [vmem:[#allocation4 + $0x250] sm:$0xff] %vm431, %v1083
      %2722 = vst.msk [vmem:[#allocation4 + $0x268] sm:$0xff] %vm431, %v1085
      %2723 = vst.msk [vmem:[#allocation4 + $0x280] sm:$0xff] %vm431, %v1088
      %2724 = vst.msk [vmem:[#allocation4 + $0x298] sm:$0xff] %vm431, %v1090
      %2725 = vst.msk [vmem:[#allocation4 + $0x2b0] sm:$0xff] %vm431, %v1831
      %2726 = vst.msk [vmem:[#allocation4 + $0x2c8] sm:$0xff] %vm431, %v1833
      %2727 = vst.msk [vmem:[#allocation4 + $0x2e0] sm:$0xff] %vm431, %v2625
      %2728 = vst.msk [vmem:[#allocation4 + $0x2f8] sm:$0xff] %vm431, %v2627
      %2729 = vst.msk [vmem:[#allocation4 + $0x310] sm:$0xff] %vm431, %v1103
      %2730 = vst.msk [vmem:[#allocation4 + $0x328] sm:$0xff] %vm431, %v1105
      %2731 = vst.msk [vmem:[#allocation4 + $0x340] sm:$0xff] %vm431, %v1108
      %2732 = vst.msk [vmem:[#allocation4 + $0x358] sm:$0xff] %vm431, %v1110
      %2733 = vst.msk [vmem:[#allocation4 + $0x370] sm:$0xff] %vm431, %v1113
      %2734 = vst.msk [vmem:[#allocation4 + $0x388] sm:$0xff] %vm431, %v1115
      %2735 = vst.msk [vmem:[#allocation4 + $0x3a0] sm:$0xff] %vm431, %v1118
      %2736 = vst.msk [vmem:[#allocation4 + $0x3b8] sm:$0xff] %vm431, %v1120
      %2737 = vst.msk [vmem:[#allocation4 + $0x3d0] sm:$0xff] %vm431, %v1123
      %2738 = vst.msk [vmem:[#allocation4 + $0x3e8] sm:$0xff] %vm431, %v1125
      %2739 = vst.msk [vmem:[#allocation4 + $0x400] sm:$0xff] %vm431, %v1128
      %2740 = vst.msk [vmem:[#allocation4 + $0x418] sm:$0xff] %vm431, %v1130
      %2741 = vst.msk [vmem:[#allocation4 + $0x430] sm:$0xff] %vm431, %v1133
      %2742 = vst.msk [vmem:[#allocation4 + $0x448] sm:$0xff] %vm431, %v1135
      %2743 = vst.msk [vmem:[#allocation4 + $0x460] sm:$0xff] %vm431, %v1138
      %2744 = vst.msk [vmem:[#allocation4 + $0x478] sm:$0xff] %vm431, %v1140
      %2745 = vst.msk [vmem:[#allocation4 + $0x490] sm:$0xff] %vm431, %v1143
      %2746 = vst.msk [vmem:[#allocation4 + $0x4a8] sm:$0xff] %vm431, %v1145
      %2747 = vst.msk [vmem:[#allocation4 + $0x4c0] sm:$0xff] %vm431, %v1148
      %2748 = vst.msk [vmem:[#allocation4 + $0x4d8] sm:$0xff] %vm431, %v1150
      %2749 = vst.msk [vmem:[#allocation4 + $0x4f0] sm:$0xff] %vm431, %v1153
      %2750 = vst.msk [vmem:[#allocation4 + $0x508] sm:$0xff] %vm431, %v1155
      %2751 = vst.msk [vmem:[#allocation4 + $0x520] sm:$0xff] %vm431, %v1158
      %2752 = vst.msk [vmem:[#allocation4 + $0x538] sm:$0xff] %vm431, %v1160
      %2753 = vst.msk [vmem:[#allocation4 + $0x550] sm:$0xff] %vm431, %v1163
      %2754 = vst.msk [vmem:[#allocation4 + $0x568] sm:$0xff] %vm431, %v1165
      %2755 = vst.msk [vmem:[#allocation4 + $0x580] sm:$0xff] %vm431, %v1168
      %2756 = vst.msk [vmem:[#allocation4 + $0x598] sm:$0xff] %vm431, %v1170
      %2757 = vst.msk [vmem:[#allocation4 + $0x5b0] sm:$0xff] %vm431, %v1836
      %2758 = vst.msk [vmem:[#allocation4 + $0x5c8] sm:$0xff] %vm431, %v1838
      %2759 = vst.msk [vmem:[#allocation4 + $0x5e0] sm:$0xff] %vm431, %v2630
      %2760 = vst.msk [vmem:[#allocation4 + $0x5f8] sm:$0xff] %vm431, %v2632
      %v2761 = vld [vmem:[%s138] sm:$0xff]
      %v2762 = vld [vmem:[%s138 + $0x8] sm:$0xff]
      %v2763 = vld [vmem:[%s138 + $0x10] sm:$0xff]
      %v2764 = vld [vmem:[%s138 + $0x18] sm:$0xff]
      %v2765 = vld [vmem:[%s138 + $0x20] sm:$0xff]
      %v2766 = vld [vmem:[%s138 + $0x28] sm:$0xff]
      %v2767 = vld [vmem:[%s138 + $0x30] sm:$0xff]
      %v2768 = vld [vmem:[%s138 + $0x38] sm:$0xff]
      %v2769 = vld [vmem:[%s138 + $0x40] sm:$0xff]
      %v2770 = vld [vmem:[%s138 + $0x48] sm:$0xff]
      %v2771 = vld [vmem:[%s138 + $0x50] sm:$0xff]
      %v2772 = vld [vmem:[%s138 + $0x58] sm:$0xff]
      %v2773 = vld [vmem:[%s138 + $0x60] sm:$0xff]
      %v2774 = vld [vmem:[%s138 + $0x68] sm:$0xff]
      %v2775 = vld [vmem:[%s138 + $0x70] sm:$0xff]
      %v2776 = vld [vmem:[%s138 + $0x78] sm:$0xff]
      %v2777 = vld [vmem:[%s138 + $0x80] sm:$0xff]
      %v2778 = vld [vmem:[%s138 + $0x88] sm:$0xff]
      %v2779 = vld [vmem:[%s138 + $0x90] sm:$0xff]
      %v2780 = vld [vmem:[%s138 + $0x98] sm:$0xff]
      %v2781 = vld [vmem:[%s138 + $0xa0] sm:$0xff]
      %v2782 = vld [vmem:[%s138 + $0xa8] sm:$0xff]
      %v2783 = vld [vmem:[%s138 + $0xb0] sm:$0xff]
      %v2784 = vld [vmem:[%s138 + $0xb8] sm:$0xff]
      %v2785 = vld [vmem:[%s138 + $0xc0] sm:$0xff]
      %v2786 = vld [vmem:[%s138 + $0xc8] sm:$0xff]
      %v2787 = vld [vmem:[%s138 + $0xd0] sm:$0xff]
      %v2788 = vld [vmem:[%s138 + $0xd8] sm:$0xff]
      %v2789 = vld [vmem:[%s138 + $0xe0] sm:$0xff]
      %v2790 = vld [vmem:[%s138 + $0xe8] sm:$0xff]
      %v2791 = vld [vmem:[%s138 + $0xf0] sm:$0xff]
      %v2792 = vld [vmem:[%s138 + $0xf8] sm:$0xff]
      %v2793 = vld [vmem:[%s138 + $0x100] sm:$0xff]
      %v2794 = vld [vmem:[%s138 + $0x108] sm:$0xff]
      %v2795 = vld [vmem:[%s138 + $0x110] sm:$0xff]
      %v2796 = vld [vmem:[%s138 + $0x118] sm:$0xff]
      %v2797 = vld [vmem:[%s138 + $0x120] sm:$0xff]
      %v2798 = vld [vmem:[%s138 + $0x128] sm:$0xff]
      %v2799 = vld [vmem:[%s138 + $0x130] sm:$0xff]
      %v2800 = vld [vmem:[%s138 + $0x138] sm:$0xff]
      %v2801 = vld [vmem:[%s138 + $0x140] sm:$0xff]
      %v2802 = vld [vmem:[%s138 + $0x148] sm:$0xff]
      %v2803 = vld [vmem:[%s138 + $0x150] sm:$0xff]
      %v2804 = vld [vmem:[%s138 + $0x158] sm:$0xff]
      %v2805 = vld [vmem:[%s138 + $0x160] sm:$0xff]
      %v2806 = vld [vmem:[%s138 + $0x168] sm:$0xff]
      %v2807 = vld [vmem:[%s138 + $0x170] sm:$0xff]
      %v2808 = vld [vmem:[%s138 + $0x178] sm:$0xff]
      %v2809 = vld [vmem:[%s138 + $0x180] sm:$0xff]
      %v2810 = vld [vmem:[%s138 + $0x188] sm:$0xff]
      %v2811 = vld [vmem:[%s138 + $0x190] sm:$0xff]
      %v2812 = vld [vmem:[%s138 + $0x198] sm:$0xff]
      %v2813 = vld [vmem:[%s138 + $0x1a0] sm:$0xff]
      %v2814 = vld [vmem:[%s138 + $0x1a8] sm:$0xff]
      %v2815 = vld [vmem:[%s138 + $0x1b0] sm:$0xff]
      %v2816 = vld [vmem:[%s138 + $0x1b8] sm:$0xff]
      %v2817 = vld [vmem:[%s138 + $0x1c0] sm:$0xff]
      %v2818 = vld [vmem:[%s138 + $0x1c8] sm:$0xff]
      %v2819 = vld [vmem:[%s138 + $0x1d0] sm:$0xff]
      %v2820 = vld [vmem:[%s138 + $0x1d8] sm:$0xff]
      %v2821 = vld [vmem:[%s138 + $0x1e0] sm:$0xff]
      %v2822 = vld [vmem:[%s138 + $0x1e8] sm:$0xff]
      %v2823 = vld [vmem:[%s138 + $0x1f0] sm:$0xff]
      %v2824 = vld [vmem:[%s138 + $0x1f8] sm:$0xff]
      %v2825 = vld [vmem:[#allocation4] sm:$0xff]
      %v2826 = vld [vmem:[#allocation4 + $0x8] sm:$0xff]
      %v2827 = vld [vmem:[#allocation4 + $0x10] sm:$0xff]
      %v2828 = vld [vmem:[#allocation4 + $0x18] sm:$0xff]
      %v2829 = vld [vmem:[#allocation4 + $0x20] sm:$0xff]
      %v2830 = vld [vmem:[#allocation4 + $0x28] sm:$0xff]
      %v2831 = vld [vmem:[#allocation4 + $0x30] sm:$0xff]
      %v2832 = vld [vmem:[#allocation4 + $0x38] sm:$0xff]
      %v2833 = vld [vmem:[#allocation4 + $0x40] sm:$0xff]
      %v2834 = vld [vmem:[#allocation4 + $0x48] sm:$0xff]
      %v2835 = vld [vmem:[#allocation4 + $0x50] sm:$0xff]
      %v2836 = vld [vmem:[#allocation4 + $0x58] sm:$0xff]
      %v2837 = vld [vmem:[#allocation4 + $0x60] sm:$0xff]
      %v2838 = vld [vmem:[#allocation4 + $0x68] sm:$0xff]
      %v2839 = vld [vmem:[#allocation4 + $0x70] sm:$0xff]
      %v2840 = vld [vmem:[#allocation4 + $0x78] sm:$0xff]
      %v2841 = vld [vmem:[#allocation4 + $0x80] sm:$0xff]
      %v2842 = vld [vmem:[#allocation4 + $0x88] sm:$0xff]
      %v2843 = vld [vmem:[#allocation4 + $0x90] sm:$0xff]
      %v2844 = vld [vmem:[#allocation4 + $0x98] sm:$0xff]
      %v2845 = vld [vmem:[#allocation4 + $0xa0] sm:$0xff]
      %v2846 = vld [vmem:[#allocation4 + $0xa8] sm:$0xff]
      %v2847 = vld [vmem:[#allocation4 + $0xb0] sm:$0xff]
      %v2848 = vld [vmem:[#allocation4 + $0xb8] sm:$0xff]
      %v2849 = vld [vmem:[#allocation4 + $0xc0] sm:$0xff]
      %v2850 = vld [vmem:[#allocation4 + $0xc8] sm:$0xff]
      %v2851 = vld [vmem:[#allocation4 + $0xd0] sm:$0xff]
      %v2852 = vld [vmem:[#allocation4 + $0xd8] sm:$0xff]
      %v2853 = vld [vmem:[#allocation4 + $0xe0] sm:$0xff]
      %v2854 = vld [vmem:[#allocation4 + $0xe8] sm:$0xff]
      %v2855 = vld [vmem:[#allocation4 + $0xf0] sm:$0xff]
      %v2856 = vld [vmem:[#allocation4 + $0xf8] sm:$0xff]
      %v2857 = vld [vmem:[#allocation4 + $0x100] sm:$0xff]
      %v2858 = vld [vmem:[#allocation4 + $0x108] sm:$0xff]
      %v2859 = vld [vmem:[#allocation4 + $0x110] sm:$0xff]
      %v2860 = vld [vmem:[#allocation4 + $0x118] sm:$0xff]
      %v2861 = vld [vmem:[#allocation4 + $0x120] sm:$0xff]
      %v2862 = vld [vmem:[#allocation4 + $0x128] sm:$0xff]
      %v2863 = vld [vmem:[#allocation4 + $0x130] sm:$0xff]
      %v2864 = vld [vmem:[#allocation4 + $0x138] sm:$0xff]
      %v2865 = vld [vmem:[#allocation4 + $0x140] sm:$0xff]
      %v2866 = vld [vmem:[#allocation4 + $0x148] sm:$0xff]
      %v2867 = vld [vmem:[#allocation4 + $0x150] sm:$0xff]
      %v2868 = vld [vmem:[#allocation4 + $0x158] sm:$0xff]
      %v2869 = vld [vmem:[#allocation4 + $0x160] sm:$0xff]
      %v2870 = vld [vmem:[#allocation4 + $0x168] sm:$0xff]
      %v2871 = vld [vmem:[#allocation4 + $0x170] sm:$0xff]
      %v2872 = vld [vmem:[#allocation4 + $0x178] sm:$0xff]
      %v2873 = vld [vmem:[#allocation4 + $0x180] sm:$0xff]
      %v2874 = vld [vmem:[#allocation4 + $0x188] sm:$0xff]
      %v2875 = vld [vmem:[#allocation4 + $0x190] sm:$0xff]
      %v2876 = vld [vmem:[#allocation4 + $0x198] sm:$0xff]
      %v2877 = vld [vmem:[#allocation4 + $0x1a0] sm:$0xff]
      %v2878 = vld [vmem:[#allocation4 + $0x1a8] sm:$0xff]
      %v2879 = vld [vmem:[#allocation4 + $0x1b0] sm:$0xff]
      %v2880 = vld [vmem:[#allocation4 + $0x1b8] sm:$0xff]
      %v2881 = vld [vmem:[#allocation4 + $0x1c0] sm:$0xff]
      %v2882 = vld [vmem:[#allocation4 + $0x1c8] sm:$0xff]
      %v2883 = vld [vmem:[#allocation4 + $0x1d0] sm:$0xff]
      %v2884 = vld [vmem:[#allocation4 + $0x1d8] sm:$0xff]
      %v2885 = vld [vmem:[#allocation4 + $0x1e0] sm:$0xff]
      %v2886 = vld [vmem:[#allocation4 + $0x1e8] sm:$0xff]
      %v2887 = vld [vmem:[#allocation4 + $0x1f0] sm:$0xff]
      %v2888 = vld [vmem:[#allocation4 + $0x1f8] sm:$0xff]
      %v2889 = vld [vmem:[#allocation4 + $0x200] sm:$0xff]
      %v2890 = vld [vmem:[#allocation4 + $0x208] sm:$0xff]
      %v2891 = vld [vmem:[#allocation4 + $0x210] sm:$0xff]
      %v2892 = vld [vmem:[#allocation4 + $0x218] sm:$0xff]
      %v2893 = vld [vmem:[#allocation4 + $0x220] sm:$0xff]
      %v2894 = vld [vmem:[#allocation4 + $0x228] sm:$0xff]
      %v2895 = vld [vmem:[#allocation4 + $0x230] sm:$0xff]
      %v2896 = vld [vmem:[#allocation4 + $0x238] sm:$0xff]
      %v2897 = vld [vmem:[#allocation4 + $0x240] sm:$0xff]
      %v2898 = vld [vmem:[#allocation4 + $0x248] sm:$0xff]
      %v2899 = vld [vmem:[#allocation4 + $0x250] sm:$0xff]
      %v2900 = vld [vmem:[#allocation4 + $0x258] sm:$0xff]
      %v2901 = vld [vmem:[#allocation4 + $0x260] sm:$0xff]
      %v2902 = vld [vmem:[#allocation4 + $0x268] sm:$0xff]
      %v2903 = vld [vmem:[#allocation4 + $0x270] sm:$0xff]
      %v2904 = vld [vmem:[#allocation4 + $0x278] sm:$0xff]
      %v2905 = vld [vmem:[#allocation4 + $0x280] sm:$0xff]
      %v2906 = vld [vmem:[#allocation4 + $0x288] sm:$0xff]
      %v2907 = vld [vmem:[#allocation4 + $0x290] sm:$0xff]
      %v2908 = vld [vmem:[#allocation4 + $0x298] sm:$0xff]
      %v2909 = vld [vmem:[#allocation4 + $0x2a0] sm:$0xff]
      %v2910 = vld [vmem:[#allocation4 + $0x2a8] sm:$0xff]
      %v2911 = vld [vmem:[#allocation4 + $0x2b0] sm:$0xff]
      %v2912 = vld [vmem:[#allocation4 + $0x2b8] sm:$0xff]
      %v2913 = vld [vmem:[#allocation4 + $0x2c0] sm:$0xff]
      %v2914 = vld [vmem:[#allocation4 + $0x2c8] sm:$0xff]
      %v2915 = vld [vmem:[#allocation4 + $0x2d0] sm:$0xff]
      %v2916 = vld [vmem:[#allocation4 + $0x2d8] sm:$0xff]
      %v2917 = vld [vmem:[#allocation4 + $0x2e0] sm:$0xff]
      %v2918 = vld [vmem:[#allocation4 + $0x2e8] sm:$0xff]
      %v2919 = vld [vmem:[#allocation4 + $0x2f0] sm:$0xff]
      %v2920 = vld [vmem:[#allocation4 + $0x2f8] sm:$0xff]
      %v2921 = vld [vmem:[#allocation4 + $0x300] sm:$0xff]
      %v2922 = vld [vmem:[#allocation4 + $0x308] sm:$0xff]
      %v2923 = vld [vmem:[#allocation4 + $0x310] sm:$0xff]
      %v2924 = vld [vmem:[#allocation4 + $0x318] sm:$0xff]
      %v2925 = vld [vmem:[#allocation4 + $0x320] sm:$0xff]
      %v2926 = vld [vmem:[#allocation4 + $0x328] sm:$0xff]
      %v2927 = vld [vmem:[#allocation4 + $0x330] sm:$0xff]
      %v2928 = vld [vmem:[#allocation4 + $0x338] sm:$0xff]
      %v2929 = vld [vmem:[#allocation4 + $0x340] sm:$0xff]
      %v2930 = vld [vmem:[#allocation4 + $0x348] sm:$0xff]
      %v2931 = vld [vmem:[#allocation4 + $0x350] sm:$0xff]
      %v2932 = vld [vmem:[#allocation4 + $0x358] sm:$0xff]
      %v2933 = vld [vmem:[#allocation4 + $0x360] sm:$0xff]
      %v2934 = vld [vmem:[#allocation4 + $0x368] sm:$0xff]
      %v2935 = vld [vmem:[#allocation4 + $0x370] sm:$0xff]
      %v2936 = vld [vmem:[#allocation4 + $0x378] sm:$0xff]
      %v2937 = vld [vmem:[#allocation4 + $0x380] sm:$0xff]
      %v2938 = vld [vmem:[#allocation4 + $0x388] sm:$0xff]
      %v2939 = vld [vmem:[#allocation4 + $0x390] sm:$0xff]
      %v2940 = vld [vmem:[#allocation4 + $0x398] sm:$0xff]
      %v2941 = vld [vmem:[#allocation4 + $0x3a0] sm:$0xff]
      %v2942 = vld [vmem:[#allocation4 + $0x3a8] sm:$0xff]
      %v2943 = vld [vmem:[#allocation4 + $0x3b0] sm:$0xff]
      %v2944 = vld [vmem:[#allocation4 + $0x3b8] sm:$0xff]
      %v2945 = vld [vmem:[#allocation4 + $0x3c0] sm:$0xff]
      %v2946 = vld [vmem:[#allocation4 + $0x3c8] sm:$0xff]
      %v2947 = vld [vmem:[#allocation4 + $0x3d0] sm:$0xff]
      %v2948 = vld [vmem:[#allocation4 + $0x3d8] sm:$0xff]
      %v2949 = vld [vmem:[#allocation4 + $0x3e0] sm:$0xff]
      %v2950 = vld [vmem:[#allocation4 + $0x3e8] sm:$0xff]
      %v2951 = vld [vmem:[#allocation4 + $0x3f0] sm:$0xff]
      %v2952 = vld [vmem:[#allocation4 + $0x3f8] sm:$0xff]
      %v2953 = vld [vmem:[#allocation4 + $0x400] sm:$0xff]
      %v2954 = vld [vmem:[#allocation4 + $0x408] sm:$0xff]
      %v2955 = vld [vmem:[#allocation4 + $0x410] sm:$0xff]
      %v2956 = vld [vmem:[#allocation4 + $0x418] sm:$0xff]
      %v2957 = vld [vmem:[#allocation4 + $0x420] sm:$0xff]
      %v2958 = vld [vmem:[#allocation4 + $0x428] sm:$0xff]
      %v2959 = vld [vmem:[#allocation4 + $0x430] sm:$0xff]
      %v2960 = vld [vmem:[#allocation4 + $0x438] sm:$0xff]
      %v2961 = vld [vmem:[#allocation4 + $0x440] sm:$0xff]
      %v2962 = vld [vmem:[#allocation4 + $0x448] sm:$0xff]
      %v2963 = vld [vmem:[#allocation4 + $0x450] sm:$0xff]
      %v2964 = vld [vmem:[#allocation4 + $0x458] sm:$0xff]
      %v2965 = vld [vmem:[#allocation4 + $0x460] sm:$0xff]
      %v2966 = vld [vmem:[#allocation4 + $0x468] sm:$0xff]
      %v2967 = vld [vmem:[#allocation4 + $0x470] sm:$0xff]
      %v2968 = vld [vmem:[#allocation4 + $0x478] sm:$0xff]
      %v2969 = vld [vmem:[#allocation4 + $0x480] sm:$0xff]
      %v2970 = vld [vmem:[#allocation4 + $0x488] sm:$0xff]
      %v2971 = vld [vmem:[#allocation4 + $0x490] sm:$0xff]
      %v2972 = vld [vmem:[#allocation4 + $0x498] sm:$0xff]
      %v2973 = vld [vmem:[#allocation4 + $0x4a0] sm:$0xff]
      %v2974 = vld [vmem:[#allocation4 + $0x4a8] sm:$0xff]
      %v2975 = vld [vmem:[#allocation4 + $0x4b0] sm:$0xff]
      %v2976 = vld [vmem:[#allocation4 + $0x4b8] sm:$0xff]
      %v2977 = vld [vmem:[#allocation4 + $0x4c0] sm:$0xff]
      %v2978 = vld [vmem:[#allocation4 + $0x4c8] sm:$0xff]
      %v2979 = vld [vmem:[#allocation4 + $0x4d0] sm:$0xff]
      %v2980 = vld [vmem:[#allocation4 + $0x4d8] sm:$0xff]
      %v2981 = vld [vmem:[#allocation4 + $0x4e0] sm:$0xff]
      %v2982 = vld [vmem:[#allocation4 + $0x4e8] sm:$0xff]
      %v2983 = vld [vmem:[#allocation4 + $0x4f0] sm:$0xff]
      %v2984 = vld [vmem:[#allocation4 + $0x4f8] sm:$0xff]
      %v2985 = vld [vmem:[#allocation4 + $0x500] sm:$0xff]
      %v2986 = vld [vmem:[#allocation4 + $0x508] sm:$0xff]
      %v2987 = vld [vmem:[#allocation4 + $0x510] sm:$0xff]
      %v2988 = vld [vmem:[#allocation4 + $0x518] sm:$0xff]
      %v2989 = vld [vmem:[#allocation4 + $0x520] sm:$0xff]
      %v2990 = vld [vmem:[#allocation4 + $0x528] sm:$0xff]
      %v2991 = vld [vmem:[#allocation4 + $0x530] sm:$0xff]
      %v2992 = vld [vmem:[#allocation4 + $0x538] sm:$0xff]
      %v2993 = vld [vmem:[#allocation4 + $0x540] sm:$0xff]
      %v2994 = vld [vmem:[#allocation4 + $0x548] sm:$0xff]
      %v2995 = vld [vmem:[#allocation4 + $0x550] sm:$0xff]
      %v2996 = vld [vmem:[#allocation4 + $0x558] sm:$0xff]
      %v2997 = vld [vmem:[#allocation4 + $0x560] sm:$0xff]
      %v2998 = vld [vmem:[#allocation4 + $0x568] sm:$0xff]
      %v2999 = vld [vmem:[#allocation4 + $0x570] sm:$0xff]
      %v3000 = vld [vmem:[#allocation4 + $0x578] sm:$0xff]
      %v3001 = vld [vmem:[#allocation4 + $0x580] sm:$0xff]
      %v3002 = vld [vmem:[#allocation4 + $0x588] sm:$0xff]
      %v3003 = vld [vmem:[#allocation4 + $0x590] sm:$0xff]
      %v3004 = vld [vmem:[#allocation4 + $0x598] sm:$0xff]
      %v3005 = vld [vmem:[#allocation4 + $0x5a0] sm:$0xff]
      %v3006 = vld [vmem:[#allocation4 + $0x5a8] sm:$0xff]
      %v3007 = vld [vmem:[#allocation4 + $0x5b0] sm:$0xff]
      %v3008 = vld [vmem:[#allocation4 + $0x5b8] sm:$0xff]
      %v3009 = vld [vmem:[#allocation4 + $0x5c0] sm:$0xff]
      %v3010 = vld [vmem:[#allocation4 + $0x5c8] sm:$0xff]
      %v3011 = vld [vmem:[#allocation4 + $0x5d0] sm:$0xff]
      %v3012 = vld [vmem:[#allocation4 + $0x5d8] sm:$0xff]
      %v3013 = vld [vmem:[#allocation4 + $0x5e0] sm:$0xff]
      %v3014 = vld [vmem:[#allocation4 + $0x5e8] sm:$0xff]
      %v3015 = vld [vmem:[#allocation4 + $0x5f0] sm:$0xff]
      %v3016 = vld [vmem:[#allocation4 + $0x5f8] sm:$0xff]
      %v3017 = vpack.c.bf16 %v2828, %v2825
      %v3018 = vpack.c.bf16 %v2829, %v2826
      %v3019 = vpack.c.bf16 %v2830, %v2827
      %v3020 = vpack.c.bf16 %v2834, %v2831
      %v3021 = vpack.c.bf16 %v2835, %v2832
      %v3022 = vpack.c.bf16 %v2836, %v2833
      %v3023 = vpack.c.bf16 %v2840, %v2837
      %v3024 = vpack.c.bf16 %v2841, %v2838
      %v3025 = vpack.c.bf16 %v2842, %v2839
      %v3026 = vpack.c.bf16 %v2846, %v2843
      %v3027 = vpack.c.bf16 %v2847, %v2844
      %v3028 = vpack.c.bf16 %v2848, %v2845
      %v3029 = vpack.c.bf16 %v2852, %v2849
      %v3030 = vpack.c.bf16 %v2853, %v2850
      %v3031 = vpack.c.bf16 %v2854, %v2851
      %v3032 = vpack.c.bf16 %v2858, %v2855
      %v3033 = vpack.c.bf16 %v2859, %v2856
      %v3034 = vpack.c.bf16 %v2860, %v2857
      %v3035 = vpack.c.bf16 %v2864, %v2861
      %v3036 = vpack.c.bf16 %v2865, %v2862
      %v3037 = vpack.c.bf16 %v2866, %v2863
      %v3038 = vpack.c.bf16 %v2870, %v2867
      %v3039 = vpack.c.bf16 %v2871, %v2868
      %v3040 = vpack.c.bf16 %v2872, %v2869
      %v3041 = vpack.c.bf16 %v2876, %v2873
      %v3042 = vpack.c.bf16 %v2877, %v2874
      %v3043 = vpack.c.bf16 %v2878, %v2875
      %v3044 = vpack.c.bf16 %v2882, %v2879
      %v3045 = vpack.c.bf16 %v2883, %v2880
      %v3046 = vpack.c.bf16 %v2884, %v2881
      %v3047 = vpack.c.bf16 %v2888, %v2885
      %v3048 = vpack.c.bf16 %v2889, %v2886
      %v3049 = vpack.c.bf16 %v2890, %v2887
      %v3050 = vpack.c.bf16 %v2894, %v2891
      %v3051 = vpack.c.bf16 %v2895, %v2892
      %v3052 = vpack.c.bf16 %v2896, %v2893
      %v3053 = vpack.c.bf16 %v2900, %v2897
      %v3054 = vpack.c.bf16 %v2901, %v2898
      %v3055 = vpack.c.bf16 %v2902, %v2899
      %v3056 = vpack.c.bf16 %v2906, %v2903
      %v3057 = vpack.c.bf16 %v2907, %v2904
      %v3058 = vpack.c.bf16 %v2908, %v2905
      %v3059 = vpack.c.bf16 %v2912, %v2909
      %v3060 = vpack.c.bf16 %v2913, %v2910
      %v3061 = vpack.c.bf16 %v2914, %v2911
      %v3062 = vpack.c.bf16 %v2918, %v2915
      %v3063 = vpack.c.bf16 %v2919, %v2916
      %v3064 = vpack.c.bf16 %v2920, %v2917
      %v3065 = vpack.c.bf16 %v2924, %v2921
      %v3066 = vpack.c.bf16 %v2925, %v2922
      %v3067 = vpack.c.bf16 %v2926, %v2923
      %v3068 = vpack.c.bf16 %v2930, %v2927
      %v3069 = vpack.c.bf16 %v2931, %v2928
      %v3070 = vpack.c.bf16 %v2932, %v2929
      %v3071 = vpack.c.bf16 %v2936, %v2933
      %v3072 = vpack.c.bf16 %v2937, %v2934
      %v3073 = vpack.c.bf16 %v2938, %v2935
      %v3074 = vpack.c.bf16 %v2942, %v2939
      %v3075 = vpack.c.bf16 %v2943, %v2940
      %v3076 = vpack.c.bf16 %v2944, %v2941
      %v3077 = vpack.c.bf16 %v2948, %v2945
      %v3078 = vpack.c.bf16 %v2949, %v2946
      %v3079 = vpack.c.bf16 %v2950, %v2947
      %v3080 = vpack.c.bf16 %v2954, %v2951
      %v3081 = vpack.c.bf16 %v2955, %v2952
      %v3082 = vpack.c.bf16 %v2956, %v2953
      %v3083 = vpack.c.bf16 %v2960, %v2957
      %v3084 = vpack.c.bf16 %v2961, %v2958
      %v3085 = vpack.c.bf16 %v2962, %v2959
      %v3086 = vpack.c.bf16 %v2966, %v2963
      %v3087 = vpack.c.bf16 %v2967, %v2964
      %v3088 = vpack.c.bf16 %v2968, %v2965
      %v3089 = vpack.c.bf16 %v2972, %v2969
      %v3090 = vpack.c.bf16 %v2973, %v2970
      %v3091 = vpack.c.bf16 %v2974, %v2971
      %v3092 = vpack.c.bf16 %v2978, %v2975
      %v3093 = vpack.c.bf16 %v2979, %v2976
      %v3094 = vpack.c.bf16 %v2980, %v2977
      %v3095 = vpack.c.bf16 %v2984, %v2981
      %v3096 = vpack.c.bf16 %v2985, %v2982
      %v3097 = vpack.c.bf16 %v2986, %v2983
      %v3098 = vpack.c.bf16 %v2990, %v2987
      %v3099 = vpack.c.bf16 %v2991, %v2988
      %v3100 = vpack.c.bf16 %v2992, %v2989
      %v3101 = vpack.c.bf16 %v2996, %v2993
      %v3102 = vpack.c.bf16 %v2997, %v2994
      %v3103 = vpack.c.bf16 %v2998, %v2995
      %v3104 = vpack.c.bf16 %v3002, %v2999
      %v3105 = vpack.c.bf16 %v3003, %v3000
      %v3106 = vpack.c.bf16 %v3004, %v3001
      %v3107 = vpack.c.bf16 %v3008, %v3005
      %v3108 = vpack.c.bf16 %v3009, %v3006
      %v3109 = vpack.c.bf16 %v3010, %v3007
      %v3110 = vpack.c.bf16 %v3014, %v3011
      %v3111 = vpack.c.bf16 %v3015, %v3012
      %v3112 = vpack.c.bf16 %v3016, %v3013
      %v3113 = vld [vmem:[%s1] sm:$0xf]
      %v3114 = vld [vmem:[%s1 + $0x4] sm:$0xf]
      %v3115 = vld [vmem:[%s1 + $0x8] sm:$0xf]
      %v3116 = vld [vmem:[%s1 + $0xc] sm:$0xf]
      %v3117 = vld [vmem:[%s1 + $0x10] sm:$0xf]
      %v3118 = vld [vmem:[%s1 + $0x14] sm:$0xf]
      %v3119 = vld [vmem:[%s1 + $0x18] sm:$0xf]
      %v3120 = vld [vmem:[%s1 + $0x1c] sm:$0xf]
      %v3121 = vld [vmem:[%s1 + $0x20] sm:$0xf]
      %v3122 = vld [vmem:[%s1 + $0x24] sm:$0xf]
      %v3123 = vld [vmem:[%s1 + $0x28] sm:$0xf]
      %v3124 = vld [vmem:[%s1 + $0x2c] sm:$0xf]
      %v3125 = vld [vmem:[%s1 + $0x30] sm:$0xf]
      %v3126 = vld [vmem:[%s1 + $0x34] sm:$0xf]
      %v3127 = vld [vmem:[%s1 + $0x38] sm:$0xf]
      %v3128 = vld [vmem:[%s1 + $0x3c] sm:$0xf]
      %v3129 = vld [vmem:[%s1 + $0x40] sm:$0xf]
      %v3130 = vld [vmem:[%s1 + $0x44] sm:$0xf]
      %v3131 = vld [vmem:[%s1 + $0x48] sm:$0xf]
      %v3132 = vld [vmem:[%s1 + $0x4c] sm:$0xf]
      %v3133 = vld [vmem:[%s1 + $0x50] sm:$0xf]
      %v3134 = vld [vmem:[%s1 + $0x54] sm:$0xf]
      %v3135 = vld [vmem:[%s1 + $0x58] sm:$0xf]
      %v3136 = vld [vmem:[%s1 + $0x5c] sm:$0xf]
      %v3137 = vld [vmem:[%s1 + $0x60] sm:$0xf]
      %v3138 = vld [vmem:[%s1 + $0x64] sm:$0xf]
      %v3139 = vld [vmem:[%s1 + $0x68] sm:$0xf]
      %v3140 = vld [vmem:[%s1 + $0x6c] sm:$0xf]
      %v3141 = vld [vmem:[%s1 + $0x70] sm:$0xf]
      %v3142 = vld [vmem:[%s1 + $0x74] sm:$0xf]
      %v3143 = vld [vmem:[%s1 + $0x78] sm:$0xf]
      %v3144 = vld [vmem:[%s1 + $0x7c] sm:$0xf]
      %v3145 = vld [vmem:[%s1 + $0x80] sm:$0xf]
      %v3146 = vld [vmem:[%s1 + $0x84] sm:$0xf]
      %v3147 = vld [vmem:[%s1 + $0x88] sm:$0xf]
      %v3148 = vld [vmem:[%s1 + $0x8c] sm:$0xf]
      %v3185 = vunpack.c.l.b16 %v3113
      %v3186 = vunpack.c.l.b16 %v3114
      %v3187 = vunpack.c.l.b16 %v3115
      %v3188 = vunpack.c.l.b16 %v3116
      %v3189 = vunpack.c.l.b16 %v3117
      %v3190 = vunpack.c.l.b16 %v3118
      %v3191 = vunpack.c.l.b16 %v3119
      %v3192 = vunpack.c.l.b16 %v3120
      %v3193 = vunpack.c.l.b16 %v3121
      %v3194 = vunpack.c.l.b16 %v3122
      %v3195 = vunpack.c.l.b16 %v3123
      %v3196 = vunpack.c.l.b16 %v3124
      %v3197 = vunpack.c.l.b16 %v3125
      %v3198 = vunpack.c.l.b16 %v3126
      %v3199 = vunpack.c.l.b16 %v3127
      %v3200 = vunpack.c.l.b16 %v3128
      %v3201 = vunpack.c.l.b16 %v3129
      %v3202 = vunpack.c.l.b16 %v3130
      %v3203 = vunpack.c.l.b16 %v3131
      %v3204 = vunpack.c.l.b16 %v3132
      %v3205 = vunpack.c.l.b16 %v3133
      %v3206 = vunpack.c.l.b16 %v3134
      %v3207 = vunpack.c.l.b16 %v3135
      %v3208 = vunpack.c.l.b16 %v3136
      %v3209 = vunpack.c.l.b16 %v3137
      %v3210 = vunpack.c.l.b16 %v3138
      %v3211 = vunpack.c.l.b16 %v3139
      %v3212 = vunpack.c.l.b16 %v3140
      %v3213 = vunpack.c.l.b16 %v3141
      %v3214 = vunpack.c.l.b16 %v3142
      %v3215 = vunpack.c.l.b16 %v3143
      %v3216 = vunpack.c.l.b16 %v3144
      %v3217 = vunpack.c.l.b16 %v3145
      %v3218 = vunpack.c.l.b16 %v3146
      %v3219 = vunpack.c.l.b16 %v3147
      %v3220 = vunpack.c.l.b16 %v3148
      %v3221 = vpack.c.b16 %v3186, %v3185
      %v3222 = vpack.c.b16 %v3188, %v3187
      %v3223 = vpack.c.b16 %v3190, %v3189
      %v3224 = vpack.c.b16 %v3192, %v3191
      %v3225 = vpack.c.b16 %v3194, %v3193
      %v3226 = vpack.c.b16 %v3196, %v3195
      %v3227 = vpack.c.b16 %v3198, %v3197
      %v3228 = vpack.c.b16 %v3200, %v3199
      %v3229 = vpack.c.b16 %v3202, %v3201
      %v3230 = vpack.c.b16 %v3204, %v3203
      %v3231 = vpack.c.b16 %v3206, %v3205
      %v3232 = vpack.c.b16 %v3208, %v3207
      %v3233 = vpack.c.b16 %v3210, %v3209
      %v3234 = vpack.c.b16 %v3212, %v3211
      %v3235 = vpack.c.b16 %v3214, %v3213
      %v3236 = vpack.c.b16 %v3216, %v3215
      %v3237 = vpack.c.b16 %v3218, %v3217
      %v3238 = vpack.c.b16 %v3220, %v3219
      %v3258 = vsel %vm431, %v3019, 0
      %v3261 = vsel %vm431, %v3022, 0
      %v3264 = vsel %vm431, %v3025, 0
      %v3267 = vsel %vm431, %v3028, 0
      %v3270 = vsel %vm431, %v3031, 0
      %v3273 = vsel %vm431, %v3034, 0
      %v3276 = vsel %vm431, %v3037, 0
      %v3279 = vsel %vm431, %v3040, 0
      %v3282 = vsel %vm431, %v3043, 0
      %v3285 = vsel %vm431, %v3046, 0
      %v3288 = vsel %vm431, %v3049, 0
      %v3291 = vsel %vm431, %v3052, 0
      %v3294 = vsel %vm431, %v3055, 0
      %v3297 = vsel %vm431, %v3058, 0
      %v3300 = vsel %vm431, %v3061, 0
      %v3303 = vsel %vm431, %v3064, 0
      %v3306 = vsel %vm431, %v3067, 0
      %v3309 = vsel %vm431, %v3070, 0
      %v3312 = vsel %vm431, %v3073, 0
      %v3315 = vsel %vm431, %v3076, 0
      %v3318 = vsel %vm431, %v3079, 0
      %v3321 = vsel %vm431, %v3082, 0
      %v3324 = vsel %vm431, %v3085, 0
      %v3327 = vsel %vm431, %v3088, 0
      %v3330 = vsel %vm431, %v3091, 0
      %v3333 = vsel %vm431, %v3094, 0
      %v3336 = vsel %vm431, %v3097, 0
      %v3339 = vsel %vm431, %v3100, 0
      %v3342 = vsel %vm431, %v3103, 0
      %v3345 = vsel %vm431, %v3106, 0
      %v3348 = vsel %vm431, %v3109, 0
      %v3351 = vsel %vm431, %v3112, 0
      %3353 = vmatprep.subr.bf16.mxu0 0
      %3354 = vmatpush1.bf16.msra.mxu0 %v3221
      %3355 = vmatprep.subr.bf16.mxu0 0
      %3356 = vmatpush1.bf16.msra.mxu0 %v3222
      %3357 = vmatprep.subr.bf16.mxu0 0
      %3358 = vmatpush1.bf16.msra.mxu0 %v3223
      %3359 = vmatprep.subr.bf16.mxu0 0
      %3360 = vmatpush1.bf16.msra.mxu0 %v3224
      %3361 = vmatprep.subr.bf16.mxu0 0
      %3362 = vmatpush1.bf16.msra.mxu0 %v3225
      %3363 = vmatprep.subr.bf16.mxu0 0
      %3364 = vmatpush1.bf16.msra.mxu0 %v3226
      %3365 = vmatprep.subr.bf16.mxu0 0
      %3366 = vmatpush1.bf16.msra.mxu0 %v3227
      %3367 = vmatprep.subr.bf16.mxu0 0
      %3368 = vmatpush1.bf16.msra.mxu0 %v3228
      %3369 = vmatprep.subr.bf16.mxu0 0
      %3370 = vmatpush1.bf16.msra.mxu0 %v3229
      %3371 = vmatprep.subr.bf16.mxu0 0
      %3372 = vmatpush1.bf16.msra.mxu0 %v3230
      %3373 = vmatprep.subr.bf16.mxu0 0
      %3374 = vmatpush1.bf16.msra.mxu0 %v3231
      %3375 = vmatprep.subr.bf16.mxu0 0
      %3376 = vmatpush1.bf16.msra.mxu0 %v3232
      %3377 = vmatprep.subr.bf16.mxu0 0
      %3378 = vmatpush1.bf16.msra.mxu0 %v3233
      %3379 = vmatprep.subr.bf16.mxu0 0
      %3380 = vmatpush1.bf16.msra.mxu0 %v3234
      %3381 = vmatprep.subr.bf16.mxu0 0
      %3382 = vmatpush1.bf16.msra.mxu0 %v3235
      %3383 = vmatprep.subr.bf16.mxu0 0
      %3384 = vmatpush1.bf16.msra.mxu0 %v3236
      %3385 = vmatprep.mubr.bf16.mxu0 %v3018
      %3386 = vmatmul.mubr.bf16.gmra.mrb[0].mxu0 %v3017
      %v3387 = vpop.f32.mrb[0].mxu0
      %v3388 = vadd.f32 0.0, %v3387
      %v3389 = vpop.f32.mrb[0].mxu0
      %v3390 = vpop.f32.mrb[0].mxu0
      %v3391 = vadd.f32 0.0, %v3390
      %v3392 = vpop.f32.mrb[0].mxu0
      %3393 = vmatprep.mubr.bf16.mxu0 %v3021
      %3394 = vmatmul.mubr.bf16.gmra.mrb[0].mxu0 %v3020
      %v3395 = vpop.f32.mrb[0].mxu0
      %v3396 = vadd.f32 0.0, %v3395
      %v3397 = vpop.f32.mrb[0].mxu0
      %v3398 = vpop.f32.mrb[0].mxu0
      %v3399 = vadd.f32 0.0, %v3398
      %v3400 = vpop.f32.mrb[0].mxu0
      %3401 = vmatprep.mubr.bf16.mxu0 %v3024
      %3402 = vmatmul.mubr.bf16.gmra.mrb[0].mxu0 %v3023
      %v3403 = vpop.f32.mrb[0].mxu0
      %v3404 = vadd.f32 0.0, %v3403
      %v3405 = vpop.f32.mrb[0].mxu0
      %v3406 = vpop.f32.mrb[0].mxu0
      %v3407 = vadd.f32 0.0, %v3406
      %v3408 = vpop.f32.mrb[0].mxu0
      %3409 = vmatprep.mubr.bf16.mxu0 %v3027
      %3410 = vmatmul.mubr.bf16.gmra.mrb[0].mxu0 %v3026
      %v3411 = vpop.f32.mrb[0].mxu0
      %v3412 = vadd.f32 0.0, %v3411
      %v3413 = vpop.f32.mrb[0].mxu0
      %v3414 = vpop.f32.mrb[0].mxu0
      %v3415 = vadd.f32 0.0, %v3414
      %v3416 = vpop.f32.mrb[0].mxu0
      %3417 = vmatprep.mubr.bf16.mxu0 %v3030
      %3418 = vmatmul.mubr.bf16.gmra.mrb[0].mxu0 %v3029
      %v3419 = vpop.f32.mrb[0].mxu0
      %v3420 = vadd.f32 0.0, %v3419
      %v3421 = vpop.f32.mrb[0].mxu0
      %v3422 = vpop.f32.mrb[0].mxu0
      %v3423 = vadd.f32 0.0, %v3422
      %v3424 = vpop.f32.mrb[0].mxu0
      %3425 = vmatprep.mubr.bf16.mxu0 %v3033
      %3426 = vmatmul.mubr.bf16.gmra.mrb[0].mxu0 %v3032
      %v3427 = vpop.f32.mrb[0].mxu0
      %v3428 = vadd.f32 0.0, %v3427
      %v3429 = vpop.f32.mrb[0].mxu0
      %v3430 = vpop.f32.mrb[0].mxu0
      %v3431 = vadd.f32 0.0, %v3430
      %v3432 = vpop.f32.mrb[0].mxu0
      %3433 = vmatprep.mubr.bf16.mxu0 %v3036
      %3434 = vmatmul.mubr.bf16.gmra.mrb[0].mxu0 %v3035
      %v3435 = vpop.f32.mrb[0].mxu0
      %v3436 = vadd.f32 0.0, %v3435
      %v3437 = vpop.f32.mrb[0].mxu0
      %v3438 = vpop.f32.mrb[0].mxu0
      %v3439 = vadd.f32 0.0, %v3438
      %v3440 = vpop.f32.mrb[0].mxu0
      %3441 = vmatprep.mubr.bf16.mxu0 %v3039
      %3442 = vmatmul.mubr.bf16.gmra.mrb[0].mxu0 %v3038
      %v3443 = vpop.f32.mrb[0].mxu0
      %v3444 = vadd.f32 0.0, %v3443
      %v3445 = vpop.f32.mrb[0].mxu0
      %v3446 = vpop.f32.mrb[0].mxu0
      %v3447 = vadd.f32 0.0, %v3446
      %v3448 = vpop.f32.mrb[0].mxu0
      %3449 = vmatprep.mubr.bf16.mxu0 %v3042
      %3450 = vmatmul.mubr.bf16.gmra.mrb[0].mxu0 %v3041
      %v3451 = vpop.f32.mrb[0].mxu0
      %v3452 = vadd.f32 0.0, %v3451
      %v3453 = vpop.f32.mrb[0].mxu0
      %v3454 = vpop.f32.mrb[0].mxu0
      %v3455 = vadd.f32 0.0, %v3454
      %v3456 = vpop.f32.mrb[0].mxu0
      %3457 = vmatprep.mubr.bf16.mxu0 %v3045
      %3458 = vmatmul.mubr.bf16.gmra.mrb[0].mxu0 %v3044
      %v3459 = vpop.f32.mrb[0].mxu0
      %v3460 = vadd.f32 0.0, %v3459
      %v3461 = vpop.f32.mrb[0].mxu0
      %v3462 = vpop.f32.mrb[0].mxu0
      %v3463 = vadd.f32 0.0, %v3462
      %v3464 = vpop.f32.mrb[0].mxu0
      %3465 = vmatprep.mubr.bf16.mxu0 %v3048
      %3466 = vmatmul.mubr.bf16.gmra.mrb[0].mxu0 %v3047
      %v3467 = vpop.f32.mrb[0].mxu0
      %v3468 = vadd.f32 0.0, %v3467
      %v3469 = vpop.f32.mrb[0].mxu0
      %v3470 = vpop.f32.mrb[0].mxu0
      %v3471 = vadd.f32 0.0, %v3470
      %v3472 = vpop.f32.mrb[0].mxu0
      %3473 = vmatprep.mubr.bf16.mxu0 %v3051
      %3474 = vmatmul.mubr.bf16.gmra.mrb[0].mxu0 %v3050
      %v3475 = vpop.f32.mrb[0].mxu0
      %v3476 = vadd.f32 0.0, %v3475
      %v3477 = vpop.f32.mrb[0].mxu0
      %v3478 = vpop.f32.mrb[0].mxu0
      %v3479 = vadd.f32 0.0, %v3478
      %v3480 = vpop.f32.mrb[0].mxu0
      %3481 = vmatprep.mubr.bf16.mxu0 %v3054
      %3482 = vmatmul.mubr.bf16.gmra.mrb[0].mxu0 %v3053
      %v3483 = vpop.f32.mrb[0].mxu0
      %v3484 = vadd.f32 0.0, %v3483
      %v3485 = vpop.f32.mrb[0].mxu0
      %v3486 = vpop.f32.mrb[0].mxu0
      %v3487 = vadd.f32 0.0, %v3486
      %v3488 = vpop.f32.mrb[0].mxu0
      %3489 = vmatprep.mubr.bf16.mxu0 %v3057
      %3490 = vmatmul.mubr.bf16.gmra.mrb[0].mxu0 %v3056
      %v3491 = vpop.f32.mrb[0].mxu0
      %v3492 = vadd.f32 0.0, %v3491
      %v3493 = vpop.f32.mrb[0].mxu0
      %v3494 = vpop.f32.mrb[0].mxu0
      %v3495 = vadd.f32 0.0, %v3494
      %v3496 = vpop.f32.mrb[0].mxu0
      %3497 = vmatprep.mubr.bf16.mxu0 %v3060
      %3498 = vmatmul.mubr.bf16.gmra.mrb[0].mxu0 %v3059
      %v3499 = vpop.f32.mrb[0].mxu0
      %v3500 = vadd.f32 0.0, %v3499
      %v3501 = vpop.f32.mrb[0].mxu0
      %v3502 = vpop.f32.mrb[0].mxu0
      %v3503 = vadd.f32 0.0, %v3502
      %v3504 = vpop.f32.mrb[0].mxu0
      %3505 = vmatprep.mubr.bf16.mxu0 %v3063
      %3506 = vmatmul.mubr.bf16.gmra.mrb[0].mxu0 %v3062
      %v3507 = vpop.f32.mrb[0].mxu0
      %v3508 = vadd.f32 0.0, %v3507
      %v3509 = vpop.f32.mrb[0].mxu0
      %v3510 = vpop.f32.mrb[0].mxu0
      %v3511 = vadd.f32 0.0, %v3510
      %v3512 = vpop.f32.mrb[0].mxu0
      %3513 = vmatprep.mubr.bf16.mxu0 %v3066
      %3514 = vmatmul.mubr.bf16.gmra.mrb[0].mxu0 %v3065
      %v3515 = vpop.f32.mrb[0].mxu0
      %v3516 = vadd.f32 0.0, %v3515
      %v3517 = vpop.f32.mrb[0].mxu0
      %v3518 = vpop.f32.mrb[0].mxu0
      %v3519 = vadd.f32 0.0, %v3518
      %v3520 = vpop.f32.mrb[0].mxu0
      %3521 = vmatprep.mubr.bf16.mxu0 %v3069
      %3522 = vmatmul.mubr.bf16.gmra.mrb[0].mxu0 %v3068
      %v3523 = vpop.f32.mrb[0].mxu0
      %v3524 = vadd.f32 0.0, %v3523
      %v3525 = vpop.f32.mrb[0].mxu0
      %v3526 = vpop.f32.mrb[0].mxu0
      %v3527 = vadd.f32 0.0, %v3526
      %v3528 = vpop.f32.mrb[0].mxu0
      %3529 = vmatprep.mubr.bf16.mxu0 %v3072
      %3530 = vmatmul.mubr.bf16.gmra.mrb[0].mxu0 %v3071
      %v3531 = vpop.f32.mrb[0].mxu0
      %v3532 = vadd.f32 0.0, %v3531
      %v3533 = vpop.f32.mrb[0].mxu0
      %v3534 = vpop.f32.mrb[0].mxu0
      %v3535 = vadd.f32 0.0, %v3534
      %v3536 = vpop.f32.mrb[0].mxu0
      %3537 = vmatprep.mubr.bf16.mxu0 %v3075
      %3538 = vmatmul.mubr.bf16.gmra.mrb[0].mxu0 %v3074
      %v3539 = vpop.f32.mrb[0].mxu0
      %v3540 = vadd.f32 0.0, %v3539
      %v3541 = vpop.f32.mrb[0].mxu0
      %v3542 = vpop.f32.mrb[0].mxu0
      %v3543 = vadd.f32 0.0, %v3542
      %v3544 = vpop.f32.mrb[0].mxu0
      %3545 = vmatprep.mubr.bf16.mxu0 %v3078
      %3546 = vmatmul.mubr.bf16.gmra.mrb[0].mxu0 %v3077
      %v3547 = vpop.f32.mrb[0].mxu0
      %v3548 = vadd.f32 0.0, %v3547
      %v3549 = vpop.f32.mrb[0].mxu0
      %v3550 = vpop.f32.mrb[0].mxu0
      %v3551 = vadd.f32 0.0, %v3550
      %v3552 = vpop.f32.mrb[0].mxu0
      %3553 = vmatprep.mubr.bf16.mxu0 %v3081
      %3554 = vmatmul.mubr.bf16.gmra.mrb[0].mxu0 %v3080
      %v3555 = vpop.f32.mrb[0].mxu0
      %v3556 = vadd.f32 0.0, %v3555
      %v3557 = vpop.f32.mrb[0].mxu0
      %v3558 = vpop.f32.mrb[0].mxu0
      %v3559 = vadd.f32 0.0, %v3558
      %v3560 = vpop.f32.mrb[0].mxu0
      %3561 = vmatprep.mubr.bf16.mxu0 %v3084
      %3562 = vmatmul.mubr.bf16.gmra.mrb[0].mxu0 %v3083
      %v3563 = vpop.f32.mrb[0].mxu0
      %v3564 = vadd.f32 0.0, %v3563
      %v3565 = vpop.f32.mrb[0].mxu0
      %v3566 = vpop.f32.mrb[0].mxu0
      %v3567 = vadd.f32 0.0, %v3566
      %v3568 = vpop.f32.mrb[0].mxu0
      %3569 = vmatprep.mubr.bf16.mxu0 %v3087
      %3570 = vmatmul.mubr.bf16.gmra.mrb[0].mxu0 %v3086
      %v3571 = vpop.f32.mrb[0].mxu0
      %v3572 = vadd.f32 0.0, %v3571
      %v3573 = vpop.f32.mrb[0].mxu0
      %v3574 = vpop.f32.mrb[0].mxu0
      %v3575 = vadd.f32 0.0, %v3574
      %v3576 = vpop.f32.mrb[0].mxu0
      %3577 = vmatprep.mubr.bf16.mxu0 %v3090
      %3578 = vmatmul.mubr.bf16.gmra.mrb[0].mxu0 %v3089
      %v3579 = vpop.f32.mrb[0].mxu0
      %v3580 = vadd.f32 0.0, %v3579
      %v3581 = vpop.f32.mrb[0].mxu0
      %v3582 = vpop.f32.mrb[0].mxu0
      %v3583 = vadd.f32 0.0, %v3582
      %v3584 = vpop.f32.mrb[0].mxu0
      %3585 = vmatprep.mubr.bf16.mxu0 %v3093
      %3586 = vmatmul.mubr.bf16.gmra.mrb[0].mxu0 %v3092
      %v3587 = vpop.f32.mrb[0].mxu0
      %v3588 = vadd.f32 0.0, %v3587
      %v3589 = vpop.f32.mrb[0].mxu0
      %v3590 = vpop.f32.mrb[0].mxu0
      %v3591 = vadd.f32 0.0, %v3590
      %v3592 = vpop.f32.mrb[0].mxu0
      %3593 = vmatprep.mubr.bf16.mxu0 %v3096
      %3594 = vmatmul.mubr.bf16.gmra.mrb[0].mxu0 %v3095
      %v3595 = vpop.f32.mrb[0].mxu0
      %v3596 = vadd.f32 0.0, %v3595
      %v3597 = vpop.f32.mrb[0].mxu0
      %v3598 = vpop.f32.mrb[0].mxu0
      %v3599 = vadd.f32 0.0, %v3598
      %v3600 = vpop.f32.mrb[0].mxu0
      %3601 = vmatprep.mubr.bf16.mxu0 %v3099
      %3602 = vmatmul.mubr.bf16.gmra.mrb[0].mxu0 %v3098
      %v3603 = vpop.f32.mrb[0].mxu0
      %v3604 = vadd.f32 0.0, %v3603
      %v3605 = vpop.f32.mrb[0].mxu0
      %v3606 = vpop.f32.mrb[0].mxu0
      %v3607 = vadd.f32 0.0, %v3606
      %v3608 = vpop.f32.mrb[0].mxu0
      %3609 = vmatprep.mubr.bf16.mxu0 %v3102
      %3610 = vmatmul.mubr.bf16.gmra.mrb[0].mxu0 %v3101
      %v3611 = vpop.f32.mrb[0].mxu0
      %v3612 = vadd.f32 0.0, %v3611
      %v3613 = vpop.f32.mrb[0].mxu0
      %v3614 = vpop.f32.mrb[0].mxu0
      %v3615 = vadd.f32 0.0, %v3614
      %v3616 = vpop.f32.mrb[0].mxu0
      %3617 = vmatprep.mubr.bf16.mxu0 %v3105
      %3618 = vmatmul.mubr.bf16.gmra.mrb[0].mxu0 %v3104
      %v3619 = vpop.f32.mrb[0].mxu0
      %v3620 = vadd.f32 0.0, %v3619
      %v3621 = vpop.f32.mrb[0].mxu0
      %v3622 = vpop.f32.mrb[0].mxu0
      %v3623 = vadd.f32 0.0, %v3622
      %v3624 = vpop.f32.mrb[0].mxu0
      %3625 = vmatprep.mubr.bf16.mxu0 %v3108
      %3626 = vmatmul.mubr.bf16.gmra.mrb[0].mxu0 %v3107
      %v3627 = vpop.f32.mrb[0].mxu0
      %v3628 = vadd.f32 0.0, %v3627
      %v3629 = vpop.f32.mrb[0].mxu0
      %v3630 = vpop.f32.mrb[0].mxu0
      %v3631 = vadd.f32 0.0, %v3630
      %v3632 = vpop.f32.mrb[0].mxu0
      %3633 = vmatprep.mubr.bf16.mxu0 %v3111
      %3634 = vmatmul.mubr.bf16.gmra.mrb[0].mxu0 %v3110
      %v3635 = vpop.f32.mrb[0].mxu0
      %v3636 = vadd.f32 0.0, %v3635
      %v3637 = vpop.f32.mrb[0].mxu0
      %v3638 = vpop.f32.mrb[0].mxu0
      %v3639 = vadd.f32 0.0, %v3638
      %v3640 = vpop.f32.mrb[0].mxu0
      %3641 = vdwg.mxu0
      %3642 = vmatprep.subr.bf16.mxu0 0
      %3643 = vmatpush1.bf16.msra.mxu0 %v3237
      %3644 = vmatprep.subr.bf16.mxu0 0
      %3645 = vmatpush1.bf16.msra.mxu0 %v3238
      %3646 = vmatprep.subr.bf16.mxu0 0
      %3647 = vmatpush1.bf16.msra.mxu0 0
      %3648 = vmatprep.subr.bf16.mxu0 0
      %3649 = vmatpush1.bf16.msra.mxu0 0
      %3650 = vmatprep.subr.bf16.mxu0 0
      %3651 = vmatpush1.bf16.msra.mxu0 0
      %3652 = vmatprep.subr.bf16.mxu0 0
      %3653 = vmatpush1.bf16.msra.mxu0 0
      %3654 = vmatprep.subr.bf16.mxu0 0
      %3655 = vmatpush1.bf16.msra.mxu0 0
      %3656 = vmatprep.subr.bf16.mxu0 0
      %3657 = vmatpush1.bf16.msra.mxu0 0
      %3658 = vmatprep.subr.bf16.mxu0 0
      %3659 = vmatpush1.bf16.msra.mxu0 0
      %3660 = vmatprep.subr.bf16.mxu0 0
      %3661 = vmatpush1.bf16.msra.mxu0 0
      %3662 = vmatprep.subr.bf16.mxu0 0
      %3663 = vmatpush1.bf16.msra.mxu0 0
      %3664 = vmatprep.subr.bf16.mxu0 0
      %3665 = vmatpush1.bf16.msra.mxu0 0
      %3666 = vmatprep.subr.bf16.mxu0 0
      %3667 = vmatpush1.bf16.msra.mxu0 0
      %3668 = vmatprep.subr.bf16.mxu0 0
      %3669 = vmatpush1.bf16.msra.mxu0 0
      %3670 = vmatprep.subr.bf16.mxu0 0
      %3671 = vmatpush1.bf16.msra.mxu0 0
      %3672 = vmatprep.subr.bf16.mxu0 0
      %3673 = vmatpush1.bf16.msra.mxu0 0
      %3674 = vmatprep.mubr.bf16.mxu0 0
      %3675 = vmatmul.mubr.bf16.gmra.mrb[0].mxu0 %v3258
      %v3676 = vpop.f32.mrb[0].mxu0
      %v3677 = vadd.f32 %v3388, %v3676
      %v3678 = vpop.f32.mrb[0].mxu0
      %v3679 = vpop.f32.mrb[0].mxu0
      %v3680 = vadd.f32 %v3391, %v3679
      %v3681 = vpop.f32.mrb[0].mxu0
      %3682 = vmatprep.mubr.bf16.mxu0 0
      %3683 = vmatmul.mubr.bf16.gmra.mrb[0].mxu0 %v3261
      %v3684 = vpop.f32.mrb[0].mxu0
      %v3685 = vadd.f32 %v3396, %v3684
      %v3686 = vpop.f32.mrb[0].mxu0
      %v3687 = vpop.f32.mrb[0].mxu0
      %v3688 = vadd.f32 %v3399, %v3687
      %v3689 = vpop.f32.mrb[0].mxu0
      %3690 = vmatprep.mubr.bf16.mxu0 0
      %3691 = vmatmul.mubr.bf16.gmra.mrb[0].mxu0 %v3264
      %v3692 = vpop.f32.mrb[0].mxu0
      %v3693 = vadd.f32 %v3404, %v3692
      %v3694 = vpop.f32.mrb[0].mxu0
      %v3695 = vpop.f32.mrb[0].mxu0
      %v3696 = vadd.f32 %v3407, %v3695
      %v3697 = vpop.f32.mrb[0].mxu0
      %3698 = vmatprep.mubr.bf16.mxu0 0
      %3699 = vmatmul.mubr.bf16.gmra.mrb[0].mxu0 %v3267
      %v3700 = vpop.f32.mrb[0].mxu0
      %v3701 = vadd.f32 %v3412, %v3700
      %v3702 = vpop.f32.mrb[0].mxu0
      %v3703 = vpop.f32.mrb[0].mxu0
      %v3704 = vadd.f32 %v3415, %v3703
      %v3705 = vpop.f32.mrb[0].mxu0
      %3706 = vmatprep.mubr.bf16.mxu0 0
      %3707 = vmatmul.mubr.bf16.gmra.mrb[0].mxu0 %v3270
      %v3708 = vpop.f32.mrb[0].mxu0
      %v3709 = vadd.f32 %v3420, %v3708
      %v3710 = vpop.f32.mrb[0].mxu0
      %v3711 = vpop.f32.mrb[0].mxu0
      %v3712 = vadd.f32 %v3423, %v3711
      %v3713 = vpop.f32.mrb[0].mxu0
      %3714 = vmatprep.mubr.bf16.mxu0 0
      %3715 = vmatmul.mubr.bf16.gmra.mrb[0].mxu0 %v3273
      %v3716 = vpop.f32.mrb[0].mxu0
      %v3717 = vadd.f32 %v3428, %v3716
      %v3718 = vpop.f32.mrb[0].mxu0
      %v3719 = vpop.f32.mrb[0].mxu0
      %v3720 = vadd.f32 %v3431, %v3719
      %v3721 = vpop.f32.mrb[0].mxu0
      %3722 = vmatprep.mubr.bf16.mxu0 0
      %3723 = vmatmul.mubr.bf16.gmra.mrb[0].mxu0 %v3276
      %v3724 = vpop.f32.mrb[0].mxu0
      %v3725 = vadd.f32 %v3436, %v3724
      %v3726 = vpop.f32.mrb[0].mxu0
      %v3727 = vpop.f32.mrb[0].mxu0
      %v3728 = vadd.f32 %v3439, %v3727
      %v3729 = vpop.f32.mrb[0].mxu0
      %3730 = vmatprep.mubr.bf16.mxu0 0
      %3731 = vmatmul.mubr.bf16.gmra.mrb[0].mxu0 %v3279
      %v3732 = vpop.f32.mrb[0].mxu0
      %v3733 = vadd.f32 %v3444, %v3732
      %v3734 = vpop.f32.mrb[0].mxu0
      %v3735 = vpop.f32.mrb[0].mxu0
      %v3736 = vadd.f32 %v3447, %v3735
      %v3737 = vpop.f32.mrb[0].mxu0
      %3738 = vmatprep.mubr.bf16.mxu0 0
      %3739 = vmatmul.mubr.bf16.gmra.mrb[0].mxu0 %v3282
      %v3740 = vpop.f32.mrb[0].mxu0
      %v3741 = vadd.f32 %v3452, %v3740
      %v3742 = vpop.f32.mrb[0].mxu0
      %v3743 = vpop.f32.mrb[0].mxu0
      %v3744 = vadd.f32 %v3455, %v3743
      %v3745 = vpop.f32.mrb[0].mxu0
      %3746 = vmatprep.mubr.bf16.mxu0 0
      %3747 = vmatmul.mubr.bf16.gmra.mrb[0].mxu0 %v3285
      %v3748 = vpop.f32.mrb[0].mxu0
      %v3749 = vadd.f32 %v3460, %v3748
      %v3750 = vpop.f32.mrb[0].mxu0
      %v3751 = vpop.f32.mrb[0].mxu0
      %v3752 = vadd.f32 %v3463, %v3751
      %v3753 = vpop.f32.mrb[0].mxu0
      %3754 = vmatprep.mubr.bf16.mxu0 0
      %3755 = vmatmul.mubr.bf16.gmra.mrb[0].mxu0 %v3288
      %v3756 = vpop.f32.mrb[0].mxu0
      %v3757 = vadd.f32 %v3468, %v3756
      %v3758 = vpop.f32.mrb[0].mxu0
      %v3759 = vpop.f32.mrb[0].mxu0
      %v3760 = vadd.f32 %v3471, %v3759
      %v3761 = vpop.f32.mrb[0].mxu0
      %3762 = vmatprep.mubr.bf16.mxu0 0
      %3763 = vmatmul.mubr.bf16.gmra.mrb[0].mxu0 %v3291
      %v3764 = vpop.f32.mrb[0].mxu0
      %v3765 = vadd.f32 %v3476, %v3764
      %v3766 = vpop.f32.mrb[0].mxu0
      %v3767 = vpop.f32.mrb[0].mxu0
      %v3768 = vadd.f32 %v3479, %v3767
      %v3769 = vpop.f32.mrb[0].mxu0
      %3770 = vmatprep.mubr.bf16.mxu0 0
      %3771 = vmatmul.mubr.bf16.gmra.mrb[0].mxu0 %v3294
      %v3772 = vpop.f32.mrb[0].mxu0
      %v3773 = vadd.f32 %v3484, %v3772
      %v3774 = vpop.f32.mrb[0].mxu0
      %v3775 = vpop.f32.mrb[0].mxu0
      %v3776 = vadd.f32 %v3487, %v3775
      %v3777 = vpop.f32.mrb[0].mxu0
      %3778 = vmatprep.mubr.bf16.mxu0 0
      %3779 = vmatmul.mubr.bf16.gmra.mrb[0].mxu0 %v3297
      %v3780 = vpop.f32.mrb[0].mxu0
      %v3781 = vadd.f32 %v3492, %v3780
      %v3782 = vpop.f32.mrb[0].mxu0
      %v3783 = vpop.f32.mrb[0].mxu0
      %v3784 = vadd.f32 %v3495, %v3783
      %v3785 = vpop.f32.mrb[0].mxu0
      %3786 = vmatprep.mubr.bf16.mxu0 0
      %3787 = vmatmul.mubr.bf16.gmra.mrb[0].mxu0 %v3300
      %v3788 = vpop.f32.mrb[0].mxu0
      %v3789 = vadd.f32 %v3500, %v3788
      %v3790 = vpop.f32.mrb[0].mxu0
      %v3791 = vpop.f32.mrb[0].mxu0
      %v3792 = vadd.f32 %v3503, %v3791
      %v3793 = vpop.f32.mrb[0].mxu0
      %3794 = vmatprep.mubr.bf16.mxu0 0
      %3795 = vmatmul.mubr.bf16.gmra.mrb[0].mxu0 %v3303
      %v3796 = vpop.f32.mrb[0].mxu0
      %v3797 = vadd.f32 %v3508, %v3796
      %v3798 = vpop.f32.mrb[0].mxu0
      %v3799 = vpop.f32.mrb[0].mxu0
      %v3800 = vadd.f32 %v3511, %v3799
      %v3801 = vpop.f32.mrb[0].mxu0
      %3802 = vmatprep.mubr.bf16.mxu0 0
      %3803 = vmatmul.mubr.bf16.gmra.mrb[0].mxu0 %v3306
      %v3804 = vpop.f32.mrb[0].mxu0
      %v3805 = vadd.f32 %v3516, %v3804
      %v3806 = vpop.f32.mrb[0].mxu0
      %v3807 = vpop.f32.mrb[0].mxu0
      %v3808 = vadd.f32 %v3519, %v3807
      %v3809 = vpop.f32.mrb[0].mxu0
      %3810 = vmatprep.mubr.bf16.mxu0 0
      %3811 = vmatmul.mubr.bf16.gmra.mrb[0].mxu0 %v3309
      %v3812 = vpop.f32.mrb[0].mxu0
      %v3813 = vadd.f32 %v3524, %v3812
      %v3814 = vpop.f32.mrb[0].mxu0
      %v3815 = vpop.f32.mrb[0].mxu0
      %v3816 = vadd.f32 %v3527, %v3815
      %v3817 = vpop.f32.mrb[0].mxu0
      %3818 = vmatprep.mubr.bf16.mxu0 0
      %3819 = vmatmul.mubr.bf16.gmra.mrb[0].mxu0 %v3312
      %v3820 = vpop.f32.mrb[0].mxu0
      %v3821 = vadd.f32 %v3532, %v3820
      %v3822 = vpop.f32.mrb[0].mxu0
      %v3823 = vpop.f32.mrb[0].mxu0
      %v3824 = vadd.f32 %v3535, %v3823
      %v3825 = vpop.f32.mrb[0].mxu0
      %3826 = vmatprep.mubr.bf16.mxu0 0
      %3827 = vmatmul.mubr.bf16.gmra.mrb[0].mxu0 %v3315
      %v3828 = vpop.f32.mrb[0].mxu0
      %v3829 = vadd.f32 %v3540, %v3828
      %v3830 = vpop.f32.mrb[0].mxu0
      %v3831 = vpop.f32.mrb[0].mxu0
      %v3832 = vadd.f32 %v3543, %v3831
      %v3833 = vpop.f32.mrb[0].mxu0
      %3834 = vmatprep.mubr.bf16.mxu0 0
      %3835 = vmatmul.mubr.bf16.gmra.mrb[0].mxu0 %v3318
      %v3836 = vpop.f32.mrb[0].mxu0
      %v3837 = vadd.f32 %v3548, %v3836
      %v3838 = vpop.f32.mrb[0].mxu0
      %v3839 = vpop.f32.mrb[0].mxu0
      %v3840 = vadd.f32 %v3551, %v3839
      %v3841 = vpop.f32.mrb[0].mxu0
      %3842 = vmatprep.mubr.bf16.mxu0 0
      %3843 = vmatmul.mubr.bf16.gmra.mrb[0].mxu0 %v3321
      %v3844 = vpop.f32.mrb[0].mxu0
      %v3845 = vadd.f32 %v3556, %v3844
      %v3846 = vpop.f32.mrb[0].mxu0
      %v3847 = vpop.f32.mrb[0].mxu0
      %v3848 = vadd.f32 %v3559, %v3847
      %v3849 = vpop.f32.mrb[0].mxu0
      %3850 = vmatprep.mubr.bf16.mxu0 0
      %3851 = vmatmul.mubr.bf16.gmra.mrb[0].mxu0 %v3324
      %v3852 = vpop.f32.mrb[0].mxu0
      %v3853 = vadd.f32 %v3564, %v3852
      %v3854 = vpop.f32.mrb[0].mxu0
      %v3855 = vpop.f32.mrb[0].mxu0
      %v3856 = vadd.f32 %v3567, %v3855
      %v3857 = vpop.f32.mrb[0].mxu0
      %3858 = vmatprep.mubr.bf16.mxu0 0
      %3859 = vmatmul.mubr.bf16.gmra.mrb[0].mxu0 %v3327
      %v3860 = vpop.f32.mrb[0].mxu0
      %v3861 = vadd.f32 %v3572, %v3860
      %v3862 = vpop.f32.mrb[0].mxu0
      %v3863 = vpop.f32.mrb[0].mxu0
      %v3864 = vadd.f32 %v3575, %v3863
      %v3865 = vpop.f32.mrb[0].mxu0
      %3866 = vmatprep.mubr.bf16.mxu0 0
      %3867 = vmatmul.mubr.bf16.gmra.mrb[0].mxu0 %v3330
      %v3868 = vpop.f32.mrb[0].mxu0
      %v3869 = vadd.f32 %v3580, %v3868
      %v3870 = vpop.f32.mrb[0].mxu0
      %v3871 = vpop.f32.mrb[0].mxu0
      %v3872 = vadd.f32 %v3583, %v3871
      %v3873 = vpop.f32.mrb[0].mxu0
      %3874 = vmatprep.mubr.bf16.mxu0 0
      %3875 = vmatmul.mubr.bf16.gmra.mrb[0].mxu0 %v3333
      %v3876 = vpop.f32.mrb[0].mxu0
      %v3877 = vadd.f32 %v3588, %v3876
      %v3878 = vpop.f32.mrb[0].mxu0
      %v3879 = vpop.f32.mrb[0].mxu0
      %v3880 = vadd.f32 %v3591, %v3879
      %v3881 = vpop.f32.mrb[0].mxu0
      %3882 = vmatprep.mubr.bf16.mxu0 0
      %3883 = vmatmul.mubr.bf16.gmra.mrb[0].mxu0 %v3336
      %v3884 = vpop.f32.mrb[0].mxu0
      %v3885 = vadd.f32 %v3596, %v3884
      %v3886 = vpop.f32.mrb[0].mxu0
      %v3887 = vpop.f32.mrb[0].mxu0
      %v3888 = vadd.f32 %v3599, %v3887
      %v3889 = vpop.f32.mrb[0].mxu0
      %3890 = vmatprep.mubr.bf16.mxu0 0
      %3891 = vmatmul.mubr.bf16.gmra.mrb[0].mxu0 %v3339
      %v3892 = vpop.f32.mrb[0].mxu0
      %v3893 = vadd.f32 %v3604, %v3892
      %v3894 = vpop.f32.mrb[0].mxu0
      %v3895 = vpop.f32.mrb[0].mxu0
      %v3896 = vadd.f32 %v3607, %v3895
      %v3897 = vpop.f32.mrb[0].mxu0
      %3898 = vmatprep.mubr.bf16.mxu0 0
      %3899 = vmatmul.mubr.bf16.gmra.mrb[0].mxu0 %v3342
      %v3900 = vpop.f32.mrb[0].mxu0
      %v3901 = vadd.f32 %v3612, %v3900
      %v3902 = vpop.f32.mrb[0].mxu0
      %v3903 = vpop.f32.mrb[0].mxu0
      %v3904 = vadd.f32 %v3615, %v3903
      %v3905 = vpop.f32.mrb[0].mxu0
      %3906 = vmatprep.mubr.bf16.mxu0 0
      %3907 = vmatmul.mubr.bf16.gmra.mrb[0].mxu0 %v3345
      %v3908 = vpop.f32.mrb[0].mxu0
      %v3909 = vadd.f32 %v3620, %v3908
      %v3910 = vpop.f32.mrb[0].mxu0
      %v3911 = vpop.f32.mrb[0].mxu0
      %v3912 = vadd.f32 %v3623, %v3911
      %v3913 = vpop.f32.mrb[0].mxu0
      %3914 = vmatprep.mubr.bf16.mxu0 0
      %3915 = vmatmul.mubr.bf16.gmra.mrb[0].mxu0 %v3348
      %v3916 = vpop.f32.mrb[0].mxu0
      %v3917 = vadd.f32 %v3628, %v3916
      %v3918 = vpop.f32.mrb[0].mxu0
      %v3919 = vpop.f32.mrb[0].mxu0
      %v3920 = vadd.f32 %v3631, %v3919
      %v3921 = vpop.f32.mrb[0].mxu0
      %3922 = vmatprep.mubr.bf16.mxu0 0
      %3923 = vmatmul.mubr.bf16.gmra.mrb[0].mxu0 %v3351
      %v3924 = vpop.f32.mrb[0].mxu0
      %v3925 = vadd.f32 %v3636, %v3924
      %v3926 = vpop.f32.mrb[0].mxu0
      %v3927 = vpop.f32.mrb[0].mxu0
      %v3928 = vadd.f32 %v3639, %v3927
      %v3929 = vpop.f32.mrb[0].mxu0
      %3930 = vdwg.mxu0
      %v3931 = vadd.f32 %v2761, %v3677
      %v3932 = vadd.f32 %v2762, %v3680
      %v3933 = vadd.f32 %v2763, %v3685
      %v3934 = vadd.f32 %v2764, %v3688
      %v3935 = vadd.f32 %v2765, %v3693
      %v3936 = vadd.f32 %v2766, %v3696
      %v3937 = vadd.f32 %v2767, %v3701
      %v3938 = vadd.f32 %v2768, %v3704
      %v3939 = vadd.f32 %v2769, %v3709
      %v3940 = vadd.f32 %v2770, %v3712
      %v3941 = vadd.f32 %v2771, %v3717
      %v3942 = vadd.f32 %v2772, %v3720
      %v3943 = vadd.f32 %v2773, %v3725
      %v3944 = vadd.f32 %v2774, %v3728
      %v3945 = vadd.f32 %v2775, %v3733
      %v3946 = vadd.f32 %v2776, %v3736
      %v3947 = vadd.f32 %v2777, %v3741
      %v3948 = vadd.f32 %v2778, %v3744
      %v3949 = vadd.f32 %v2779, %v3749
      %v3950 = vadd.f32 %v2780, %v3752
      %v3951 = vadd.f32 %v2781, %v3757
      %v3952 = vadd.f32 %v2782, %v3760
      %v3953 = vadd.f32 %v2783, %v3765
      %v3954 = vadd.f32 %v2784, %v3768
      %v3955 = vadd.f32 %v2785, %v3773
      %v3956 = vadd.f32 %v2786, %v3776
      %v3957 = vadd.f32 %v2787, %v3781
      %v3958 = vadd.f32 %v2788, %v3784
      %v3959 = vadd.f32 %v2789, %v3789
      %v3960 = vadd.f32 %v2790, %v3792
      %v3961 = vadd.f32 %v2791, %v3797
      %v3962 = vadd.f32 %v2792, %v3800
      %v3963 = vadd.f32 %v2793, %v3805
      %v3964 = vadd.f32 %v2794, %v3808
      %v3965 = vadd.f32 %v2795, %v3813
      %v3966 = vadd.f32 %v2796, %v3816
      %v3967 = vadd.f32 %v2797, %v3821
      %v3968 = vadd.f32 %v2798, %v3824
      %v3969 = vadd.f32 %v2799, %v3829
      %v3970 = vadd.f32 %v2800, %v3832
      %v3971 = vadd.f32 %v2801, %v3837
      %v3972 = vadd.f32 %v2802, %v3840
      %v3973 = vadd.f32 %v2803, %v3845
      %v3974 = vadd.f32 %v2804, %v3848
      %v3975 = vadd.f32 %v2805, %v3853
      %v3976 = vadd.f32 %v2806, %v3856
      %v3977 = vadd.f32 %v2807, %v3861
      %v3978 = vadd.f32 %v2808, %v3864
      %v3979 = vadd.f32 %v2809, %v3869
      %v3980 = vadd.f32 %v2810, %v3872
      %v3981 = vadd.f32 %v2811, %v3877
      %v3982 = vadd.f32 %v2812, %v3880
      %v3983 = vadd.f32 %v2813, %v3885
      %v3984 = vadd.f32 %v2814, %v3888
      %v3985 = vadd.f32 %v2815, %v3893
      %v3986 = vadd.f32 %v2816, %v3896
      %v3987 = vadd.f32 %v2817, %v3901
      %v3988 = vadd.f32 %v2818, %v3904
      %v3989 = vadd.f32 %v2819, %v3909
      %v3990 = vadd.f32 %v2820, %v3912
      %v3991 = vadd.f32 %v2821, %v3917
      %v3992 = vadd.f32 %v2822, %v3920
      %v3993 = vadd.f32 %v2823, %v3925
      %v3994 = vadd.f32 %v2824, %v3928
      %v3995 = vlaneseq
      %v3996 = vand.u32 %v3995, 127
      %vm3997 = vcmp.lt.s32.totalorder %v3996, 96
      %v3998 = vxor.u32 %v3931, 2147483648
      %v3999 = vxor.u32 %v3932, 2147483648
      %v4000 = vxor.u32 %v3933, 2147483648
      %v4001 = vxor.u32 %v3934, 2147483648
      %v4002 = vxor.u32 %v3935, 2147483648
      %v4003 = vxor.u32 %v3936, 2147483648
      %v4004 = vxor.u32 %v3937, 2147483648
      %v4005 = vxor.u32 %v3938, 2147483648
      %v4006 = vxor.u32 %v3939, 2147483648
      %v4007 = vxor.u32 %v3940, 2147483648
      %v4008 = vxor.u32 %v3941, 2147483648
      %v4009 = vxor.u32 %v3942, 2147483648
      %v4010 = vxor.u32 %v3943, 2147483648
      %v4011 = vxor.u32 %v3944, 2147483648
      %v4012 = vxor.u32 %v3945, 2147483648
      %v4013 = vxor.u32 %v3946, 2147483648
      %v4014 = vxor.u32 %v3947, 2147483648
      %v4015 = vxor.u32 %v3948, 2147483648
      %v4016 = vxor.u32 %v3949, 2147483648
      %v4017 = vxor.u32 %v3950, 2147483648
      %v4018 = vxor.u32 %v3951, 2147483648
      %v4019 = vxor.u32 %v3952, 2147483648
      %v4020 = vxor.u32 %v3953, 2147483648
      %v4021 = vxor.u32 %v3954, 2147483648
      %v4022 = vxor.u32 %v3955, 2147483648
      %v4023 = vxor.u32 %v3956, 2147483648
      %v4024 = vxor.u32 %v3957, 2147483648
      %v4025 = vxor.u32 %v3958, 2147483648
      %v4026 = vxor.u32 %v3959, 2147483648
      %v4027 = vxor.u32 %v3960, 2147483648
      %v4028 = vxor.u32 %v3961, 2147483648
      %v4029 = vxor.u32 %v3962, 2147483648
      %v4030 = vxor.u32 %v3963, 2147483648
      %v4031 = vxor.u32 %v3964, 2147483648
      %v4032 = vxor.u32 %v3965, 2147483648
      %v4033 = vxor.u32 %v3966, 2147483648
      %v4034 = vxor.u32 %v3967, 2147483648
      %v4035 = vxor.u32 %v3968, 2147483648
      %v4036 = vxor.u32 %v3969, 2147483648
      %v4037 = vxor.u32 %v3970, 2147483648
      %v4038 = vxor.u32 %v3971, 2147483648
      %v4039 = vxor.u32 %v3972, 2147483648
      %v4040 = vxor.u32 %v3973, 2147483648
      %v4041 = vxor.u32 %v3974, 2147483648
      %v4042 = vxor.u32 %v3975, 2147483648
      %v4043 = vxor.u32 %v3976, 2147483648
      %v4044 = vxor.u32 %v3977, 2147483648
      %v4045 = vxor.u32 %v3978, 2147483648
      %v4046 = vxor.u32 %v3979, 2147483648
      %v4047 = vxor.u32 %v3980, 2147483648
      %v4048 = vxor.u32 %v3981, 2147483648
      %v4049 = vxor.u32 %v3982, 2147483648
      %v4050 = vxor.u32 %v3983, 2147483648
      %v4051 = vxor.u32 %v3984, 2147483648
      %v4052 = vxor.u32 %v3985, 2147483648
      %v4053 = vxor.u32 %v3986, 2147483648
      %v4054 = vxor.u32 %v3987, 2147483648
      %v4055 = vxor.u32 %v3988, 2147483648
      %v4056 = vxor.u32 %v3989, 2147483648
      %v4057 = vxor.u32 %v3990, 2147483648
      %v4058 = vxor.u32 %v3991, 2147483648
      %v4059 = vxor.u32 %v3992, 2147483648
      %v4060 = vxor.u32 %v3993, 2147483648
      %v4061 = vxor.u32 %v3994, 2147483648
      %v4062 = vmul.f32 %v3998, 1.442695
      %v4063 = vpow.pop %v4062
      %v4064 = vmul.f32 %v3999, 1.442695
      %v4065 = vpow.pop %v4064
      %v4066 = vmul.f32 %v4000, 1.442695
      %v4067 = vpow.pop %v4066
      %v4068 = vmul.f32 %v4001, 1.442695
      %v4069 = vpow.pop %v4068
      %v4070 = vmul.f32 %v4002, 1.442695
      %v4071 = vpow.pop %v4070
      %v4072 = vmul.f32 %v4003, 1.442695
      %v4073 = vpow.pop %v4072
      %v4074 = vmul.f32 %v4004, 1.442695
      %v4075 = vpow.pop %v4074
      %v4076 = vmul.f32 %v4005, 1.442695
      %v4077 = vpow.pop %v4076
      %v4078 = vmul.f32 %v4006, 1.442695
      %v4079 = vpow.pop %v4078
      %v4080 = vmul.f32 %v4007, 1.442695
      %v4081 = vpow.pop %v4080
      %v4082 = vmul.f32 %v4008, 1.442695
      %v4083 = vpow.pop %v4082
      %v4084 = vmul.f32 %v4009, 1.442695
      %v4085 = vpow.pop %v4084
      %v4086 = vmul.f32 %v4010, 1.442695
      %v4087 = vpow.pop %v4086
      %v4088 = vmul.f32 %v4011, 1.442695
      %v4089 = vpow.pop %v4088
      %v4090 = vmul.f32 %v4012, 1.442695
      %v4091 = vpow.pop %v4090
      %v4092 = vmul.f32 %v4013, 1.442695
      %v4093 = vpow.pop %v4092
      %v4094 = vmul.f32 %v4014, 1.442695
      %v4095 = vpow.pop %v4094
      %v4096 = vmul.f32 %v4015, 1.442695
      %v4097 = vpow.pop %v4096
      %v4098 = vmul.f32 %v4016, 1.442695
      %v4099 = vpow.pop %v4098
      %v4100 = vmul.f32 %v4017, 1.442695
      %v4101 = vpow.pop %v4100
      %v4102 = vmul.f32 %v4018, 1.442695
      %v4103 = vpow.pop %v4102
      %v4104 = vmul.f32 %v4019, 1.442695
      %v4105 = vpow.pop %v4104
      %v4106 = vmul.f32 %v4020, 1.442695
      %v4107 = vpow.pop %v4106
      %v4108 = vmul.f32 %v4021, 1.442695
      %v4109 = vpow.pop %v4108
      %v4110 = vmul.f32 %v4022, 1.442695
      %v4111 = vpow.pop %v4110
      %v4112 = vmul.f32 %v4023, 1.442695
      %v4113 = vpow.pop %v4112
      %v4114 = vmul.f32 %v4024, 1.442695
      %v4115 = vpow.pop %v4114
      %v4116 = vmul.f32 %v4025, 1.442695
      %v4117 = vpow.pop %v4116
      %v4118 = vmul.f32 %v4026, 1.442695
      %v4119 = vpow.pop %v4118
      %v4120 = vmul.f32 %v4027, 1.442695
      %v4121 = vpow.pop %v4120
      %v4122 = vmul.f32 %v4028, 1.442695
      %v4123 = vpow.pop %v4122
      %v4124 = vmul.f32 %v4029, 1.442695
      %v4125 = vpow.pop %v4124
      %v4126 = vmul.f32 %v4030, 1.442695
      %v4127 = vpow.pop %v4126
      %v4128 = vmul.f32 %v4031, 1.442695
      %v4129 = vpow.pop %v4128
      %v4130 = vmul.f32 %v4032, 1.442695
      %v4131 = vpow.pop %v4130
      %v4132 = vmul.f32 %v4033, 1.442695
      %v4133 = vpow.pop %v4132
      %v4134 = vmul.f32 %v4034, 1.442695
      %v4135 = vpow.pop %v4134
      %v4136 = vmul.f32 %v4035, 1.442695
      %v4137 = vpow.pop %v4136
      %v4138 = vmul.f32 %v4036, 1.442695
      %v4139 = vpow.pop %v4138
      %v4140 = vmul.f32 %v4037, 1.442695
      %v4141 = vpow.pop %v4140
      %v4142 = vmul.f32 %v4038, 1.442695
      %v4143 = vpow.pop %v4142
      %v4144 = vmul.f32 %v4039, 1.442695
      %v4145 = vpow.pop %v4144
      %v4146 = vmul.f32 %v4040, 1.442695
      %v4147 = vpow.pop %v4146
      %v4148 = vmul.f32 %v4041, 1.442695
      %v4149 = vpow.pop %v4148
      %v4150 = vmul.f32 %v4042, 1.442695
      %v4151 = vpow.pop %v4150
      %v4152 = vmul.f32 %v4043, 1.442695
      %v4153 = vpow.pop %v4152
      %v4154 = vmul.f32 %v4044, 1.442695
      %v4155 = vpow.pop %v4154
      %v4156 = vmul.f32 %v4045, 1.442695
      %v4157 = vpow.pop %v4156
      %v4158 = vmul.f32 %v4046, 1.442695
      %v4159 = vpow.pop %v4158
      %v4160 = vmul.f32 %v4047, 1.442695
      %v4161 = vpow.pop %v4160
      %v4162 = vmul.f32 %v4048, 1.442695
      %v4163 = vpow.pop %v4162
      %v4164 = vmul.f32 %v4049, 1.442695
      %v4165 = vpow.pop %v4164
      %v4166 = vmul.f32 %v4050, 1.442695
      %v4167 = vpow.pop %v4166
      %v4168 = vmul.f32 %v4051, 1.442695
      %v4169 = vpow.pop %v4168
      %v4170 = vmul.f32 %v4052, 1.442695
      %v4171 = vpow.pop %v4170
      %v4172 = vmul.f32 %v4053, 1.442695
      %v4173 = vpow.pop %v4172
      %v4174 = vmul.f32 %v4054, 1.442695
      %v4175 = vpow.pop %v4174
      %v4176 = vmul.f32 %v4055, 1.442695
      %v4177 = vpow.pop %v4176
      %v4178 = vmul.f32 %v4056, 1.442695
      %v4179 = vpow.pop %v4178
      %v4180 = vmul.f32 %v4057, 1.442695
      %v4181 = vpow.pop %v4180
      %v4182 = vmul.f32 %v4058, 1.442695
      %v4183 = vpow.pop %v4182
      %v4184 = vmul.f32 %v4059, 1.442695
      %v4185 = vpow.pop %v4184
      %v4186 = vmul.f32 %v4060, 1.442695
      %v4187 = vpow.pop %v4186
      %v4188 = vmul.f32 %v4061, 1.442695
      %v4189 = vpow.pop %v4188
      %v4190 = vadd.f32 %v4063, 1.0
      %v4191 = vadd.f32 %v4065, 1.0
      %v4192 = vadd.f32 %v4067, 1.0
      %v4193 = vadd.f32 %v4069, 1.0
      %v4194 = vadd.f32 %v4071, 1.0
      %v4195 = vadd.f32 %v4073, 1.0
      %v4196 = vadd.f32 %v4075, 1.0
      %v4197 = vadd.f32 %v4077, 1.0
      %v4198 = vadd.f32 %v4079, 1.0
      %v4199 = vadd.f32 %v4081, 1.0
      %v4200 = vadd.f32 %v4083, 1.0
      %v4201 = vadd.f32 %v4085, 1.0
      %v4202 = vadd.f32 %v4087, 1.0
      %v4203 = vadd.f32 %v4089, 1.0
      %v4204 = vadd.f32 %v4091, 1.0
      %v4205 = vadd.f32 %v4093, 1.0
      %v4206 = vadd.f32 %v4095, 1.0
      %v4207 = vadd.f32 %v4097, 1.0
      %v4208 = vadd.f32 %v4099, 1.0
      %v4209 = vadd.f32 %v4101, 1.0
      %v4210 = vadd.f32 %v4103, 1.0
      %v4211 = vadd.f32 %v4105, 1.0
      %v4212 = vadd.f32 %v4107, 1.0
      %v4213 = vadd.f32 %v4109, 1.0
      %v4214 = vadd.f32 %v4111, 1.0
      %v4215 = vadd.f32 %v4113, 1.0
      %v4216 = vadd.f32 %v4115, 1.0
      %v4217 = vadd.f32 %v4117, 1.0
      %v4218 = vadd.f32 %v4119, 1.0
      %v4219 = vadd.f32 %v4121, 1.0
      %v4220 = vadd.f32 %v4123, 1.0
      %v4221 = vadd.f32 %v4125, 1.0
      %v4222 = vadd.f32 %v4127, 1.0
      %v4223 = vadd.f32 %v4129, 1.0
      %v4224 = vadd.f32 %v4131, 1.0
      %v4225 = vadd.f32 %v4133, 1.0
      %v4226 = vadd.f32 %v4135, 1.0
      %v4227 = vadd.f32 %v4137, 1.0
      %v4228 = vadd.f32 %v4139, 1.0
      %v4229 = vadd.f32 %v4141, 1.0
      %v4230 = vadd.f32 %v4143, 1.0
      %v4231 = vadd.f32 %v4145, 1.0
      %v4232 = vadd.f32 %v4147, 1.0
      %v4233 = vadd.f32 %v4149, 1.0
      %v4234 = vadd.f32 %v4151, 1.0
      %v4235 = vadd.f32 %v4153, 1.0
      %v4236 = vadd.f32 %v4155, 1.0
      %v4237 = vadd.f32 %v4157, 1.0
      %v4238 = vadd.f32 %v4159, 1.0
      %v4239 = vadd.f32 %v4161, 1.0
      %v4240 = vadd.f32 %v4163, 1.0
      %v4241 = vadd.f32 %v4165, 1.0
      %v4242 = vadd.f32 %v4167, 1.0
      %v4243 = vadd.f32 %v4169, 1.0
      %v4244 = vadd.f32 %v4171, 1.0
      %v4245 = vadd.f32 %v4173, 1.0
      %v4246 = vadd.f32 %v4175, 1.0
      %v4247 = vadd.f32 %v4177, 1.0
      %v4248 = vadd.f32 %v4179, 1.0
      %v4249 = vadd.f32 %v4181, 1.0
      %v4250 = vadd.f32 %v4183, 1.0
      %v4251 = vadd.f32 %v4185, 1.0
      %v4252 = vadd.f32 %v4187, 1.0
      %v4253 = vadd.f32 %v4189, 1.0
      %v4254 = vrcp.pop %v4190
      %v4255 = vmul.f32 1.0, %v4254
      %v4256 = vrcp.pop %v4191
      %v4257 = vmul.f32 1.0, %v4256
      %v4258 = vrcp.pop %v4192
      %v4259 = vmul.f32 1.0, %v4258
      %v4260 = vrcp.pop %v4193
      %v4261 = vmul.f32 1.0, %v4260
      %v4262 = vrcp.pop %v4194
      %v4263 = vmul.f32 1.0, %v4262
      %v4264 = vrcp.pop %v4195
      %v4265 = vmul.f32 1.0, %v4264
      %v4266 = vrcp.pop %v4196
      %v4267 = vmul.f32 1.0, %v4266
      %v4268 = vrcp.pop %v4197
      %v4269 = vmul.f32 1.0, %v4268
      %v4270 = vrcp.pop %v4198
      %v4271 = vmul.f32 1.0, %v4270
      %v4272 = vrcp.pop %v4199
      %v4273 = vmul.f32 1.0, %v4272
      %v4274 = vrcp.pop %v4200
      %v4275 = vmul.f32 1.0, %v4274
      %v4276 = vrcp.pop %v4201
      %v4277 = vmul.f32 1.0, %v4276
      %v4278 = vrcp.pop %v4202
      %v4279 = vmul.f32 1.0, %v4278
      %v4280 = vrcp.pop %v4203
      %v4281 = vmul.f32 1.0, %v4280
      %v4282 = vrcp.pop %v4204
      %v4283 = vmul.f32 1.0, %v4282
      %v4284 = vrcp.pop %v4205
      %v4285 = vmul.f32 1.0, %v4284
      %v4286 = vrcp.pop %v4206
      %v4287 = vmul.f32 1.0, %v4286
      %v4288 = vrcp.pop %v4207
      %v4289 = vmul.f32 1.0, %v4288
      %v4290 = vrcp.pop %v4208
      %v4291 = vmul.f32 1.0, %v4290
      %v4292 = vrcp.pop %v4209
      %v4293 = vmul.f32 1.0, %v4292
      %v4294 = vrcp.pop %v4210
      %v4295 = vmul.f32 1.0, %v4294
      %v4296 = vrcp.pop %v4211
      %v4297 = vmul.f32 1.0, %v4296
      %v4298 = vrcp.pop %v4212
      %v4299 = vmul.f32 1.0, %v4298
      %v4300 = vrcp.pop %v4213
      %v4301 = vmul.f32 1.0, %v4300
      %v4302 = vrcp.pop %v4214
      %v4303 = vmul.f32 1.0, %v4302
      %v4304 = vrcp.pop %v4215
      %v4305 = vmul.f32 1.0, %v4304
      %v4306 = vrcp.pop %v4216
      %v4307 = vmul.f32 1.0, %v4306
      %v4308 = vrcp.pop %v4217
      %v4309 = vmul.f32 1.0, %v4308
      %v4310 = vrcp.pop %v4218
      %v4311 = vmul.f32 1.0, %v4310
      %v4312 = vrcp.pop %v4219
      %v4313 = vmul.f32 1.0, %v4312
      %v4314 = vrcp.pop %v4220
      %v4315 = vmul.f32 1.0, %v4314
      %v4316 = vrcp.pop %v4221
      %v4317 = vmul.f32 1.0, %v4316
      %v4318 = vrcp.pop %v4222
      %v4319 = vmul.f32 1.0, %v4318
      %v4320 = vrcp.pop %v4223
      %v4321 = vmul.f32 1.0, %v4320
      %v4322 = vrcp.pop %v4224
      %v4323 = vmul.f32 1.0, %v4322
      %v4324 = vrcp.pop %v4225
      %v4325 = vmul.f32 1.0, %v4324
      %v4326 = vrcp.pop %v4226
      %v4327 = vmul.f32 1.0, %v4326
      %v4328 = vrcp.pop %v4227
      %v4329 = vmul.f32 1.0, %v4328
      %v4330 = vrcp.pop %v4228
      %v4331 = vmul.f32 1.0, %v4330
      %v4332 = vrcp.pop %v4229
      %v4333 = vmul.f32 1.0, %v4332
      %v4334 = vrcp.pop %v4230
      %v4335 = vmul.f32 1.0, %v4334
      %v4336 = vrcp.pop %v4231
      %v4337 = vmul.f32 1.0, %v4336
      %v4338 = vrcp.pop %v4232
      %v4339 = vmul.f32 1.0, %v4338
      %v4340 = vrcp.pop %v4233
      %v4341 = vmul.f32 1.0, %v4340
      %v4342 = vrcp.pop %v4234
      %v4343 = vmul.f32 1.0, %v4342
      %v4344 = vrcp.pop %v4235
      %v4345 = vmul.f32 1.0, %v4344
      %v4346 = vrcp.pop %v4236
      %v4347 = vmul.f32 1.0, %v4346
      %v4348 = vrcp.pop %v4237
      %v4349 = vmul.f32 1.0, %v4348
      %v4350 = vrcp.pop %v4238
      %v4351 = vmul.f32 1.0, %v4350
      %v4352 = vrcp.pop %v4239
      %v4353 = vmul.f32 1.0, %v4352
      %v4354 = vrcp.pop %v4240
      %v4355 = vmul.f32 1.0, %v4354
      %v4356 = vrcp.pop %v4241
      %v4357 = vmul.f32 1.0, %v4356
      %v4358 = vrcp.pop %v4242
      %v4359 = vmul.f32 1.0, %v4358
      %v4360 = vrcp.pop %v4243
      %v4361 = vmul.f32 1.0, %v4360
      %v4362 = vrcp.pop %v4244
      %v4363 = vmul.f32 1.0, %v4362
      %v4364 = vrcp.pop %v4245
      %v4365 = vmul.f32 1.0, %v4364
      %v4366 = vrcp.pop %v4246
      %v4367 = vmul.f32 1.0, %v4366
      %v4368 = vrcp.pop %v4247
      %v4369 = vmul.f32 1.0, %v4368
      %v4370 = vrcp.pop %v4248
      %v4371 = vmul.f32 1.0, %v4370
      %v4372 = vrcp.pop %v4249
      %v4373 = vmul.f32 1.0, %v4372
      %v4374 = vrcp.pop %v4250
      %v4375 = vmul.f32 1.0, %v4374
      %v4376 = vrcp.pop %v4251
      %v4377 = vmul.f32 1.0, %v4376
      %v4378 = vrcp.pop %v4252
      %v4379 = vmul.f32 1.0, %v4378
      %v4380 = vrcp.pop %v4253
      %v4381 = vmul.f32 1.0, %v4380
      %v4382 = vtanh.pop %v3931
      %v4383 = vtanh.pop %v3932
      %v4384 = vtanh.pop %v3933
      %v4385 = vtanh.pop %v3934
      %v4386 = vtanh.pop %v3935
      %v4387 = vtanh.pop %v3936
      %v4388 = vtanh.pop %v3937
      %v4389 = vtanh.pop %v3938
      %v4390 = vtanh.pop %v3939
      %v4391 = vtanh.pop %v3940
      %v4392 = vtanh.pop %v3941
      %v4393 = vtanh.pop %v3942
      %v4394 = vtanh.pop %v3943
      %v4395 = vtanh.pop %v3944
      %v4396 = vtanh.pop %v3945
      %v4397 = vtanh.pop %v3946
      %v4398 = vtanh.pop %v3947
      %v4399 = vtanh.pop %v3948
      %v4400 = vtanh.pop %v3949
      %v4401 = vtanh.pop %v3950
      %v4402 = vtanh.pop %v3951
      %v4403 = vtanh.pop %v3952
      %v4404 = vtanh.pop %v3953
      %v4405 = vtanh.pop %v3954
      %v4406 = vtanh.pop %v3955
      %v4407 = vtanh.pop %v3956
      %v4408 = vtanh.pop %v3957
      %v4409 = vtanh.pop %v3958
      %v4410 = vtanh.pop %v3959
      %v4411 = vtanh.pop %v3960
      %v4412 = vtanh.pop %v3961
      %v4413 = vtanh.pop %v3962
      %v4414 = vtanh.pop %v3963
      %v4415 = vtanh.pop %v3964
      %v4416 = vtanh.pop %v3965
      %v4417 = vtanh.pop %v3966
      %v4418 = vtanh.pop %v3967
      %v4419 = vtanh.pop %v3968
      %v4420 = vtanh.pop %v3969
      %v4421 = vtanh.pop %v3970
      %v4422 = vtanh.pop %v3971
      %v4423 = vtanh.pop %v3972
      %v4424 = vtanh.pop %v3973
      %v4425 = vtanh.pop %v3974
      %v4426 = vtanh.pop %v3975
      %v4427 = vtanh.pop %v3976
      %v4428 = vtanh.pop %v3977
      %v4429 = vtanh.pop %v3978
      %v4430 = vtanh.pop %v3979
      %v4431 = vtanh.pop %v3980
      %v4432 = vtanh.pop %v3981
      %v4433 = vtanh.pop %v3982
      %v4434 = vtanh.pop %v3983
      %v4435 = vtanh.pop %v3984
      %v4436 = vtanh.pop %v3985
      %v4437 = vtanh.pop %v3986
      %v4438 = vtanh.pop %v3987
      %v4439 = vtanh.pop %v3988
      %v4440 = vtanh.pop %v3989
      %v4441 = vtanh.pop %v3990
      %v4442 = vtanh.pop %v3991
      %v4443 = vtanh.pop %v3992
      %v4444 = vtanh.pop %v3993
      %v4445 = vtanh.pop %v3994
      %v4446 = vsel %vm3997, %v4255, %v4382
      %v4447 = vsel %vm3997, %v4257, %v4383
      %v4448 = vsel %vm3997, %v4259, %v4384
      %v4449 = vsel %vm3997, %v4261, %v4385
      %v4450 = vsel %vm3997, %v4263, %v4386
      %v4451 = vsel %vm3997, %v4265, %v4387
      %v4452 = vsel %vm3997, %v4267, %v4388
      %v4453 = vsel %vm3997, %v4269, %v4389
      %v4454 = vsel %vm3997, %v4271, %v4390
      %v4455 = vsel %vm3997, %v4273, %v4391
      %v4456 = vsel %vm3997, %v4275, %v4392
      %v4457 = vsel %vm3997, %v4277, %v4393
      %v4458 = vsel %vm3997, %v4279, %v4394
      %v4459 = vsel %vm3997, %v4281, %v4395
      %v4460 = vsel %vm3997, %v4283, %v4396
      %v4461 = vsel %vm3997, %v4285, %v4397
      %v4462 = vsel %vm3997, %v4287, %v4398
      %v4463 = vsel %vm3997, %v4289, %v4399
      %v4464 = vsel %vm3997, %v4291, %v4400
      %v4465 = vsel %vm3997, %v4293, %v4401
      %v4466 = vsel %vm3997, %v4295, %v4402
      %v4467 = vsel %vm3997, %v4297, %v4403
      %v4468 = vsel %vm3997, %v4299, %v4404
      %v4469 = vsel %vm3997, %v4301, %v4405
      %v4470 = vsel %vm3997, %v4303, %v4406
      %v4471 = vsel %vm3997, %v4305, %v4407
      %v4472 = vsel %vm3997, %v4307, %v4408
      %v4473 = vsel %vm3997, %v4309, %v4409
      %v4474 = vsel %vm3997, %v4311, %v4410
      %v4475 = vsel %vm3997, %v4313, %v4411
      %v4476 = vsel %vm3997, %v4315, %v4412
      %v4477 = vsel %vm3997, %v4317, %v4413
      %v4478 = vsel %vm3997, %v4319, %v4414
      %v4479 = vsel %vm3997, %v4321, %v4415
      %v4480 = vsel %vm3997, %v4323, %v4416
      %v4481 = vsel %vm3997, %v4325, %v4417
      %v4482 = vsel %vm3997, %v4327, %v4418
      %v4483 = vsel %vm3997, %v4329, %v4419
      %v4484 = vsel %vm3997, %v4331, %v4420
      %v4485 = vsel %vm3997, %v4333, %v4421
      %v4486 = vsel %vm3997, %v4335, %v4422
      %v4487 = vsel %vm3997, %v4337, %v4423
      %v4488 = vsel %vm3997, %v4339, %v4424
      %v4489 = vsel %vm3997, %v4341, %v4425
      %v4490 = vsel %vm3997, %v4343, %v4426
      %v4491 = vsel %vm3997, %v4345, %v4427
      %v4492 = vsel %vm3997, %v4347, %v4428
      %v4493 = vsel %vm3997, %v4349, %v4429
      %v4494 = vsel %vm3997, %v4351, %v4430
      %v4495 = vsel %vm3997, %v4353, %v4431
      %v4496 = vsel %vm3997, %v4355, %v4432
      %v4497 = vsel %vm3997, %v4357, %v4433
      %v4498 = vsel %vm3997, %v4359, %v4434
      %v4499 = vsel %vm3997, %v4361, %v4435
      %v4500 = vsel %vm3997, %v4363, %v4436
      %v4501 = vsel %vm3997, %v4365, %v4437
      %v4502 = vsel %vm3997, %v4367, %v4438
      %v4503 = vsel %vm3997, %v4369, %v4439
      %v4504 = vsel %vm3997, %v4371, %v4440
      %v4505 = vsel %vm3997, %v4373, %v4441
      %v4506 = vsel %vm3997, %v4375, %v4442
      %v4507 = vsel %vm3997, %v4377, %v4443
      %v4508 = vsel %vm3997, %v4379, %v4444
      %v4509 = vsel %vm3997, %v4381, %v4445
      %v4510 = vld [vmem:[#allocation3] sm:$0xff]
      %v4511 = vld [vmem:[#allocation3 + $0x8] sm:$0xff]
      %v4512 = vld [vmem:[#allocation3 + $0x10] sm:$0xff]
      %v4513 = vld [vmem:[#allocation3 + $0x18] sm:$0xff]
      %v4514 = vld [vmem:[#allocation3 + $0x20] sm:$0xff]
      %v4515 = vld [vmem:[#allocation3 + $0x28] sm:$0xff]
      %v4516 = vld [vmem:[#allocation3 + $0x30] sm:$0xff]
      %v4517 = vld [vmem:[#allocation3 + $0x38] sm:$0xff]
      %v4518 = vld [vmem:[#allocation3 + $0x40] sm:$0xff]
      %v4519 = vld [vmem:[#allocation3 + $0x48] sm:$0xff]
      %v4520 = vld [vmem:[#allocation3 + $0x50] sm:$0xff]
      %v4521 = vld [vmem:[#allocation3 + $0x58] sm:$0xff]
      %v4522 = vld [vmem:[#allocation3 + $0x60] sm:$0xff]
      %v4523 = vld [vmem:[#allocation3 + $0x68] sm:$0xff]
      %v4524 = vld [vmem:[#allocation3 + $0x70] sm:$0xff]
      %v4525 = vld [vmem:[#allocation3 + $0x78] sm:$0xff]
      %v4526 = vld [vmem:[#allocation3 + $0x80] sm:$0xff]
      %v4527 = vld [vmem:[#allocation3 + $0x88] sm:$0xff]
      %v4528 = vld [vmem:[#allocation3 + $0x90] sm:$0xff]
      %v4529 = vld [vmem:[#allocation3 + $0x98] sm:$0xff]
      %v4530 = vld [vmem:[#allocation3 + $0xa0] sm:$0xff]
      %v4531 = vld [vmem:[#allocation3 + $0xa8] sm:$0xff]
      %v4532 = vld [vmem:[#allocation3 + $0xb0] sm:$0xff]
      %v4533 = vld [vmem:[#allocation3 + $0xb8] sm:$0xff]
      %v4534 = vld [vmem:[#allocation3 + $0xc0] sm:$0xff]
      %v4535 = vld [vmem:[#allocation3 + $0xc8] sm:$0xff]
      %v4536 = vld [vmem:[#allocation3 + $0xd0] sm:$0xff]
      %v4537 = vld [vmem:[#allocation3 + $0xd8] sm:$0xff]
      %v4538 = vld [vmem:[#allocation3 + $0xe0] sm:$0xff]
      %v4539 = vld [vmem:[#allocation3 + $0xe8] sm:$0xff]
      %v4540 = vld [vmem:[#allocation3 + $0xf0] sm:$0xff]
      %v4541 = vld [vmem:[#allocation3 + $0xf8] sm:$0xff]
      %v4542 = vld [vmem:[#allocation3 + $0x100] sm:$0xff]
      %v4543 = vld [vmem:[#allocation3 + $0x108] sm:$0xff]
      %v4544 = vld [vmem:[#allocation3 + $0x110] sm:$0xff]
      %v4545 = vld [vmem:[#allocation3 + $0x118] sm:$0xff]
      %v4546 = vld [vmem:[#allocation3 + $0x120] sm:$0xff]
      %v4547 = vld [vmem:[#allocation3 + $0x128] sm:$0xff]
      %v4548 = vld [vmem:[#allocation3 + $0x130] sm:$0xff]
      %v4549 = vld [vmem:[#allocation3 + $0x138] sm:$0xff]
      %v4550 = vld [vmem:[#allocation3 + $0x140] sm:$0xff]
      %v4551 = vld [vmem:[#allocation3 + $0x148] sm:$0xff]
      %v4552 = vld [vmem:[#allocation3 + $0x150] sm:$0xff]
      %v4553 = vld [vmem:[#allocation3 + $0x158] sm:$0xff]
      %v4554 = vld [vmem:[#allocation3 + $0x160] sm:$0xff]
      %v4555 = vld [vmem:[#allocation3 + $0x168] sm:$0xff]
      %v4556 = vld [vmem:[#allocation3 + $0x170] sm:$0xff]
      %v4557 = vld [vmem:[#allocation3 + $0x178] sm:$0xff]
      %v4558 = vld [vmem:[#allocation3 + $0x180] sm:$0xff]
      %v4559 = vld [vmem:[#allocation3 + $0x188] sm:$0xff]
      %v4560 = vld [vmem:[#allocation3 + $0x190] sm:$0xff]
      %v4561 = vld [vmem:[#allocation3 + $0x198] sm:$0xff]
      %v4562 = vld [vmem:[#allocation3 + $0x1a0] sm:$0xff]
      %v4563 = vld [vmem:[#allocation3 + $0x1a8] sm:$0xff]
      %v4564 = vld [vmem:[#allocation3 + $0x1b0] sm:$0xff]
      %v4565 = vld [vmem:[#allocation3 + $0x1b8] sm:$0xff]
      %v4566 = vld [vmem:[#allocation3 + $0x1c0] sm:$0xff]
      %v4567 = vld [vmem:[#allocation3 + $0x1c8] sm:$0xff]
      %v4568 = vld [vmem:[#allocation3 + $0x1d0] sm:$0xff]
      %v4569 = vld [vmem:[#allocation3 + $0x1d8] sm:$0xff]
      %v4570 = vld [vmem:[#allocation3 + $0x1e0] sm:$0xff]
      %v4571 = vld [vmem:[#allocation3 + $0x1e8] sm:$0xff]
      %v4572 = vld [vmem:[#allocation3 + $0x1f0] sm:$0xff]
      %v4573 = vld [vmem:[#allocation3 + $0x1f8] sm:$0xff]
      %4638 = vrot.lane.b32.xlu0 %v4510, 32
      %v4639 = vpop.permute.xlu0 %4638
      %4640 = vrot.lane.b32.xlu0 %v4511, 32
      %v4641 = vpop.permute.xlu0 %4640
      %4642 = vrot.lane.b32.xlu0 %v4512, 32
      %v4643 = vpop.permute.xlu0 %4642
      %4644 = vrot.lane.b32.xlu0 %v4513, 32
      %v4645 = vpop.permute.xlu0 %4644
      %4646 = vrot.lane.b32.xlu0 %v4514, 32
      %v4647 = vpop.permute.xlu0 %4646
      %4648 = vrot.lane.b32.xlu0 %v4515, 32
      %v4649 = vpop.permute.xlu0 %4648
      %4650 = vrot.lane.b32.xlu0 %v4516, 32
      %v4651 = vpop.permute.xlu0 %4650
      %4652 = vrot.lane.b32.xlu0 %v4517, 32
      %v4653 = vpop.permute.xlu0 %4652
      %4654 = vrot.lane.b32.xlu0 %v4518, 32
      %v4655 = vpop.permute.xlu0 %4654
      %4656 = vrot.lane.b32.xlu0 %v4519, 32
      %v4657 = vpop.permute.xlu0 %4656
      %4658 = vrot.lane.b32.xlu0 %v4520, 32
      %v4659 = vpop.permute.xlu0 %4658
      %4660 = vrot.lane.b32.xlu0 %v4521, 32
      %v4661 = vpop.permute.xlu0 %4660
      %4662 = vrot.lane.b32.xlu0 %v4522, 32
      %v4663 = vpop.permute.xlu0 %4662
      %4664 = vrot.lane.b32.xlu0 %v4523, 32
      %v4665 = vpop.permute.xlu0 %4664
      %4666 = vrot.lane.b32.xlu0 %v4524, 32
      %v4667 = vpop.permute.xlu0 %4666
      %4668 = vrot.lane.b32.xlu0 %v4525, 32
      %v4669 = vpop.permute.xlu0 %4668
      %4670 = vrot.lane.b32.xlu0 %v4526, 32
      %v4671 = vpop.permute.xlu0 %4670
      %4672 = vrot.lane.b32.xlu0 %v4527, 32
      %v4673 = vpop.permute.xlu0 %4672
      %4674 = vrot.lane.b32.xlu0 %v4528, 32
      %v4675 = vpop.permute.xlu0 %4674
      %4676 = vrot.lane.b32.xlu0 %v4529, 32
      %v4677 = vpop.permute.xlu0 %4676
      %4678 = vrot.lane.b32.xlu0 %v4530, 32
      %v4679 = vpop.permute.xlu0 %4678
      %4680 = vrot.lane.b32.xlu0 %v4531, 32
      %v4681 = vpop.permute.xlu0 %4680
      %4682 = vrot.lane.b32.xlu0 %v4532, 32
      %v4683 = vpop.permute.xlu0 %4682
      %4684 = vrot.lane.b32.xlu0 %v4533, 32
      %v4685 = vpop.permute.xlu0 %4684
      %4686 = vrot.lane.b32.xlu0 %v4534, 32
      %v4687 = vpop.permute.xlu0 %4686
      %4688 = vrot.lane.b32.xlu0 %v4535, 32
      %v4689 = vpop.permute.xlu0 %4688
      %4690 = vrot.lane.b32.xlu0 %v4536, 32
      %v4691 = vpop.permute.xlu0 %4690
      %4692 = vrot.lane.b32.xlu0 %v4537, 32
      %v4693 = vpop.permute.xlu0 %4692
      %4694 = vrot.lane.b32.xlu0 %v4538, 32
      %v4695 = vpop.permute.xlu0 %4694
      %4696 = vrot.lane.b32.xlu0 %v4539, 32
      %v4697 = vpop.permute.xlu0 %4696
      %4698 = vrot.lane.b32.xlu0 %v4540, 32
      %v4699 = vpop.permute.xlu0 %4698
      %4700 = vrot.lane.b32.xlu0 %v4541, 32
      %v4701 = vpop.permute.xlu0 %4700
      %4702 = vrot.lane.b32.xlu0 %v4542, 32
      %v4703 = vpop.permute.xlu0 %4702
      %4704 = vrot.lane.b32.xlu0 %v4543, 32
      %v4705 = vpop.permute.xlu0 %4704
      %4706 = vrot.lane.b32.xlu0 %v4544, 32
      %v4707 = vpop.permute.xlu0 %4706
      %4708 = vrot.lane.b32.xlu0 %v4545, 32
      %v4709 = vpop.permute.xlu0 %4708
      %4710 = vrot.lane.b32.xlu0 %v4546, 32
      %v4711 = vpop.permute.xlu0 %4710
      %4712 = vrot.lane.b32.xlu0 %v4547, 32
      %v4713 = vpop.permute.xlu0 %4712
      %4714 = vrot.lane.b32.xlu0 %v4548, 32
      %v4715 = vpop.permute.xlu0 %4714
      %4716 = vrot.lane.b32.xlu0 %v4549, 32
      %v4717 = vpop.permute.xlu0 %4716
      %4718 = vrot.lane.b32.xlu0 %v4550, 32
      %v4719 = vpop.permute.xlu0 %4718
      %4720 = vrot.lane.b32.xlu0 %v4551, 32
      %v4721 = vpop.permute.xlu0 %4720
      %4722 = vrot.lane.b32.xlu0 %v4552, 32
      %v4723 = vpop.permute.xlu0 %4722
      %4724 = vrot.lane.b32.xlu0 %v4553, 32
      %v4725 = vpop.permute.xlu0 %4724
      %4726 = vrot.lane.b32.xlu0 %v4554, 32
      %v4727 = vpop.permute.xlu0 %4726
      %4728 = vrot.lane.b32.xlu0 %v4555, 32
      %v4729 = vpop.permute.xlu0 %4728
      %4730 = vrot.lane.b32.xlu0 %v4556, 32
      %v4731 = vpop.permute.xlu0 %4730
      %4732 = vrot.lane.b32.xlu0 %v4557, 32
      %v4733 = vpop.permute.xlu0 %4732
      %4734 = vrot.lane.b32.xlu0 %v4558, 32
      %v4735 = vpop.permute.xlu0 %4734
      %4736 = vrot.lane.b32.xlu0 %v4559, 32
      %v4737 = vpop.permute.xlu0 %4736
      %4738 = vrot.lane.b32.xlu0 %v4560, 32
      %v4739 = vpop.permute.xlu0 %4738
      %4740 = vrot.lane.b32.xlu0 %v4561, 32
      %v4741 = vpop.permute.xlu0 %4740
      %4742 = vrot.lane.b32.xlu0 %v4562, 32
      %v4743 = vpop.permute.xlu0 %4742
      %4744 = vrot.lane.b32.xlu0 %v4563, 32
      %v4745 = vpop.permute.xlu0 %4744
      %4746 = vrot.lane.b32.xlu0 %v4564, 32
      %v4747 = vpop.permute.xlu0 %4746
      %4748 = vrot.lane.b32.xlu0 %v4565, 32
      %v4749 = vpop.permute.xlu0 %4748
      %4750 = vrot.lane.b32.xlu0 %v4566, 32
      %v4751 = vpop.permute.xlu0 %4750
      %4752 = vrot.lane.b32.xlu0 %v4567, 32
      %v4753 = vpop.permute.xlu0 %4752
      %4754 = vrot.lane.b32.xlu0 %v4568, 32
      %v4755 = vpop.permute.xlu0 %4754
      %4756 = vrot.lane.b32.xlu0 %v4569, 32
      %v4757 = vpop.permute.xlu0 %4756
      %4758 = vrot.lane.b32.xlu0 %v4570, 32
      %v4759 = vpop.permute.xlu0 %4758
      %4760 = vrot.lane.b32.xlu0 %v4571, 32
      %v4761 = vpop.permute.xlu0 %4760
      %4762 = vrot.lane.b32.xlu0 %v4572, 32
      %v4763 = vpop.permute.xlu0 %4762
      %4764 = vrot.lane.b32.xlu0 %v4573, 32
      %v4765 = vpop.permute.xlu0 %4764
      %v4830 = vmul.f32 %v4446, %v4639
      %v4831 = vmul.f32 %v4447, %v4641
      %v4832 = vmul.f32 %v4448, %v4643
      %v4833 = vmul.f32 %v4449, %v4645
      %v4834 = vmul.f32 %v4450, %v4647
      %v4835 = vmul.f32 %v4451, %v4649
      %v4836 = vmul.f32 %v4452, %v4651
      %v4837 = vmul.f32 %v4453, %v4653
      %v4838 = vmul.f32 %v4454, %v4655
      %v4839 = vmul.f32 %v4455, %v4657
      %v4840 = vmul.f32 %v4456, %v4659
      %v4841 = vmul.f32 %v4457, %v4661
      %v4842 = vmul.f32 %v4458, %v4663
      %v4843 = vmul.f32 %v4459, %v4665
      %v4844 = vmul.f32 %v4460, %v4667
      %v4845 = vmul.f32 %v4461, %v4669
      %v4846 = vmul.f32 %v4462, %v4671
      %v4847 = vmul.f32 %v4463, %v4673
      %v4848 = vmul.f32 %v4464, %v4675
      %v4849 = vmul.f32 %v4465, %v4677
      %v4850 = vmul.f32 %v4466, %v4679
      %v4851 = vmul.f32 %v4467, %v4681
      %v4852 = vmul.f32 %v4468, %v4683
      %v4853 = vmul.f32 %v4469, %v4685
      %v4854 = vmul.f32 %v4470, %v4687
      %v4855 = vmul.f32 %v4471, %v4689
      %v4856 = vmul.f32 %v4472, %v4691
      %v4857 = vmul.f32 %v4473, %v4693
      %v4858 = vmul.f32 %v4474, %v4695
      %v4859 = vmul.f32 %v4475, %v4697
      %v4860 = vmul.f32 %v4476, %v4699
      %v4861 = vmul.f32 %v4477, %v4701
      %v4862 = vmul.f32 %v4478, %v4703
      %v4863 = vmul.f32 %v4479, %v4705
      %v4864 = vmul.f32 %v4480, %v4707
      %v4865 = vmul.f32 %v4481, %v4709
      %v4866 = vmul.f32 %v4482, %v4711
      %v4867 = vmul.f32 %v4483, %v4713
      %v4868 = vmul.f32 %v4484, %v4715
      %v4869 = vmul.f32 %v4485, %v4717
      %v4870 = vmul.f32 %v4486, %v4719
      %v4871 = vmul.f32 %v4487, %v4721
      %v4872 = vmul.f32 %v4488, %v4723
      %v4873 = vmul.f32 %v4489, %v4725
      %v4874 = vmul.f32 %v4490, %v4727
      %v4875 = vmul.f32 %v4491, %v4729
      %v4876 = vmul.f32 %v4492, %v4731
      %v4877 = vmul.f32 %v4493, %v4733
      %v4878 = vmul.f32 %v4494, %v4735
      %v4879 = vmul.f32 %v4495, %v4737
      %v4880 = vmul.f32 %v4496, %v4739
      %v4881 = vmul.f32 %v4497, %v4741
      %v4882 = vmul.f32 %v4498, %v4743
      %v4883 = vmul.f32 %v4499, %v4745
      %v4884 = vmul.f32 %v4500, %v4747
      %v4885 = vmul.f32 %v4501, %v4749
      %v4886 = vmul.f32 %v4502, %v4751
      %v4887 = vmul.f32 %v4503, %v4753
      %v4888 = vmul.f32 %v4504, %v4755
      %v4889 = vmul.f32 %v4505, %v4757
      %v4890 = vmul.f32 %v4506, %v4759
      %v4891 = vmul.f32 %v4507, %v4761
      %v4892 = vmul.f32 %v4508, %v4763
      %v4893 = vmul.f32 %v4509, %v4765
      %4958 = vrot.lane.b32.xlu0 %v4446, 32
      %v4959 = vpop.permute.xlu0 %4958
      %4960 = vrot.lane.b32.xlu0 %v4447, 32
      %v4961 = vpop.permute.xlu0 %4960
      %4962 = vrot.lane.b32.xlu0 %v4448, 32
      %v4963 = vpop.permute.xlu0 %4962
      %4964 = vrot.lane.b32.xlu0 %v4449, 32
      %v4965 = vpop.permute.xlu0 %4964
      %4966 = vrot.lane.b32.xlu0 %v4450, 32
      %v4967 = vpop.permute.xlu0 %4966
      %4968 = vrot.lane.b32.xlu0 %v4451, 32
      %v4969 = vpop.permute.xlu0 %4968
      %4970 = vrot.lane.b32.xlu0 %v4452, 32
      %v4971 = vpop.permute.xlu0 %4970
      %4972 = vrot.lane.b32.xlu0 %v4453, 32
      %v4973 = vpop.permute.xlu0 %4972
      %4974 = vrot.lane.b32.xlu0 %v4454, 32
      %v4975 = vpop.permute.xlu0 %4974
      %4976 = vrot.lane.b32.xlu0 %v4455, 32
      %v4977 = vpop.permute.xlu0 %4976
      %4978 = vrot.lane.b32.xlu0 %v4456, 32
      %v4979 = vpop.permute.xlu0 %4978
      %4980 = vrot.lane.b32.xlu0 %v4457, 32
      %v4981 = vpop.permute.xlu0 %4980
      %4982 = vrot.lane.b32.xlu0 %v4458, 32
      %v4983 = vpop.permute.xlu0 %4982
      %4984 = vrot.lane.b32.xlu0 %v4459, 32
      %v4985 = vpop.permute.xlu0 %4984
      %4986 = vrot.lane.b32.xlu0 %v4460, 32
      %v4987 = vpop.permute.xlu0 %4986
      %4988 = vrot.lane.b32.xlu0 %v4461, 32
      %v4989 = vpop.permute.xlu0 %4988
      %4990 = vrot.lane.b32.xlu0 %v4462, 32
      %v4991 = vpop.permute.xlu0 %4990
      %4992 = vrot.lane.b32.xlu0 %v4463, 32
      %v4993 = vpop.permute.xlu0 %4992
      %4994 = vrot.lane.b32.xlu0 %v4464, 32
      %v4995 = vpop.permute.xlu0 %4994
      %4996 = vrot.lane.b32.xlu0 %v4465, 32
      %v4997 = vpop.permute.xlu0 %4996
      %4998 = vrot.lane.b32.xlu0 %v4466, 32
      %v4999 = vpop.permute.xlu0 %4998
      %5000 = vrot.lane.b32.xlu0 %v4467, 32
      %v5001 = vpop.permute.xlu0 %5000
      %5002 = vrot.lane.b32.xlu0 %v4468, 32
      %v5003 = vpop.permute.xlu0 %5002
      %5004 = vrot.lane.b32.xlu0 %v4469, 32
      %v5005 = vpop.permute.xlu0 %5004
      %5006 = vrot.lane.b32.xlu0 %v4470, 32
      %v5007 = vpop.permute.xlu0 %5006
      %5008 = vrot.lane.b32.xlu0 %v4471, 32
      %v5009 = vpop.permute.xlu0 %5008
      %5010 = vrot.lane.b32.xlu0 %v4472, 32
      %v5011 = vpop.permute.xlu0 %5010
      %5012 = vrot.lane.b32.xlu0 %v4473, 32
      %v5013 = vpop.permute.xlu0 %5012
      %5014 = vrot.lane.b32.xlu0 %v4474, 32
      %v5015 = vpop.permute.xlu0 %5014
      %5016 = vrot.lane.b32.xlu0 %v4475, 32
      %v5017 = vpop.permute.xlu0 %5016
      %5018 = vrot.lane.b32.xlu0 %v4476, 32
      %v5019 = vpop.permute.xlu0 %5018
      %5020 = vrot.lane.b32.xlu0 %v4477, 32
      %v5021 = vpop.permute.xlu0 %5020
      %5022 = vrot.lane.b32.xlu0 %v4478, 32
      %v5023 = vpop.permute.xlu0 %5022
      %5024 = vrot.lane.b32.xlu0 %v4479, 32
      %v5025 = vpop.permute.xlu0 %5024
      %5026 = vrot.lane.b32.xlu0 %v4480, 32
      %v5027 = vpop.permute.xlu0 %5026
      %5028 = vrot.lane.b32.xlu0 %v4481, 32
      %v5029 = vpop.permute.xlu0 %5028
      %5030 = vrot.lane.b32.xlu0 %v4482, 32
      %v5031 = vpop.permute.xlu0 %5030
      %5032 = vrot.lane.b32.xlu0 %v4483, 32
      %v5033 = vpop.permute.xlu0 %5032
      %5034 = vrot.lane.b32.xlu0 %v4484, 32
      %v5035 = vpop.permute.xlu0 %5034
      %5036 = vrot.lane.b32.xlu0 %v4485, 32
      %v5037 = vpop.permute.xlu0 %5036
      %5038 = vrot.lane.b32.xlu0 %v4486, 32
      %v5039 = vpop.permute.xlu0 %5038
      %5040 = vrot.lane.b32.xlu0 %v4487, 32
      %v5041 = vpop.permute.xlu0 %5040
      %5042 = vrot.lane.b32.xlu0 %v4488, 32
      %v5043 = vpop.permute.xlu0 %5042
      %5044 = vrot.lane.b32.xlu0 %v4489, 32
      %v5045 = vpop.permute.xlu0 %5044
      %5046 = vrot.lane.b32.xlu0 %v4490, 32
      %v5047 = vpop.permute.xlu0 %5046
      %5048 = vrot.lane.b32.xlu0 %v4491, 32
      %v5049 = vpop.permute.xlu0 %5048
      %5050 = vrot.lane.b32.xlu0 %v4492, 32
      %v5051 = vpop.permute.xlu0 %5050
      %5052 = vrot.lane.b32.xlu0 %v4493, 32
      %v5053 = vpop.permute.xlu0 %5052
      %5054 = vrot.lane.b32.xlu0 %v4494, 32
      %v5055 = vpop.permute.xlu0 %5054
      %5056 = vrot.lane.b32.xlu0 %v4495, 32
      %v5057 = vpop.permute.xlu0 %5056
      %5058 = vrot.lane.b32.xlu0 %v4496, 32
      %v5059 = vpop.permute.xlu0 %5058
      %5060 = vrot.lane.b32.xlu0 %v4497, 32
      %v5061 = vpop.permute.xlu0 %5060
      %5062 = vrot.lane.b32.xlu0 %v4498, 32
      %v5063 = vpop.permute.xlu0 %5062
      %5064 = vrot.lane.b32.xlu0 %v4499, 32
      %v5065 = vpop.permute.xlu0 %5064
      %5066 = vrot.lane.b32.xlu0 %v4500, 32
      %v5067 = vpop.permute.xlu0 %5066
      %5068 = vrot.lane.b32.xlu0 %v4501, 32
      %v5069 = vpop.permute.xlu0 %5068
      %5070 = vrot.lane.b32.xlu0 %v4502, 32
      %v5071 = vpop.permute.xlu0 %5070
      %5072 = vrot.lane.b32.xlu0 %v4503, 32
      %v5073 = vpop.permute.xlu0 %5072
      %5074 = vrot.lane.b32.xlu0 %v4504, 32
      %v5075 = vpop.permute.xlu0 %5074
      %5076 = vrot.lane.b32.xlu0 %v4505, 32
      %v5077 = vpop.permute.xlu0 %5076
      %5078 = vrot.lane.b32.xlu0 %v4506, 32
      %v5079 = vpop.permute.xlu0 %5078
      %5080 = vrot.lane.b32.xlu0 %v4507, 32
      %v5081 = vpop.permute.xlu0 %5080
      %5082 = vrot.lane.b32.xlu0 %v4508, 32
      %v5083 = vpop.permute.xlu0 %5082
      %5084 = vrot.lane.b32.xlu0 %v4509, 32
      %v5085 = vpop.permute.xlu0 %5084
      %v5150 = vmul.f32 %v4446, %v4959
      %v5151 = vmul.f32 %v4447, %v4961
      %v5152 = vmul.f32 %v4448, %v4963
      %v5153 = vmul.f32 %v4449, %v4965
      %v5154 = vmul.f32 %v4450, %v4967
      %v5155 = vmul.f32 %v4451, %v4969
      %v5156 = vmul.f32 %v4452, %v4971
      %v5157 = vmul.f32 %v4453, %v4973
      %v5158 = vmul.f32 %v4454, %v4975
      %v5159 = vmul.f32 %v4455, %v4977
      %v5160 = vmul.f32 %v4456, %v4979
      %v5161 = vmul.f32 %v4457, %v4981
      %v5162 = vmul.f32 %v4458, %v4983
      %v5163 = vmul.f32 %v4459, %v4985
      %v5164 = vmul.f32 %v4460, %v4987
      %v5165 = vmul.f32 %v4461, %v4989
      %v5166 = vmul.f32 %v4462, %v4991
      %v5167 = vmul.f32 %v4463, %v4993
      %v5168 = vmul.f32 %v4464, %v4995
      %v5169 = vmul.f32 %v4465, %v4997
      %v5170 = vmul.f32 %v4466, %v4999
      %v5171 = vmul.f32 %v4467, %v5001
      %v5172 = vmul.f32 %v4468, %v5003
      %v5173 = vmul.f32 %v4469, %v5005
      %v5174 = vmul.f32 %v4470, %v5007
      %v5175 = vmul.f32 %v4471, %v5009
      %v5176 = vmul.f32 %v4472, %v5011
      %v5177 = vmul.f32 %v4473, %v5013
      %v5178 = vmul.f32 %v4474, %v5015
      %v5179 = vmul.f32 %v4475, %v5017
      %v5180 = vmul.f32 %v4476, %v5019
      %v5181 = vmul.f32 %v4477, %v5021
      %v5182 = vmul.f32 %v4478, %v5023
      %v5183 = vmul.f32 %v4479, %v5025
      %v5184 = vmul.f32 %v4480, %v5027
      %v5185 = vmul.f32 %v4481, %v5029
      %v5186 = vmul.f32 %v4482, %v5031
      %v5187 = vmul.f32 %v4483, %v5033
      %v5188 = vmul.f32 %v4484, %v5035
      %v5189 = vmul.f32 %v4485, %v5037
      %v5190 = vmul.f32 %v4486, %v5039
      %v5191 = vmul.f32 %v4487, %v5041
      %v5192 = vmul.f32 %v4488, %v5043
      %v5193 = vmul.f32 %v4489, %v5045
      %v5194 = vmul.f32 %v4490, %v5047
      %v5195 = vmul.f32 %v4491, %v5049
      %v5196 = vmul.f32 %v4492, %v5051
      %v5197 = vmul.f32 %v4493, %v5053
      %v5198 = vmul.f32 %v4494, %v5055
      %v5199 = vmul.f32 %v4495, %v5057
      %v5200 = vmul.f32 %v4496, %v5059
      %v5201 = vmul.f32 %v4497, %v5061
      %v5202 = vmul.f32 %v4498, %v5063
      %v5203 = vmul.f32 %v4499, %v5065
      %v5204 = vmul.f32 %v4500, %v5067
      %v5205 = vmul.f32 %v4501, %v5069
      %v5206 = vmul.f32 %v4502, %v5071
      %v5207 = vmul.f32 %v4503, %v5073
      %v5208 = vmul.f32 %v4504, %v5075
      %v5209 = vmul.f32 %v4505, %v5077
      %v5210 = vmul.f32 %v4506, %v5079
      %v5211 = vmul.f32 %v4507, %v5081
      %v5212 = vmul.f32 %v4508, %v5083
      %v5213 = vmul.f32 %v4509, %v5085
      %5278 = vrot.lane.b32.xlu0 %v5150, 32
      %v5279 = vpop.permute.xlu0 %5278
      %5280 = vrot.lane.b32.xlu0 %v5151, 32
      %v5281 = vpop.permute.xlu0 %5280
      %5282 = vrot.lane.b32.xlu0 %v5152, 32
      %v5283 = vpop.permute.xlu0 %5282
      %5284 = vrot.lane.b32.xlu0 %v5153, 32
      %v5285 = vpop.permute.xlu0 %5284
      %5286 = vrot.lane.b32.xlu0 %v5154, 32
      %v5287 = vpop.permute.xlu0 %5286
      %5288 = vrot.lane.b32.xlu0 %v5155, 32
      %v5289 = vpop.permute.xlu0 %5288
      %5290 = vrot.lane.b32.xlu0 %v5156, 32
      %v5291 = vpop.permute.xlu0 %5290
      %5292 = vrot.lane.b32.xlu0 %v5157, 32
      %v5293 = vpop.permute.xlu0 %5292
      %5294 = vrot.lane.b32.xlu0 %v5158, 32
      %v5295 = vpop.permute.xlu0 %5294
      %5296 = vrot.lane.b32.xlu0 %v5159, 32
      %v5297 = vpop.permute.xlu0 %5296
      %5298 = vrot.lane.b32.xlu0 %v5160, 32
      %v5299 = vpop.permute.xlu0 %5298
      %5300 = vrot.lane.b32.xlu0 %v5161, 32
      %v5301 = vpop.permute.xlu0 %5300
      %5302 = vrot.lane.b32.xlu0 %v5162, 32
      %v5303 = vpop.permute.xlu0 %5302
      %5304 = vrot.lane.b32.xlu0 %v5163, 32
      %v5305 = vpop.permute.xlu0 %5304
      %5306 = vrot.lane.b32.xlu0 %v5164, 32
      %v5307 = vpop.permute.xlu0 %5306
      %5308 = vrot.lane.b32.xlu0 %v5165, 32
      %v5309 = vpop.permute.xlu0 %5308
      %5310 = vrot.lane.b32.xlu0 %v5166, 32
      %v5311 = vpop.permute.xlu0 %5310
      %5312 = vrot.lane.b32.xlu0 %v5167, 32
      %v5313 = vpop.permute.xlu0 %5312
      %5314 = vrot.lane.b32.xlu0 %v5168, 32
      %v5315 = vpop.permute.xlu0 %5314
      %5316 = vrot.lane.b32.xlu0 %v5169, 32
      %v5317 = vpop.permute.xlu0 %5316
      %5318 = vrot.lane.b32.xlu0 %v5170, 32
      %v5319 = vpop.permute.xlu0 %5318
      %5320 = vrot.lane.b32.xlu0 %v5171, 32
      %v5321 = vpop.permute.xlu0 %5320
      %5322 = vrot.lane.b32.xlu0 %v5172, 32
      %v5323 = vpop.permute.xlu0 %5322
      %5324 = vrot.lane.b32.xlu0 %v5173, 32
      %v5325 = vpop.permute.xlu0 %5324
      %5326 = vrot.lane.b32.xlu0 %v5174, 32
      %v5327 = vpop.permute.xlu0 %5326
      %5328 = vrot.lane.b32.xlu0 %v5175, 32
      %v5329 = vpop.permute.xlu0 %5328
      %5330 = vrot.lane.b32.xlu0 %v5176, 32
      %v5331 = vpop.permute.xlu0 %5330
      %5332 = vrot.lane.b32.xlu0 %v5177, 32
      %v5333 = vpop.permute.xlu0 %5332
      %5334 = vrot.lane.b32.xlu0 %v5178, 32
      %v5335 = vpop.permute.xlu0 %5334
      %5336 = vrot.lane.b32.xlu0 %v5179, 32
      %v5337 = vpop.permute.xlu0 %5336
      %5338 = vrot.lane.b32.xlu0 %v5180, 32
      %v5339 = vpop.permute.xlu0 %5338
      %5340 = vrot.lane.b32.xlu0 %v5181, 32
      %v5341 = vpop.permute.xlu0 %5340
      %5342 = vrot.lane.b32.xlu0 %v5182, 32
      %v5343 = vpop.permute.xlu0 %5342
      %5344 = vrot.lane.b32.xlu0 %v5183, 32
      %v5345 = vpop.permute.xlu0 %5344
      %5346 = vrot.lane.b32.xlu0 %v5184, 32
      %v5347 = vpop.permute.xlu0 %5346
      %5348 = vrot.lane.b32.xlu0 %v5185, 32
      %v5349 = vpop.permute.xlu0 %5348
      %5350 = vrot.lane.b32.xlu0 %v5186, 32
      %v5351 = vpop.permute.xlu0 %5350
      %5352 = vrot.lane.b32.xlu0 %v5187, 32
      %v5353 = vpop.permute.xlu0 %5352
      %5354 = vrot.lane.b32.xlu0 %v5188, 32
      %v5355 = vpop.permute.xlu0 %5354
      %5356 = vrot.lane.b32.xlu0 %v5189, 32
      %v5357 = vpop.permute.xlu0 %5356
      %5358 = vrot.lane.b32.xlu0 %v5190, 32
      %v5359 = vpop.permute.xlu0 %5358
      %5360 = vrot.lane.b32.xlu0 %v5191, 32
      %v5361 = vpop.permute.xlu0 %5360
      %5362 = vrot.lane.b32.xlu0 %v5192, 32
      %v5363 = vpop.permute.xlu0 %5362
      %5364 = vrot.lane.b32.xlu0 %v5193, 32
      %v5365 = vpop.permute.xlu0 %5364
      %5366 = vrot.lane.b32.xlu0 %v5194, 32
      %v5367 = vpop.permute.xlu0 %5366
      %5368 = vrot.lane.b32.xlu0 %v5195, 32
      %v5369 = vpop.permute.xlu0 %5368
      %5370 = vrot.lane.b32.xlu0 %v5196, 32
      %v5371 = vpop.permute.xlu0 %5370
      %5372 = vrot.lane.b32.xlu0 %v5197, 32
      %v5373 = vpop.permute.xlu0 %5372
      %5374 = vrot.lane.b32.xlu0 %v5198, 32
      %v5375 = vpop.permute.xlu0 %5374
      %5376 = vrot.lane.b32.xlu0 %v5199, 32
      %v5377 = vpop.permute.xlu0 %5376
      %5378 = vrot.lane.b32.xlu0 %v5200, 32
      %v5379 = vpop.permute.xlu0 %5378
      %5380 = vrot.lane.b32.xlu0 %v5201, 32
      %v5381 = vpop.permute.xlu0 %5380
      %5382 = vrot.lane.b32.xlu0 %v5202, 32
      %v5383 = vpop.permute.xlu0 %5382
      %5384 = vrot.lane.b32.xlu0 %v5203, 32
      %v5385 = vpop.permute.xlu0 %5384
      %5386 = vrot.lane.b32.xlu0 %v5204, 32
      %v5387 = vpop.permute.xlu0 %5386
      %5388 = vrot.lane.b32.xlu0 %v5205, 32
      %v5389 = vpop.permute.xlu0 %5388
      %5390 = vrot.lane.b32.xlu0 %v5206, 32
      %v5391 = vpop.permute.xlu0 %5390
      %5392 = vrot.lane.b32.xlu0 %v5207, 32
      %v5393 = vpop.permute.xlu0 %5392
      %5394 = vrot.lane.b32.xlu0 %v5208, 32
      %v5395 = vpop.permute.xlu0 %5394
      %5396 = vrot.lane.b32.xlu0 %v5209, 32
      %v5397 = vpop.permute.xlu0 %5396
      %5398 = vrot.lane.b32.xlu0 %v5210, 32
      %v5399 = vpop.permute.xlu0 %5398
      %5400 = vrot.lane.b32.xlu0 %v5211, 32
      %v5401 = vpop.permute.xlu0 %5400
      %5402 = vrot.lane.b32.xlu0 %v5212, 32
      %v5403 = vpop.permute.xlu0 %5402
      %5404 = vrot.lane.b32.xlu0 %v5213, 32
      %v5405 = vpop.permute.xlu0 %5404
      %v5470 = vadd.f32 %v4830, %v5279
      %v5471 = vadd.f32 %v4831, %v5281
      %v5472 = vadd.f32 %v4832, %v5283
      %v5473 = vadd.f32 %v4833, %v5285
      %v5474 = vadd.f32 %v4834, %v5287
      %v5475 = vadd.f32 %v4835, %v5289
      %v5476 = vadd.f32 %v4836, %v5291
      %v5477 = vadd.f32 %v4837, %v5293
      %v5478 = vadd.f32 %v4838, %v5295
      %v5479 = vadd.f32 %v4839, %v5297
      %v5480 = vadd.f32 %v4840, %v5299
      %v5481 = vadd.f32 %v4841, %v5301
      %v5482 = vadd.f32 %v4842, %v5303
      %v5483 = vadd.f32 %v4843, %v5305
      %v5484 = vadd.f32 %v4844, %v5307
      %v5485 = vadd.f32 %v4845, %v5309
      %v5486 = vadd.f32 %v4846, %v5311
      %v5487 = vadd.f32 %v4847, %v5313
      %v5488 = vadd.f32 %v4848, %v5315
      %v5489 = vadd.f32 %v4849, %v5317
      %v5490 = vadd.f32 %v4850, %v5319
      %v5491 = vadd.f32 %v4851, %v5321
      %v5492 = vadd.f32 %v4852, %v5323
      %v5493 = vadd.f32 %v4853, %v5325
      %v5494 = vadd.f32 %v4854, %v5327
      %v5495 = vadd.f32 %v4855, %v5329
      %v5496 = vadd.f32 %v4856, %v5331
      %v5497 = vadd.f32 %v4857, %v5333
      %v5498 = vadd.f32 %v4858, %v5335
      %v5499 = vadd.f32 %v4859, %v5337
      %v5500 = vadd.f32 %v4860, %v5339
      %v5501 = vadd.f32 %v4861, %v5341
      %v5502 = vadd.f32 %v4862, %v5343
      %v5503 = vadd.f32 %v4863, %v5345
      %v5504 = vadd.f32 %v4864, %v5347
      %v5505 = vadd.f32 %v4865, %v5349
      %v5506 = vadd.f32 %v4866, %v5351
      %v5507 = vadd.f32 %v4867, %v5353
      %v5508 = vadd.f32 %v4868, %v5355
      %v5509 = vadd.f32 %v4869, %v5357
      %v5510 = vadd.f32 %v4870, %v5359
      %v5511 = vadd.f32 %v4871, %v5361
      %v5512 = vadd.f32 %v4872, %v5363
      %v5513 = vadd.f32 %v4873, %v5365
      %v5514 = vadd.f32 %v4874, %v5367
      %v5515 = vadd.f32 %v4875, %v5369
      %v5516 = vadd.f32 %v4876, %v5371
      %v5517 = vadd.f32 %v4877, %v5373
      %v5518 = vadd.f32 %v4878, %v5375
      %v5519 = vadd.f32 %v4879, %v5377
      %v5520 = vadd.f32 %v4880, %v5379
      %v5521 = vadd.f32 %v4881, %v5381
      %v5522 = vadd.f32 %v4882, %v5383
      %v5523 = vadd.f32 %v4883, %v5385
      %v5524 = vadd.f32 %v4884, %v5387
      %v5525 = vadd.f32 %v4885, %v5389
      %v5526 = vadd.f32 %v4886, %v5391
      %v5527 = vadd.f32 %v4887, %v5393
      %v5528 = vadd.f32 %v4888, %v5395
      %v5529 = vadd.f32 %v4889, %v5397
      %v5530 = vadd.f32 %v4890, %v5399
      %v5531 = vadd.f32 %v4891, %v5401
      %v5532 = vadd.f32 %v4892, %v5403
      %v5533 = vadd.f32 %v4893, %v5405
      %v5534 = vtanh.pop %v5470
      %v5535 = vtanh.pop %v5471
      %v5536 = vtanh.pop %v5472
      %v5537 = vtanh.pop %v5473
      %v5538 = vtanh.pop %v5474
      %v5539 = vtanh.pop %v5475
      %v5540 = vtanh.pop %v5476
      %v5541 = vtanh.pop %v5477
      %v5542 = vtanh.pop %v5478
      %v5543 = vtanh.pop %v5479
      %v5544 = vtanh.pop %v5480
      %v5545 = vtanh.pop %v5481
      %v5546 = vtanh.pop %v5482
      %v5547 = vtanh.pop %v5483
      %v5548 = vtanh.pop %v5484
      %v5549 = vtanh.pop %v5485
      %v5550 = vtanh.pop %v5486
      %v5551 = vtanh.pop %v5487
      %v5552 = vtanh.pop %v5488
      %v5553 = vtanh.pop %v5489
      %v5554 = vtanh.pop %v5490
      %v5555 = vtanh.pop %v5491
      %v5556 = vtanh.pop %v5492
      %v5557 = vtanh.pop %v5493
      %v5558 = vtanh.pop %v5494
      %v5559 = vtanh.pop %v5495
      %v5560 = vtanh.pop %v5496
      %v5561 = vtanh.pop %v5497
      %v5562 = vtanh.pop %v5498
      %v5563 = vtanh.pop %v5499
      %v5564 = vtanh.pop %v5500
      %v5565 = vtanh.pop %v5501
      %v5566 = vtanh.pop %v5502
      %v5567 = vtanh.pop %v5503
      %v5568 = vtanh.pop %v5504
      %v5569 = vtanh.pop %v5505
      %v5570 = vtanh.pop %v5506
      %v5571 = vtanh.pop %v5507
      %v5572 = vtanh.pop %v5508
      %v5573 = vtanh.pop %v5509
      %v5574 = vtanh.pop %v5510
      %v5575 = vtanh.pop %v5511
      %v5576 = vtanh.pop %v5512
      %v5577 = vtanh.pop %v5513
      %v5578 = vtanh.pop %v5514
      %v5579 = vtanh.pop %v5515
      %v5580 = vtanh.pop %v5516
      %v5581 = vtanh.pop %v5517
      %v5582 = vtanh.pop %v5518
      %v5583 = vtanh.pop %v5519
      %v5584 = vtanh.pop %v5520
      %v5585 = vtanh.pop %v5521
      %v5586 = vtanh.pop %v5522
      %v5587 = vtanh.pop %v5523
      %v5588 = vtanh.pop %v5524
      %v5589 = vtanh.pop %v5525
      %v5590 = vtanh.pop %v5526
      %v5591 = vtanh.pop %v5527
      %v5592 = vtanh.pop %v5528
      %v5593 = vtanh.pop %v5529
      %v5594 = vtanh.pop %v5530
      %v5595 = vtanh.pop %v5531
      %v5596 = vtanh.pop %v5532
      %v5597 = vtanh.pop %v5533
      %5662 = vrot.lane.b32.xlu0 %v5534, 32
      %v5663 = vpop.permute.xlu0 %5662
      %5664 = vrot.lane.b32.xlu0 %v5535, 32
      %v5665 = vpop.permute.xlu0 %5664
      %5666 = vrot.lane.b32.xlu0 %v5536, 32
      %v5667 = vpop.permute.xlu0 %5666
      %5668 = vrot.lane.b32.xlu0 %v5537, 32
      %v5669 = vpop.permute.xlu0 %5668
      %5670 = vrot.lane.b32.xlu0 %v5538, 32
      %v5671 = vpop.permute.xlu0 %5670
      %5672 = vrot.lane.b32.xlu0 %v5539, 32
      %v5673 = vpop.permute.xlu0 %5672
      %5674 = vrot.lane.b32.xlu0 %v5540, 32
      %v5675 = vpop.permute.xlu0 %5674
      %5676 = vrot.lane.b32.xlu0 %v5541, 32
      %v5677 = vpop.permute.xlu0 %5676
      %5678 = vrot.lane.b32.xlu0 %v5542, 32
      %v5679 = vpop.permute.xlu0 %5678
      %5680 = vrot.lane.b32.xlu0 %v5543, 32
      %v5681 = vpop.permute.xlu0 %5680
      %5682 = vrot.lane.b32.xlu0 %v5544, 32
      %v5683 = vpop.permute.xlu0 %5682
      %5684 = vrot.lane.b32.xlu0 %v5545, 32
      %v5685 = vpop.permute.xlu0 %5684
      %5686 = vrot.lane.b32.xlu0 %v5546, 32
      %v5687 = vpop.permute.xlu0 %5686
      %5688 = vrot.lane.b32.xlu0 %v5547, 32
      %v5689 = vpop.permute.xlu0 %5688
      %5690 = vrot.lane.b32.xlu0 %v5548, 32
      %v5691 = vpop.permute.xlu0 %5690
      %5692 = vrot.lane.b32.xlu0 %v5549, 32
      %v5693 = vpop.permute.xlu0 %5692
      %5694 = vrot.lane.b32.xlu0 %v5550, 32
      %v5695 = vpop.permute.xlu0 %5694
      %5696 = vrot.lane.b32.xlu0 %v5551, 32
      %v5697 = vpop.permute.xlu0 %5696
      %5698 = vrot.lane.b32.xlu0 %v5552, 32
      %v5699 = vpop.permute.xlu0 %5698
      %5700 = vrot.lane.b32.xlu0 %v5553, 32
      %v5701 = vpop.permute.xlu0 %5700
      %5702 = vrot.lane.b32.xlu0 %v5554, 32
      %v5703 = vpop.permute.xlu0 %5702
      %5704 = vrot.lane.b32.xlu0 %v5555, 32
      %v5705 = vpop.permute.xlu0 %5704
      %5706 = vrot.lane.b32.xlu0 %v5556, 32
      %v5707 = vpop.permute.xlu0 %5706
      %5708 = vrot.lane.b32.xlu0 %v5557, 32
      %v5709 = vpop.permute.xlu0 %5708
      %5710 = vrot.lane.b32.xlu0 %v5558, 32
      %v5711 = vpop.permute.xlu0 %5710
      %5712 = vrot.lane.b32.xlu0 %v5559, 32
      %v5713 = vpop.permute.xlu0 %5712
      %5714 = vrot.lane.b32.xlu0 %v5560, 32
      %v5715 = vpop.permute.xlu0 %5714
      %5716 = vrot.lane.b32.xlu0 %v5561, 32
      %v5717 = vpop.permute.xlu0 %5716
      %5718 = vrot.lane.b32.xlu0 %v5562, 32
      %v5719 = vpop.permute.xlu0 %5718
      %5720 = vrot.lane.b32.xlu0 %v5563, 32
      %v5721 = vpop.permute.xlu0 %5720
      %5722 = vrot.lane.b32.xlu0 %v5564, 32
      %v5723 = vpop.permute.xlu0 %5722
      %5724 = vrot.lane.b32.xlu0 %v5565, 32
      %v5725 = vpop.permute.xlu0 %5724
      %5726 = vrot.lane.b32.xlu0 %v5566, 32
      %v5727 = vpop.permute.xlu0 %5726
      %5728 = vrot.lane.b32.xlu0 %v5567, 32
      %v5729 = vpop.permute.xlu0 %5728
      %5730 = vrot.lane.b32.xlu0 %v5568, 32
      %v5731 = vpop.permute.xlu0 %5730
      %5732 = vrot.lane.b32.xlu0 %v5569, 32
      %v5733 = vpop.permute.xlu0 %5732
      %5734 = vrot.lane.b32.xlu0 %v5570, 32
      %v5735 = vpop.permute.xlu0 %5734
      %5736 = vrot.lane.b32.xlu0 %v5571, 32
      %v5737 = vpop.permute.xlu0 %5736
      %5738 = vrot.lane.b32.xlu0 %v5572, 32
      %v5739 = vpop.permute.xlu0 %5738
      %5740 = vrot.lane.b32.xlu0 %v5573, 32
      %v5741 = vpop.permute.xlu0 %5740
      %5742 = vrot.lane.b32.xlu0 %v5574, 32
      %v5743 = vpop.permute.xlu0 %5742
      %5744 = vrot.lane.b32.xlu0 %v5575, 32
      %v5745 = vpop.permute.xlu0 %5744
      %5746 = vrot.lane.b32.xlu0 %v5576, 32
      %v5747 = vpop.permute.xlu0 %5746
      %5748 = vrot.lane.b32.xlu0 %v5577, 32
      %v5749 = vpop.permute.xlu0 %5748
      %5750 = vrot.lane.b32.xlu0 %v5578, 32
      %v5751 = vpop.permute.xlu0 %5750
      %5752 = vrot.lane.b32.xlu0 %v5579, 32
      %v5753 = vpop.permute.xlu0 %5752
      %5754 = vrot.lane.b32.xlu0 %v5580, 32
      %v5755 = vpop.permute.xlu0 %5754
      %5756 = vrot.lane.b32.xlu0 %v5581, 32
      %v5757 = vpop.permute.xlu0 %5756
      %5758 = vrot.lane.b32.xlu0 %v5582, 32
      %v5759 = vpop.permute.xlu0 %5758
      %5760 = vrot.lane.b32.xlu0 %v5583, 32
      %v5761 = vpop.permute.xlu0 %5760
      %5762 = vrot.lane.b32.xlu0 %v5584, 32
      %v5763 = vpop.permute.xlu0 %5762
      %5764 = vrot.lane.b32.xlu0 %v5585, 32
      %v5765 = vpop.permute.xlu0 %5764
      %5766 = vrot.lane.b32.xlu0 %v5586, 32
      %v5767 = vpop.permute.xlu0 %5766
      %5768 = vrot.lane.b32.xlu0 %v5587, 32
      %v5769 = vpop.permute.xlu0 %5768
      %5770 = vrot.lane.b32.xlu0 %v5588, 32
      %v5771 = vpop.permute.xlu0 %5770
      %5772 = vrot.lane.b32.xlu0 %v5589, 32
      %v5773 = vpop.permute.xlu0 %5772
      %5774 = vrot.lane.b32.xlu0 %v5590, 32
      %v5775 = vpop.permute.xlu0 %5774
      %5776 = vrot.lane.b32.xlu0 %v5591, 32
      %v5777 = vpop.permute.xlu0 %5776
      %5778 = vrot.lane.b32.xlu0 %v5592, 32
      %v5779 = vpop.permute.xlu0 %5778
      %5780 = vrot.lane.b32.xlu0 %v5593, 32
      %v5781 = vpop.permute.xlu0 %5780
      %5782 = vrot.lane.b32.xlu0 %v5594, 32
      %v5783 = vpop.permute.xlu0 %5782
      %5784 = vrot.lane.b32.xlu0 %v5595, 32
      %v5785 = vpop.permute.xlu0 %5784
      %5786 = vrot.lane.b32.xlu0 %v5596, 32
      %v5787 = vpop.permute.xlu0 %5786
      %5788 = vrot.lane.b32.xlu0 %v5597, 32
      %v5789 = vpop.permute.xlu0 %5788
      %v5854 = vmul.f32 %v4446, %v5663
      %v5855 = vmul.f32 %v4447, %v5665
      %v5856 = vmul.f32 %v4448, %v5667
      %v5857 = vmul.f32 %v4449, %v5669
      %v5858 = vmul.f32 %v4450, %v5671
      %v5859 = vmul.f32 %v4451, %v5673
      %v5860 = vmul.f32 %v4452, %v5675
      %v5861 = vmul.f32 %v4453, %v5677
      %v5862 = vmul.f32 %v4454, %v5679
      %v5863 = vmul.f32 %v4455, %v5681
      %v5864 = vmul.f32 %v4456, %v5683
      %v5865 = vmul.f32 %v4457, %v5685
      %v5866 = vmul.f32 %v4458, %v5687
      %v5867 = vmul.f32 %v4459, %v5689
      %v5868 = vmul.f32 %v4460, %v5691
      %v5869 = vmul.f32 %v4461, %v5693
      %v5870 = vmul.f32 %v4462, %v5695
      %v5871 = vmul.f32 %v4463, %v5697
      %v5872 = vmul.f32 %v4464, %v5699
      %v5873 = vmul.f32 %v4465, %v5701
      %v5874 = vmul.f32 %v4466, %v5703
      %v5875 = vmul.f32 %v4467, %v5705
      %v5876 = vmul.f32 %v4468, %v5707
      %v5877 = vmul.f32 %v4469, %v5709
      %v5878 = vmul.f32 %v4470, %v5711
      %v5879 = vmul.f32 %v4471, %v5713
      %v5880 = vmul.f32 %v4472, %v5715
      %v5881 = vmul.f32 %v4473, %v5717
      %v5882 = vmul.f32 %v4474, %v5719
      %v5883 = vmul.f32 %v4475, %v5721
      %v5884 = vmul.f32 %v4476, %v5723
      %v5885 = vmul.f32 %v4477, %v5725
      %v5886 = vmul.f32 %v4478, %v5727
      %v5887 = vmul.f32 %v4479, %v5729
      %v5888 = vmul.f32 %v4480, %v5731
      %v5889 = vmul.f32 %v4481, %v5733
      %v5890 = vmul.f32 %v4482, %v5735
      %v5891 = vmul.f32 %v4483, %v5737
      %v5892 = vmul.f32 %v4484, %v5739
      %v5893 = vmul.f32 %v4485, %v5741
      %v5894 = vmul.f32 %v4486, %v5743
      %v5895 = vmul.f32 %v4487, %v5745
      %v5896 = vmul.f32 %v4488, %v5747
      %v5897 = vmul.f32 %v4489, %v5749
      %v5898 = vmul.f32 %v4490, %v5751
      %v5899 = vmul.f32 %v4491, %v5753
      %v5900 = vmul.f32 %v4492, %v5755
      %v5901 = vmul.f32 %v4493, %v5757
      %v5902 = vmul.f32 %v4494, %v5759
      %v5903 = vmul.f32 %v4495, %v5761
      %v5904 = vmul.f32 %v4496, %v5763
      %v5905 = vmul.f32 %v4497, %v5765
      %v5906 = vmul.f32 %v4498, %v5767
      %v5907 = vmul.f32 %v4499, %v5769
      %v5908 = vmul.f32 %v4500, %v5771
      %v5909 = vmul.f32 %v4501, %v5773
      %v5910 = vmul.f32 %v4502, %v5775
      %v5911 = vmul.f32 %v4503, %v5777
      %v5912 = vmul.f32 %v4504, %v5779
      %v5913 = vmul.f32 %v4505, %v5781
      %v5914 = vmul.f32 %v4506, %v5783
      %v5915 = vmul.f32 %v4507, %v5785
      %v5916 = vmul.f32 %v4508, %v5787
      %v5917 = vmul.f32 %v4509, %v5789
      %5982 = vrot.lane.b32.xlu0 %v5470, 96
      %v5983 = vpop.permute.xlu0 %5982
      %5984 = vrot.lane.b32.xlu0 %v5471, 96
      %v5985 = vpop.permute.xlu0 %5984
      %5986 = vrot.lane.b32.xlu0 %v5472, 96
      %v5987 = vpop.permute.xlu0 %5986
      %5988 = vrot.lane.b32.xlu0 %v5473, 96
      %v5989 = vpop.permute.xlu0 %5988
      %5990 = vrot.lane.b32.xlu0 %v5474, 96
      %v5991 = vpop.permute.xlu0 %5990
      %5992 = vrot.lane.b32.xlu0 %v5475, 96
      %v5993 = vpop.permute.xlu0 %5992
      %5994 = vrot.lane.b32.xlu0 %v5476, 96
      %v5995 = vpop.permute.xlu0 %5994
      %5996 = vrot.lane.b32.xlu0 %v5477, 96
      %v5997 = vpop.permute.xlu0 %5996
      %5998 = vrot.lane.b32.xlu0 %v5478, 96
      %v5999 = vpop.permute.xlu0 %5998
      %6000 = vrot.lane.b32.xlu0 %v5479, 96
      %v6001 = vpop.permute.xlu0 %6000
      %6002 = vrot.lane.b32.xlu0 %v5480, 96
      %v6003 = vpop.permute.xlu0 %6002
      %6004 = vrot.lane.b32.xlu0 %v5481, 96
      %v6005 = vpop.permute.xlu0 %6004
      %6006 = vrot.lane.b32.xlu0 %v5482, 96
      %v6007 = vpop.permute.xlu0 %6006
      %6008 = vrot.lane.b32.xlu0 %v5483, 96
      %v6009 = vpop.permute.xlu0 %6008
      %6010 = vrot.lane.b32.xlu0 %v5484, 96
      %v6011 = vpop.permute.xlu0 %6010
      %6012 = vrot.lane.b32.xlu0 %v5485, 96
      %v6013 = vpop.permute.xlu0 %6012
      %6014 = vrot.lane.b32.xlu0 %v5486, 96
      %v6015 = vpop.permute.xlu0 %6014
      %6016 = vrot.lane.b32.xlu0 %v5487, 96
      %v6017 = vpop.permute.xlu0 %6016
      %6018 = vrot.lane.b32.xlu0 %v5488, 96
      %v6019 = vpop.permute.xlu0 %6018
      %6020 = vrot.lane.b32.xlu0 %v5489, 96
      %v6021 = vpop.permute.xlu0 %6020
      %6022 = vrot.lane.b32.xlu0 %v5490, 96
      %v6023 = vpop.permute.xlu0 %6022
      %6024 = vrot.lane.b32.xlu0 %v5491, 96
      %v6025 = vpop.permute.xlu0 %6024
      %6026 = vrot.lane.b32.xlu0 %v5492, 96
      %v6027 = vpop.permute.xlu0 %6026
      %6028 = vrot.lane.b32.xlu0 %v5493, 96
      %v6029 = vpop.permute.xlu0 %6028
      %6030 = vrot.lane.b32.xlu0 %v5494, 96
      %v6031 = vpop.permute.xlu0 %6030
      %6032 = vrot.lane.b32.xlu0 %v5495, 96
      %v6033 = vpop.permute.xlu0 %6032
      %6034 = vrot.lane.b32.xlu0 %v5496, 96
      %v6035 = vpop.permute.xlu0 %6034
      %6036 = vrot.lane.b32.xlu0 %v5497, 96
      %v6037 = vpop.permute.xlu0 %6036
      %6038 = vrot.lane.b32.xlu0 %v5498, 96
      %v6039 = vpop.permute.xlu0 %6038
      %6040 = vrot.lane.b32.xlu0 %v5499, 96
      %v6041 = vpop.permute.xlu0 %6040
      %6042 = vrot.lane.b32.xlu0 %v5500, 96
      %v6043 = vpop.permute.xlu0 %6042
      %6044 = vrot.lane.b32.xlu0 %v5501, 96
      %v6045 = vpop.permute.xlu0 %6044
      %6046 = vrot.lane.b32.xlu0 %v5502, 96
      %v6047 = vpop.permute.xlu0 %6046
      %6048 = vrot.lane.b32.xlu0 %v5503, 96
      %v6049 = vpop.permute.xlu0 %6048
      %6050 = vrot.lane.b32.xlu0 %v5504, 96
      %v6051 = vpop.permute.xlu0 %6050
      %6052 = vrot.lane.b32.xlu0 %v5505, 96
      %v6053 = vpop.permute.xlu0 %6052
      %6054 = vrot.lane.b32.xlu0 %v5506, 96
      %v6055 = vpop.permute.xlu0 %6054
      %6056 = vrot.lane.b32.xlu0 %v5507, 96
      %v6057 = vpop.permute.xlu0 %6056
      %6058 = vrot.lane.b32.xlu0 %v5508, 96
      %v6059 = vpop.permute.xlu0 %6058
      %6060 = vrot.lane.b32.xlu0 %v5509, 96
      %v6061 = vpop.permute.xlu0 %6060
      %6062 = vrot.lane.b32.xlu0 %v5510, 96
      %v6063 = vpop.permute.xlu0 %6062
      %6064 = vrot.lane.b32.xlu0 %v5511, 96
      %v6065 = vpop.permute.xlu0 %6064
      %6066 = vrot.lane.b32.xlu0 %v5512, 96
      %v6067 = vpop.permute.xlu0 %6066
      %6068 = vrot.lane.b32.xlu0 %v5513, 96
      %v6069 = vpop.permute.xlu0 %6068
      %6070 = vrot.lane.b32.xlu0 %v5514, 96
      %v6071 = vpop.permute.xlu0 %6070
      %6072 = vrot.lane.b32.xlu0 %v5515, 96
      %v6073 = vpop.permute.xlu0 %6072
      %6074 = vrot.lane.b32.xlu0 %v5516, 96
      %v6075 = vpop.permute.xlu0 %6074
      %6076 = vrot.lane.b32.xlu0 %v5517, 96
      %v6077 = vpop.permute.xlu0 %6076
      %6078 = vrot.lane.b32.xlu0 %v5518, 96
      %v6079 = vpop.permute.xlu0 %6078
      %6080 = vrot.lane.b32.xlu0 %v5519, 96
      %v6081 = vpop.permute.xlu0 %6080
      %6082 = vrot.lane.b32.xlu0 %v5520, 96
      %v6083 = vpop.permute.xlu0 %6082
      %6084 = vrot.lane.b32.xlu0 %v5521, 96
      %v6085 = vpop.permute.xlu0 %6084
      %6086 = vrot.lane.b32.xlu0 %v5522, 96
      %v6087 = vpop.permute.xlu0 %6086
      %6088 = vrot.lane.b32.xlu0 %v5523, 96
      %v6089 = vpop.permute.xlu0 %6088
      %6090 = vrot.lane.b32.xlu0 %v5524, 96
      %v6091 = vpop.permute.xlu0 %6090
      %6092 = vrot.lane.b32.xlu0 %v5525, 96
      %v6093 = vpop.permute.xlu0 %6092
      %6094 = vrot.lane.b32.xlu0 %v5526, 96
      %v6095 = vpop.permute.xlu0 %6094
      %6096 = vrot.lane.b32.xlu0 %v5527, 96
      %v6097 = vpop.permute.xlu0 %6096
      %6098 = vrot.lane.b32.xlu0 %v5528, 96
      %v6099 = vpop.permute.xlu0 %6098
      %6100 = vrot.lane.b32.xlu0 %v5529, 96
      %v6101 = vpop.permute.xlu0 %6100
      %6102 = vrot.lane.b32.xlu0 %v5530, 96
      %v6103 = vpop.permute.xlu0 %6102
      %6104 = vrot.lane.b32.xlu0 %v5531, 96
      %v6105 = vpop.permute.xlu0 %6104
      %6106 = vrot.lane.b32.xlu0 %v5532, 96
      %v6107 = vpop.permute.xlu0 %6106
      %6108 = vrot.lane.b32.xlu0 %v5533, 96
      %v6109 = vpop.permute.xlu0 %6108
      %6174 = vst.msk [vmem:[#allocation3] sm:$0xff] %vm431, %v5983
      %6175 = vst.msk [vmem:[#allocation3 + $0x8] sm:$0xff] %vm431, %v5985
      %6176 = vst.msk [vmem:[#allocation3 + $0x10] sm:$0xff] %vm431, %v5987
      %6177 = vst.msk [vmem:[#allocation3 + $0x18] sm:$0xff] %vm431, %v5989
      %6178 = vst.msk [vmem:[#allocation3 + $0x20] sm:$0xff] %vm431, %v5991
      %6179 = vst.msk [vmem:[#allocation3 + $0x28] sm:$0xff] %vm431, %v5993
      %6180 = vst.msk [vmem:[#allocation3 + $0x30] sm:$0xff] %vm431, %v5995
      %6181 = vst.msk [vmem:[#allocation3 + $0x38] sm:$0xff] %vm431, %v5997
      %6182 = vst.msk [vmem:[#allocation3 + $0x40] sm:$0xff] %vm431, %v5999
      %6183 = vst.msk [vmem:[#allocation3 + $0x48] sm:$0xff] %vm431, %v6001
      %6184 = vst.msk [vmem:[#allocation3 + $0x50] sm:$0xff] %vm431, %v6003
      %6185 = vst.msk [vmem:[#allocation3 + $0x58] sm:$0xff] %vm431, %v6005
      %6186 = vst.msk [vmem:[#allocation3 + $0x60] sm:$0xff] %vm431, %v6007
      %6187 = vst.msk [vmem:[#allocation3 + $0x68] sm:$0xff] %vm431, %v6009
      %6188 = vst.msk [vmem:[#allocation3 + $0x70] sm:$0xff] %vm431, %v6011
      %6189 = vst.msk [vmem:[#allocation3 + $0x78] sm:$0xff] %vm431, %v6013
      %6190 = vst.msk [vmem:[#allocation3 + $0x80] sm:$0xff] %vm431, %v6015
      %6191 = vst.msk [vmem:[#allocation3 + $0x88] sm:$0xff] %vm431, %v6017
      %6192 = vst.msk [vmem:[#allocation3 + $0x90] sm:$0xff] %vm431, %v6019
      %6193 = vst.msk [vmem:[#allocation3 + $0x98] sm:$0xff] %vm431, %v6021
      %6194 = vst.msk [vmem:[#allocation3 + $0xa0] sm:$0xff] %vm431, %v6023
      %6195 = vst.msk [vmem:[#allocation3 + $0xa8] sm:$0xff] %vm431, %v6025
      %6196 = vst.msk [vmem:[#allocation3 + $0xb0] sm:$0xff] %vm431, %v6027
      %6197 = vst.msk [vmem:[#allocation3 + $0xb8] sm:$0xff] %vm431, %v6029
      %6198 = vst.msk [vmem:[#allocation3 + $0xc0] sm:$0xff] %vm431, %v6031
      %6199 = vst.msk [vmem:[#allocation3 + $0xc8] sm:$0xff] %vm431, %v6033
      %6200 = vst.msk [vmem:[#allocation3 + $0xd0] sm:$0xff] %vm431, %v6035
      %6201 = vst.msk [vmem:[#allocation3 + $0xd8] sm:$0xff] %vm431, %v6037
      %6202 = vst.msk [vmem:[#allocation3 + $0xe0] sm:$0xff] %vm431, %v6039
      %6203 = vst.msk [vmem:[#allocation3 + $0xe8] sm:$0xff] %vm431, %v6041
      %6204 = vst.msk [vmem:[#allocation3 + $0xf0] sm:$0xff] %vm431, %v6043
      %6205 = vst.msk [vmem:[#allocation3 + $0xf8] sm:$0xff] %vm431, %v6045
      %6206 = vst.msk [vmem:[#allocation3 + $0x100] sm:$0xff] %vm431, %v6047
      %6207 = vst.msk [vmem:[#allocation3 + $0x108] sm:$0xff] %vm431, %v6049
      %6208 = vst.msk [vmem:[#allocation3 + $0x110] sm:$0xff] %vm431, %v6051
      %6209 = vst.msk [vmem:[#allocation3 + $0x118] sm:$0xff] %vm431, %v6053
      %6210 = vst.msk [vmem:[#allocation3 + $0x120] sm:$0xff] %vm431, %v6055
      %6211 = vst.msk [vmem:[#allocation3 + $0x128] sm:$0xff] %vm431, %v6057
      %6212 = vst.msk [vmem:[#allocation3 + $0x130] sm:$0xff] %vm431, %v6059
      %6213 = vst.msk [vmem:[#allocation3 + $0x138] sm:$0xff] %vm431, %v6061
      %6214 = vst.msk [vmem:[#allocation3 + $0x140] sm:$0xff] %vm431, %v6063
      %6215 = vst.msk [vmem:[#allocation3 + $0x148] sm:$0xff] %vm431, %v6065
      %6216 = vst.msk [vmem:[#allocation3 + $0x150] sm:$0xff] %vm431, %v6067
      %6217 = vst.msk [vmem:[#allocation3 + $0x158] sm:$0xff] %vm431, %v6069
      %6218 = vst.msk [vmem:[#allocation3 + $0x160] sm:$0xff] %vm431, %v6071
      %6219 = vst.msk [vmem:[#allocation3 + $0x168] sm:$0xff] %vm431, %v6073
      %6220 = vst.msk [vmem:[#allocation3 + $0x170] sm:$0xff] %vm431, %v6075
      %6221 = vst.msk [vmem:[#allocation3 + $0x178] sm:$0xff] %vm431, %v6077
      %6222 = vst.msk [vmem:[#allocation3 + $0x180] sm:$0xff] %vm431, %v6079
      %6223 = vst.msk [vmem:[#allocation3 + $0x188] sm:$0xff] %vm431, %v6081
      %6224 = vst.msk [vmem:[#allocation3 + $0x190] sm:$0xff] %vm431, %v6083
      %6225 = vst.msk [vmem:[#allocation3 + $0x198] sm:$0xff] %vm431, %v6085
      %6226 = vst.msk [vmem:[#allocation3 + $0x1a0] sm:$0xff] %vm431, %v6087
      %6227 = vst.msk [vmem:[#allocation3 + $0x1a8] sm:$0xff] %vm431, %v6089
      %6228 = vst.msk [vmem:[#allocation3 + $0x1b0] sm:$0xff] %vm431, %v6091
      %6229 = vst.msk [vmem:[#allocation3 + $0x1b8] sm:$0xff] %vm431, %v6093
      %6230 = vst.msk [vmem:[#allocation3 + $0x1c0] sm:$0xff] %vm431, %v6095
      %6231 = vst.msk [vmem:[#allocation3 + $0x1c8] sm:$0xff] %vm431, %v6097
      %6232 = vst.msk [vmem:[#allocation3 + $0x1d0] sm:$0xff] %vm431, %v6099
      %6233 = vst.msk [vmem:[#allocation3 + $0x1d8] sm:$0xff] %vm431, %v6101
      %6234 = vst.msk [vmem:[#allocation3 + $0x1e0] sm:$0xff] %vm431, %v6103
      %6235 = vst.msk [vmem:[#allocation3 + $0x1e8] sm:$0xff] %vm431, %v6105
      %6236 = vst.msk [vmem:[#allocation3 + $0x1f0] sm:$0xff] %vm431, %v6107
      %6237 = vst.msk [vmem:[#allocation3 + $0x1f8] sm:$0xff] %vm431, %v6109
      %6302 = vrot.lane.b32.xlu0 %v5854, 64
      %v6303 = vpop.permute.xlu0 %6302
      %6304 = vrot.lane.b32.xlu0 %v5855, 64
      %v6305 = vpop.permute.xlu0 %6304
      %6306 = vrot.lane.b32.xlu0 %v5856, 64
      %v6307 = vpop.permute.xlu0 %6306
      %6308 = vrot.lane.b32.xlu0 %v5857, 64
      %v6309 = vpop.permute.xlu0 %6308
      %6310 = vrot.lane.b32.xlu0 %v5858, 64
      %v6311 = vpop.permute.xlu0 %6310
      %6312 = vrot.lane.b32.xlu0 %v5859, 64
      %v6313 = vpop.permute.xlu0 %6312
      %6314 = vrot.lane.b32.xlu0 %v5860, 64
      %v6315 = vpop.permute.xlu0 %6314
      %6316 = vrot.lane.b32.xlu0 %v5861, 64
      %v6317 = vpop.permute.xlu0 %6316
      %6318 = vrot.lane.b32.xlu0 %v5862, 64
      %v6319 = vpop.permute.xlu0 %6318
      %6320 = vrot.lane.b32.xlu0 %v5863, 64
      %v6321 = vpop.permute.xlu0 %6320
      %6322 = vrot.lane.b32.xlu0 %v5864, 64
      %v6323 = vpop.permute.xlu0 %6322
      %6324 = vrot.lane.b32.xlu0 %v5865, 64
      %v6325 = vpop.permute.xlu0 %6324
      %6326 = vrot.lane.b32.xlu0 %v5866, 64
      %v6327 = vpop.permute.xlu0 %6326
      %6328 = vrot.lane.b32.xlu0 %v5867, 64
      %v6329 = vpop.permute.xlu0 %6328
      %6330 = vrot.lane.b32.xlu0 %v5868, 64
      %v6331 = vpop.permute.xlu0 %6330
      %6332 = vrot.lane.b32.xlu0 %v5869, 64
      %v6333 = vpop.permute.xlu0 %6332
      %6334 = vrot.lane.b32.xlu0 %v5870, 64
      %v6335 = vpop.permute.xlu0 %6334
      %6336 = vrot.lane.b32.xlu0 %v5871, 64
      %v6337 = vpop.permute.xlu0 %6336
      %6338 = vrot.lane.b32.xlu0 %v5872, 64
      %v6339 = vpop.permute.xlu0 %6338
      %6340 = vrot.lane.b32.xlu0 %v5873, 64
      %v6341 = vpop.permute.xlu0 %6340
      %6342 = vrot.lane.b32.xlu0 %v5874, 64
      %v6343 = vpop.permute.xlu0 %6342
      %6344 = vrot.lane.b32.xlu0 %v5875, 64
      %v6345 = vpop.permute.xlu0 %6344
      %6346 = vrot.lane.b32.xlu0 %v5876, 64
      %v6347 = vpop.permute.xlu0 %6346
      %6348 = vrot.lane.b32.xlu0 %v5877, 64
      %v6349 = vpop.permute.xlu0 %6348
      %6350 = vrot.lane.b32.xlu0 %v5878, 64
      %v6351 = vpop.permute.xlu0 %6350
      %6352 = vrot.lane.b32.xlu0 %v5879, 64
      %v6353 = vpop.permute.xlu0 %6352
      %6354 = vrot.lane.b32.xlu0 %v5880, 64
      %v6355 = vpop.permute.xlu0 %6354
      %6356 = vrot.lane.b32.xlu0 %v5881, 64
      %v6357 = vpop.permute.xlu0 %6356
      %6358 = vrot.lane.b32.xlu0 %v5882, 64
      %v6359 = vpop.permute.xlu0 %6358
      %6360 = vrot.lane.b32.xlu0 %v5883, 64
      %v6361 = vpop.permute.xlu0 %6360
      %6362 = vrot.lane.b32.xlu0 %v5884, 64
      %v6363 = vpop.permute.xlu0 %6362
      %6364 = vrot.lane.b32.xlu0 %v5885, 64
      %v6365 = vpop.permute.xlu0 %6364
      %6366 = vrot.lane.b32.xlu0 %v5886, 64
      %v6367 = vpop.permute.xlu0 %6366
      %6368 = vrot.lane.b32.xlu0 %v5887, 64
      %v6369 = vpop.permute.xlu0 %6368
      %6370 = vrot.lane.b32.xlu0 %v5888, 64
      %v6371 = vpop.permute.xlu0 %6370
      %6372 = vrot.lane.b32.xlu0 %v5889, 64
      %v6373 = vpop.permute.xlu0 %6372
      %6374 = vrot.lane.b32.xlu0 %v5890, 64
      %v6375 = vpop.permute.xlu0 %6374
      %6376 = vrot.lane.b32.xlu0 %v5891, 64
      %v6377 = vpop.permute.xlu0 %6376
      %6378 = vrot.lane.b32.xlu0 %v5892, 64
      %v6379 = vpop.permute.xlu0 %6378
      %6380 = vrot.lane.b32.xlu0 %v5893, 64
      %v6381 = vpop.permute.xlu0 %6380
      %6382 = vrot.lane.b32.xlu0 %v5894, 64
      %v6383 = vpop.permute.xlu0 %6382
      %6384 = vrot.lane.b32.xlu0 %v5895, 64
      %v6385 = vpop.permute.xlu0 %6384
      %6386 = vrot.lane.b32.xlu0 %v5896, 64
      %v6387 = vpop.permute.xlu0 %6386
      %6388 = vrot.lane.b32.xlu0 %v5897, 64
      %v6389 = vpop.permute.xlu0 %6388
      %6390 = vrot.lane.b32.xlu0 %v5898, 64
      %v6391 = vpop.permute.xlu0 %6390
      %6392 = vrot.lane.b32.xlu0 %v5899, 64
      %v6393 = vpop.permute.xlu0 %6392
      %6394 = vrot.lane.b32.xlu0 %v5900, 64
      %v6395 = vpop.permute.xlu0 %6394
      %6396 = vrot.lane.b32.xlu0 %v5901, 64
      %v6397 = vpop.permute.xlu0 %6396
      %6398 = vrot.lane.b32.xlu0 %v5902, 64
      %v6399 = vpop.permute.xlu0 %6398
      %6400 = vrot.lane.b32.xlu0 %v5903, 64
      %v6401 = vpop.permute.xlu0 %6400
      %6402 = vrot.lane.b32.xlu0 %v5904, 64
      %v6403 = vpop.permute.xlu0 %6402
      %6404 = vrot.lane.b32.xlu0 %v5905, 64
      %v6405 = vpop.permute.xlu0 %6404
      %6406 = vrot.lane.b32.xlu0 %v5906, 64
      %v6407 = vpop.permute.xlu0 %6406
      %6408 = vrot.lane.b32.xlu0 %v5907, 64
      %v6409 = vpop.permute.xlu0 %6408
      %6410 = vrot.lane.b32.xlu0 %v5908, 64
      %v6411 = vpop.permute.xlu0 %6410
      %6412 = vrot.lane.b32.xlu0 %v5909, 64
      %v6413 = vpop.permute.xlu0 %6412
      %6414 = vrot.lane.b32.xlu0 %v5910, 64
      %v6415 = vpop.permute.xlu0 %6414
      %6416 = vrot.lane.b32.xlu0 %v5911, 64
      %v6417 = vpop.permute.xlu0 %6416
      %6418 = vrot.lane.b32.xlu0 %v5912, 64
      %v6419 = vpop.permute.xlu0 %6418
      %6420 = vrot.lane.b32.xlu0 %v5913, 64
      %v6421 = vpop.permute.xlu0 %6420
      %6422 = vrot.lane.b32.xlu0 %v5914, 64
      %v6423 = vpop.permute.xlu0 %6422
      %6424 = vrot.lane.b32.xlu0 %v5915, 64
      %v6425 = vpop.permute.xlu0 %6424
      %6426 = vrot.lane.b32.xlu0 %v5916, 64
      %v6427 = vpop.permute.xlu0 %6426
      %6428 = vrot.lane.b32.xlu0 %v5917, 64
      %v6429 = vpop.permute.xlu0 %6428
      %s6494 = scalar_lea.vmem [#allocation2], 24
      %6495 = vst.msk [vmem:[%s6494 + $0x1] sm:$0xff] %vm431, %v6303
      %6496 = vst.msk [vmem:[%s6494 + $0x9] sm:$0xff] %vm431, %v6305
      %6497 = vst.msk [vmem:[%s6494 + $0x19] sm:$0xff] %vm431, %v6307
      %6498 = vst.msk [vmem:[%s6494 + $0x21] sm:$0xff] %vm431, %v6309
      %6499 = vst.msk [vmem:[%s6494 + $0x31] sm:$0xff] %vm431, %v6311
      %6500 = vst.msk [vmem:[%s6494 + $0x39] sm:$0xff] %vm431, %v6313
      %6501 = vst.msk [vmem:[%s6494 + $0x49] sm:$0xff] %vm431, %v6315
      %6502 = vst.msk [vmem:[%s6494 + $0x51] sm:$0xff] %vm431, %v6317
      %6503 = vst.msk [vmem:[%s6494 + $0x61] sm:$0xff] %vm431, %v6319
      %6504 = vst.msk [vmem:[%s6494 + $0x69] sm:$0xff] %vm431, %v6321
      %6505 = vst.msk [vmem:[%s6494 + $0x79] sm:$0xff] %vm431, %v6323
      %6506 = vst.msk [vmem:[%s6494 + $0x81] sm:$0xff] %vm431, %v6325
      %6507 = vst.msk [vmem:[%s6494 + $0x91] sm:$0xff] %vm431, %v6327
      %6508 = vst.msk [vmem:[%s6494 + $0x99] sm:$0xff] %vm431, %v6329
      %6509 = vst.msk [vmem:[%s6494 + $0xa9] sm:$0xff] %vm431, %v6331
      %6510 = vst.msk [vmem:[%s6494 + $0xb1] sm:$0xff] %vm431, %v6333
      %6511 = vst.msk [vmem:[%s6494 + $0xc1] sm:$0xff] %vm431, %v6335
      %6512 = vst.msk [vmem:[%s6494 + $0xc9] sm:$0xff] %vm431, %v6337
      %6513 = vst.msk [vmem:[%s6494 + $0xd9] sm:$0xff] %vm431, %v6339
      %6514 = vst.msk [vmem:[%s6494 + $0xe1] sm:$0xff] %vm431, %v6341
      %6515 = vst.msk [vmem:[%s6494 + $0xf1] sm:$0xff] %vm431, %v6343
      %6516 = vst.msk [vmem:[%s6494 + $0xf9] sm:$0xff] %vm431, %v6345
      %6517 = vst.msk [vmem:[%s6494 + $0x109] sm:$0xff] %vm431, %v6347
      %6518 = vst.msk [vmem:[%s6494 + $0x111] sm:$0xff] %vm431, %v6349
      %6519 = vst.msk [vmem:[%s6494 + $0x121] sm:$0xff] %vm431, %v6351
      %6520 = vst.msk [vmem:[%s6494 + $0x129] sm:$0xff] %vm431, %v6353
      %6521 = vst.msk [vmem:[%s6494 + $0x139] sm:$0xff] %vm431, %v6355
      %6522 = vst.msk [vmem:[%s6494 + $0x141] sm:$0xff] %vm431, %v6357
      %6523 = vst.msk [vmem:[%s6494 + $0x151] sm:$0xff] %vm431, %v6359
      %6524 = vst.msk [vmem:[%s6494 + $0x159] sm:$0xff] %vm431, %v6361
      %6525 = vst.msk [vmem:[%s6494 + $0x169] sm:$0xff] %vm431, %v6363
      %6526 = vst.msk [vmem:[%s6494 + $0x171] sm:$0xff] %vm431, %v6365
      %6527 = vst.msk [vmem:[%s6494 + $0x1b1] sm:$0xff] %vm431, %v6367
      %6528 = vst.msk [vmem:[%s6494 + $0x1b9] sm:$0xff] %vm431, %v6369
      %6529 = vst.msk [vmem:[%s6494 + $0x1c9] sm:$0xff] %vm431, %v6371
      %6530 = vst.msk [vmem:[%s6494 + $0x1d1] sm:$0xff] %vm431, %v6373
      %6531 = vst.msk [vmem:[%s6494 + $0x1e1] sm:$0xff] %vm431, %v6375
      %6532 = vst.msk [vmem:[%s6494 + $0x1e9] sm:$0xff] %vm431, %v6377
      %6533 = vst.msk [vmem:[%s6494 + $0x1f9] sm:$0xff] %vm431, %v6379
      %6534 = vst.msk [vmem:[%s6494 + $0x201] sm:$0xff] %vm431, %v6381
      %6535 = vst.msk [vmem:[%s6494 + $0x211] sm:$0xff] %vm431, %v6383
      %6536 = vst.msk [vmem:[%s6494 + $0x219] sm:$0xff] %vm431, %v6385
      %6537 = vst.msk [vmem:[%s6494 + $0x229] sm:$0xff] %vm431, %v6387
      %6538 = vst.msk [vmem:[%s6494 + $0x231] sm:$0xff] %vm431, %v6389
      %6539 = vst.msk [vmem:[%s6494 + $0x241] sm:$0xff] %vm431, %v6391
      %6540 = vst.msk [vmem:[%s6494 + $0x249] sm:$0xff] %vm431, %v6393
      %6541 = vst.msk [vmem:[%s6494 + $0x259] sm:$0xff] %vm431, %v6395
      %6542 = vst.msk [vmem:[%s6494 + $0x261] sm:$0xff] %vm431, %v6397
      %6543 = vst.msk [vmem:[%s6494 + $0x271] sm:$0xff] %vm431, %v6399
      %6544 = vst.msk [vmem:[%s6494 + $0x279] sm:$0xff] %vm431, %v6401
      %6545 = vst.msk [vmem:[%s6494 + $0x289] sm:$0xff] %vm431, %v6403
      %6546 = vst.msk [vmem:[%s6494 + $0x291] sm:$0xff] %vm431, %v6405
      %6547 = vst.msk [vmem:[%s6494 + $0x2a1] sm:$0xff] %vm431, %v6407
      %6548 = vst.msk [vmem:[%s6494 + $0x2a9] sm:$0xff] %vm431, %v6409
      %6549 = vst.msk [vmem:[%s6494 + $0x2b9] sm:$0xff] %vm431, %v6411
      %6550 = vst.msk [vmem:[%s6494 + $0x2c1] sm:$0xff] %vm431, %v6413
      %6551 = vst.msk [vmem:[%s6494 + $0x2d1] sm:$0xff] %vm431, %v6415
      %6552 = vst.msk [vmem:[%s6494 + $0x2d9] sm:$0xff] %vm431, %v6417
      %6553 = vst.msk [vmem:[%s6494 + $0x2e9] sm:$0xff] %vm431, %v6419
      %6554 = vst.msk [vmem:[%s6494 + $0x2f1] sm:$0xff] %vm431, %v6421
      %6555 = vst.msk [vmem:[%s6494 + $0x301] sm:$0xff] %vm431, %v6423
      %6556 = vst.msk [vmem:[%s6494 + $0x309] sm:$0xff] %vm431, %v6425
      %6557 = vst.msk [vmem:[%s6494 + $0x319] sm:$0xff] %vm431, %v6427
      %6558 = vst.msk [vmem:[%s6494 + $0x321] sm:$0xff] %vm431, %v6429
      %6559 = vst.msk [vmem:[%s143] sm:$0xff] %vm431, %v6303
      %6560 = vst.msk [vmem:[%s143 + $0x8] sm:$0xff] %vm431, %v6305
      %6561 = vst.msk [vmem:[%s143 + $0x10] sm:$0xff] %vm431, %v6307
      %6562 = vst.msk [vmem:[%s143 + $0x18] sm:$0xff] %vm431, %v6309
      %6563 = vst.msk [vmem:[%s143 + $0x20] sm:$0xff] %vm431, %v6311
      %6564 = vst.msk [vmem:[%s143 + $0x28] sm:$0xff] %vm431, %v6313
      %6565 = vst.msk [vmem:[%s143 + $0x30] sm:$0xff] %vm431, %v6315
      %6566 = vst.msk [vmem:[%s143 + $0x38] sm:$0xff] %vm431, %v6317
      %6567 = vst.msk [vmem:[%s143 + $0x40] sm:$0xff] %vm431, %v6319
      %6568 = vst.msk [vmem:[%s143 + $0x48] sm:$0xff] %vm431, %v6321
      %6569 = vst.msk [vmem:[%s143 + $0x50] sm:$0xff] %vm431, %v6323
      %6570 = vst.msk [vmem:[%s143 + $0x58] sm:$0xff] %vm431, %v6325
      %6571 = vst.msk [vmem:[%s143 + $0x60] sm:$0xff] %vm431, %v6327
      %6572 = vst.msk [vmem:[%s143 + $0x68] sm:$0xff] %vm431, %v6329
      %6573 = vst.msk [vmem:[%s143 + $0x70] sm:$0xff] %vm431, %v6331
      %6574 = vst.msk [vmem:[%s143 + $0x78] sm:$0xff] %vm431, %v6333
      %6575 = vst.msk [vmem:[%s143 + $0x80] sm:$0xff] %vm431, %v6335
      %6576 = vst.msk [vmem:[%s143 + $0x88] sm:$0xff] %vm431, %v6337
      %6577 = vst.msk [vmem:[%s143 + $0x90] sm:$0xff] %vm431, %v6339
      %6578 = vst.msk [vmem:[%s143 + $0x98] sm:$0xff] %vm431, %v6341
      %6579 = vst.msk [vmem:[%s143 + $0xa0] sm:$0xff] %vm431, %v6343
      %6580 = vst.msk [vmem:[%s143 + $0xa8] sm:$0xff] %vm431, %v6345
      %6581 = vst.msk [vmem:[%s143 + $0xb0] sm:$0xff] %vm431, %v6347
      %6582 = vst.msk [vmem:[%s143 + $0xb8] sm:$0xff] %vm431, %v6349
      %6583 = vst.msk [vmem:[%s143 + $0xc0] sm:$0xff] %vm431, %v6351
      %6584 = vst.msk [vmem:[%s143 + $0xc8] sm:$0xff] %vm431, %v6353
      %6585 = vst.msk [vmem:[%s143 + $0xd0] sm:$0xff] %vm431, %v6355
      %6586 = vst.msk [vmem:[%s143 + $0xd8] sm:$0xff] %vm431, %v6357
      %6587 = vst.msk [vmem:[%s143 + $0xe0] sm:$0xff] %vm431, %v6359
      %6588 = vst.msk [vmem:[%s143 + $0xe8] sm:$0xff] %vm431, %v6361
      %6589 = vst.msk [vmem:[%s143 + $0xf0] sm:$0xff] %vm431, %v6363
      %6590 = vst.msk [vmem:[%s143 + $0xf8] sm:$0xff] %vm431, %v6365
      %6591 = vst.msk [vmem:[%s143 + $0x100] sm:$0xff] %vm431, %v6367
      %6592 = vst.msk [vmem:[%s143 + $0x108] sm:$0xff] %vm431, %v6369
      %6593 = vst.msk [vmem:[%s143 + $0x110] sm:$0xff] %vm431, %v6371
      %6594 = vst.msk [vmem:[%s143 + $0x118] sm:$0xff] %vm431, %v6373
      %6595 = vst.msk [vmem:[%s143 + $0x120] sm:$0xff] %vm431, %v6375
      %6596 = vst.msk [vmem:[%s143 + $0x128] sm:$0xff] %vm431, %v6377
      %6597 = vst.msk [vmem:[%s143 + $0x130] sm:$0xff] %vm431, %v6379
      %6598 = vst.msk [vmem:[%s143 + $0x138] sm:$0xff] %vm431, %v6381
      %6599 = vst.msk [vmem:[%s143 + $0x140] sm:$0xff] %vm431, %v6383
      %6600 = vst.msk [vmem:[%s143 + $0x148] sm:$0xff] %vm431, %v6385
      %6601 = vst.msk [vmem:[%s143 + $0x150] sm:$0xff] %vm431, %v6387
      %6602 = vst.msk [vmem:[%s143 + $0x158] sm:$0xff] %vm431, %v6389
      %6603 = vst.msk [vmem:[%s143 + $0x160] sm:$0xff] %vm431, %v6391
      %6604 = vst.msk [vmem:[%s143 + $0x168] sm:$0xff] %vm431, %v6393
      %6605 = vst.msk [vmem:[%s143 + $0x170] sm:$0xff] %vm431, %v6395
      %6606 = vst.msk [vmem:[%s143 + $0x178] sm:$0xff] %vm431, %v6397
      %6607 = vst.msk [vmem:[%s143 + $0x180] sm:$0xff] %vm431, %v6399
      %6608 = vst.msk [vmem:[%s143 + $0x188] sm:$0xff] %vm431, %v6401
      %6609 = vst.msk [vmem:[%s143 + $0x190] sm:$0xff] %vm431, %v6403
      %6610 = vst.msk [vmem:[%s143 + $0x198] sm:$0xff] %vm431, %v6405
      %6611 = vst.msk [vmem:[%s143 + $0x1a0] sm:$0xff] %vm431, %v6407
      %6612 = vst.msk [vmem:[%s143 + $0x1a8] sm:$0xff] %vm431, %v6409
      %6613 = vst.msk [vmem:[%s143 + $0x1b0] sm:$0xff] %vm431, %v6411
      %6614 = vst.msk [vmem:[%s143 + $0x1b8] sm:$0xff] %vm431, %v6413
      %6615 = vst.msk [vmem:[%s143 + $0x1c0] sm:$0xff] %vm431, %v6415
      %6616 = vst.msk [vmem:[%s143 + $0x1c8] sm:$0xff] %vm431, %v6417
      %6617 = vst.msk [vmem:[%s143 + $0x1d0] sm:$0xff] %vm431, %v6419
      %6618 = vst.msk [vmem:[%s143 + $0x1d8] sm:$0xff] %vm431, %v6421
      %6619 = vst.msk [vmem:[%s143 + $0x1e0] sm:$0xff] %vm431, %v6423
      %6620 = vst.msk [vmem:[%s143 + $0x1e8] sm:$0xff] %vm431, %v6425
      %6621 = vst.msk [vmem:[%s143 + $0x1f0] sm:$0xff] %vm431, %v6427
      %6622 = vst.msk [vmem:[%s143 + $0x1f8] sm:$0xff] %vm431, %v6429
      %p6623 = scmp.lt.s32.totalorder %s13, 7
      %s6624 = scalar_select %p6623, %s13, 7
      %s6625 = smul.addr %s6624, 64
      %s6626 = smul.addr %s6625, 8
      %s6627 = scalar_lea.vmem %s2, %s6626
      // Predicated region
      $region33: #{convlstm_forward.3} parent=27 // pred_check
        %p6628 = pneg %p78
      $region34: #{convlstm_forward.3} parent=27 // pred_check_branch
        %6630 = sbr.rel (%p6628) target = $region36
      $region35: #{convlstm_forward.3} parent=27 // pred_region
        _
      $region36: #{convlstm_forward.3} parent=27 // pred_fallthru
        _
    $region28: #{convlstm_forward.3} parent=5 // pred_fallthru
      _
    %p6631 = scmp.le.s32.totalorder 2, %s8
    // Predicated region
    $region37: #{convlstm_forward.3} parent=5 // pred_check
      %p6632 = pneg %p6631
    $region38: #{convlstm_forward.3} parent=5 // pred_check_branch
      %6634 = sbr.rel (%p6632) target = $region40
    $region39: #{convlstm_forward.3} parent=5 // pred_region
      %s6635 = ssub.s32 %s8, 2
      // Predicated region
      $region41: #{convlstm_forward.3} parent=39 // pred_check
        %p6636 = pneg %p84
      $region42: #{convlstm_forward.3} parent=39 // pred_check_branch
        %6638 = sbr.rel (%p6636) target = $region44
      $region43: #{convlstm_forward.3} parent=39 // pred_region
        %p6639 = scmp.lt.s32.totalorder %s14, 7
        %s6640 = scalar_select %p6639, %s14, 7
        %s6641 = smul.addr %s6640, 64
        %s6642 = smul.addr %s6641, 8
        %s6643 = scalar_lea.vmem %s2, %s6642
      $region44: #{convlstm_forward.3} parent=39 // pred_fallthru
        _
    $region40: #{convlstm_forward.3} parent=5 // pred_fallthru
      _
  $region6: #{convlstm_forward.3} parent=0 // loop_footer
    %s12 = sadd.s32 1, %s8
  $region7: #{convlstm_forward.3} parent=0 // loop_footer_branch
    %7 = sbr.rel target = $region3
  $region8: #{convlstm_forward.3} parent=0 // loop_exit
    _

</llo_original>
